<compile_context>
chip_gen: v5e
topology: v5e:2x2
jax: 0.10.0
libtpu: 0.0.40
codegen_flags: <defaults>
</compile_context>

<pallas_src>
import math

import jax
import jax.numpy as jnp
from jax.experimental import pallas as pl
from jax.experimental.pallas import tpu as pltpu


# ----------------------------------------------------------------------------
# Model config
# ----------------------------------------------------------------------------
N, W, T, DX = 2, 4, 4, 3
DZ, DC = 8, 4
H_HORIZON = 2
D_MODEL = 128
N_HEADS = 4
HEAD_DIM = D_MODEL // N_HEADS
FF_HIDDEN = int(D_MODEL * 3)
DEPTH = 2
D_OUT = DX
SEQ = W * T                       # forecaster sequence length (time_emb=False)
OUT_LEN = H_HORIZON * T
ENC_HIDDEN = 32                   # synthetic pretrained LatentEncoder hidden width
WIDE_OUT = D_OUT * OUT_LEN * 2    # 48
WIDE_PAD = 64                     # head width padded to 64 lanes (48 real)
LN_EPS = 1e-5
ATTN_SCALE = 1.0 / math.sqrt(HEAD_DIM)


# ----------------------------------------------------------------------------
# Fused forward kernel (one grid step processes `nb` batch elements)
# ----------------------------------------------------------------------------
def _make_kernel(nb):
    def kernel(x_ref, enc1_w, enc2_w, dec1_w, dec2_wt, pos_ref, misc_ref, *refs):
        blk_refs = refs[:5 * DEPTH]
        wide_wt = refs[5 * DEPTH]
        out_ref = refs[5 * DEPTH + 1]
        bf16 = jnp.bfloat16

        def bdot(a, w):
            # bf16 MXU inputs (skip cast if already bf16), f32 accumulation.
            if a.dtype != bf16:
                a = a.astype(bf16)
            if w.dtype != bf16:
                w = w.astype(bf16)
            return jnp.dot(a, w, preferred_element_type=jnp.float32)

        def vcat(parts):
            return parts[0] if len(parts) == 1 else jnp.concatenate(parts, axis=0)

        def tree_sum(parts):
            while len(parts) > 1:
                parts = [parts[i] + parts[i + 1] for i in range(0, len(parts), 2)]
            return parts[0]

        def layernorm(xv, g, b):
            mu = jnp.mean(xv, axis=-1, keepdims=True)
            xc = xv - mu
            var = jnp.mean(xc * xc, axis=-1, keepdims=True)
            return xc * jax.lax.rsqrt(var + LN_EPS) * g + b

        misc = misc_ref[...]                      # (8, 128) f32 slab of small vectors
        enc1_b = misc[0:1, :ENC_HIDDEN]
        enc2_b = misc[1:2, :DZ]
        dec1_b = misc[2:3, :]
        wide_b = misc[3:4, :WIDE_PAD]
        pos = pos_ref[...]                        # (SEQ, D) pos-enc + dec2 bias, t-major

        # ---- encode + latent decode, per batch element -> stacked (nb*SEQ, D) ----
        z_parts = []
        for b in range(nb):
            xw = x_ref[b]                                            # (W, T*DX) f32
            h = jnp.tanh(bdot(xw, enc1_w[...]) + enc1_b)             # (W, ENC_HIDDEN)
            zl = bdot(h, enc2_w[...]) + enc2_b                       # (W, DZ)
            hd = jnp.maximum(bdot(zl, dec1_w[...]) + dec1_b, 0.0)    # (W, D)
            rows = [bdot(hd, dec2_wt[t]) for t in range(T)]          # T x (W, D)
            z_parts.append(vcat(rows) + pos)                         # (SEQ, D) t-major
        z = vcat(z_parts)                                            # (nb*SEQ, D)

        # ---- transformer encoder blocks (post-norm) ------------------------------
        for d in range(DEPTH):
            qkv_w = blk_refs[5 * d + 0]
            wo_w = blk_refs[5 * d + 1]
            ff1_w = blk_refs[5 * d + 2]
            ff2_w = blk_refs[5 * d + 3]
            vec = blk_refs[5 * d + 4][...]        # (8, 3*D) f32 slab
            qkv_b = vec[0:1, :]
            ff1_b = vec[1:2, :]
            wo_b = vec[2:3, :D_MODEL]
            ln1_g = vec[3:4, :D_MODEL]
            ln1_b = vec[4:5, :D_MODEL]
            ff2_b = vec[5:6, :D_MODEL]
            ln2_g = vec[6:7, :D_MODEL]
            ln2_b = vec[7:8, :D_MODEL]

            # ATTN_SCALE is pre-folded into the Q columns of qkv_w / qkv_b.
            qkv = bdot(z, qkv_w[...]) + qkv_b                        # (nb*SEQ, 3D) f32
            qkv16 = qkv.astype(bf16)                                 # single cast
            wo_full = wo_w[...]                                      # (D, D) bf16

            attn_parts = []
            for hh in range(N_HEADS):
                lo = hh * HEAD_DIM
                head_rows = []
                for b in range(nb):
                    r0 = b * SEQ
                    q = qkv16[r0:r0 + SEQ, lo:lo + HEAD_DIM]
                    k = qkv16[r0:r0 + SEQ, D_MODEL + lo:D_MODEL + lo + HEAD_DIM]
                    v = qkv16[r0:r0 + SEQ, 2 * D_MODEL + lo:2 * D_MODEL + lo + HEAD_DIM]
                    # q @ k^T without explicit transpose (contract lane dims)
                    s = jax.lax.dot_general(
                        q, k, dimension_numbers=(((1,), (1,)), ((), ())),
                        preferred_element_type=jnp.float32)          # (SEQ, SEQ)
                    m = jnp.max(s, axis=-1, keepdims=True)
                    p = jnp.exp(s - m)
                    # EUP reciprocal is off the VALU/MXU critical path (approx ~1e-3).
                    p = p * pl.reciprocal(jnp.sum(p, axis=-1, keepdims=True),
                                          approx=True)
                    head_rows.append(bdot(p, v))                     # (SEQ, HEAD_DIM)
                head_all = vcat(head_rows)                           # (nb*SEQ, HEAD_DIM)
                # per-head accumulation through W_O slice (no 4-way lane concat)
                attn_parts.append(bdot(head_all, wo_full[lo:lo + HEAD_DIM, :]))
            attn = tree_sum(attn_parts)                              # (nb*SEQ, D)

            # residual + LayerNorm fused epilogue
            z = layernorm(z + attn + wo_b, ln1_g, ln1_b)

            # FFN fully in VMEM
            ff = jax.nn.gelu(bdot(z, ff1_w[...]) + ff1_b)            # (nb*SEQ, FF)
            ff = bdot(ff, ff2_w[...]) + ff2_b                        # (nb*SEQ, D)
            z = layernorm(z + ff, ln2_g, ln2_b)

        # ---- wide_linear head: y[b] = b + sum_s z[b*SEQ+s, :] @ W[s] -------------
        parts = []
        for s in range(SEQ):
            lhs = vcat([z[b * SEQ + s:b * SEQ + s + 1, :] for b in range(nb)])  # (nb, D)
            parts.append(bdot(lhs, wide_wt[s]))                      # (nb, WIDE_PAD)
        y = tree_sum(parts) + wide_b                                 # (nb, WIDE_PAD)
        for b in range(nb):
            out_ref[b] = y[b:b + 1, :]

    return kernel


# ----------------------------------------------------------------------------
# Deterministic parameter initialization + kernel-operand packing
# ----------------------------------------------------------------------------
def init_params(key):
    def dense(k, fan_in, fan_out):
        k1, _ = jax.random.split(k)
        w = jax.random.normal(k1, (fan_in, fan_out), jnp.float32) * 0.02
        b = jnp.zeros((fan_out,), jnp.float32)
        return {"w": w, "b": b}

    keys = jax.random.split(key, 32)
    ki = iter(keys)
    p = {}
    p["enc1"] = dense(next(ki), T * DX, ENC_HIDDEN)
    p["enc2"] = dense(next(ki), ENC_HIDDEN, DZ)
    p["dec1"] = dense(next(ki), DZ, D_MODEL)
    p["dec2"] = dense(next(ki), D_MODEL, T * D_MODEL)
    p["blocks"] = []
    for _ in range(DEPTH):
        blk = {
            "wq": dense(next(ki), D_MODEL, D_MODEL),
            "wk": dense(next(ki), D_MODEL, D_MODEL),
            "wv": dense(next(ki), D_MODEL, D_MODEL),
            "wo": dense(next(ki), D_MODEL, D_MODEL),
            "ln1_g": jnp.ones((D_MODEL,), jnp.float32),
            "ln1_b": jnp.zeros((D_MODEL,), jnp.float32),
            "ff1": dense(next(ki), D_MODEL, FF_HIDDEN),
            "ff2": dense(next(ki), FF_HIDDEN, D_MODEL),
            "ln2_g": jnp.ones((D_MODEL,), jnp.float32),
            "ln2_b": jnp.zeros((D_MODEL,), jnp.float32),
        }
        p["blocks"].append(blk)
    p["wide"] = dense(next(ki), D_MODEL * SEQ, WIDE_OUT)
    return p


def sincos_pos_encoding(seq_len, d_model):
    pos = jnp.arange(seq_len, dtype=jnp.float32)[:, None]
    div = jnp.exp(jnp.arange(0, d_model, 2, dtype=jnp.float32)
                  * (-math.log(10000.0) / d_model))
    pe = jnp.zeros((seq_len, d_model), jnp.float32)
    pe = pe.at[:, 0::2].set(jnp.sin(pos * div))
    pe = pe.at[:, 1::2].set(jnp.cos(pos * div))
    return pe


def pack_params(p):
    """Pre-fuse / pre-permute / pre-cast parameters into coalesced kernel operands."""
    bf16 = jnp.bfloat16
    # permutation: kernel row j (= t*W + w) <- reference row s (= w*T + t)
    perm = jnp.array([(j % W) * T + (j // W) for j in range(SEQ)], jnp.int32)

    # small-vector slab (enc/dec biases + wide bias)
    misc = jnp.zeros((8, 128), jnp.float32)
    misc = misc.at[0, :ENC_HIDDEN].set(p["enc1"]["b"])
    misc = misc.at[1, :DZ].set(p["enc2"]["b"])
    misc = misc.at[2, :D_MODEL].set(p["dec1"]["b"])
    misc = misc.at[3, :WIDE_OUT].set(p["wide"]["b"])

    # dec2: (d_model, T*d_model) -> (T, d_model, d_model), bf16
    dec2_wt = (p["dec2"]["w"].reshape(D_MODEL, T, D_MODEL)
               .transpose(1, 0, 2).astype(bf16))
    # positional encoding (permuted) with the dec2 bias folded in
    pos = sincos_pos_encoding(SEQ, D_MODEL)[perm]
    dec2_b_rows = jnp.repeat(p["dec2"]["b"].reshape(T, D_MODEL), W, axis=0)

    ops = [
        p["enc1"]["w"].astype(bf16),
        p["enc2"]["w"].astype(bf16),
        p["dec1"]["w"].astype(bf16),
        dec2_wt,
        pos + dec2_b_rows,                        # (SEQ, D) f32
        misc,
    ]

    for blk in p["blocks"]:
        # fold attention scale into the Q columns
        qkv_w = jnp.concatenate(
            [blk["wq"]["w"] * ATTN_SCALE, blk["wk"]["w"], blk["wv"]["w"]], axis=1)
        qkv_b = jnp.concatenate(
            [blk["wq"]["b"] * ATTN_SCALE, blk["wk"]["b"], blk["wv"]["b"]], axis=0)
        vec = jnp.zeros((8, 3 * D_MODEL), jnp.float32)
        vec = vec.at[0, :].set(qkv_b)
        vec = vec.at[1, :].set(blk["ff1"]["b"])
        vec = vec.at[2, :D_MODEL].set(blk["wo"]["b"])
        vec = vec.at[3, :D_MODEL].set(blk["ln1_g"])
        vec = vec.at[4, :D_MODEL].set(blk["ln1_b"])
        vec = vec.at[5, :D_MODEL].set(blk["ff2"]["b"])
        vec = vec.at[6, :D_MODEL].set(blk["ln2_g"])
        vec = vec.at[7, :D_MODEL].set(blk["ln2_b"])
        ops += [
            qkv_w.astype(bf16),
            blk["wo"]["w"].astype(bf16),
            blk["ff1"]["w"].astype(bf16),
            blk["ff2"]["w"].astype(bf16),
            vec,
        ]

    # wide head: pad 48 -> 64 lanes only, reshape to (SEQ, d_model, 64), permute s
    w_pad = jnp.zeros((SEQ * D_MODEL, WIDE_PAD), jnp.float32)
    w_pad = w_pad.at[:, :WIDE_OUT].set(p["wide"]["w"])
    wide_wt = w_pad.reshape(SEQ, D_MODEL, WIDE_PAD)[perm].astype(bf16)
    ops.append(wide_wt)
    return ops


# ----------------------------------------------------------------------------
# Forward pass (mirrors DataTrajectory.forward with time_emb=False, code=False)
# ----------------------------------------------------------------------------
def _const_spec(arr):
    rank = arr.ndim
    return pl.BlockSpec(arr.shape, lambda b, _r=rank: (0,) * _r)


def _batch_block(n):
    """v7x (2 TensorCores/chip): 1 example per grid step so the parallel grid
    uses both cores.  Single-TC v5e/v6e: whole batch in one grid step."""
    try:
        kind = jax.devices()[0].device_kind.lower()
    except Exception:
        kind = ""
    if "v7" in kind or "7x" in kind:
        return 1
    return n


def data_trajectory_forward(packed, x):
    """x: (N, W, T, dx) float32 -> (mu, log_var) each (N, H*T, d_out)."""
    n = x.shape[0]
    xf = x.reshape(n, W, T * DX).astype(jnp.float32)
    nb = _batch_block(n)

    in_specs = [pl.BlockSpec((nb, W, T * DX), lambda b: (b, 0, 0))]
    in_specs += [_const_spec(op) for op in packed]
    out_spec = pl.BlockSpec((nb, 1, WIDE_PAD), lambda b: (b, 0, 0))

    y = pl.pallas_call(
        _make_kernel(nb),
        out_shape=jax.ShapeDtypeStruct((n, 1, WIDE_PAD), jnp.float32),
        grid=(n // nb,),
        in_specs=in_specs,
        out_specs=out_spec,
        compiler_params=pltpu.CompilerParams(dimension_semantics=("parallel",)),
    )(xf, *packed)

    y = y[:, 0, :WIDE_OUT]                           # strip lane padding
    mu, log_var = jnp.split(y, 2, axis=-1)           # torch.chunk(..., 2, dim=-1)
    mu = mu.reshape(n, OUT_LEN, D_OUT)
    log_var = log_var.reshape(n, OUT_LEN, D_OUT)
    return mu, log_var


# ----------------------------------------------------------------------------
if __name__ == "__main__":
    key = jax.random.PRNGKey(0)
    k_params, k_x = jax.random.split(key)
    params = init_params(k_params)
    packed = pack_params(params)
    x = jax.random.normal(k_x, (N, W, T, DX), jnp.float32)

    fwd = jax.jit(data_trajectory_forward)
    mu, log_var = fwd(packed, x)
    jax.block_until_ready((mu, log_var))

    assert mu.shape == (N, H_HORIZON * T, D_OUT)
    assert log_var.shape == (N, H_HORIZON * T, D_OUT)
    assert bool(jnp.all(jnp.isfinite(mu))) and bool(jnp.all(jnp.isfinite(log_var)))
    print("KERNEL_OK")
</pallas_src>

<mosaic_0001>
module attributes {stable_mosaic.version = 11 : i64} {
  func.func @kernel(%arg0: i32, %arg1: memref<2x4x12xf32, #tpu.memory_space<vmem>>, %arg2: memref<12x32xbf16, #tpu.memory_space<vmem>>, %arg3: memref<32x8xbf16, #tpu.memory_space<vmem>>, %arg4: memref<8x128xbf16, #tpu.memory_space<vmem>>, %arg5: memref<4x128x128xbf16, #tpu.memory_space<vmem>>, %arg6: memref<16x128xf32, #tpu.memory_space<vmem>>, %arg7: memref<8x128xf32, #tpu.memory_space<vmem>>, %arg8: memref<128x384xbf16, #tpu.memory_space<vmem>>, %arg9: memref<128x128xbf16, #tpu.memory_space<vmem>>, %arg10: memref<128x384xbf16, #tpu.memory_space<vmem>>, %arg11: memref<384x128xbf16, #tpu.memory_space<vmem>>, %arg12: memref<8x384xf32, #tpu.memory_space<vmem>>, %arg13: memref<128x384xbf16, #tpu.memory_space<vmem>>, %arg14: memref<128x128xbf16, #tpu.memory_space<vmem>>, %arg15: memref<128x384xbf16, #tpu.memory_space<vmem>>, %arg16: memref<384x128xbf16, #tpu.memory_space<vmem>>, %arg17: memref<8x384xf32, #tpu.memory_space<vmem>>, %arg18: memref<16x128x64xbf16, #tpu.memory_space<vmem>>, %arg19: memref<2x1x64xf32, #tpu.memory_space<vmem>>) attributes {dimension_semantics = [#tpu.dimension_semantics<parallel>], iteration_bounds = array<i64: 1>, scalar_prefetch = 0 : i64, scratch_operands = 0 : i64, tpu.core_type = #tpu.core_type<tc>, window_params = [{transform_indices = @transform_0, window_bounds = array<i64: 2, 4, 12>}, {pipeline_mode = #tpu.pipeline_mode<synchronous>, transform_indices = @transform_1, window_bounds = array<i64: 12, 32>}, {pipeline_mode = #tpu.pipeline_mode<synchronous>, transform_indices = @transform_2, window_bounds = array<i64: 32, 8>}, {pipeline_mode = #tpu.pipeline_mode<synchronous>, transform_indices = @transform_3, window_bounds = array<i64: 8, 128>}, {pipeline_mode = #tpu.pipeline_mode<synchronous>, transform_indices = @transform_4, window_bounds = array<i64: 4, 128, 128>}, {pipeline_mode = #tpu.pipeline_mode<synchronous>, transform_indices = @transform_5, window_bounds = array<i64: 16, 128>}, {pipeline_mode = #tpu.pipeline_mode<synchronous>, transform_indices = @transform_6, window_bounds = array<i64: 8, 128>}, {pipeline_mode = #tpu.pipeline_mode<synchronous>, transform_indices = @transform_7, window_bounds = array<i64: 128, 384>}, {pipeline_mode = #tpu.pipeline_mode<synchronous>, transform_indices = @transform_8, window_bounds = array<i64: 128, 128>}, {pipeline_mode = #tpu.pipeline_mode<synchronous>, transform_indices = @transform_9, window_bounds = array<i64: 128, 384>}, {pipeline_mode = #tpu.pipeline_mode<synchronous>, transform_indices = @transform_10, window_bounds = array<i64: 384, 128>}, {pipeline_mode = #tpu.pipeline_mode<synchronous>, transform_indices = @transform_11, window_bounds = array<i64: 8, 384>}, {pipeline_mode = #tpu.pipeline_mode<synchronous>, transform_indices = @transform_12, window_bounds = array<i64: 128, 384>}, {pipeline_mode = #tpu.pipeline_mode<synchronous>, transform_indices = @transform_13, window_bounds = array<i64: 128, 128>}, {pipeline_mode = #tpu.pipeline_mode<synchronous>, transform_indices = @transform_14, window_bounds = array<i64: 128, 384>}, {pipeline_mode = #tpu.pipeline_mode<synchronous>, transform_indices = @transform_15, window_bounds = array<i64: 384, 128>}, {pipeline_mode = #tpu.pipeline_mode<synchronous>, transform_indices = @transform_16, window_bounds = array<i64: 8, 384>}, {pipeline_mode = #tpu.pipeline_mode<synchronous>, transform_indices = @transform_17, window_bounds = array<i64: 16, 128, 64>}, {transform_indices = @transform_18, window_bounds = array<i64: 2, 1, 64>}]} {
    %c0 = arith.constant 0 : index
    %c0_0 = arith.constant 0 : index
    %0 = vector.load %arg7[%c0, %c0_0] : memref<8x128xf32, #tpu.memory_space<vmem>>, vector<8x128xf32>
    %1 = vector.extract_strided_slice %0 {offsets = [0, 0], sizes = [1, 32], strides = [1, 1]} : vector<8x128xf32> to vector<1x32xf32>
    %2 = vector.extract_strided_slice %0 {offsets = [1, 0], sizes = [1, 8], strides = [1, 1]} : vector<8x128xf32> to vector<1x8xf32>
    %3 = vector.extract_strided_slice %0 {offsets = [2, 0], sizes = [1, 128], strides = [1, 1]} : vector<8x128xf32> to vector<1x128xf32>
    %4 = vector.extract_strided_slice %0 {offsets = [3, 0], sizes = [1, 64], strides = [1, 1]} : vector<8x128xf32> to vector<1x64xf32>
    %c0_1 = arith.constant 0 : index
    %c0_2 = arith.constant 0 : index
    %5 = vector.load %arg6[%c0_1, %c0_2] : memref<16x128xf32, #tpu.memory_space<vmem>>, vector<16x128xf32>
    %c0_3 = arith.constant 0 : index
    %c0_4 = arith.constant 0 : index
    %c0_5 = arith.constant 0 : index
    %6 = vector.load %arg1[%c0_3, %c0_4, %c0_5] : memref<2x4x12xf32, #tpu.memory_space<vmem>>, vector<1x4x12xf32>
    %7 = vector.shape_cast %6 : vector<1x4x12xf32> to vector<4x12xf32>
    %c0_6 = arith.constant 0 : index
    %c0_7 = arith.constant 0 : index
    %8 = vector.load %arg2[%c0_6, %c0_7] : memref<12x32xbf16, #tpu.memory_space<vmem>>, vector<12x32xbf16>
    %9 = arith.truncf %7 : vector<4x12xf32> to vector<4x12xbf16>
    %cst = arith.constant dense<0.000000e+00> : vector<4x32xf32>
    %10 = tpu.matmul %9, %8, %cst {dimension_numbers = #tpu.dot_dimension_numbers<[1], [0], [0], [1], [0, 0, 1, 1], [], []>} : vector<4x12xbf16>, vector<12x32xbf16>, vector<4x32xf32> -> vector<4x32xf32>
    %11 = vector.broadcast %1 : vector<1x32xf32> to vector<4x32xf32>
    %12 = arith.addf %10, %11 : vector<4x32xf32>
    %13 = math.tanh %12 : vector<4x32xf32>
    %c0_8 = arith.constant 0 : index
    %c0_9 = arith.constant 0 : index
    %14 = vector.load %arg3[%c0_8, %c0_9] : memref<32x8xbf16, #tpu.memory_space<vmem>>, vector<32x8xbf16>
    %15 = arith.truncf %13 : vector<4x32xf32> to vector<4x32xbf16>
    %cst_10 = arith.constant dense<0.000000e+00> : vector<4x8xf32>
    %16 = tpu.matmul %15, %14, %cst_10 {dimension_numbers = #tpu.dot_dimension_numbers<[1], [0], [0], [1], [0, 0, 1, 1], [], []>} : vector<4x32xbf16>, vector<32x8xbf16>, vector<4x8xf32> -> vector<4x8xf32>
    %17 = vector.broadcast %2 : vector<1x8xf32> to vector<4x8xf32>
    %18 = arith.addf %16, %17 : vector<4x8xf32>
    %c0_11 = arith.constant 0 : index
    %c0_12 = arith.constant 0 : index
    %19 = vector.load %arg4[%c0_11, %c0_12] : memref<8x128xbf16, #tpu.memory_space<vmem>>, vector<8x128xbf16>
    %20 = arith.truncf %18 : vector<4x8xf32> to vector<4x8xbf16>
    %cst_13 = arith.constant dense<0.000000e+00> : vector<4x128xf32>
    %21 = tpu.matmul %20, %19, %cst_13 {dimension_numbers = #tpu.dot_dimension_numbers<[1], [0], [0], [1], [0, 0, 1, 1], [], []>} : vector<4x8xbf16>, vector<8x128xbf16>, vector<4x128xf32> -> vector<4x128xf32>
    %22 = vector.broadcast %3 : vector<1x128xf32> to vector<4x128xf32>
    %23 = arith.addf %21, %22 : vector<4x128xf32>
    %cst_14 = arith.constant 0.000000e+00 : f32
    %24 = vector.broadcast %cst_14 : f32 to vector<4x128xf32>
    %25 = arith.maximumf %23, %24 : vector<4x128xf32>
    %c0_15 = arith.constant 0 : index
    %c0_16 = arith.constant 0 : index
    %c0_17 = arith.constant 0 : index
    %26 = vector.load %arg5[%c0_15, %c0_16, %c0_17] : memref<4x128x128xbf16, #tpu.memory_space<vmem>>, vector<1x128x128xbf16>
    %27 = vector.shape_cast %26 : vector<1x128x128xbf16> to vector<128x128xbf16>
    %28 = arith.truncf %25 : vector<4x128xf32> to vector<4x128xbf16>
    %cst_18 = arith.constant dense<0.000000e+00> : vector<4x128xf32>
    %29 = tpu.matmul %28, %27, %cst_18 {dimension_numbers = #tpu.dot_dimension_numbers<[1], [0], [0], [1], [0, 0, 1, 1], [], []>} : vector<4x128xbf16>, vector<128x128xbf16>, vector<4x128xf32> -> vector<4x128xf32>
    %c1 = arith.constant 1 : index
    %c0_19 = arith.constant 0 : index
    %c0_20 = arith.constant 0 : index
    %30 = vector.load %arg5[%c1, %c0_19, %c0_20] : memref<4x128x128xbf16, #tpu.memory_space<vmem>>, vector<1x128x128xbf16>
    %31 = vector.shape_cast %30 : vector<1x128x128xbf16> to vector<128x128xbf16>
    %32 = arith.truncf %25 : vector<4x128xf32> to vector<4x128xbf16>
    %cst_21 = arith.constant dense<0.000000e+00> : vector<4x128xf32>
    %33 = tpu.matmul %32, %31, %cst_21 {dimension_numbers = #tpu.dot_dimension_numbers<[1], [0], [0], [1], [0, 0, 1, 1], [], []>} : vector<4x128xbf16>, vector<128x128xbf16>, vector<4x128xf32> -> vector<4x128xf32>
    %c2 = arith.constant 2 : index
    %c0_22 = arith.constant 0 : index
    %c0_23 = arith.constant 0 : index
    %34 = vector.load %arg5[%c2, %c0_22, %c0_23] : memref<4x128x128xbf16, #tpu.memory_space<vmem>>, vector<1x128x128xbf16>
    %35 = vector.shape_cast %34 : vector<1x128x128xbf16> to vector<128x128xbf16>
    %36 = arith.truncf %25 : vector<4x128xf32> to vector<4x128xbf16>
    %cst_24 = arith.constant dense<0.000000e+00> : vector<4x128xf32>
    %37 = tpu.matmul %36, %35, %cst_24 {dimension_numbers = #tpu.dot_dimension_numbers<[1], [0], [0], [1], [0, 0, 1, 1], [], []>} : vector<4x128xbf16>, vector<128x128xbf16>, vector<4x128xf32> -> vector<4x128xf32>
    %c3 = arith.constant 3 : index
    %c0_25 = arith.constant 0 : index
    %c0_26 = arith.constant 0 : index
    %38 = vector.load %arg5[%c3, %c0_25, %c0_26] : memref<4x128x128xbf16, #tpu.memory_space<vmem>>, vector<1x128x128xbf16>
    %39 = vector.shape_cast %38 : vector<1x128x128xbf16> to vector<128x128xbf16>
    %40 = arith.truncf %25 : vector<4x128xf32> to vector<4x128xbf16>
    %cst_27 = arith.constant dense<0.000000e+00> : vector<4x128xf32>
    %41 = tpu.matmul %40, %39, %cst_27 {dimension_numbers = #tpu.dot_dimension_numbers<[1], [0], [0], [1], [0, 0, 1, 1], [], []>} : vector<4x128xbf16>, vector<128x128xbf16>, vector<4x128xf32> -> vector<4x128xf32>
    %42 = tpu.concatenate %29, %33, %37, %41 in 0 : vector<4x128xf32>, vector<4x128xf32>, vector<4x128xf32>, vector<4x128xf32> -> vector<16x128xf32>
    %43 = arith.addf %42, %5 : vector<16x128xf32>
    %c1_28 = arith.constant 1 : index
    %c0_29 = arith.constant 0 : index
    %c0_30 = arith.constant 0 : index
    %44 = vector.load %arg1[%c1_28, %c0_29, %c0_30] : memref<2x4x12xf32, #tpu.memory_space<vmem>>, vector<1x4x12xf32>
    %45 = vector.shape_cast %44 : vector<1x4x12xf32> to vector<4x12xf32>
    %c0_31 = arith.constant 0 : index
    %c0_32 = arith.constant 0 : index
    %46 = vector.load %arg2[%c0_31, %c0_32] : memref<12x32xbf16, #tpu.memory_space<vmem>>, vector<12x32xbf16>
    %47 = arith.truncf %45 : vector<4x12xf32> to vector<4x12xbf16>
    %cst_33 = arith.constant dense<0.000000e+00> : vector<4x32xf32>
    %48 = tpu.matmul %47, %46, %cst_33 {dimension_numbers = #tpu.dot_dimension_numbers<[1], [0], [0], [1], [0, 0, 1, 1], [], []>} : vector<4x12xbf16>, vector<12x32xbf16>, vector<4x32xf32> -> vector<4x32xf32>
    %49 = vector.broadcast %1 : vector<1x32xf32> to vector<4x32xf32>
    %50 = arith.addf %48, %49 : vector<4x32xf32>
    %51 = math.tanh %50 : vector<4x32xf32>
    %c0_34 = arith.constant 0 : index
    %c0_35 = arith.constant 0 : index
    %52 = vector.load %arg3[%c0_34, %c0_35] : memref<32x8xbf16, #tpu.memory_space<vmem>>, vector<32x8xbf16>
    %53 = arith.truncf %51 : vector<4x32xf32> to vector<4x32xbf16>
    %cst_36 = arith.constant dense<0.000000e+00> : vector<4x8xf32>
    %54 = tpu.matmul %53, %52, %cst_36 {dimension_numbers = #tpu.dot_dimension_numbers<[1], [0], [0], [1], [0, 0, 1, 1], [], []>} : vector<4x32xbf16>, vector<32x8xbf16>, vector<4x8xf32> -> vector<4x8xf32>
    %55 = vector.broadcast %2 : vector<1x8xf32> to vector<4x8xf32>
    %56 = arith.addf %54, %55 : vector<4x8xf32>
    %c0_37 = arith.constant 0 : index
    %c0_38 = arith.constant 0 : index
    %57 = vector.load %arg4[%c0_37, %c0_38] : memref<8x128xbf16, #tpu.memory_space<vmem>>, vector<8x128xbf16>
    %58 = arith.truncf %56 : vector<4x8xf32> to vector<4x8xbf16>
    %cst_39 = arith.constant dense<0.000000e+00> : vector<4x128xf32>
    %59 = tpu.matmul %58, %57, %cst_39 {dimension_numbers = #tpu.dot_dimension_numbers<[1], [0], [0], [1], [0, 0, 1, 1], [], []>} : vector<4x8xbf16>, vector<8x128xbf16>, vector<4x128xf32> -> vector<4x128xf32>
    %60 = vector.broadcast %3 : vector<1x128xf32> to vector<4x128xf32>
    %61 = arith.addf %59, %60 : vector<4x128xf32>
    %cst_40 = arith.constant 0.000000e+00 : f32
    %62 = vector.broadcast %cst_40 : f32 to vector<4x128xf32>
    %63 = arith.maximumf %61, %62 : vector<4x128xf32>
    %c0_41 = arith.constant 0 : index
    %c0_42 = arith.constant 0 : index
    %c0_43 = arith.constant 0 : index
    %64 = vector.load %arg5[%c0_41, %c0_42, %c0_43] : memref<4x128x128xbf16, #tpu.memory_space<vmem>>, vector<1x128x128xbf16>
    %65 = vector.shape_cast %64 : vector<1x128x128xbf16> to vector<128x128xbf16>
    %66 = arith.truncf %63 : vector<4x128xf32> to vector<4x128xbf16>
    %cst_44 = arith.constant dense<0.000000e+00> : vector<4x128xf32>
    %67 = tpu.matmul %66, %65, %cst_44 {dimension_numbers = #tpu.dot_dimension_numbers<[1], [0], [0], [1], [0, 0, 1, 1], [], []>} : vector<4x128xbf16>, vector<128x128xbf16>, vector<4x128xf32> -> vector<4x128xf32>
    %c1_45 = arith.constant 1 : index
    %c0_46 = arith.constant 0 : index
    %c0_47 = arith.constant 0 : index
    %68 = vector.load %arg5[%c1_45, %c0_46, %c0_47] : memref<4x128x128xbf16, #tpu.memory_space<vmem>>, vector<1x128x128xbf16>
    %69 = vector.shape_cast %68 : vector<1x128x128xbf16> to vector<128x128xbf16>
    %70 = arith.truncf %63 : vector<4x128xf32> to vector<4x128xbf16>
    %cst_48 = arith.constant dense<0.000000e+00> : vector<4x128xf32>
    %71 = tpu.matmul %70, %69, %cst_48 {dimension_numbers = #tpu.dot_dimension_numbers<[1], [0], [0], [1], [0, 0, 1, 1], [], []>} : vector<4x128xbf16>, vector<128x128xbf16>, vector<4x128xf32> -> vector<4x128xf32>
    %c2_49 = arith.constant 2 : index
    %c0_50 = arith.constant 0 : index
    %c0_51 = arith.constant 0 : index
    %72 = vector.load %arg5[%c2_49, %c0_50, %c0_51] : memref<4x128x128xbf16, #tpu.memory_space<vmem>>, vector<1x128x128xbf16>
    %73 = vector.shape_cast %72 : vector<1x128x128xbf16> to vector<128x128xbf16>
    %74 = arith.truncf %63 : vector<4x128xf32> to vector<4x128xbf16>
    %cst_52 = arith.constant dense<0.000000e+00> : vector<4x128xf32>
    %75 = tpu.matmul %74, %73, %cst_52 {dimension_numbers = #tpu.dot_dimension_numbers<[1], [0], [0], [1], [0, 0, 1, 1], [], []>} : vector<4x128xbf16>, vector<128x128xbf16>, vector<4x128xf32> -> vector<4x128xf32>
    %c3_53 = arith.constant 3 : index
    %c0_54 = arith.constant 0 : index
    %c0_55 = arith.constant 0 : index
    %76 = vector.load %arg5[%c3_53, %c0_54, %c0_55] : memref<4x128x128xbf16, #tpu.memory_space<vmem>>, vector<1x128x128xbf16>
    %77 = vector.shape_cast %76 : vector<1x128x128xbf16> to vector<128x128xbf16>
    %78 = arith.truncf %63 : vector<4x128xf32> to vector<4x128xbf16>
    %cst_56 = arith.constant dense<0.000000e+00> : vector<4x128xf32>
    %79 = tpu.matmul %78, %77, %cst_56 {dimension_numbers = #tpu.dot_dimension_numbers<[1], [0], [0], [1], [0, 0, 1, 1], [], []>} : vector<4x128xbf16>, vector<128x128xbf16>, vector<4x128xf32> -> vector<4x128xf32>
    %80 = tpu.concatenate %67, %71, %75, %79 in 0 : vector<4x128xf32>, vector<4x128xf32>, vector<4x128xf32>, vector<4x128xf32> -> vector<16x128xf32>
    %81 = arith.addf %80, %5 : vector<16x128xf32>
    %82 = tpu.concatenate %43, %81 in 0 : vector<16x128xf32>, vector<16x128xf32> -> vector<32x128xf32>
    %c0_57 = arith.constant 0 : index
    %c0_58 = arith.constant 0 : index
    %83 = vector.load %arg12[%c0_57, %c0_58] : memref<8x384xf32, #tpu.memory_space<vmem>>, vector<8x384xf32>
    %84 = vector.extract_strided_slice %83 {offsets = [0, 0], sizes = [1, 384], strides = [1, 1]} : vector<8x384xf32> to vector<1x384xf32>
    %85 = vector.extract_strided_slice %83 {offsets = [1, 0], sizes = [1, 384], strides = [1, 1]} : vector<8x384xf32> to vector<1x384xf32>
    %86 = vector.extract_strided_slice %83 {offsets = [2, 0], sizes = [1, 128], strides = [1, 1]} : vector<8x384xf32> to vector<1x128xf32>
    %87 = vector.extract_strided_slice %83 {offsets = [3, 0], sizes = [1, 128], strides = [1, 1]} : vector<8x384xf32> to vector<1x128xf32>
    %88 = vector.extract_strided_slice %83 {offsets = [4, 0], sizes = [1, 128], strides = [1, 1]} : vector<8x384xf32> to vector<1x128xf32>
    %89 = vector.extract_strided_slice %83 {offsets = [5, 0], sizes = [1, 128], strides = [1, 1]} : vector<8x384xf32> to vector<1x128xf32>
    %90 = vector.extract_strided_slice %83 {offsets = [6, 0], sizes = [1, 128], strides = [1, 1]} : vector<8x384xf32> to vector<1x128xf32>
    %91 = vector.extract_strided_slice %83 {offsets = [7, 0], sizes = [1, 128], strides = [1, 1]} : vector<8x384xf32> to vector<1x128xf32>
    %c0_59 = arith.constant 0 : index
    %c0_60 = arith.constant 0 : index
    %92 = vector.load %arg8[%c0_59, %c0_60] : memref<128x384xbf16, #tpu.memory_space<vmem>>, vector<128x384xbf16>
    %93 = arith.truncf %82 : vector<32x128xf32> to vector<32x128xbf16>
    %cst_61 = arith.constant dense<0.000000e+00> : vector<32x384xf32>
    %94 = tpu.matmul %93, %92, %cst_61 {dimension_numbers = #tpu.dot_dimension_numbers<[1], [0], [0], [1], [0, 0, 1, 1], [], []>} : vector<32x128xbf16>, vector<128x384xbf16>, vector<32x384xf32> -> vector<32x384xf32>
    %95 = vector.broadcast %84 : vector<1x384xf32> to vector<32x384xf32>
    %96 = arith.addf %94, %95 : vector<32x384xf32>
    %97 = arith.truncf %96 : vector<32x384xf32> to vector<32x384xbf16>
    %c0_62 = arith.constant 0 : index
    %c0_63 = arith.constant 0 : index
    %98 = vector.load %arg9[%c0_62, %c0_63] : memref<128x128xbf16, #tpu.memory_space<vmem>>, vector<128x128xbf16>
    %99 = vector.extract_strided_slice %97 {offsets = [0, 0], sizes = [16, 32], strides = [1, 1]} : vector<32x384xbf16> to vector<16x32xbf16>
    %100 = vector.extract_strided_slice %97 {offsets = [0, 128], sizes = [16, 32], strides = [1, 1]} : vector<32x384xbf16> to vector<16x32xbf16>
    %101 = vector.extract_strided_slice %97 {offsets = [0, 256], sizes = [16, 32], strides = [1, 1]} : vector<32x384xbf16> to vector<16x32xbf16>
    %cst_64 = arith.constant dense<0.000000e+00> : vector<16x16xf32>
    %102 = tpu.matmul %99, %100, %cst_64 {dimension_numbers = #tpu.dot_dimension_numbers<[1], [1], [0], [0], [0, 0, 1, 0], [], []>} : vector<16x32xbf16>, vector<16x32xbf16>, vector<16x16xf32> -> vector<16x16xf32>
    %cst_65 = arith.constant dense<0xFF800000> : vector<16xf32>
    %103 = vector.multi_reduction <maximumf>, %102, %cst_65 [1] : vector<16x16xf32> to vector<16xf32>
    %104 = vector.shape_cast %103 : vector<16xf32> to vector<16x1xf32>
    %105 = vector.broadcast %104 : vector<16x1xf32> to vector<16x16xf32>
    %106 = arith.subf %102, %105 : vector<16x16xf32>
    %107 = math.exp %106 : vector<16x16xf32>
    %cst_66 = arith.constant dense<0.000000e+00> : vector<16xf32>
    %108 = vector.multi_reduction <add>, %107, %cst_66 [1] : vector<16x16xf32> to vector<16xf32>
    %109 = vector.shape_cast %108 : vector<16xf32> to vector<16x1xf32>
    %110 = tpu.reciprocal %109 {approx = true} : vector<16x1xf32> -> vector<16x1xf32>
    %111 = vector.broadcast %110 : vector<16x1xf32> to vector<16x16xf32>
    %112 = arith.mulf %107, %111 : vector<16x16xf32>
    %113 = arith.truncf %112 : vector<16x16xf32> to vector<16x16xbf16>
    %cst_67 = arith.constant dense<0.000000e+00> : vector<16x32xf32>
    %114 = tpu.matmul %113, %101, %cst_67 {dimension_numbers = #tpu.dot_dimension_numbers<[1], [0], [0], [1], [0, 0, 1, 1], [], []>} : vector<16x16xbf16>, vector<16x32xbf16>, vector<16x32xf32> -> vector<16x32xf32>
    %115 = vector.extract_strided_slice %97 {offsets = [16, 0], sizes = [16, 32], strides = [1, 1]} : vector<32x384xbf16> to vector<16x32xbf16>
    %116 = vector.extract_strided_slice %97 {offsets = [16, 128], sizes = [16, 32], strides = [1, 1]} : vector<32x384xbf16> to vector<16x32xbf16>
    %117 = vector.extract_strided_slice %97 {offsets = [16, 256], sizes = [16, 32], strides = [1, 1]} : vector<32x384xbf16> to vector<16x32xbf16>
    %cst_68 = arith.constant dense<0.000000e+00> : vector<16x16xf32>
    %118 = tpu.matmul %115, %116, %cst_68 {dimension_numbers = #tpu.dot_dimension_numbers<[1], [1], [0], [0], [0, 0, 1, 0], [], []>} : vector<16x32xbf16>, vector<16x32xbf16>, vector<16x16xf32> -> vector<16x16xf32>
    %cst_69 = arith.constant dense<0xFF800000> : vector<16xf32>
    %119 = vector.multi_reduction <maximumf>, %118, %cst_69 [1] : vector<16x16xf32> to vector<16xf32>
    %120 = vector.shape_cast %119 : vector<16xf32> to vector<16x1xf32>
    %121 = vector.broadcast %120 : vector<16x1xf32> to vector<16x16xf32>
    %122 = arith.subf %118, %121 : vector<16x16xf32>
    %123 = math.exp %122 : vector<16x16xf32>
    %cst_70 = arith.constant dense<0.000000e+00> : vector<16xf32>
    %124 = vector.multi_reduction <add>, %123, %cst_70 [1] : vector<16x16xf32> to vector<16xf32>
    %125 = vector.shape_cast %124 : vector<16xf32> to vector<16x1xf32>
    %126 = tpu.reciprocal %125 {approx = true} : vector<16x1xf32> -> vector<16x1xf32>
    %127 = vector.broadcast %126 : vector<16x1xf32> to vector<16x16xf32>
    %128 = arith.mulf %123, %127 : vector<16x16xf32>
    %129 = arith.truncf %128 : vector<16x16xf32> to vector<16x16xbf16>
    %cst_71 = arith.constant dense<0.000000e+00> : vector<16x32xf32>
    %130 = tpu.matmul %129, %117, %cst_71 {dimension_numbers = #tpu.dot_dimension_numbers<[1], [0], [0], [1], [0, 0, 1, 1], [], []>} : vector<16x16xbf16>, vector<16x32xbf16>, vector<16x32xf32> -> vector<16x32xf32>
    %131 = tpu.concatenate %114, %130 in 0 : vector<16x32xf32>, vector<16x32xf32> -> vector<32x32xf32>
    %132 = vector.extract_strided_slice %98 {offsets = [0, 0], sizes = [32, 128], strides = [1, 1]} : vector<128x128xbf16> to vector<32x128xbf16>
    %133 = arith.truncf %131 : vector<32x32xf32> to vector<32x32xbf16>
    %cst_72 = arith.constant dense<0.000000e+00> : vector<32x128xf32>
    %134 = tpu.matmul %133, %132, %cst_72 {dimension_numbers = #tpu.dot_dimension_numbers<[1], [0], [0], [1], [0, 0, 1, 1], [], []>} : vector<32x32xbf16>, vector<32x128xbf16>, vector<32x128xf32> -> vector<32x128xf32>
    %135 = vector.extract_strided_slice %97 {offsets = [0, 32], sizes = [16, 32], strides = [1, 1]} : vector<32x384xbf16> to vector<16x32xbf16>
    %136 = vector.extract_strided_slice %97 {offsets = [0, 160], sizes = [16, 32], strides = [1, 1]} : vector<32x384xbf16> to vector<16x32xbf16>
    %137 = vector.extract_strided_slice %97 {offsets = [0, 288], sizes = [16, 32], strides = [1, 1]} : vector<32x384xbf16> to vector<16x32xbf16>
    %cst_73 = arith.constant dense<0.000000e+00> : vector<16x16xf32>
    %138 = tpu.matmul %135, %136, %cst_73 {dimension_numbers = #tpu.dot_dimension_numbers<[1], [1], [0], [0], [0, 0, 1, 0], [], []>} : vector<16x32xbf16>, vector<16x32xbf16>, vector<16x16xf32> -> vector<16x16xf32>
    %cst_74 = arith.constant dense<0xFF800000> : vector<16xf32>
    %139 = vector.multi_reduction <maximumf>, %138, %cst_74 [1] : vector<16x16xf32> to vector<16xf32>
    %140 = vector.shape_cast %139 : vector<16xf32> to vector<16x1xf32>
    %141 = vector.broadcast %140 : vector<16x1xf32> to vector<16x16xf32>
    %142 = arith.subf %138, %141 : vector<16x16xf32>
    %143 = math.exp %142 : vector<16x16xf32>
    %cst_75 = arith.constant dense<0.000000e+00> : vector<16xf32>
    %144 = vector.multi_reduction <add>, %143, %cst_75 [1] : vector<16x16xf32> to vector<16xf32>
    %145 = vector.shape_cast %144 : vector<16xf32> to vector<16x1xf32>
    %146 = tpu.reciprocal %145 {approx = true} : vector<16x1xf32> -> vector<16x1xf32>
    %147 = vector.broadcast %146 : vector<16x1xf32> to vector<16x16xf32>
    %148 = arith.mulf %143, %147 : vector<16x16xf32>
    %149 = arith.truncf %148 : vector<16x16xf32> to vector<16x16xbf16>
    %cst_76 = arith.constant dense<0.000000e+00> : vector<16x32xf32>
    %150 = tpu.matmul %149, %137, %cst_76 {dimension_numbers = #tpu.dot_dimension_numbers<[1], [0], [0], [1], [0, 0, 1, 1], [], []>} : vector<16x16xbf16>, vector<16x32xbf16>, vector<16x32xf32> -> vector<16x32xf32>
    %151 = vector.extract_strided_slice %97 {offsets = [16, 32], sizes = [16, 32], strides = [1, 1]} : vector<32x384xbf16> to vector<16x32xbf16>
    %152 = vector.extract_strided_slice %97 {offsets = [16, 160], sizes = [16, 32], strides = [1, 1]} : vector<32x384xbf16> to vector<16x32xbf16>
    %153 = vector.extract_strided_slice %97 {offsets = [16, 288], sizes = [16, 32], strides = [1, 1]} : vector<32x384xbf16> to vector<16x32xbf16>
    %cst_77 = arith.constant dense<0.000000e+00> : vector<16x16xf32>
    %154 = tpu.matmul %151, %152, %cst_77 {dimension_numbers = #tpu.dot_dimension_numbers<[1], [1], [0], [0], [0, 0, 1, 0], [], []>} : vector<16x32xbf16>, vector<16x32xbf16>, vector<16x16xf32> -> vector<16x16xf32>
    %cst_78 = arith.constant dense<0xFF800000> : vector<16xf32>
    %155 = vector.multi_reduction <maximumf>, %154, %cst_78 [1] : vector<16x16xf32> to vector<16xf32>
    %156 = vector.shape_cast %155 : vector<16xf32> to vector<16x1xf32>
    %157 = vector.broadcast %156 : vector<16x1xf32> to vector<16x16xf32>
    %158 = arith.subf %154, %157 : vector<16x16xf32>
    %159 = math.exp %158 : vector<16x16xf32>
    %cst_79 = arith.constant dense<0.000000e+00> : vector<16xf32>
    %160 = vector.multi_reduction <add>, %159, %cst_79 [1] : vector<16x16xf32> to vector<16xf32>
    %161 = vector.shape_cast %160 : vector<16xf32> to vector<16x1xf32>
    %162 = tpu.reciprocal %161 {approx = true} : vector<16x1xf32> -> vector<16x1xf32>
    %163 = vector.broadcast %162 : vector<16x1xf32> to vector<16x16xf32>
    %164 = arith.mulf %159, %163 : vector<16x16xf32>
    %165 = arith.truncf %164 : vector<16x16xf32> to vector<16x16xbf16>
    %cst_80 = arith.constant dense<0.000000e+00> : vector<16x32xf32>
    %166 = tpu.matmul %165, %153, %cst_80 {dimension_numbers = #tpu.dot_dimension_numbers<[1], [0], [0], [1], [0, 0, 1, 1], [], []>} : vector<16x16xbf16>, vector<16x32xbf16>, vector<16x32xf32> -> vector<16x32xf32>
    %167 = tpu.concatenate %150, %166 in 0 : vector<16x32xf32>, vector<16x32xf32> -> vector<32x32xf32>
    %168 = vector.extract_strided_slice %98 {offsets = [32, 0], sizes = [32, 128], strides = [1, 1]} : vector<128x128xbf16> to vector<32x128xbf16>
    %169 = arith.truncf %167 : vector<32x32xf32> to vector<32x32xbf16>
    %cst_81 = arith.constant dense<0.000000e+00> : vector<32x128xf32>
    %170 = tpu.matmul %169, %168, %cst_81 {dimension_numbers = #tpu.dot_dimension_numbers<[1], [0], [0], [1], [0, 0, 1, 1], [], []>} : vector<32x32xbf16>, vector<32x128xbf16>, vector<32x128xf32> -> vector<32x128xf32>
    %171 = vector.extract_strided_slice %97 {offsets = [0, 64], sizes = [16, 32], strides = [1, 1]} : vector<32x384xbf16> to vector<16x32xbf16>
    %172 = vector.extract_strided_slice %97 {offsets = [0, 192], sizes = [16, 32], strides = [1, 1]} : vector<32x384xbf16> to vector<16x32xbf16>
    %173 = vector.extract_strided_slice %97 {offsets = [0, 320], sizes = [16, 32], strides = [1, 1]} : vector<32x384xbf16> to vector<16x32xbf16>
    %cst_82 = arith.constant dense<0.000000e+00> : vector<16x16xf32>
    %174 = tpu.matmul %171, %172, %cst_82 {dimension_numbers = #tpu.dot_dimension_numbers<[1], [1], [0], [0], [0, 0, 1, 0], [], []>} : vector<16x32xbf16>, vector<16x32xbf16>, vector<16x16xf32> -> vector<16x16xf32>
    %cst_83 = arith.constant dense<0xFF800000> : vector<16xf32>
    %175 = vector.multi_reduction <maximumf>, %174, %cst_83 [1] : vector<16x16xf32> to vector<16xf32>
    %176 = vector.shape_cast %175 : vector<16xf32> to vector<16x1xf32>
    %177 = vector.broadcast %176 : vector<16x1xf32> to vector<16x16xf32>
    %178 = arith.subf %174, %177 : vector<16x16xf32>
    %179 = math.exp %178 : vector<16x16xf32>
    %cst_84 = arith.constant dense<0.000000e+00> : vector<16xf32>
    %180 = vector.multi_reduction <add>, %179, %cst_84 [1] : vector<16x16xf32> to vector<16xf32>
    %181 = vector.shape_cast %180 : vector<16xf32> to vector<16x1xf32>
    %182 = tpu.reciprocal %181 {approx = true} : vector<16x1xf32> -> vector<16x1xf32>
    %183 = vector.broadcast %182 : vector<16x1xf32> to vector<16x16xf32>
    %184 = arith.mulf %179, %183 : vector<16x16xf32>
    %185 = arith.truncf %184 : vector<16x16xf32> to vector<16x16xbf16>
    %cst_85 = arith.constant dense<0.000000e+00> : vector<16x32xf32>
    %186 = tpu.matmul %185, %173, %cst_85 {dimension_numbers = #tpu.dot_dimension_numbers<[1], [0], [0], [1], [0, 0, 1, 1], [], []>} : vector<16x16xbf16>, vector<16x32xbf16>, vector<16x32xf32> -> vector<16x32xf32>
    %187 = vector.extract_strided_slice %97 {offsets = [16, 64], sizes = [16, 32], strides = [1, 1]} : vector<32x384xbf16> to vector<16x32xbf16>
    %188 = vector.extract_strided_slice %97 {offsets = [16, 192], sizes = [16, 32], strides = [1, 1]} : vector<32x384xbf16> to vector<16x32xbf16>
    %189 = vector.extract_strided_slice %97 {offsets = [16, 320], sizes = [16, 32], strides = [1, 1]} : vector<32x384xbf16> to vector<16x32xbf16>
    %cst_86 = arith.constant dense<0.000000e+00> : vector<16x16xf32>
    %190 = tpu.matmul %187, %188, %cst_86 {dimension_numbers = #tpu.dot_dimension_numbers<[1], [1], [0], [0], [0, 0, 1, 0], [], []>} : vector<16x32xbf16>, vector<16x32xbf16>, vector<16x16xf32> -> vector<16x16xf32>
    %cst_87 = arith.constant dense<0xFF800000> : vector<16xf32>
    %191 = vector.multi_reduction <maximumf>, %190, %cst_87 [1] : vector<16x16xf32> to vector<16xf32>
    %192 = vector.shape_cast %191 : vector<16xf32> to vector<16x1xf32>
    %193 = vector.broadcast %192 : vector<16x1xf32> to vector<16x16xf32>
    %194 = arith.subf %190, %193 : vector<16x16xf32>
    %195 = math.exp %194 : vector<16x16xf32>
    %cst_88 = arith.constant dense<0.000000e+00> : vector<16xf32>
    %196 = vector.multi_reduction <add>, %195, %cst_88 [1] : vector<16x16xf32> to vector<16xf32>
    %197 = vector.shape_cast %196 : vector<16xf32> to vector<16x1xf32>
    %198 = tpu.reciprocal %197 {approx = true} : vector<16x1xf32> -> vector<16x1xf32>
    %199 = vector.broadcast %198 : vector<16x1xf32> to vector<16x16xf32>
    %200 = arith.mulf %195, %199 : vector<16x16xf32>
    %201 = arith.truncf %200 : vector<16x16xf32> to vector<16x16xbf16>
    %cst_89 = arith.constant dense<0.000000e+00> : vector<16x32xf32>
    %202 = tpu.matmul %201, %189, %cst_89 {dimension_numbers = #tpu.dot_dimension_numbers<[1], [0], [0], [1], [0, 0, 1, 1], [], []>} : vector<16x16xbf16>, vector<16x32xbf16>, vector<16x32xf32> -> vector<16x32xf32>
    %203 = tpu.concatenate %186, %202 in 0 : vector<16x32xf32>, vector<16x32xf32> -> vector<32x32xf32>
    %204 = vector.extract_strided_slice %98 {offsets = [64, 0], sizes = [32, 128], strides = [1, 1]} : vector<128x128xbf16> to vector<32x128xbf16>
    %205 = arith.truncf %203 : vector<32x32xf32> to vector<32x32xbf16>
    %cst_90 = arith.constant dense<0.000000e+00> : vector<32x128xf32>
    %206 = tpu.matmul %205, %204, %cst_90 {dimension_numbers = #tpu.dot_dimension_numbers<[1], [0], [0], [1], [0, 0, 1, 1], [], []>} : vector<32x32xbf16>, vector<32x128xbf16>, vector<32x128xf32> -> vector<32x128xf32>
    %207 = vector.extract_strided_slice %97 {offsets = [0, 96], sizes = [16, 32], strides = [1, 1]} : vector<32x384xbf16> to vector<16x32xbf16>
    %208 = vector.extract_strided_slice %97 {offsets = [0, 224], sizes = [16, 32], strides = [1, 1]} : vector<32x384xbf16> to vector<16x32xbf16>
    %209 = vector.extract_strided_slice %97 {offsets = [0, 352], sizes = [16, 32], strides = [1, 1]} : vector<32x384xbf16> to vector<16x32xbf16>
    %cst_91 = arith.constant dense<0.000000e+00> : vector<16x16xf32>
    %210 = tpu.matmul %207, %208, %cst_91 {dimension_numbers = #tpu.dot_dimension_numbers<[1], [1], [0], [0], [0, 0, 1, 0], [], []>} : vector<16x32xbf16>, vector<16x32xbf16>, vector<16x16xf32> -> vector<16x16xf32>
    %cst_92 = arith.constant dense<0xFF800000> : vector<16xf32>
    %211 = vector.multi_reduction <maximumf>, %210, %cst_92 [1] : vector<16x16xf32> to vector<16xf32>
    %212 = vector.shape_cast %211 : vector<16xf32> to vector<16x1xf32>
    %213 = vector.broadcast %212 : vector<16x1xf32> to vector<16x16xf32>
    %214 = arith.subf %210, %213 : vector<16x16xf32>
    %215 = math.exp %214 : vector<16x16xf32>
    %cst_93 = arith.constant dense<0.000000e+00> : vector<16xf32>
    %216 = vector.multi_reduction <add>, %215, %cst_93 [1] : vector<16x16xf32> to vector<16xf32>
    %217 = vector.shape_cast %216 : vector<16xf32> to vector<16x1xf32>
    %218 = tpu.reciprocal %217 {approx = true} : vector<16x1xf32> -> vector<16x1xf32>
    %219 = vector.broadcast %218 : vector<16x1xf32> to vector<16x16xf32>
    %220 = arith.mulf %215, %219 : vector<16x16xf32>
    %221 = arith.truncf %220 : vector<16x16xf32> to vector<16x16xbf16>
    %cst_94 = arith.constant dense<0.000000e+00> : vector<16x32xf32>
    %222 = tpu.matmul %221, %209, %cst_94 {dimension_numbers = #tpu.dot_dimension_numbers<[1], [0], [0], [1], [0, 0, 1, 1], [], []>} : vector<16x16xbf16>, vector<16x32xbf16>, vector<16x32xf32> -> vector<16x32xf32>
    %223 = vector.extract_strided_slice %97 {offsets = [16, 96], sizes = [16, 32], strides = [1, 1]} : vector<32x384xbf16> to vector<16x32xbf16>
    %224 = vector.extract_strided_slice %97 {offsets = [16, 224], sizes = [16, 32], strides = [1, 1]} : vector<32x384xbf16> to vector<16x32xbf16>
    %225 = vector.extract_strided_slice %97 {offsets = [16, 352], sizes = [16, 32], strides = [1, 1]} : vector<32x384xbf16> to vector<16x32xbf16>
    %cst_95 = arith.constant dense<0.000000e+00> : vector<16x16xf32>
    %226 = tpu.matmul %223, %224, %cst_95 {dimension_numbers = #tpu.dot_dimension_numbers<[1], [1], [0], [0], [0, 0, 1, 0], [], []>} : vector<16x32xbf16>, vector<16x32xbf16>, vector<16x16xf32> -> vector<16x16xf32>
    %cst_96 = arith.constant dense<0xFF800000> : vector<16xf32>
    %227 = vector.multi_reduction <maximumf>, %226, %cst_96 [1] : vector<16x16xf32> to vector<16xf32>
    %228 = vector.shape_cast %227 : vector<16xf32> to vector<16x1xf32>
    %229 = vector.broadcast %228 : vector<16x1xf32> to vector<16x16xf32>
    %230 = arith.subf %226, %229 : vector<16x16xf32>
    %231 = math.exp %230 : vector<16x16xf32>
    %cst_97 = arith.constant dense<0.000000e+00> : vector<16xf32>
    %232 = vector.multi_reduction <add>, %231, %cst_97 [1] : vector<16x16xf32> to vector<16xf32>
    %233 = vector.shape_cast %232 : vector<16xf32> to vector<16x1xf32>
    %234 = tpu.reciprocal %233 {approx = true} : vector<16x1xf32> -> vector<16x1xf32>
    %235 = vector.broadcast %234 : vector<16x1xf32> to vector<16x16xf32>
    %236 = arith.mulf %231, %235 : vector<16x16xf32>
    %237 = arith.truncf %236 : vector<16x16xf32> to vector<16x16xbf16>
    %cst_98 = arith.constant dense<0.000000e+00> : vector<16x32xf32>
    %238 = tpu.matmul %237, %225, %cst_98 {dimension_numbers = #tpu.dot_dimension_numbers<[1], [0], [0], [1], [0, 0, 1, 1], [], []>} : vector<16x16xbf16>, vector<16x32xbf16>, vector<16x32xf32> -> vector<16x32xf32>
    %239 = tpu.concatenate %222, %238 in 0 : vector<16x32xf32>, vector<16x32xf32> -> vector<32x32xf32>
    %240 = vector.extract_strided_slice %98 {offsets = [96, 0], sizes = [32, 128], strides = [1, 1]} : vector<128x128xbf16> to vector<32x128xbf16>
    %241 = arith.truncf %239 : vector<32x32xf32> to vector<32x32xbf16>
    %cst_99 = arith.constant dense<0.000000e+00> : vector<32x128xf32>
    %242 = tpu.matmul %241, %240, %cst_99 {dimension_numbers = #tpu.dot_dimension_numbers<[1], [0], [0], [1], [0, 0, 1, 1], [], []>} : vector<32x32xbf16>, vector<32x128xbf16>, vector<32x128xf32> -> vector<32x128xf32>
    %243 = arith.addf %134, %170 : vector<32x128xf32>
    %244 = arith.addf %206, %242 : vector<32x128xf32>
    %245 = arith.addf %243, %244 : vector<32x128xf32>
    %246 = arith.addf %82, %245 : vector<32x128xf32>
    %247 = vector.broadcast %86 : vector<1x128xf32> to vector<32x128xf32>
    %248 = arith.addf %246, %247 : vector<32x128xf32>
    %cst_100 = arith.constant dense<0.000000e+00> : vector<32xf32>
    %249 = vector.multi_reduction <add>, %248, %cst_100 [1] : vector<32x128xf32> to vector<32xf32>
    %250 = vector.shape_cast %249 : vector<32xf32> to vector<32x1xf32>
    %cst_101 = arith.constant 1.280000e+02 : f32
    %251 = vector.broadcast %cst_101 : f32 to vector<32x1xf32>
    %252 = arith.divf %250, %251 : vector<32x1xf32>
    %253 = vector.broadcast %252 : vector<32x1xf32> to vector<32x128xf32>
    %254 = arith.subf %248, %253 : vector<32x128xf32>
    %255 = arith.mulf %254, %254 : vector<32x128xf32>
    %cst_102 = arith.constant dense<0.000000e+00> : vector<32xf32>
    %256 = vector.multi_reduction <add>, %255, %cst_102 [1] : vector<32x128xf32> to vector<32xf32>
    %257 = vector.shape_cast %256 : vector<32xf32> to vector<32x1xf32>
    %cst_103 = arith.constant 1.280000e+02 : f32
    %258 = vector.broadcast %cst_103 : f32 to vector<32x1xf32>
    %259 = arith.divf %257, %258 : vector<32x1xf32>
    %cst_104 = arith.constant 9.99999974E-6 : f32
    %260 = vector.broadcast %cst_104 : f32 to vector<32x1xf32>
    %261 = arith.addf %259, %260 : vector<32x1xf32>
    %262 = math.rsqrt %261 : vector<32x1xf32>
    %263 = vector.broadcast %262 : vector<32x1xf32> to vector<32x128xf32>
    %264 = arith.mulf %254, %263 : vector<32x128xf32>
    %265 = vector.broadcast %87 : vector<1x128xf32> to vector<32x128xf32>
    %266 = arith.mulf %264, %265 : vector<32x128xf32>
    %267 = vector.broadcast %88 : vector<1x128xf32> to vector<32x128xf32>
    %268 = arith.addf %266, %267 : vector<32x128xf32>
    %c0_105 = arith.constant 0 : index
    %c0_106 = arith.constant 0 : index
    %269 = vector.load %arg10[%c0_105, %c0_106] : memref<128x384xbf16, #tpu.memory_space<vmem>>, vector<128x384xbf16>
    %270 = arith.truncf %268 : vector<32x128xf32> to vector<32x128xbf16>
    %cst_107 = arith.constant dense<0.000000e+00> : vector<32x384xf32>
    %271 = tpu.matmul %270, %269, %cst_107 {dimension_numbers = #tpu.dot_dimension_numbers<[1], [0], [0], [1], [0, 0, 1, 1], [], []>} : vector<32x128xbf16>, vector<128x384xbf16>, vector<32x384xf32> -> vector<32x384xf32>
    %272 = vector.broadcast %85 : vector<1x384xf32> to vector<32x384xf32>
    %273 = arith.addf %271, %272 : vector<32x384xf32>
    %274 = arith.mulf %273, %273 : vector<32x384xf32>
    %275 = arith.mulf %273, %274 : vector<32x384xf32>
    %cst_108 = arith.constant 4.471500e-02 : f32
    %276 = vector.broadcast %cst_108 : f32 to vector<32x384xf32>
    %277 = arith.mulf %276, %275 : vector<32x384xf32>
    %278 = arith.addf %273, %277 : vector<32x384xf32>
    %cst_109 = arith.constant 0.797884583 : f32
    %279 = vector.broadcast %cst_109 : f32 to vector<32x384xf32>
    %280 = arith.mulf %279, %278 : vector<32x384xf32>
    %281 = math.tanh %280 : vector<32x384xf32>
    %cst_110 = arith.constant 1.000000e+00 : f32
    %282 = vector.broadcast %cst_110 : f32 to vector<32x384xf32>
    %283 = arith.addf %282, %281 : vector<32x384xf32>
    %cst_111 = arith.constant 5.000000e-01 : f32
    %284 = vector.broadcast %cst_111 : f32 to vector<32x384xf32>
    %285 = arith.mulf %284, %283 : vector<32x384xf32>
    %286 = arith.mulf %273, %285 : vector<32x384xf32>
    %c0_112 = arith.constant 0 : index
    %c0_113 = arith.constant 0 : index
    %287 = vector.load %arg11[%c0_112, %c0_113] : memref<384x128xbf16, #tpu.memory_space<vmem>>, vector<384x128xbf16>
    %288 = arith.truncf %286 : vector<32x384xf32> to vector<32x384xbf16>
    %cst_114 = arith.constant dense<0.000000e+00> : vector<32x128xf32>
    %289 = tpu.matmul %288, %287, %cst_114 {dimension_numbers = #tpu.dot_dimension_numbers<[1], [0], [0], [1], [0, 0, 1, 1], [], []>} : vector<32x384xbf16>, vector<384x128xbf16>, vector<32x128xf32> -> vector<32x128xf32>
    %290 = vector.broadcast %89 : vector<1x128xf32> to vector<32x128xf32>
    %291 = arith.addf %289, %290 : vector<32x128xf32>
    %292 = arith.addf %268, %291 : vector<32x128xf32>
    %cst_115 = arith.constant dense<0.000000e+00> : vector<32xf32>
    %293 = vector.multi_reduction <add>, %292, %cst_115 [1] : vector<32x128xf32> to vector<32xf32>
    %294 = vector.shape_cast %293 : vector<32xf32> to vector<32x1xf32>
    %cst_116 = arith.constant 1.280000e+02 : f32
    %295 = vector.broadcast %cst_116 : f32 to vector<32x1xf32>
    %296 = arith.divf %294, %295 : vector<32x1xf32>
    %297 = vector.broadcast %296 : vector<32x1xf32> to vector<32x128xf32>
    %298 = arith.subf %292, %297 : vector<32x128xf32>
    %299 = arith.mulf %298, %298 : vector<32x128xf32>
    %cst_117 = arith.constant dense<0.000000e+00> : vector<32xf32>
    %300 = vector.multi_reduction <add>, %299, %cst_117 [1] : vector<32x128xf32> to vector<32xf32>
    %301 = vector.shape_cast %300 : vector<32xf32> to vector<32x1xf32>
    %cst_118 = arith.constant 1.280000e+02 : f32
    %302 = vector.broadcast %cst_118 : f32 to vector<32x1xf32>
    %303 = arith.divf %301, %302 : vector<32x1xf32>
    %cst_119 = arith.constant 9.99999974E-6 : f32
    %304 = vector.broadcast %cst_119 : f32 to vector<32x1xf32>
    %305 = arith.addf %303, %304 : vector<32x1xf32>
    %306 = math.rsqrt %305 : vector<32x1xf32>
    %307 = vector.broadcast %306 : vector<32x1xf32> to vector<32x128xf32>
    %308 = arith.mulf %298, %307 : vector<32x128xf32>
    %309 = vector.broadcast %90 : vector<1x128xf32> to vector<32x128xf32>
    %310 = arith.mulf %308, %309 : vector<32x128xf32>
    %311 = vector.broadcast %91 : vector<1x128xf32> to vector<32x128xf32>
    %312 = arith.addf %310, %311 : vector<32x128xf32>
    %c0_120 = arith.constant 0 : index
    %c0_121 = arith.constant 0 : index
    %313 = vector.load %arg17[%c0_120, %c0_121] : memref<8x384xf32, #tpu.memory_space<vmem>>, vector<8x384xf32>
    %314 = vector.extract_strided_slice %313 {offsets = [0, 0], sizes = [1, 384], strides = [1, 1]} : vector<8x384xf32> to vector<1x384xf32>
    %315 = vector.extract_strided_slice %313 {offsets = [1, 0], sizes = [1, 384], strides = [1, 1]} : vector<8x384xf32> to vector<1x384xf32>
    %316 = vector.extract_strided_slice %313 {offsets = [2, 0], sizes = [1, 128], strides = [1, 1]} : vector<8x384xf32> to vector<1x128xf32>
    %317 = vector.extract_strided_slice %313 {offsets = [3, 0], sizes = [1, 128], strides = [1, 1]} : vector<8x384xf32> to vector<1x128xf32>
    %318 = vector.extract_strided_slice %313 {offsets = [4, 0], sizes = [1, 128], strides = [1, 1]} : vector<8x384xf32> to vector<1x128xf32>
    %319 = vector.extract_strided_slice %313 {offsets = [5, 0], sizes = [1, 128], strides = [1, 1]} : vector<8x384xf32> to vector<1x128xf32>
    %320 = vector.extract_strided_slice %313 {offsets = [6, 0], sizes = [1, 128], strides = [1, 1]} : vector<8x384xf32> to vector<1x128xf32>
    %321 = vector.extract_strided_slice %313 {offsets = [7, 0], sizes = [1, 128], strides = [1, 1]} : vector<8x384xf32> to vector<1x128xf32>
    %c0_122 = arith.constant 0 : index
    %c0_123 = arith.constant 0 : index
    %322 = vector.load %arg13[%c0_122, %c0_123] : memref<128x384xbf16, #tpu.memory_space<vmem>>, vector<128x384xbf16>
    %323 = arith.truncf %312 : vector<32x128xf32> to vector<32x128xbf16>
    %cst_124 = arith.constant dense<0.000000e+00> : vector<32x384xf32>
    %324 = tpu.matmul %323, %322, %cst_124 {dimension_numbers = #tpu.dot_dimension_numbers<[1], [0], [0], [1], [0, 0, 1, 1], [], []>} : vector<32x128xbf16>, vector<128x384xbf16>, vector<32x384xf32> -> vector<32x384xf32>
    %325 = vector.broadcast %314 : vector<1x384xf32> to vector<32x384xf32>
    %326 = arith.addf %324, %325 : vector<32x384xf32>
    %327 = arith.truncf %326 : vector<32x384xf32> to vector<32x384xbf16>
    %c0_125 = arith.constant 0 : index
    %c0_126 = arith.constant 0 : index
    %328 = vector.load %arg14[%c0_125, %c0_126] : memref<128x128xbf16, #tpu.memory_space<vmem>>, vector<128x128xbf16>
    %329 = vector.extract_strided_slice %327 {offsets = [0, 0], sizes = [16, 32], strides = [1, 1]} : vector<32x384xbf16> to vector<16x32xbf16>
    %330 = vector.extract_strided_slice %327 {offsets = [0, 128], sizes = [16, 32], strides = [1, 1]} : vector<32x384xbf16> to vector<16x32xbf16>
    %331 = vector.extract_strided_slice %327 {offsets = [0, 256], sizes = [16, 32], strides = [1, 1]} : vector<32x384xbf16> to vector<16x32xbf16>
    %cst_127 = arith.constant dense<0.000000e+00> : vector<16x16xf32>
    %332 = tpu.matmul %329, %330, %cst_127 {dimension_numbers = #tpu.dot_dimension_numbers<[1], [1], [0], [0], [0, 0, 1, 0], [], []>} : vector<16x32xbf16>, vector<16x32xbf16>, vector<16x16xf32> -> vector<16x16xf32>
    %cst_128 = arith.constant dense<0xFF800000> : vector<16xf32>
    %333 = vector.multi_reduction <maximumf>, %332, %cst_128 [1] : vector<16x16xf32> to vector<16xf32>
    %334 = vector.shape_cast %333 : vector<16xf32> to vector<16x1xf32>
    %335 = vector.broadcast %334 : vector<16x1xf32> to vector<16x16xf32>
    %336 = arith.subf %332, %335 : vector<16x16xf32>
    %337 = math.exp %336 : vector<16x16xf32>
    %cst_129 = arith.constant dense<0.000000e+00> : vector<16xf32>
    %338 = vector.multi_reduction <add>, %337, %cst_129 [1] : vector<16x16xf32> to vector<16xf32>
    %339 = vector.shape_cast %338 : vector<16xf32> to vector<16x1xf32>
    %340 = tpu.reciprocal %339 {approx = true} : vector<16x1xf32> -> vector<16x1xf32>
    %341 = vector.broadcast %340 : vector<16x1xf32> to vector<16x16xf32>
    %342 = arith.mulf %337, %341 : vector<16x16xf32>
    %343 = arith.truncf %342 : vector<16x16xf32> to vector<16x16xbf16>
    %cst_130 = arith.constant dense<0.000000e+00> : vector<16x32xf32>
    %344 = tpu.matmul %343, %331, %cst_130 {dimension_numbers = #tpu.dot_dimension_numbers<[1], [0], [0], [1], [0, 0, 1, 1], [], []>} : vector<16x16xbf16>, vector<16x32xbf16>, vector<16x32xf32> -> vector<16x32xf32>
    %345 = vector.extract_strided_slice %327 {offsets = [16, 0], sizes = [16, 32], strides = [1, 1]} : vector<32x384xbf16> to vector<16x32xbf16>
    %346 = vector.extract_strided_slice %327 {offsets = [16, 128], sizes = [16, 32], strides = [1, 1]} : vector<32x384xbf16> to vector<16x32xbf16>
    %347 = vector.extract_strided_slice %327 {offsets = [16, 256], sizes = [16, 32], strides = [1, 1]} : vector<32x384xbf16> to vector<16x32xbf16>
    %cst_131 = arith.constant dense<0.000000e+00> : vector<16x16xf32>
    %348 = tpu.matmul %345, %346, %cst_131 {dimension_numbers = #tpu.dot_dimension_numbers<[1], [1], [0], [0], [0, 0, 1, 0], [], []>} : vector<16x32xbf16>, vector<16x32xbf16>, vector<16x16xf32> -> vector<16x16xf32>
    %cst_132 = arith.constant dense<0xFF800000> : vector<16xf32>
    %349 = vector.multi_reduction <maximumf>, %348, %cst_132 [1] : vector<16x16xf32> to vector<16xf32>
    %350 = vector.shape_cast %349 : vector<16xf32> to vector<16x1xf32>
    %351 = vector.broadcast %350 : vector<16x1xf32> to vector<16x16xf32>
    %352 = arith.subf %348, %351 : vector<16x16xf32>
    %353 = math.exp %352 : vector<16x16xf32>
    %cst_133 = arith.constant dense<0.000000e+00> : vector<16xf32>
    %354 = vector.multi_reduction <add>, %353, %cst_133 [1] : vector<16x16xf32> to vector<16xf32>
    %355 = vector.shape_cast %354 : vector<16xf32> to vector<16x1xf32>
    %356 = tpu.reciprocal %355 {approx = true} : vector<16x1xf32> -> vector<16x1xf32>
    %357 = vector.broadcast %356 : vector<16x1xf32> to vector<16x16xf32>
    %358 = arith.mulf %353, %357 : vector<16x16xf32>
    %359 = arith.truncf %358 : vector<16x16xf32> to vector<16x16xbf16>
    %cst_134 = arith.constant dense<0.000000e+00> : vector<16x32xf32>
    %360 = tpu.matmul %359, %347, %cst_134 {dimension_numbers = #tpu.dot_dimension_numbers<[1], [0], [0], [1], [0, 0, 1, 1], [], []>} : vector<16x16xbf16>, vector<16x32xbf16>, vector<16x32xf32> -> vector<16x32xf32>
    %361 = tpu.concatenate %344, %360 in 0 : vector<16x32xf32>, vector<16x32xf32> -> vector<32x32xf32>
    %362 = vector.extract_strided_slice %328 {offsets = [0, 0], sizes = [32, 128], strides = [1, 1]} : vector<128x128xbf16> to vector<32x128xbf16>
    %363 = arith.truncf %361 : vector<32x32xf32> to vector<32x32xbf16>
    %cst_135 = arith.constant dense<0.000000e+00> : vector<32x128xf32>
    %364 = tpu.matmul %363, %362, %cst_135 {dimension_numbers = #tpu.dot_dimension_numbers<[1], [0], [0], [1], [0, 0, 1, 1], [], []>} : vector<32x32xbf16>, vector<32x128xbf16>, vector<32x128xf32> -> vector<32x128xf32>
    %365 = vector.extract_strided_slice %327 {offsets = [0, 32], sizes = [16, 32], strides = [1, 1]} : vector<32x384xbf16> to vector<16x32xbf16>
    %366 = vector.extract_strided_slice %327 {offsets = [0, 160], sizes = [16, 32], strides = [1, 1]} : vector<32x384xbf16> to vector<16x32xbf16>
    %367 = vector.extract_strided_slice %327 {offsets = [0, 288], sizes = [16, 32], strides = [1, 1]} : vector<32x384xbf16> to vector<16x32xbf16>
    %cst_136 = arith.constant dense<0.000000e+00> : vector<16x16xf32>
    %368 = tpu.matmul %365, %366, %cst_136 {dimension_numbers = #tpu.dot_dimension_numbers<[1], [1], [0], [0], [0, 0, 1, 0], [], []>} : vector<16x32xbf16>, vector<16x32xbf16>, vector<16x16xf32> -> vector<16x16xf32>
    %cst_137 = arith.constant dense<0xFF800000> : vector<16xf32>
    %369 = vector.multi_reduction <maximumf>, %368, %cst_137 [1] : vector<16x16xf32> to vector<16xf32>
    %370 = vector.shape_cast %369 : vector<16xf32> to vector<16x1xf32>
    %371 = vector.broadcast %370 : vector<16x1xf32> to vector<16x16xf32>
    %372 = arith.subf %368, %371 : vector<16x16xf32>
    %373 = math.exp %372 : vector<16x16xf32>
    %cst_138 = arith.constant dense<0.000000e+00> : vector<16xf32>
    %374 = vector.multi_reduction <add>, %373, %cst_138 [1] : vector<16x16xf32> to vector<16xf32>
    %375 = vector.shape_cast %374 : vector<16xf32> to vector<16x1xf32>
    %376 = tpu.reciprocal %375 {approx = true} : vector<16x1xf32> -> vector<16x1xf32>
    %377 = vector.broadcast %376 : vector<16x1xf32> to vector<16x16xf32>
    %378 = arith.mulf %373, %377 : vector<16x16xf32>
    %379 = arith.truncf %378 : vector<16x16xf32> to vector<16x16xbf16>
    %cst_139 = arith.constant dense<0.000000e+00> : vector<16x32xf32>
    %380 = tpu.matmul %379, %367, %cst_139 {dimension_numbers = #tpu.dot_dimension_numbers<[1], [0], [0], [1], [0, 0, 1, 1], [], []>} : vector<16x16xbf16>, vector<16x32xbf16>, vector<16x32xf32> -> vector<16x32xf32>
    %381 = vector.extract_strided_slice %327 {offsets = [16, 32], sizes = [16, 32], strides = [1, 1]} : vector<32x384xbf16> to vector<16x32xbf16>
    %382 = vector.extract_strided_slice %327 {offsets = [16, 160], sizes = [16, 32], strides = [1, 1]} : vector<32x384xbf16> to vector<16x32xbf16>
    %383 = vector.extract_strided_slice %327 {offsets = [16, 288], sizes = [16, 32], strides = [1, 1]} : vector<32x384xbf16> to vector<16x32xbf16>
    %cst_140 = arith.constant dense<0.000000e+00> : vector<16x16xf32>
    %384 = tpu.matmul %381, %382, %cst_140 {dimension_numbers = #tpu.dot_dimension_numbers<[1], [1], [0], [0], [0, 0, 1, 0], [], []>} : vector<16x32xbf16>, vector<16x32xbf16>, vector<16x16xf32> -> vector<16x16xf32>
    %cst_141 = arith.constant dense<0xFF800000> : vector<16xf32>
    %385 = vector.multi_reduction <maximumf>, %384, %cst_141 [1] : vector<16x16xf32> to vector<16xf32>
    %386 = vector.shape_cast %385 : vector<16xf32> to vector<16x1xf32>
    %387 = vector.broadcast %386 : vector<16x1xf32> to vector<16x16xf32>
    %388 = arith.subf %384, %387 : vector<16x16xf32>
    %389 = math.exp %388 : vector<16x16xf32>
    %cst_142 = arith.constant dense<0.000000e+00> : vector<16xf32>
    %390 = vector.multi_reduction <add>, %389, %cst_142 [1] : vector<16x16xf32> to vector<16xf32>
    %391 = vector.shape_cast %390 : vector<16xf32> to vector<16x1xf32>
    %392 = tpu.reciprocal %391 {approx = true} : vector<16x1xf32> -> vector<16x1xf32>
    %393 = vector.broadcast %392 : vector<16x1xf32> to vector<16x16xf32>
    %394 = arith.mulf %389, %393 : vector<16x16xf32>
    %395 = arith.truncf %394 : vector<16x16xf32> to vector<16x16xbf16>
    %cst_143 = arith.constant dense<0.000000e+00> : vector<16x32xf32>
    %396 = tpu.matmul %395, %383, %cst_143 {dimension_numbers = #tpu.dot_dimension_numbers<[1], [0], [0], [1], [0, 0, 1, 1], [], []>} : vector<16x16xbf16>, vector<16x32xbf16>, vector<16x32xf32> -> vector<16x32xf32>
    %397 = tpu.concatenate %380, %396 in 0 : vector<16x32xf32>, vector<16x32xf32> -> vector<32x32xf32>
    %398 = vector.extract_strided_slice %328 {offsets = [32, 0], sizes = [32, 128], strides = [1, 1]} : vector<128x128xbf16> to vector<32x128xbf16>
    %399 = arith.truncf %397 : vector<32x32xf32> to vector<32x32xbf16>
    %cst_144 = arith.constant dense<0.000000e+00> : vector<32x128xf32>
    %400 = tpu.matmul %399, %398, %cst_144 {dimension_numbers = #tpu.dot_dimension_numbers<[1], [0], [0], [1], [0, 0, 1, 1], [], []>} : vector<32x32xbf16>, vector<32x128xbf16>, vector<32x128xf32> -> vector<32x128xf32>
    %401 = vector.extract_strided_slice %327 {offsets = [0, 64], sizes = [16, 32], strides = [1, 1]} : vector<32x384xbf16> to vector<16x32xbf16>
    %402 = vector.extract_strided_slice %327 {offsets = [0, 192], sizes = [16, 32], strides = [1, 1]} : vector<32x384xbf16> to vector<16x32xbf16>
    %403 = vector.extract_strided_slice %327 {offsets = [0, 320], sizes = [16, 32], strides = [1, 1]} : vector<32x384xbf16> to vector<16x32xbf16>
    %cst_145 = arith.constant dense<0.000000e+00> : vector<16x16xf32>
    %404 = tpu.matmul %401, %402, %cst_145 {dimension_numbers = #tpu.dot_dimension_numbers<[1], [1], [0], [0], [0, 0, 1, 0], [], []>} : vector<16x32xbf16>, vector<16x32xbf16>, vector<16x16xf32> -> vector<16x16xf32>
    %cst_146 = arith.constant dense<0xFF800000> : vector<16xf32>
    %405 = vector.multi_reduction <maximumf>, %404, %cst_146 [1] : vector<16x16xf32> to vector<16xf32>
    %406 = vector.shape_cast %405 : vector<16xf32> to vector<16x1xf32>
    %407 = vector.broadcast %406 : vector<16x1xf32> to vector<16x16xf32>
    %408 = arith.subf %404, %407 : vector<16x16xf32>
    %409 = math.exp %408 : vector<16x16xf32>
    %cst_147 = arith.constant dense<0.000000e+00> : vector<16xf32>
    %410 = vector.multi_reduction <add>, %409, %cst_147 [1] : vector<16x16xf32> to vector<16xf32>
    %411 = vector.shape_cast %410 : vector<16xf32> to vector<16x1xf32>
    %412 = tpu.reciprocal %411 {approx = true} : vector<16x1xf32> -> vector<16x1xf32>
    %413 = vector.broadcast %412 : vector<16x1xf32> to vector<16x16xf32>
    %414 = arith.mulf %409, %413 : vector<16x16xf32>
    %415 = arith.truncf %414 : vector<16x16xf32> to vector<16x16xbf16>
    %cst_148 = arith.constant dense<0.000000e+00> : vector<16x32xf32>
    %416 = tpu.matmul %415, %403, %cst_148 {dimension_numbers = #tpu.dot_dimension_numbers<[1], [0], [0], [1], [0, 0, 1, 1], [], []>} : vector<16x16xbf16>, vector<16x32xbf16>, vector<16x32xf32> -> vector<16x32xf32>
    %417 = vector.extract_strided_slice %327 {offsets = [16, 64], sizes = [16, 32], strides = [1, 1]} : vector<32x384xbf16> to vector<16x32xbf16>
    %418 = vector.extract_strided_slice %327 {offsets = [16, 192], sizes = [16, 32], strides = [1, 1]} : vector<32x384xbf16> to vector<16x32xbf16>
    %419 = vector.extract_strided_slice %327 {offsets = [16, 320], sizes = [16, 32], strides = [1, 1]} : vector<32x384xbf16> to vector<16x32xbf16>
    %cst_149 = arith.constant dense<0.000000e+00> : vector<16x16xf32>
    %420 = tpu.matmul %417, %418, %cst_149 {dimension_numbers = #tpu.dot_dimension_numbers<[1], [1], [0], [0], [0, 0, 1, 0], [], []>} : vector<16x32xbf16>, vector<16x32xbf16>, vector<16x16xf32> -> vector<16x16xf32>
    %cst_150 = arith.constant dense<0xFF800000> : vector<16xf32>
    %421 = vector.multi_reduction <maximumf>, %420, %cst_150 [1] : vector<16x16xf32> to vector<16xf32>
    %422 = vector.shape_cast %421 : vector<16xf32> to vector<16x1xf32>
    %423 = vector.broadcast %422 : vector<16x1xf32> to vector<16x16xf32>
    %424 = arith.subf %420, %423 : vector<16x16xf32>
    %425 = math.exp %424 : vector<16x16xf32>
    %cst_151 = arith.constant dense<0.000000e+00> : vector<16xf32>
    %426 = vector.multi_reduction <add>, %425, %cst_151 [1] : vector<16x16xf32> to vector<16xf32>
    %427 = vector.shape_cast %426 : vector<16xf32> to vector<16x1xf32>
    %428 = tpu.reciprocal %427 {approx = true} : vector<16x1xf32> -> vector<16x1xf32>
    %429 = vector.broadcast %428 : vector<16x1xf32> to vector<16x16xf32>
    %430 = arith.mulf %425, %429 : vector<16x16xf32>
    %431 = arith.truncf %430 : vector<16x16xf32> to vector<16x16xbf16>
    %cst_152 = arith.constant dense<0.000000e+00> : vector<16x32xf32>
    %432 = tpu.matmul %431, %419, %cst_152 {dimension_numbers = #tpu.dot_dimension_numbers<[1], [0], [0], [1], [0, 0, 1, 1], [], []>} : vector<16x16xbf16>, vector<16x32xbf16>, vector<16x32xf32> -> vector<16x32xf32>
    %433 = tpu.concatenate %416, %432 in 0 : vector<16x32xf32>, vector<16x32xf32> -> vector<32x32xf32>
    %434 = vector.extract_strided_slice %328 {offsets = [64, 0], sizes = [32, 128], strides = [1, 1]} : vector<128x128xbf16> to vector<32x128xbf16>
    %435 = arith.truncf %433 : vector<32x32xf32> to vector<32x32xbf16>
    %cst_153 = arith.constant dense<0.000000e+00> : vector<32x128xf32>
    %436 = tpu.matmul %435, %434, %cst_153 {dimension_numbers = #tpu.dot_dimension_numbers<[1], [0], [0], [1], [0, 0, 1, 1], [], []>} : vector<32x32xbf16>, vector<32x128xbf16>, vector<32x128xf32> -> vector<32x128xf32>
    %437 = vector.extract_strided_slice %327 {offsets = [0, 96], sizes = [16, 32], strides = [1, 1]} : vector<32x384xbf16> to vector<16x32xbf16>
    %438 = vector.extract_strided_slice %327 {offsets = [0, 224], sizes = [16, 32], strides = [1, 1]} : vector<32x384xbf16> to vector<16x32xbf16>
    %439 = vector.extract_strided_slice %327 {offsets = [0, 352], sizes = [16, 32], strides = [1, 1]} : vector<32x384xbf16> to vector<16x32xbf16>
    %cst_154 = arith.constant dense<0.000000e+00> : vector<16x16xf32>
    %440 = tpu.matmul %437, %438, %cst_154 {dimension_numbers = #tpu.dot_dimension_numbers<[1], [1], [0], [0], [0, 0, 1, 0], [], []>} : vector<16x32xbf16>, vector<16x32xbf16>, vector<16x16xf32> -> vector<16x16xf32>
    %cst_155 = arith.constant dense<0xFF800000> : vector<16xf32>
    %441 = vector.multi_reduction <maximumf>, %440, %cst_155 [1] : vector<16x16xf32> to vector<16xf32>
    %442 = vector.shape_cast %441 : vector<16xf32> to vector<16x1xf32>
    %443 = vector.broadcast %442 : vector<16x1xf32> to vector<16x16xf32>
    %444 = arith.subf %440, %443 : vector<16x16xf32>
    %445 = math.exp %444 : vector<16x16xf32>
    %cst_156 = arith.constant dense<0.000000e+00> : vector<16xf32>
    %446 = vector.multi_reduction <add>, %445, %cst_156 [1] : vector<16x16xf32> to vector<16xf32>
    %447 = vector.shape_cast %446 : vector<16xf32> to vector<16x1xf32>
    %448 = tpu.reciprocal %447 {approx = true} : vector<16x1xf32> -> vector<16x1xf32>
    %449 = vector.broadcast %448 : vector<16x1xf32> to vector<16x16xf32>
    %450 = arith.mulf %445, %449 : vector<16x16xf32>
    %451 = arith.truncf %450 : vector<16x16xf32> to vector<16x16xbf16>
    %cst_157 = arith.constant dense<0.000000e+00> : vector<16x32xf32>
    %452 = tpu.matmul %451, %439, %cst_157 {dimension_numbers = #tpu.dot_dimension_numbers<[1], [0], [0], [1], [0, 0, 1, 1], [], []>} : vector<16x16xbf16>, vector<16x32xbf16>, vector<16x32xf32> -> vector<16x32xf32>
    %453 = vector.extract_strided_slice %327 {offsets = [16, 96], sizes = [16, 32], strides = [1, 1]} : vector<32x384xbf16> to vector<16x32xbf16>
    %454 = vector.extract_strided_slice %327 {offsets = [16, 224], sizes = [16, 32], strides = [1, 1]} : vector<32x384xbf16> to vector<16x32xbf16>
    %455 = vector.extract_strided_slice %327 {offsets = [16, 352], sizes = [16, 32], strides = [1, 1]} : vector<32x384xbf16> to vector<16x32xbf16>
    %cst_158 = arith.constant dense<0.000000e+00> : vector<16x16xf32>
    %456 = tpu.matmul %453, %454, %cst_158 {dimension_numbers = #tpu.dot_dimension_numbers<[1], [1], [0], [0], [0, 0, 1, 0], [], []>} : vector<16x32xbf16>, vector<16x32xbf16>, vector<16x16xf32> -> vector<16x16xf32>
    %cst_159 = arith.constant dense<0xFF800000> : vector<16xf32>
    %457 = vector.multi_reduction <maximumf>, %456, %cst_159 [1] : vector<16x16xf32> to vector<16xf32>
    %458 = vector.shape_cast %457 : vector<16xf32> to vector<16x1xf32>
    %459 = vector.broadcast %458 : vector<16x1xf32> to vector<16x16xf32>
    %460 = arith.subf %456, %459 : vector<16x16xf32>
    %461 = math.exp %460 : vector<16x16xf32>
    %cst_160 = arith.constant dense<0.000000e+00> : vector<16xf32>
    %462 = vector.multi_reduction <add>, %461, %cst_160 [1] : vector<16x16xf32> to vector<16xf32>
    %463 = vector.shape_cast %462 : vector<16xf32> to vector<16x1xf32>
    %464 = tpu.reciprocal %463 {approx = true} : vector<16x1xf32> -> vector<16x1xf32>
    %465 = vector.broadcast %464 : vector<16x1xf32> to vector<16x16xf32>
    %466 = arith.mulf %461, %465 : vector<16x16xf32>
    %467 = arith.truncf %466 : vector<16x16xf32> to vector<16x16xbf16>
    %cst_161 = arith.constant dense<0.000000e+00> : vector<16x32xf32>
    %468 = tpu.matmul %467, %455, %cst_161 {dimension_numbers = #tpu.dot_dimension_numbers<[1], [0], [0], [1], [0, 0, 1, 1], [], []>} : vector<16x16xbf16>, vector<16x32xbf16>, vector<16x32xf32> -> vector<16x32xf32>
    %469 = tpu.concatenate %452, %468 in 0 : vector<16x32xf32>, vector<16x32xf32> -> vector<32x32xf32>
    %470 = vector.extract_strided_slice %328 {offsets = [96, 0], sizes = [32, 128], strides = [1, 1]} : vector<128x128xbf16> to vector<32x128xbf16>
    %471 = arith.truncf %469 : vector<32x32xf32> to vector<32x32xbf16>
    %cst_162 = arith.constant dense<0.000000e+00> : vector<32x128xf32>
    %472 = tpu.matmul %471, %470, %cst_162 {dimension_numbers = #tpu.dot_dimension_numbers<[1], [0], [0], [1], [0, 0, 1, 1], [], []>} : vector<32x32xbf16>, vector<32x128xbf16>, vector<32x128xf32> -> vector<32x128xf32>
    %473 = arith.addf %364, %400 : vector<32x128xf32>
    %474 = arith.addf %436, %472 : vector<32x128xf32>
    %475 = arith.addf %473, %474 : vector<32x128xf32>
    %476 = arith.addf %312, %475 : vector<32x128xf32>
    %477 = vector.broadcast %316 : vector<1x128xf32> to vector<32x128xf32>
    %478 = arith.addf %476, %477 : vector<32x128xf32>
    %cst_163 = arith.constant dense<0.000000e+00> : vector<32xf32>
    %479 = vector.multi_reduction <add>, %478, %cst_163 [1] : vector<32x128xf32> to vector<32xf32>
    %480 = vector.shape_cast %479 : vector<32xf32> to vector<32x1xf32>
    %cst_164 = arith.constant 1.280000e+02 : f32
    %481 = vector.broadcast %cst_164 : f32 to vector<32x1xf32>
    %482 = arith.divf %480, %481 : vector<32x1xf32>
    %483 = vector.broadcast %482 : vector<32x1xf32> to vector<32x128xf32>
    %484 = arith.subf %478, %483 : vector<32x128xf32>
    %485 = arith.mulf %484, %484 : vector<32x128xf32>
    %cst_165 = arith.constant dense<0.000000e+00> : vector<32xf32>
    %486 = vector.multi_reduction <add>, %485, %cst_165 [1] : vector<32x128xf32> to vector<32xf32>
    %487 = vector.shape_cast %486 : vector<32xf32> to vector<32x1xf32>
    %cst_166 = arith.constant 1.280000e+02 : f32
    %488 = vector.broadcast %cst_166 : f32 to vector<32x1xf32>
    %489 = arith.divf %487, %488 : vector<32x1xf32>
    %cst_167 = arith.constant 9.99999974E-6 : f32
    %490 = vector.broadcast %cst_167 : f32 to vector<32x1xf32>
    %491 = arith.addf %489, %490 : vector<32x1xf32>
    %492 = math.rsqrt %491 : vector<32x1xf32>
    %493 = vector.broadcast %492 : vector<32x1xf32> to vector<32x128xf32>
    %494 = arith.mulf %484, %493 : vector<32x128xf32>
    %495 = vector.broadcast %317 : vector<1x128xf32> to vector<32x128xf32>
    %496 = arith.mulf %494, %495 : vector<32x128xf32>
    %497 = vector.broadcast %318 : vector<1x128xf32> to vector<32x128xf32>
    %498 = arith.addf %496, %497 : vector<32x128xf32>
    %c0_168 = arith.constant 0 : index
    %c0_169 = arith.constant 0 : index
    %499 = vector.load %arg15[%c0_168, %c0_169] : memref<128x384xbf16, #tpu.memory_space<vmem>>, vector<128x384xbf16>
    %500 = arith.truncf %498 : vector<32x128xf32> to vector<32x128xbf16>
    %cst_170 = arith.constant dense<0.000000e+00> : vector<32x384xf32>
    %501 = tpu.matmul %500, %499, %cst_170 {dimension_numbers = #tpu.dot_dimension_numbers<[1], [0], [0], [1], [0, 0, 1, 1], [], []>} : vector<32x128xbf16>, vector<128x384xbf16>, vector<32x384xf32> -> vector<32x384xf32>
    %502 = vector.broadcast %315 : vector<1x384xf32> to vector<32x384xf32>
    %503 = arith.addf %501, %502 : vector<32x384xf32>
    %504 = arith.mulf %503, %503 : vector<32x384xf32>
    %505 = arith.mulf %503, %504 : vector<32x384xf32>
    %cst_171 = arith.constant 4.471500e-02 : f32
    %506 = vector.broadcast %cst_171 : f32 to vector<32x384xf32>
    %507 = arith.mulf %506, %505 : vector<32x384xf32>
    %508 = arith.addf %503, %507 : vector<32x384xf32>
    %cst_172 = arith.constant 0.797884583 : f32
    %509 = vector.broadcast %cst_172 : f32 to vector<32x384xf32>
    %510 = arith.mulf %509, %508 : vector<32x384xf32>
    %511 = math.tanh %510 : vector<32x384xf32>
    %cst_173 = arith.constant 1.000000e+00 : f32
    %512 = vector.broadcast %cst_173 : f32 to vector<32x384xf32>
    %513 = arith.addf %512, %511 : vector<32x384xf32>
    %cst_174 = arith.constant 5.000000e-01 : f32
    %514 = vector.broadcast %cst_174 : f32 to vector<32x384xf32>
    %515 = arith.mulf %514, %513 : vector<32x384xf32>
    %516 = arith.mulf %503, %515 : vector<32x384xf32>
    %c0_175 = arith.constant 0 : index
    %c0_176 = arith.constant 0 : index
    %517 = vector.load %arg16[%c0_175, %c0_176] : memref<384x128xbf16, #tpu.memory_space<vmem>>, vector<384x128xbf16>
    %518 = arith.truncf %516 : vector<32x384xf32> to vector<32x384xbf16>
    %cst_177 = arith.constant dense<0.000000e+00> : vector<32x128xf32>
    %519 = tpu.matmul %518, %517, %cst_177 {dimension_numbers = #tpu.dot_dimension_numbers<[1], [0], [0], [1], [0, 0, 1, 1], [], []>} : vector<32x384xbf16>, vector<384x128xbf16>, vector<32x128xf32> -> vector<32x128xf32>
    %520 = vector.broadcast %319 : vector<1x128xf32> to vector<32x128xf32>
    %521 = arith.addf %519, %520 : vector<32x128xf32>
    %522 = arith.addf %498, %521 : vector<32x128xf32>
    %cst_178 = arith.constant dense<0.000000e+00> : vector<32xf32>
    %523 = vector.multi_reduction <add>, %522, %cst_178 [1] : vector<32x128xf32> to vector<32xf32>
    %524 = vector.shape_cast %523 : vector<32xf32> to vector<32x1xf32>
    %cst_179 = arith.constant 1.280000e+02 : f32
    %525 = vector.broadcast %cst_179 : f32 to vector<32x1xf32>
    %526 = arith.divf %524, %525 : vector<32x1xf32>
    %527 = vector.broadcast %526 : vector<32x1xf32> to vector<32x128xf32>
    %528 = arith.subf %522, %527 : vector<32x128xf32>
    %529 = arith.mulf %528, %528 : vector<32x128xf32>
    %cst_180 = arith.constant dense<0.000000e+00> : vector<32xf32>
    %530 = vector.multi_reduction <add>, %529, %cst_180 [1] : vector<32x128xf32> to vector<32xf32>
    %531 = vector.shape_cast %530 : vector<32xf32> to vector<32x1xf32>
    %cst_181 = arith.constant 1.280000e+02 : f32
    %532 = vector.broadcast %cst_181 : f32 to vector<32x1xf32>
    %533 = arith.divf %531, %532 : vector<32x1xf32>
    %cst_182 = arith.constant 9.99999974E-6 : f32
    %534 = vector.broadcast %cst_182 : f32 to vector<32x1xf32>
    %535 = arith.addf %533, %534 : vector<32x1xf32>
    %536 = math.rsqrt %535 : vector<32x1xf32>
    %537 = vector.broadcast %536 : vector<32x1xf32> to vector<32x128xf32>
    %538 = arith.mulf %528, %537 : vector<32x128xf32>
    %539 = vector.broadcast %320 : vector<1x128xf32> to vector<32x128xf32>
    %540 = arith.mulf %538, %539 : vector<32x128xf32>
    %541 = vector.broadcast %321 : vector<1x128xf32> to vector<32x128xf32>
    %542 = arith.addf %540, %541 : vector<32x128xf32>
    %543 = vector.extract_strided_slice %542 {offsets = [0, 0], sizes = [1, 128], strides = [1, 1]} : vector<32x128xf32> to vector<1x128xf32>
    %544 = vector.extract_strided_slice %542 {offsets = [16, 0], sizes = [1, 128], strides = [1, 1]} : vector<32x128xf32> to vector<1x128xf32>
    %545 = tpu.concatenate %543, %544 in 0 : vector<1x128xf32>, vector<1x128xf32> -> vector<2x128xf32>
    %c0_183 = arith.constant 0 : index
    %c0_184 = arith.constant 0 : index
    %c0_185 = arith.constant 0 : index
    %546 = vector.load %arg18[%c0_183, %c0_184, %c0_185] : memref<16x128x64xbf16, #tpu.memory_space<vmem>>, vector<1x128x64xbf16>
    %547 = vector.shape_cast %546 : vector<1x128x64xbf16> to vector<128x64xbf16>
    %548 = arith.truncf %545 : vector<2x128xf32> to vector<2x128xbf16>
    %cst_186 = arith.constant dense<0.000000e+00> : vector<2x64xf32>
    %549 = tpu.matmul %548, %547, %cst_186 {dimension_numbers = #tpu.dot_dimension_numbers<[1], [0], [0], [1], [0, 0, 1, 1], [], []>} : vector<2x128xbf16>, vector<128x64xbf16>, vector<2x64xf32> -> vector<2x64xf32>
    %550 = vector.extract_strided_slice %542 {offsets = [1, 0], sizes = [1, 128], strides = [1, 1]} : vector<32x128xf32> to vector<1x128xf32>
    %551 = vector.extract_strided_slice %542 {offsets = [17, 0], sizes = [1, 128], strides = [1, 1]} : vector<32x128xf32> to vector<1x128xf32>
    %552 = tpu.concatenate %550, %551 in 0 : vector<1x128xf32>, vector<1x128xf32> -> vector<2x128xf32>
    %c1_187 = arith.constant 1 : index
    %c0_188 = arith.constant 0 : index
    %c0_189 = arith.constant 0 : index
    %553 = vector.load %arg18[%c1_187, %c0_188, %c0_189] : memref<16x128x64xbf16, #tpu.memory_space<vmem>>, vector<1x128x64xbf16>
    %554 = vector.shape_cast %553 : vector<1x128x64xbf16> to vector<128x64xbf16>
    %555 = arith.truncf %552 : vector<2x128xf32> to vector<2x128xbf16>
    %cst_190 = arith.constant dense<0.000000e+00> : vector<2x64xf32>
    %556 = tpu.matmul %555, %554, %cst_190 {dimension_numbers = #tpu.dot_dimension_numbers<[1], [0], [0], [1], [0, 0, 1, 1], [], []>} : vector<2x128xbf16>, vector<128x64xbf16>, vector<2x64xf32> -> vector<2x64xf32>
    %557 = vector.extract_strided_slice %542 {offsets = [2, 0], sizes = [1, 128], strides = [1, 1]} : vector<32x128xf32> to vector<1x128xf32>
    %558 = vector.extract_strided_slice %542 {offsets = [18, 0], sizes = [1, 128], strides = [1, 1]} : vector<32x128xf32> to vector<1x128xf32>
    %559 = tpu.concatenate %557, %558 in 0 : vector<1x128xf32>, vector<1x128xf32> -> vector<2x128xf32>
    %c2_191 = arith.constant 2 : index
    %c0_192 = arith.constant 0 : index
    %c0_193 = arith.constant 0 : index
    %560 = vector.load %arg18[%c2_191, %c0_192, %c0_193] : memref<16x128x64xbf16, #tpu.memory_space<vmem>>, vector<1x128x64xbf16>
    %561 = vector.shape_cast %560 : vector<1x128x64xbf16> to vector<128x64xbf16>
    %562 = arith.truncf %559 : vector<2x128xf32> to vector<2x128xbf16>
    %cst_194 = arith.constant dense<0.000000e+00> : vector<2x64xf32>
    %563 = tpu.matmul %562, %561, %cst_194 {dimension_numbers = #tpu.dot_dimension_numbers<[1], [0], [0], [1], [0, 0, 1, 1], [], []>} : vector<2x128xbf16>, vector<128x64xbf16>, vector<2x64xf32> -> vector<2x64xf32>
    %564 = vector.extract_strided_slice %542 {offsets = [3, 0], sizes = [1, 128], strides = [1, 1]} : vector<32x128xf32> to vector<1x128xf32>
    %565 = vector.extract_strided_slice %542 {offsets = [19, 0], sizes = [1, 128], strides = [1, 1]} : vector<32x128xf32> to vector<1x128xf32>
    %566 = tpu.concatenate %564, %565 in 0 : vector<1x128xf32>, vector<1x128xf32> -> vector<2x128xf32>
    %c3_195 = arith.constant 3 : index
    %c0_196 = arith.constant 0 : index
    %c0_197 = arith.constant 0 : index
    %567 = vector.load %arg18[%c3_195, %c0_196, %c0_197] : memref<16x128x64xbf16, #tpu.memory_space<vmem>>, vector<1x128x64xbf16>
    %568 = vector.shape_cast %567 : vector<1x128x64xbf16> to vector<128x64xbf16>
    %569 = arith.truncf %566 : vector<2x128xf32> to vector<2x128xbf16>
    %cst_198 = arith.constant dense<0.000000e+00> : vector<2x64xf32>
    %570 = tpu.matmul %569, %568, %cst_198 {dimension_numbers = #tpu.dot_dimension_numbers<[1], [0], [0], [1], [0, 0, 1, 1], [], []>} : vector<2x128xbf16>, vector<128x64xbf16>, vector<2x64xf32> -> vector<2x64xf32>
    %571 = vector.extract_strided_slice %542 {offsets = [4, 0], sizes = [1, 128], strides = [1, 1]} : vector<32x128xf32> to vector<1x128xf32>
    %572 = vector.extract_strided_slice %542 {offsets = [20, 0], sizes = [1, 128], strides = [1, 1]} : vector<32x128xf32> to vector<1x128xf32>
    %573 = tpu.concatenate %571, %572 in 0 : vector<1x128xf32>, vector<1x128xf32> -> vector<2x128xf32>
    %c4 = arith.constant 4 : index
    %c0_199 = arith.constant 0 : index
    %c0_200 = arith.constant 0 : index
    %574 = vector.load %arg18[%c4, %c0_199, %c0_200] : memref<16x128x64xbf16, #tpu.memory_space<vmem>>, vector<1x128x64xbf16>
    %575 = vector.shape_cast %574 : vector<1x128x64xbf16> to vector<128x64xbf16>
    %576 = arith.truncf %573 : vector<2x128xf32> to vector<2x128xbf16>
    %cst_201 = arith.constant dense<0.000000e+00> : vector<2x64xf32>
    %577 = tpu.matmul %576, %575, %cst_201 {dimension_numbers = #tpu.dot_dimension_numbers<[1], [0], [0], [1], [0, 0, 1, 1], [], []>} : vector<2x128xbf16>, vector<128x64xbf16>, vector<2x64xf32> -> vector<2x64xf32>
    %578 = vector.extract_strided_slice %542 {offsets = [5, 0], sizes = [1, 128], strides = [1, 1]} : vector<32x128xf32> to vector<1x128xf32>
    %579 = vector.extract_strided_slice %542 {offsets = [21, 0], sizes = [1, 128], strides = [1, 1]} : vector<32x128xf32> to vector<1x128xf32>
    %580 = tpu.concatenate %578, %579 in 0 : vector<1x128xf32>, vector<1x128xf32> -> vector<2x128xf32>
    %c5 = arith.constant 5 : index
    %c0_202 = arith.constant 0 : index
    %c0_203 = arith.constant 0 : index
    %581 = vector.load %arg18[%c5, %c0_202, %c0_203] : memref<16x128x64xbf16, #tpu.memory_space<vmem>>, vector<1x128x64xbf16>
    %582 = vector.shape_cast %581 : vector<1x128x64xbf16> to vector<128x64xbf16>
    %583 = arith.truncf %580 : vector<2x128xf32> to vector<2x128xbf16>
    %cst_204 = arith.constant dense<0.000000e+00> : vector<2x64xf32>
    %584 = tpu.matmul %583, %582, %cst_204 {dimension_numbers = #tpu.dot_dimension_numbers<[1], [0], [0], [1], [0, 0, 1, 1], [], []>} : vector<2x128xbf16>, vector<128x64xbf16>, vector<2x64xf32> -> vector<2x64xf32>
    %585 = vector.extract_strided_slice %542 {offsets = [6, 0], sizes = [1, 128], strides = [1, 1]} : vector<32x128xf32> to vector<1x128xf32>
    %586 = vector.extract_strided_slice %542 {offsets = [22, 0], sizes = [1, 128], strides = [1, 1]} : vector<32x128xf32> to vector<1x128xf32>
    %587 = tpu.concatenate %585, %586 in 0 : vector<1x128xf32>, vector<1x128xf32> -> vector<2x128xf32>
    %c6 = arith.constant 6 : index
    %c0_205 = arith.constant 0 : index
    %c0_206 = arith.constant 0 : index
    %588 = vector.load %arg18[%c6, %c0_205, %c0_206] : memref<16x128x64xbf16, #tpu.memory_space<vmem>>, vector<1x128x64xbf16>
    %589 = vector.shape_cast %588 : vector<1x128x64xbf16> to vector<128x64xbf16>
    %590 = arith.truncf %587 : vector<2x128xf32> to vector<2x128xbf16>
    %cst_207 = arith.constant dense<0.000000e+00> : vector<2x64xf32>
    %591 = tpu.matmul %590, %589, %cst_207 {dimension_numbers = #tpu.dot_dimension_numbers<[1], [0], [0], [1], [0, 0, 1, 1], [], []>} : vector<2x128xbf16>, vector<128x64xbf16>, vector<2x64xf32> -> vector<2x64xf32>
    %592 = vector.extract_strided_slice %542 {offsets = [7, 0], sizes = [1, 128], strides = [1, 1]} : vector<32x128xf32> to vector<1x128xf32>
    %593 = vector.extract_strided_slice %542 {offsets = [23, 0], sizes = [1, 128], strides = [1, 1]} : vector<32x128xf32> to vector<1x128xf32>
    %594 = tpu.concatenate %592, %593 in 0 : vector<1x128xf32>, vector<1x128xf32> -> vector<2x128xf32>
    %c7 = arith.constant 7 : index
    %c0_208 = arith.constant 0 : index
    %c0_209 = arith.constant 0 : index
    %595 = vector.load %arg18[%c7, %c0_208, %c0_209] : memref<16x128x64xbf16, #tpu.memory_space<vmem>>, vector<1x128x64xbf16>
    %596 = vector.shape_cast %595 : vector<1x128x64xbf16> to vector<128x64xbf16>
    %597 = arith.truncf %594 : vector<2x128xf32> to vector<2x128xbf16>
    %cst_210 = arith.constant dense<0.000000e+00> : vector<2x64xf32>
    %598 = tpu.matmul %597, %596, %cst_210 {dimension_numbers = #tpu.dot_dimension_numbers<[1], [0], [0], [1], [0, 0, 1, 1], [], []>} : vector<2x128xbf16>, vector<128x64xbf16>, vector<2x64xf32> -> vector<2x64xf32>
    %599 = vector.extract_strided_slice %542 {offsets = [8, 0], sizes = [1, 128], strides = [1, 1]} : vector<32x128xf32> to vector<1x128xf32>
    %600 = vector.extract_strided_slice %542 {offsets = [24, 0], sizes = [1, 128], strides = [1, 1]} : vector<32x128xf32> to vector<1x128xf32>
    %601 = tpu.concatenate %599, %600 in 0 : vector<1x128xf32>, vector<1x128xf32> -> vector<2x128xf32>
    %c8 = arith.constant 8 : index
    %c0_211 = arith.constant 0 : index
    %c0_212 = arith.constant 0 : index
    %602 = vector.load %arg18[%c8, %c0_211, %c0_212] : memref<16x128x64xbf16, #tpu.memory_space<vmem>>, vector<1x128x64xbf16>
    %603 = vector.shape_cast %602 : vector<1x128x64xbf16> to vector<128x64xbf16>
    %604 = arith.truncf %601 : vector<2x128xf32> to vector<2x128xbf16>
    %cst_213 = arith.constant dense<0.000000e+00> : vector<2x64xf32>
    %605 = tpu.matmul %604, %603, %cst_213 {dimension_numbers = #tpu.dot_dimension_numbers<[1], [0], [0], [1], [0, 0, 1, 1], [], []>} : vector<2x128xbf16>, vector<128x64xbf16>, vector<2x64xf32> -> vector<2x64xf32>
    %606 = vector.extract_strided_slice %542 {offsets = [9, 0], sizes = [1, 128], strides = [1, 1]} : vector<32x128xf32> to vector<1x128xf32>
    %607 = vector.extract_strided_slice %542 {offsets = [25, 0], sizes = [1, 128], strides = [1, 1]} : vector<32x128xf32> to vector<1x128xf32>
    %608 = tpu.concatenate %606, %607 in 0 : vector<1x128xf32>, vector<1x128xf32> -> vector<2x128xf32>
    %c9 = arith.constant 9 : index
    %c0_214 = arith.constant 0 : index
    %c0_215 = arith.constant 0 : index
    %609 = vector.load %arg18[%c9, %c0_214, %c0_215] : memref<16x128x64xbf16, #tpu.memory_space<vmem>>, vector<1x128x64xbf16>
    %610 = vector.shape_cast %609 : vector<1x128x64xbf16> to vector<128x64xbf16>
    %611 = arith.truncf %608 : vector<2x128xf32> to vector<2x128xbf16>
    %cst_216 = arith.constant dense<0.000000e+00> : vector<2x64xf32>
    %612 = tpu.matmul %611, %610, %cst_216 {dimension_numbers = #tpu.dot_dimension_numbers<[1], [0], [0], [1], [0, 0, 1, 1], [], []>} : vector<2x128xbf16>, vector<128x64xbf16>, vector<2x64xf32> -> vector<2x64xf32>
    %613 = vector.extract_strided_slice %542 {offsets = [10, 0], sizes = [1, 128], strides = [1, 1]} : vector<32x128xf32> to vector<1x128xf32>
    %614 = vector.extract_strided_slice %542 {offsets = [26, 0], sizes = [1, 128], strides = [1, 1]} : vector<32x128xf32> to vector<1x128xf32>
    %615 = tpu.concatenate %613, %614 in 0 : vector<1x128xf32>, vector<1x128xf32> -> vector<2x128xf32>
    %c10 = arith.constant 10 : index
    %c0_217 = arith.constant 0 : index
    %c0_218 = arith.constant 0 : index
    %616 = vector.load %arg18[%c10, %c0_217, %c0_218] : memref<16x128x64xbf16, #tpu.memory_space<vmem>>, vector<1x128x64xbf16>
    %617 = vector.shape_cast %616 : vector<1x128x64xbf16> to vector<128x64xbf16>
    %618 = arith.truncf %615 : vector<2x128xf32> to vector<2x128xbf16>
    %cst_219 = arith.constant dense<0.000000e+00> : vector<2x64xf32>
    %619 = tpu.matmul %618, %617, %cst_219 {dimension_numbers = #tpu.dot_dimension_numbers<[1], [0], [0], [1], [0, 0, 1, 1], [], []>} : vector<2x128xbf16>, vector<128x64xbf16>, vector<2x64xf32> -> vector<2x64xf32>
    %620 = vector.extract_strided_slice %542 {offsets = [11, 0], sizes = [1, 128], strides = [1, 1]} : vector<32x128xf32> to vector<1x128xf32>
    %621 = vector.extract_strided_slice %542 {offsets = [27, 0], sizes = [1, 128], strides = [1, 1]} : vector<32x128xf32> to vector<1x128xf32>
    %622 = tpu.concatenate %620, %621 in 0 : vector<1x128xf32>, vector<1x128xf32> -> vector<2x128xf32>
    %c11 = arith.constant 11 : index
    %c0_220 = arith.constant 0 : index
    %c0_221 = arith.constant 0 : index
    %623 = vector.load %arg18[%c11, %c0_220, %c0_221] : memref<16x128x64xbf16, #tpu.memory_space<vmem>>, vector<1x128x64xbf16>
    %624 = vector.shape_cast %623 : vector<1x128x64xbf16> to vector<128x64xbf16>
    %625 = arith.truncf %622 : vector<2x128xf32> to vector<2x128xbf16>
    %cst_222 = arith.constant dense<0.000000e+00> : vector<2x64xf32>
    %626 = tpu.matmul %625, %624, %cst_222 {dimension_numbers = #tpu.dot_dimension_numbers<[1], [0], [0], [1], [0, 0, 1, 1], [], []>} : vector<2x128xbf16>, vector<128x64xbf16>, vector<2x64xf32> -> vector<2x64xf32>
    %627 = vector.extract_strided_slice %542 {offsets = [12, 0], sizes = [1, 128], strides = [1, 1]} : vector<32x128xf32> to vector<1x128xf32>
    %628 = vector.extract_strided_slice %542 {offsets = [28, 0], sizes = [1, 128], strides = [1, 1]} : vector<32x128xf32> to vector<1x128xf32>
    %629 = tpu.concatenate %627, %628 in 0 : vector<1x128xf32>, vector<1x128xf32> -> vector<2x128xf32>
    %c12 = arith.constant 12 : index
    %c0_223 = arith.constant 0 : index
    %c0_224 = arith.constant 0 : index
    %630 = vector.load %arg18[%c12, %c0_223, %c0_224] : memref<16x128x64xbf16, #tpu.memory_space<vmem>>, vector<1x128x64xbf16>
    %631 = vector.shape_cast %630 : vector<1x128x64xbf16> to vector<128x64xbf16>
    %632 = arith.truncf %629 : vector<2x128xf32> to vector<2x128xbf16>
    %cst_225 = arith.constant dense<0.000000e+00> : vector<2x64xf32>
    %633 = tpu.matmul %632, %631, %cst_225 {dimension_numbers = #tpu.dot_dimension_numbers<[1], [0], [0], [1], [0, 0, 1, 1], [], []>} : vector<2x128xbf16>, vector<128x64xbf16>, vector<2x64xf32> -> vector<2x64xf32>
    %634 = vector.extract_strided_slice %542 {offsets = [13, 0], sizes = [1, 128], strides = [1, 1]} : vector<32x128xf32> to vector<1x128xf32>
    %635 = vector.extract_strided_slice %542 {offsets = [29, 0], sizes = [1, 128], strides = [1, 1]} : vector<32x128xf32> to vector<1x128xf32>
    %636 = tpu.concatenate %634, %635 in 0 : vector<1x128xf32>, vector<1x128xf32> -> vector<2x128xf32>
    %c13 = arith.constant 13 : index
    %c0_226 = arith.constant 0 : index
    %c0_227 = arith.constant 0 : index
    %637 = vector.load %arg18[%c13, %c0_226, %c0_227] : memref<16x128x64xbf16, #tpu.memory_space<vmem>>, vector<1x128x64xbf16>
    %638 = vector.shape_cast %637 : vector<1x128x64xbf16> to vector<128x64xbf16>
    %639 = arith.truncf %636 : vector<2x128xf32> to vector<2x128xbf16>
    %cst_228 = arith.constant dense<0.000000e+00> : vector<2x64xf32>
    %640 = tpu.matmul %639, %638, %cst_228 {dimension_numbers = #tpu.dot_dimension_numbers<[1], [0], [0], [1], [0, 0, 1, 1], [], []>} : vector<2x128xbf16>, vector<128x64xbf16>, vector<2x64xf32> -> vector<2x64xf32>
    %641 = vector.extract_strided_slice %542 {offsets = [14, 0], sizes = [1, 128], strides = [1, 1]} : vector<32x128xf32> to vector<1x128xf32>
    %642 = vector.extract_strided_slice %542 {offsets = [30, 0], sizes = [1, 128], strides = [1, 1]} : vector<32x128xf32> to vector<1x128xf32>
    %643 = tpu.concatenate %641, %642 in 0 : vector<1x128xf32>, vector<1x128xf32> -> vector<2x128xf32>
    %c14 = arith.constant 14 : index
    %c0_229 = arith.constant 0 : index
    %c0_230 = arith.constant 0 : index
    %644 = vector.load %arg18[%c14, %c0_229, %c0_230] : memref<16x128x64xbf16, #tpu.memory_space<vmem>>, vector<1x128x64xbf16>
    %645 = vector.shape_cast %644 : vector<1x128x64xbf16> to vector<128x64xbf16>
    %646 = arith.truncf %643 : vector<2x128xf32> to vector<2x128xbf16>
    %cst_231 = arith.constant dense<0.000000e+00> : vector<2x64xf32>
    %647 = tpu.matmul %646, %645, %cst_231 {dimension_numbers = #tpu.dot_dimension_numbers<[1], [0], [0], [1], [0, 0, 1, 1], [], []>} : vector<2x128xbf16>, vector<128x64xbf16>, vector<2x64xf32> -> vector<2x64xf32>
    %648 = vector.extract_strided_slice %542 {offsets = [15, 0], sizes = [1, 128], strides = [1, 1]} : vector<32x128xf32> to vector<1x128xf32>
    %649 = vector.extract_strided_slice %542 {offsets = [31, 0], sizes = [1, 128], strides = [1, 1]} : vector<32x128xf32> to vector<1x128xf32>
    %650 = tpu.concatenate %648, %649 in 0 : vector<1x128xf32>, vector<1x128xf32> -> vector<2x128xf32>
    %c15 = arith.constant 15 : index
    %c0_232 = arith.constant 0 : index
    %c0_233 = arith.constant 0 : index
    %651 = vector.load %arg18[%c15, %c0_232, %c0_233] : memref<16x128x64xbf16, #tpu.memory_space<vmem>>, vector<1x128x64xbf16>
    %652 = vector.shape_cast %651 : vector<1x128x64xbf16> to vector<128x64xbf16>
    %653 = arith.truncf %650 : vector<2x128xf32> to vector<2x128xbf16>
    %cst_234 = arith.constant dense<0.000000e+00> : vector<2x64xf32>
    %654 = tpu.matmul %653, %652, %cst_234 {dimension_numbers = #tpu.dot_dimension_numbers<[1], [0], [0], [1], [0, 0, 1, 1], [], []>} : vector<2x128xbf16>, vector<128x64xbf16>, vector<2x64xf32> -> vector<2x64xf32>
    %655 = arith.addf %549, %556 : vector<2x64xf32>
    %656 = arith.addf %563, %570 : vector<2x64xf32>
    %657 = arith.addf %577, %584 : vector<2x64xf32>
    %658 = arith.addf %591, %598 : vector<2x64xf32>
    %659 = arith.addf %605, %612 : vector<2x64xf32>
    %660 = arith.addf %619, %626 : vector<2x64xf32>
    %661 = arith.addf %633, %640 : vector<2x64xf32>
    %662 = arith.addf %647, %654 : vector<2x64xf32>
    %663 = arith.addf %655, %656 : vector<2x64xf32>
    %664 = arith.addf %657, %658 : vector<2x64xf32>
    %665 = arith.addf %659, %660 : vector<2x64xf32>
    %666 = arith.addf %661, %662 : vector<2x64xf32>
    %667 = arith.addf %663, %664 : vector<2x64xf32>
    %668 = arith.addf %665, %666 : vector<2x64xf32>
    %669 = arith.addf %667, %668 : vector<2x64xf32>
    %670 = vector.broadcast %4 : vector<1x64xf32> to vector<2x64xf32>
    %671 = arith.addf %669, %670 : vector<2x64xf32>
    %672 = vector.extract_strided_slice %671 {offsets = [0, 0], sizes = [1, 64], strides = [1, 1]} : vector<2x64xf32> to vector<1x64xf32>
    %c0_235 = arith.constant 0 : index
    %c0_236 = arith.constant 0 : index
    %c0_237 = arith.constant 0 : index
    %673 = vector.load %arg19[%c0_235, %c0_236, %c0_237] : memref<2x1x64xf32, #tpu.memory_space<vmem>>, vector<1x1x64xf32>
    %674 = vector.shape_cast %673 : vector<1x1x64xf32> to vector<1x64xf32>
    %675 = vector.shape_cast %672 : vector<1x64xf32> to vector<1x1x64xf32>
    tpu.vector_store %arg19[%c0_235, %c0_236, %c0_237], %675 {strides = array<i32>} : memref<2x1x64xf32, #tpu.memory_space<vmem>>, vector<1x1x64xf32>,
    %676 = vector.extract_strided_slice %671 {offsets = [1, 0], sizes = [1, 64], strides = [1, 1]} : vector<2x64xf32> to vector<1x64xf32>
    %c1_238 = arith.constant 1 : index
    %c0_239 = arith.constant 0 : index
    %c0_240 = arith.constant 0 : index
    %677 = vector.load %arg19[%c1_238, %c0_239, %c0_240] : memref<2x1x64xf32, #tpu.memory_space<vmem>>, vector<1x1x64xf32>
    %678 = vector.shape_cast %677 : vector<1x1x64xf32> to vector<1x64xf32>
    %679 = vector.shape_cast %676 : vector<1x64xf32> to vector<1x1x64xf32>
    tpu.vector_store %arg19[%c1_238, %c0_239, %c0_240], %679 {strides = array<i32>} : memref<2x1x64xf32, #tpu.memory_space<vmem>>, vector<1x1x64xf32>,
    return
  }
  func.func @transform_0(%arg0: i32) -> (i32, i32, i32) {
    %c0_i32 = arith.constant 0 : i32
    %c0_i32_0 = arith.constant 0 : i32
    %c0_i32_1 = arith.constant 0 : i32
    return %arg0, %c0_i32, %c0_i32_0 : i32, i32, i32
  }
  func.func @transform_1(%arg0: i32) -> (i32, i32) {
    %c0_i32 = arith.constant 0 : i32
    %c0_i32_0 = arith.constant 0 : i32
    %c0_i32_1 = arith.constant 0 : i32
    return %c0_i32, %c0_i32_0 : i32, i32
  }
  func.func @transform_2(%arg0: i32) -> (i32, i32) {
    %c0_i32 = arith.constant 0 : i32
    %c0_i32_0 = arith.constant 0 : i32
    %c0_i32_1 = arith.constant 0 : i32
    return %c0_i32, %c0_i32_0 : i32, i32
  }
  func.func @transform_3(%arg0: i32) -> (i32, i32) {
    %c0_i32 = arith.constant 0 : i32
    %c0_i32_0 = arith.constant 0 : i32
    %c0_i32_1 = arith.constant 0 : i32
    return %c0_i32, %c0_i32_0 : i32, i32
  }
  func.func @transform_4(%arg0: i32) -> (i32, i32, i32) {
    %c0_i32 = arith.constant 0 : i32
    %c0_i32_0 = arith.constant 0 : i32
    %c0_i32_1 = arith.constant 0 : i32
    %c0_i32_2 = arith.constant 0 : i32
    return %c0_i32, %c0_i32_0, %c0_i32_1 : i32, i32, i32
  }
  func.func @transform_5(%arg0: i32) -> (i32, i32) {
    %c0_i32 = arith.constant 0 : i32
    %c0_i32_0 = arith.constant 0 : i32
    %c0_i32_1 = arith.constant 0 : i32
    return %c0_i32, %c0_i32_0 : i32, i32
  }
  func.func @transform_6(%arg0: i32) -> (i32, i32) {
    %c0_i32 = arith.constant 0 : i32
    %c0_i32_0 = arith.constant 0 : i32
    %c0_i32_1 = arith.constant 0 : i32
    return %c0_i32, %c0_i32_0 : i32, i32
  }
  func.func @transform_7(%arg0: i32) -> (i32, i32) {
    %c0_i32 = arith.constant 0 : i32
    %c0_i32_0 = arith.constant 0 : i32
    %c0_i32_1 = arith.constant 0 : i32
    return %c0_i32, %c0_i32_0 : i32, i32
  }
  func.func @transform_8(%arg0: i32) -> (i32, i32) {
    %c0_i32 = arith.constant 0 : i32
    %c0_i32_0 = arith.constant 0 : i32
    %c0_i32_1 = arith.constant 0 : i32
    return %c0_i32, %c0_i32_0 : i32, i32
  }
  func.func @transform_9(%arg0: i32) -> (i32, i32) {
    %c0_i32 = arith.constant 0 : i32
    %c0_i32_0 = arith.constant 0 : i32
    %c0_i32_1 = arith.constant 0 : i32
    return %c0_i32, %c0_i32_0 : i32, i32
  }
  func.func @transform_10(%arg0: i32) -> (i32, i32) {
    %c0_i32 = arith.constant 0 : i32
    %c0_i32_0 = arith.constant 0 : i32
    %c0_i32_1 = arith.constant 0 : i32
    return %c0_i32, %c0_i32_0 : i32, i32
  }
  func.func @transform_11(%arg0: i32) -> (i32, i32) {
    %c0_i32 = arith.constant 0 : i32
    %c0_i32_0 = arith.constant 0 : i32
    %c0_i32_1 = arith.constant 0 : i32
    return %c0_i32, %c0_i32_0 : i32, i32
  }
  func.func @transform_12(%arg0: i32) -> (i32, i32) {
    %c0_i32 = arith.constant 0 : i32
    %c0_i32_0 = arith.constant 0 : i32
    %c0_i32_1 = arith.constant 0 : i32
    return %c0_i32, %c0_i32_0 : i32, i32
  }
  func.func @transform_13(%arg0: i32) -> (i32, i32) {
    %c0_i32 = arith.constant 0 : i32
    %c0_i32_0 = arith.constant 0 : i32
    %c0_i32_1 = arith.constant 0 : i32
    return %c0_i32, %c0_i32_0 : i32, i32
  }
  func.func @transform_14(%arg0: i32) -> (i32, i32) {
    %c0_i32 = arith.constant 0 : i32
    %c0_i32_0 = arith.constant 0 : i32
    %c0_i32_1 = arith.constant 0 : i32
    return %c0_i32, %c0_i32_0 : i32, i32
  }
  func.func @transform_15(%arg0: i32) -> (i32, i32) {
    %c0_i32 = arith.constant 0 : i32
    %c0_i32_0 = arith.constant 0 : i32
    %c0_i32_1 = arith.constant 0 : i32
    return %c0_i32, %c0_i32_0 : i32, i32
  }
  func.func @transform_16(%arg0: i32) -> (i32, i32) {
    %c0_i32 = arith.constant 0 : i32
    %c0_i32_0 = arith.constant 0 : i32
    %c0_i32_1 = arith.constant 0 : i32
    return %c0_i32, %c0_i32_0 : i32, i32
  }
  func.func @transform_17(%arg0: i32) -> (i32, i32, i32) {
    %c0_i32 = arith.constant 0 : i32
    %c0_i32_0 = arith.constant 0 : i32
    %c0_i32_1 = arith.constant 0 : i32
    %c0_i32_2 = arith.constant 0 : i32
    return %c0_i32, %c0_i32_0, %c0_i32_1 : i32, i32, i32
  }
  func.func @transform_18(%arg0: i32) -> (i32, i32, i32) {
    %c0_i32 = arith.constant 0 : i32
    %c0_i32_0 = arith.constant 0 : i32
    %c0_i32_1 = arith.constant 0 : i32
    return %arg0, %c0_i32, %c0_i32_0 : i32, i32, i32
  }
}

</mosaic_0001>

<llo_original>
// kernel: data_trajectory_forward.1
$region0: #{data_trajectory_forward.1}
  #allocation0 [shape = 'u32[]', space=smem, size = 0x4, offset = 0x4, fixed_abs, tag = 'smem constant byte address 0x4 - core index']
  #allocation1 [shape = 'u32[72,128]{1,0:T(1,128)}', space=vmem, size = 0x9000, scoped, tag = 'internal scratch']
  %s0 = inlined_call_operand.vmem [shape: f32[2,4,12], index: 0, kind: input, shape index: {}]
  %s1 = inlined_call_operand.vmem [shape: bf16[12,32], index: 1, kind: input, shape index: {}]
  %s2 = inlined_call_operand.vmem [shape: bf16[32,8], index: 2, kind: input, shape index: {}]
  %s3 = inlined_call_operand.vmem [shape: bf16[8,128], index: 3, kind: input, shape index: {}]
  %s4 = inlined_call_operand.vmem [shape: bf16[4,128,128], index: 4, kind: input, shape index: {}]
  %s5 = inlined_call_operand.vmem [shape: f32[16,128], index: 5, kind: input, shape index: {}]
  %s6 = inlined_call_operand.vmem [shape: f32[8,128], index: 6, kind: input, shape index: {}]
  %s7 = inlined_call_operand.vmem [shape: bf16[128,384], index: 7, kind: input, shape index: {}]
  %s8 = inlined_call_operand.vmem [shape: bf16[128,128], index: 8, kind: input, shape index: {}]
  %s9 = inlined_call_operand.vmem [shape: bf16[128,384], index: 9, kind: input, shape index: {}]
  %s10 = inlined_call_operand.vmem [shape: bf16[384,128], index: 10, kind: input, shape index: {}]
  %s11 = inlined_call_operand.vmem [shape: f32[8,384], index: 11, kind: input, shape index: {}]
  %s12 = inlined_call_operand.vmem [shape: bf16[128,384], index: 12, kind: input, shape index: {}]
  %s13 = inlined_call_operand.vmem [shape: bf16[128,128], index: 13, kind: input, shape index: {}]
  %s14 = inlined_call_operand.vmem [shape: bf16[128,384], index: 14, kind: input, shape index: {}]
  %s15 = inlined_call_operand.vmem [shape: bf16[384,128], index: 15, kind: input, shape index: {}]
  %s16 = inlined_call_operand.vmem [shape: f32[8,384], index: 16, kind: input, shape index: {}]
  %s17 = inlined_call_operand.vmem [shape: bf16[16,128,64], index: 17, kind: input, shape index: {}]
  %s18 = inlined_call_operand.vmem [shape: f32[2,1,64], index: 18, kind: output, shape index: {}]
  %s19 = sld [smem:[#allocation0]]
  $region82: #{data_trajectory_forward.1} parent=0
    _
  %s21 = ssub.s32 1, %s19
  %s22 = scalar_select 0, %s21, %s19
  // Predicated region
  $region2: #{data_trajectory_forward.1} parent=0 // pred_check
    _
  $region3: #{data_trajectory_forward.1} parent=0 // pred_check_branch
    %24 = sbr.rel (0) target = $region5
  $region4: #{data_trajectory_forward.1} parent=0 // pred_region
    _
  $region5: #{data_trajectory_forward.1} parent=0 // pred_fallthru
    _
  // Predicated region
  $region6: #{data_trajectory_forward.1} parent=0 // pred_check
    _
  $region7: #{data_trajectory_forward.1} parent=0 // pred_check_branch
    %26 = sbr.rel (0) target = $region9
  $region8: #{data_trajectory_forward.1} parent=0 // pred_region
    _
  $region9: #{data_trajectory_forward.1} parent=0 // pred_fallthru
    _
  // Predicated region
  $region10: #{data_trajectory_forward.1} parent=0 // pred_check
    _
  $region11: #{data_trajectory_forward.1} parent=0 // pred_check_branch
    %28 = sbr.rel (0) target = $region13
  $region12: #{data_trajectory_forward.1} parent=0 // pred_region
    _
  $region13: #{data_trajectory_forward.1} parent=0 // pred_fallthru
    _
  // Predicated region
  $region14: #{data_trajectory_forward.1} parent=0 // pred_check
    _
  $region15: #{data_trajectory_forward.1} parent=0 // pred_check_branch
    %30 = sbr.rel (0) target = $region17
  $region16: #{data_trajectory_forward.1} parent=0 // pred_region
    _
  $region17: #{data_trajectory_forward.1} parent=0 // pred_fallthru
    _
  // Predicated region
  $region18: #{data_trajectory_forward.1} parent=0 // pred_check
    _
  $region19: #{data_trajectory_forward.1} parent=0 // pred_check_branch
    %32 = sbr.rel (0) target = $region21
  $region20: #{data_trajectory_forward.1} parent=0 // pred_region
    _
  $region21: #{data_trajectory_forward.1} parent=0 // pred_fallthru
    _
  // Predicated region
  $region22: #{data_trajectory_forward.1} parent=0 // pred_check
    _
  $region23: #{data_trajectory_forward.1} parent=0 // pred_check_branch
    %34 = sbr.rel (0) target = $region25
  $region24: #{data_trajectory_forward.1} parent=0 // pred_region
    _
  $region25: #{data_trajectory_forward.1} parent=0 // pred_fallthru
    _
  // Predicated region
  $region26: #{data_trajectory_forward.1} parent=0 // pred_check
    _
  $region27: #{data_trajectory_forward.1} parent=0 // pred_check_branch
    %36 = sbr.rel (0) target = $region29
  $region28: #{data_trajectory_forward.1} parent=0 // pred_region
    _
  $region29: #{data_trajectory_forward.1} parent=0 // pred_fallthru
    _
  // Predicated region
  $region30: #{data_trajectory_forward.1} parent=0 // pred_check
    _
  $region31: #{data_trajectory_forward.1} parent=0 // pred_check_branch
    %38 = sbr.rel (0) target = $region33
  $region32: #{data_trajectory_forward.1} parent=0 // pred_region
    _
  $region33: #{data_trajectory_forward.1} parent=0 // pred_fallthru
    _
  // Predicated region
  $region34: #{data_trajectory_forward.1} parent=0 // pred_check
    _
  $region35: #{data_trajectory_forward.1} parent=0 // pred_check_branch
    %40 = sbr.rel (0) target = $region37
  $region36: #{data_trajectory_forward.1} parent=0 // pred_region
    _
  $region37: #{data_trajectory_forward.1} parent=0 // pred_fallthru
    _
  // Predicated region
  $region38: #{data_trajectory_forward.1} parent=0 // pred_check
    _
  $region39: #{data_trajectory_forward.1} parent=0 // pred_check_branch
    %42 = sbr.rel (0) target = $region41
  $region40: #{data_trajectory_forward.1} parent=0 // pred_region
    _
  $region41: #{data_trajectory_forward.1} parent=0 // pred_fallthru
    _
  // Predicated region
  $region42: #{data_trajectory_forward.1} parent=0 // pred_check
    _
  $region43: #{data_trajectory_forward.1} parent=0 // pred_check_branch
    %44 = sbr.rel (0) target = $region45
  $region44: #{data_trajectory_forward.1} parent=0 // pred_region
    _
  $region45: #{data_trajectory_forward.1} parent=0 // pred_fallthru
    _
  // Predicated region
  $region46: #{data_trajectory_forward.1} parent=0 // pred_check
    _
  $region47: #{data_trajectory_forward.1} parent=0 // pred_check_branch
    %46 = sbr.rel (0) target = $region49
  $region48: #{data_trajectory_forward.1} parent=0 // pred_region
    _
  $region49: #{data_trajectory_forward.1} parent=0 // pred_fallthru
    _
  // Predicated region
  $region50: #{data_trajectory_forward.1} parent=0 // pred_check
    _
  $region51: #{data_trajectory_forward.1} parent=0 // pred_check_branch
    %48 = sbr.rel (0) target = $region53
  $region52: #{data_trajectory_forward.1} parent=0 // pred_region
    _
  $region53: #{data_trajectory_forward.1} parent=0 // pred_fallthru
    _
  // Predicated region
  $region54: #{data_trajectory_forward.1} parent=0 // pred_check
    _
  $region55: #{data_trajectory_forward.1} parent=0 // pred_check_branch
    %50 = sbr.rel (0) target = $region57
  $region56: #{data_trajectory_forward.1} parent=0 // pred_region
    _
  $region57: #{data_trajectory_forward.1} parent=0 // pred_fallthru
    _
  // Predicated region
  $region58: #{data_trajectory_forward.1} parent=0 // pred_check
    _
  $region59: #{data_trajectory_forward.1} parent=0 // pred_check_branch
    %52 = sbr.rel (0) target = $region61
  $region60: #{data_trajectory_forward.1} parent=0 // pred_region
    _
  $region61: #{data_trajectory_forward.1} parent=0 // pred_fallthru
    _
  // Predicated region
  $region62: #{data_trajectory_forward.1} parent=0 // pred_check
    _
  $region63: #{data_trajectory_forward.1} parent=0 // pred_check_branch
    %54 = sbr.rel (0) target = $region65
  $region64: #{data_trajectory_forward.1} parent=0 // pred_region
    _
  $region65: #{data_trajectory_forward.1} parent=0 // pred_fallthru
    _
  // Predicated region
  $region66: #{data_trajectory_forward.1} parent=0 // pred_check
    _
  $region67: #{data_trajectory_forward.1} parent=0 // pred_check_branch
    %56 = sbr.rel (0) target = $region69
  $region68: #{data_trajectory_forward.1} parent=0 // pred_region
    _
  $region69: #{data_trajectory_forward.1} parent=0 // pred_fallthru
    _
  // Predicated region
  $region70: #{data_trajectory_forward.1} parent=0 // pred_check
    _
  $region71: #{data_trajectory_forward.1} parent=0 // pred_check_branch
    %58 = sbr.rel (0) target = $region73
  $region72: #{data_trajectory_forward.1} parent=0 // pred_region
    _
  $region73: #{data_trajectory_forward.1} parent=0 // pred_fallthru
    _
  %v60 = vld [vmem:[%s6] sm:$0xff]
  %v61 = vld [vmem:[%s5] sm:$0xff]
  %v62 = vld [vmem:[%s5 + $0x8] sm:$0xff]
  %v63 = vld [vmem:[%s0] sm:$0xf]
  %v64 = vld [vmem:[%s1] sm:$0xf]
  %v65 = vld [vmem:[%s1 + $0x4] sm:$0x3]
  %v66 = vpack.c.bf16 %v63, %v63
  %v67 = vperm.slane %v60, 0
  %v70 = vunpack.c.l.b16 %v64
  %v71 = vunpack.c.l.b16 %v65
  %v72 = vpack.c.b16 %v71, %v70
  %vm73 = vcmask 97280
  %v75 = vsel %vm73, %v66, 0
  %vm77 = vcmask 1045504
  %v79 = vsel %vm77, %v72, 0
  %81 = vmatpush.bf16.msra.mxu0 0
  %82 = vmatpush.bf16.msra.mxu0 0
  %83 = vmatpush.bf16.msra.mxu0 0
  %84 = vmatpush.bf16.msra.mxu0 0
  %85 = vmatpush.bf16.msra.mxu0 0
  %86 = vmatpush.bf16.msra.mxu0 0
  %87 = vmatpush.bf16.msra.mxu0 0
  %88 = vmatpush.bf16.msra.mxu0 %v79
  %89 = vmatmul.bf16.gmra.mxu0 %v75
  %v90 = vpop.f32.mrf.mxu0
  %v91 = vadd.f32 %v67, %v90
  %v92 = vpop.f32.mrf.mxu0
  %93 = vdwg.mxu0
  %v94 = vtanh.pop %v91
  %v95 = vld [vmem:[%s2] sm:$0xf]
  %v96 = vld [vmem:[%s2 + $0x4] sm:$0xf]
  %v97 = vld [vmem:[%s2 + $0x8] sm:$0xf]
  %v98 = vld [vmem:[%s2 + $0xc] sm:$0xf]
  %v99 = vpack.c.bf16 %v94, %v94
  %v100 = vperm.slane %v60, 1
  %v105 = vunpack.c.l.b16 %v95
  %v106 = vunpack.c.l.b16 %v96
  %v107 = vunpack.c.l.b16 %v97
  %v108 = vunpack.c.l.b16 %v98
  %v109 = vpack.c.b16 %v106, %v105
  %v110 = vpack.c.b16 %v108, %v107
  %vm113 = vcmask 261120
  %v115 = vsel %vm113, %v99, 0
  %117 = vmatpush.bf16.msra.mxu0 0
  %118 = vmatpush.bf16.msra.mxu0 0
  %119 = vmatpush.bf16.msra.mxu0 0
  %120 = vmatpush.bf16.msra.mxu0 0
  %121 = vmatpush.bf16.msra.mxu0 0
  %122 = vmatpush.bf16.msra.mxu0 0
  %123 = vmatpush.bf16.msra.mxu0 %v110
  %124 = vmatpush.bf16.msra.mxu0 %v109
  %125 = vmatmul.bf16.gmra.mxu0 %v115
  %v126 = vpop.f32.mrf.mxu0
  %v127 = vadd.f32 %v100, %v126
  %v128 = vpop.f32.mrf.mxu0
  %129 = vdwg.mxu0
  %v130 = vld [vmem:[%s3] sm:$0xf]
  %v131 = vpack.c.bf16 %v127, %v127
  %v132 = vperm.slane %v60, 2
  %vm133 = vcmask 64512
  %v135 = vsel %vm133, %v131, 0
  %vm137 = vcmask 1043456
  %v139 = vsel %vm137, %v130, 0
  %141 = vmatpush.bf16.msra.mxu0 0
  %142 = vmatpush.bf16.msra.mxu0 0
  %143 = vmatpush.bf16.msra.mxu0 0
  %144 = vmatpush.bf16.msra.mxu0 0
  %145 = vmatpush.bf16.msra.mxu0 0
  %146 = vmatpush.bf16.msra.mxu0 0
  %147 = vmatpush.bf16.msra.mxu0 0
  %148 = vmatpush.bf16.msra.mxu0 %v139
  %149 = vmatmul.bf16.gmra.mxu0 %v135
  %v150 = vpop.f32.mrf.mxu0
  %v151 = vadd.f32 %v132, %v150
  %v152 = vpop.f32.mrf.mxu0
  %153 = vdwg.mxu0
  %v154 = vmax.f32 %v151, 0.0
  %v155 = vld [vmem:[%s4] sm:$0xf]
  %v156 = vld [vmem:[%s4 + $0x4] sm:$0xf]
  %v157 = vld [vmem:[%s4 + $0x8] sm:$0xf]
  %v158 = vld [vmem:[%s4 + $0xc] sm:$0xf]
  %v159 = vld [vmem:[%s4 + $0x10] sm:$0xf]
  %v160 = vld [vmem:[%s4 + $0x14] sm:$0xf]
  %v161 = vld [vmem:[%s4 + $0x18] sm:$0xf]
  %v162 = vld [vmem:[%s4 + $0x1c] sm:$0xf]
  %v163 = vld [vmem:[%s4 + $0x20] sm:$0xf]
  %v164 = vld [vmem:[%s4 + $0x24] sm:$0xf]
  %v165 = vld [vmem:[%s4 + $0x28] sm:$0xf]
  %v166 = vld [vmem:[%s4 + $0x2c] sm:$0xf]
  %v167 = vld [vmem:[%s4 + $0x30] sm:$0xf]
  %v168 = vld [vmem:[%s4 + $0x34] sm:$0xf]
  %v169 = vld [vmem:[%s4 + $0x38] sm:$0xf]
  %v170 = vld [vmem:[%s4 + $0x3c] sm:$0xf]
  %v171 = vpack.c.bf16 %v154, %v154
  %v188 = vunpack.c.l.b16 %v155
  %v189 = vunpack.c.l.b16 %v156
  %v190 = vunpack.c.l.b16 %v157
  %v191 = vunpack.c.l.b16 %v158
  %v192 = vunpack.c.l.b16 %v159
  %v193 = vunpack.c.l.b16 %v160
  %v194 = vunpack.c.l.b16 %v161
  %v195 = vunpack.c.l.b16 %v162
  %v196 = vunpack.c.l.b16 %v163
  %v197 = vunpack.c.l.b16 %v164
  %v198 = vunpack.c.l.b16 %v165
  %v199 = vunpack.c.l.b16 %v166
  %v200 = vunpack.c.l.b16 %v167
  %v201 = vunpack.c.l.b16 %v168
  %v202 = vunpack.c.l.b16 %v169
  %v203 = vunpack.c.l.b16 %v170
  %v204 = vpack.c.b16 %v189, %v188
  %v205 = vpack.c.b16 %v191, %v190
  %v206 = vpack.c.b16 %v193, %v192
  %v207 = vpack.c.b16 %v195, %v194
  %v208 = vpack.c.b16 %v197, %v196
  %v209 = vpack.c.b16 %v199, %v198
  %v210 = vpack.c.b16 %v201, %v200
  %v211 = vpack.c.b16 %v203, %v202
  %220 = vmatpush.bf16.msra.mxu0 %v211
  %221 = vmatpush.bf16.msra.mxu0 %v210
  %222 = vmatpush.bf16.msra.mxu0 %v209
  %223 = vmatpush.bf16.msra.mxu0 %v208
  %224 = vmatpush.bf16.msra.mxu0 %v207
  %225 = vmatpush.bf16.msra.mxu0 %v206
  %226 = vmatpush.bf16.msra.mxu0 %v205
  %227 = vmatpush.bf16.msra.mxu0 %v204
  %228 = vmatmul.bf16.gmra.mxu0 %v171
  %v229 = vpop.f32.mrf.mxu0
  %v230 = vadd.f32 0.0, %v229
  %v231 = vpop.f32.mrf.mxu0
  %232 = vdwg.mxu0
  %s233 = scalar_lea.vmem %s4, 64
  %v234 = vld [vmem:[%s233] sm:$0xf]
  %v235 = vld [vmem:[%s233 + $0x4] sm:$0xf]
  %v236 = vld [vmem:[%s233 + $0x8] sm:$0xf]
  %v237 = vld [vmem:[%s233 + $0xc] sm:$0xf]
  %v238 = vld [vmem:[%s233 + $0x10] sm:$0xf]
  %v239 = vld [vmem:[%s233 + $0x14] sm:$0xf]
  %v240 = vld [vmem:[%s233 + $0x18] sm:$0xf]
  %v241 = vld [vmem:[%s233 + $0x1c] sm:$0xf]
  %v242 = vld [vmem:[%s233 + $0x20] sm:$0xf]
  %v243 = vld [vmem:[%s233 + $0x24] sm:$0xf]
  %v244 = vld [vmem:[%s233 + $0x28] sm:$0xf]
  %v245 = vld [vmem:[%s233 + $0x2c] sm:$0xf]
  %v246 = vld [vmem:[%s233 + $0x30] sm:$0xf]
  %v247 = vld [vmem:[%s233 + $0x34] sm:$0xf]
  %v248 = vld [vmem:[%s233 + $0x38] sm:$0xf]
  %v249 = vld [vmem:[%s233 + $0x3c] sm:$0xf]
  %v266 = vunpack.c.l.b16 %v234
  %v267 = vunpack.c.l.b16 %v235
  %v268 = vunpack.c.l.b16 %v236
  %v269 = vunpack.c.l.b16 %v237
  %v270 = vunpack.c.l.b16 %v238
  %v271 = vunpack.c.l.b16 %v239
  %v272 = vunpack.c.l.b16 %v240
  %v273 = vunpack.c.l.b16 %v241
  %v274 = vunpack.c.l.b16 %v242
  %v275 = vunpack.c.l.b16 %v243
  %v276 = vunpack.c.l.b16 %v244
  %v277 = vunpack.c.l.b16 %v245
  %v278 = vunpack.c.l.b16 %v246
  %v279 = vunpack.c.l.b16 %v247
  %v280 = vunpack.c.l.b16 %v248
  %v281 = vunpack.c.l.b16 %v249
  %v282 = vpack.c.b16 %v267, %v266
  %v283 = vpack.c.b16 %v269, %v268
  %v284 = vpack.c.b16 %v271, %v270
  %v285 = vpack.c.b16 %v273, %v272
  %v286 = vpack.c.b16 %v275, %v274
  %v287 = vpack.c.b16 %v277, %v276
  %v288 = vpack.c.b16 %v279, %v278
  %v289 = vpack.c.b16 %v281, %v280
  %298 = vmatpush.bf16.msra.mxu0 %v289
  %299 = vmatpush.bf16.msra.mxu0 %v288
  %300 = vmatpush.bf16.msra.mxu0 %v287
  %301 = vmatpush.bf16.msra.mxu0 %v286
  %302 = vmatpush.bf16.msra.mxu0 %v285
  %303 = vmatpush.bf16.msra.mxu0 %v284
  %304 = vmatpush.bf16.msra.mxu0 %v283
  %305 = vmatpush.bf16.msra.mxu0 %v282
  %306 = vmatmul.bf16.gmra.mxu0 %v171
  %v307 = vpop.f32.mrf.mxu0
  %v308 = vadd.f32 0.0, %v307
  %v309 = vpop.f32.mrf.mxu0
  %310 = vdwg.mxu0
  %s311 = scalar_lea.vmem %s4, 128
  %v312 = vld [vmem:[%s311] sm:$0xf]
  %v313 = vld [vmem:[%s311 + $0x4] sm:$0xf]
  %v314 = vld [vmem:[%s311 + $0x8] sm:$0xf]
  %v315 = vld [vmem:[%s311 + $0xc] sm:$0xf]
  %v316 = vld [vmem:[%s311 + $0x10] sm:$0xf]
  %v317 = vld [vmem:[%s311 + $0x14] sm:$0xf]
  %v318 = vld [vmem:[%s311 + $0x18] sm:$0xf]
  %v319 = vld [vmem:[%s311 + $0x1c] sm:$0xf]
  %v320 = vld [vmem:[%s311 + $0x20] sm:$0xf]
  %v321 = vld [vmem:[%s311 + $0x24] sm:$0xf]
  %v322 = vld [vmem:[%s311 + $0x28] sm:$0xf]
  %v323 = vld [vmem:[%s311 + $0x2c] sm:$0xf]
  %v324 = vld [vmem:[%s311 + $0x30] sm:$0xf]
  %v325 = vld [vmem:[%s311 + $0x34] sm:$0xf]
  %v326 = vld [vmem:[%s311 + $0x38] sm:$0xf]
  %v327 = vld [vmem:[%s311 + $0x3c] sm:$0xf]
  %v344 = vunpack.c.l.b16 %v312
  %v345 = vunpack.c.l.b16 %v313
  %v346 = vunpack.c.l.b16 %v314
  %v347 = vunpack.c.l.b16 %v315
  %v348 = vunpack.c.l.b16 %v316
  %v349 = vunpack.c.l.b16 %v317
  %v350 = vunpack.c.l.b16 %v318
  %v351 = vunpack.c.l.b16 %v319
  %v352 = vunpack.c.l.b16 %v320
  %v353 = vunpack.c.l.b16 %v321
  %v354 = vunpack.c.l.b16 %v322
  %v355 = vunpack.c.l.b16 %v323
  %v356 = vunpack.c.l.b16 %v324
  %v357 = vunpack.c.l.b16 %v325
  %v358 = vunpack.c.l.b16 %v326
  %v359 = vunpack.c.l.b16 %v327
  %v360 = vpack.c.b16 %v345, %v344
  %v361 = vpack.c.b16 %v347, %v346
  %v362 = vpack.c.b16 %v349, %v348
  %v363 = vpack.c.b16 %v351, %v350
  %v364 = vpack.c.b16 %v353, %v352
  %v365 = vpack.c.b16 %v355, %v354
  %v366 = vpack.c.b16 %v357, %v356
  %v367 = vpack.c.b16 %v359, %v358
  %376 = vmatpush.bf16.msra.mxu0 %v367
  %377 = vmatpush.bf16.msra.mxu0 %v366
  %378 = vmatpush.bf16.msra.mxu0 %v365
  %379 = vmatpush.bf16.msra.mxu0 %v364
  %380 = vmatpush.bf16.msra.mxu0 %v363
  %381 = vmatpush.bf16.msra.mxu0 %v362
  %382 = vmatpush.bf16.msra.mxu0 %v361
  %383 = vmatpush.bf16.msra.mxu0 %v360
  %384 = vmatmul.bf16.gmra.mxu0 %v171
  %v385 = vpop.f32.mrf.mxu0
  %v386 = vadd.f32 0.0, %v385
  %v387 = vpop.f32.mrf.mxu0
  %388 = vdwg.mxu0
  %s389 = scalar_lea.vmem %s4, 192
  %v390 = vld [vmem:[%s389] sm:$0xf]
  %v391 = vld [vmem:[%s389 + $0x4] sm:$0xf]
  %v392 = vld [vmem:[%s389 + $0x8] sm:$0xf]
  %v393 = vld [vmem:[%s389 + $0xc] sm:$0xf]
  %v394 = vld [vmem:[%s389 + $0x10] sm:$0xf]
  %v395 = vld [vmem:[%s389 + $0x14] sm:$0xf]
  %v396 = vld [vmem:[%s389 + $0x18] sm:$0xf]
  %v397 = vld [vmem:[%s389 + $0x1c] sm:$0xf]
  %v398 = vld [vmem:[%s389 + $0x20] sm:$0xf]
  %v399 = vld [vmem:[%s389 + $0x24] sm:$0xf]
  %v400 = vld [vmem:[%s389 + $0x28] sm:$0xf]
  %v401 = vld [vmem:[%s389 + $0x2c] sm:$0xf]
  %v402 = vld [vmem:[%s389 + $0x30] sm:$0xf]
  %v403 = vld [vmem:[%s389 + $0x34] sm:$0xf]
  %v404 = vld [vmem:[%s389 + $0x38] sm:$0xf]
  %v405 = vld [vmem:[%s389 + $0x3c] sm:$0xf]
  %v422 = vunpack.c.l.b16 %v390
  %v423 = vunpack.c.l.b16 %v391
  %v424 = vunpack.c.l.b16 %v392
  %v425 = vunpack.c.l.b16 %v393
  %v426 = vunpack.c.l.b16 %v394
  %v427 = vunpack.c.l.b16 %v395
  %v428 = vunpack.c.l.b16 %v396
  %v429 = vunpack.c.l.b16 %v397
  %v430 = vunpack.c.l.b16 %v398
  %v431 = vunpack.c.l.b16 %v399
  %v432 = vunpack.c.l.b16 %v400
  %v433 = vunpack.c.l.b16 %v401
  %v434 = vunpack.c.l.b16 %v402
  %v435 = vunpack.c.l.b16 %v403
  %v436 = vunpack.c.l.b16 %v404
  %v437 = vunpack.c.l.b16 %v405
  %v438 = vpack.c.b16 %v423, %v422
  %v439 = vpack.c.b16 %v425, %v424
  %v440 = vpack.c.b16 %v427, %v426
  %v441 = vpack.c.b16 %v429, %v428
  %v442 = vpack.c.b16 %v431, %v430
  %v443 = vpack.c.b16 %v433, %v432
  %v444 = vpack.c.b16 %v435, %v434
  %v445 = vpack.c.b16 %v437, %v436
  %454 = vmatpush.bf16.msra.mxu0 %v445
  %455 = vmatpush.bf16.msra.mxu0 %v444
  %456 = vmatpush.bf16.msra.mxu0 %v443
  %457 = vmatpush.bf16.msra.mxu0 %v442
  %458 = vmatpush.bf16.msra.mxu0 %v441
  %459 = vmatpush.bf16.msra.mxu0 %v440
  %460 = vmatpush.bf16.msra.mxu0 %v439
  %461 = vmatpush.bf16.msra.mxu0 %v438
  %462 = vmatmul.bf16.gmra.mxu0 %v171
  %v463 = vpop.f32.mrf.mxu0
  %v464 = vadd.f32 0.0, %v463
  %v465 = vpop.f32.mrf.mxu0
  %466 = vdwg.mxu0
  %v468 = vrot.slane %v308, 4
  %v471 = vrot.slane %v464, 4
  %v473 = vsel %vm137, %v230, %v468
  %v474 = vsel %vm137, %v386, %v471
  %v475 = vadd.f32 %v473, %v61
  %v476 = vadd.f32 %v474, %v62
  %s477 = scalar_lea.vmem %s0, 4
  %v478 = vld [vmem:[%s477] sm:$0xf]
  %v479 = vpack.c.bf16 %v478, %v478
  %v481 = vsel %vm73, %v479, 0
  %483 = vmatpush.bf16.msra.mxu0 0
  %484 = vmatpush.bf16.msra.mxu0 0
  %485 = vmatpush.bf16.msra.mxu0 0
  %486 = vmatpush.bf16.msra.mxu0 0
  %487 = vmatpush.bf16.msra.mxu0 0
  %488 = vmatpush.bf16.msra.mxu0 0
  %489 = vmatpush.bf16.msra.mxu0 0
  %490 = vmatpush.bf16.msra.mxu0 %v79
  %491 = vmatmul.bf16.gmra.mxu0 %v481
  %v492 = vpop.f32.mrf.mxu0
  %v493 = vadd.f32 %v67, %v492
  %v494 = vpop.f32.mrf.mxu0
  %495 = vdwg.mxu0
  %v496 = vtanh.pop %v493
  %v497 = vpack.c.bf16 %v496, %v496
  %v499 = vsel %vm113, %v497, 0
  %501 = vmatpush.bf16.msra.mxu0 0
  %502 = vmatpush.bf16.msra.mxu0 0
  %503 = vmatpush.bf16.msra.mxu0 0
  %504 = vmatpush.bf16.msra.mxu0 0
  %505 = vmatpush.bf16.msra.mxu0 0
  %506 = vmatpush.bf16.msra.mxu0 0
  %507 = vmatpush.bf16.msra.mxu0 %v110
  %508 = vmatpush.bf16.msra.mxu0 %v109
  %509 = vmatmul.bf16.gmra.mxu0 %v499
  %v510 = vpop.f32.mrf.mxu0
  %v511 = vadd.f32 %v100, %v510
  %v512 = vpop.f32.mrf.mxu0
  %513 = vdwg.mxu0
  %v514 = vpack.c.bf16 %v511, %v511
  %v516 = vsel %vm133, %v514, 0
  %518 = vmatpush.bf16.msra.mxu0 0
  %519 = vmatpush.bf16.msra.mxu0 0
  %520 = vmatpush.bf16.msra.mxu0 0
  %521 = vmatpush.bf16.msra.mxu0 0
  %522 = vmatpush.bf16.msra.mxu0 0
  %523 = vmatpush.bf16.msra.mxu0 0
  %524 = vmatpush.bf16.msra.mxu0 0
  %525 = vmatpush.bf16.msra.mxu0 %v139
  %526 = vmatmul.bf16.gmra.mxu0 %v516
  %v527 = vpop.f32.mrf.mxu0
  %v528 = vadd.f32 %v132, %v527
  %v529 = vpop.f32.mrf.mxu0
  %530 = vdwg.mxu0
  %v531 = vmax.f32 %v528, 0.0
  %v532 = vpack.c.bf16 %v531, %v531
  %533 = vmatpush.bf16.msra.mxu0 %v211
  %534 = vmatpush.bf16.msra.mxu0 %v210
  %535 = vmatpush.bf16.msra.mxu0 %v209
  %536 = vmatpush.bf16.msra.mxu0 %v208
  %537 = vmatpush.bf16.msra.mxu0 %v207
  %538 = vmatpush.bf16.msra.mxu0 %v206
  %539 = vmatpush.bf16.msra.mxu0 %v205
  %540 = vmatpush.bf16.msra.mxu0 %v204
  %541 = vmatmul.bf16.gmra.mxu0 %v532
  %v542 = vpop.f32.mrf.mxu0
  %v543 = vadd.f32 0.0, %v542
  %v544 = vpop.f32.mrf.mxu0
  %545 = vdwg.mxu0
  %546 = vmatpush.bf16.msra.mxu0 %v289
  %547 = vmatpush.bf16.msra.mxu0 %v288
  %548 = vmatpush.bf16.msra.mxu0 %v287
  %549 = vmatpush.bf16.msra.mxu0 %v286
  %550 = vmatpush.bf16.msra.mxu0 %v285
  %551 = vmatpush.bf16.msra.mxu0 %v284
  %552 = vmatpush.bf16.msra.mxu0 %v283
  %553 = vmatpush.bf16.msra.mxu0 %v282
  %554 = vmatmul.bf16.gmra.mxu0 %v532
  %v555 = vpop.f32.mrf.mxu0
  %v556 = vadd.f32 0.0, %v555
  %v557 = vpop.f32.mrf.mxu0
  %558 = vdwg.mxu0
  %559 = vmatpush.bf16.msra.mxu0 %v367
  %560 = vmatpush.bf16.msra.mxu0 %v366
  %561 = vmatpush.bf16.msra.mxu0 %v365
  %562 = vmatpush.bf16.msra.mxu0 %v364
  %563 = vmatpush.bf16.msra.mxu0 %v363
  %564 = vmatpush.bf16.msra.mxu0 %v362
  %565 = vmatpush.bf16.msra.mxu0 %v361
  %566 = vmatpush.bf16.msra.mxu0 %v360
  %567 = vmatmul.bf16.gmra.mxu0 %v532
  %v568 = vpop.f32.mrf.mxu0
  %v569 = vadd.f32 0.0, %v568
  %v570 = vpop.f32.mrf.mxu0
  %571 = vdwg.mxu0
  %572 = vmatpush.bf16.msra.mxu0 %v445
  %573 = vmatpush.bf16.msra.mxu0 %v444
  %574 = vmatpush.bf16.msra.mxu0 %v443
  %575 = vmatpush.bf16.msra.mxu0 %v442
  %576 = vmatpush.bf16.msra.mxu0 %v441
  %577 = vmatpush.bf16.msra.mxu0 %v440
  %578 = vmatpush.bf16.msra.mxu0 %v439
  %579 = vmatpush.bf16.msra.mxu0 %v438
  %580 = vmatmul.bf16.gmra.mxu0 %v532
  %v581 = vpop.f32.mrf.mxu0
  %v582 = vadd.f32 0.0, %v581
  %v583 = vpop.f32.mrf.mxu0
  %584 = vdwg.mxu0
  %v586 = vrot.slane %v556, 4
  %v589 = vrot.slane %v582, 4
  %v591 = vsel %vm137, %v543, %v586
  %v592 = vsel %vm137, %v569, %v589
  %v593 = vadd.f32 %v591, %v61
  %v594 = vadd.f32 %v592, %v62
  %v595 = vld [vmem:[%s11] sm:$0xff]
  %v596 = vld [vmem:[%s11 + $0x8] sm:$0xff]
  %v597 = vld [vmem:[%s11 + $0x10] sm:$0xff]
  %v598 = vld [vmem:[%s7] sm:$0xff]
  %v599 = vld [vmem:[%s7 + $0x8] sm:$0xf]
  %v600 = vld [vmem:[%s7 + $0xc] sm:$0xff]
  %v601 = vld [vmem:[%s7 + $0x14] sm:$0xf]
  %v602 = vld [vmem:[%s7 + $0x18] sm:$0xff]
  %v603 = vld [vmem:[%s7 + $0x20] sm:$0xf]
  %v604 = vld [vmem:[%s7 + $0x24] sm:$0xff]
  %v605 = vld [vmem:[%s7 + $0x2c] sm:$0xf]
  %v606 = vld [vmem:[%s7 + $0x30] sm:$0xff]
  %v607 = vld [vmem:[%s7 + $0x38] sm:$0xf]
  %v608 = vld [vmem:[%s7 + $0x3c] sm:$0xff]
  %v609 = vld [vmem:[%s7 + $0x44] sm:$0xf]
  %v610 = vld [vmem:[%s7 + $0x48] sm:$0xff]
  %v611 = vld [vmem:[%s7 + $0x50] sm:$0xf]
  %v612 = vld [vmem:[%s7 + $0x54] sm:$0xff]
  %v613 = vld [vmem:[%s7 + $0x5c] sm:$0xf]
  %v614 = vld [vmem:[%s7 + $0x60] sm:$0xff]
  %v615 = vld [vmem:[%s7 + $0x68] sm:$0xf]
  %v616 = vld [vmem:[%s7 + $0x6c] sm:$0xff]
  %v617 = vld [vmem:[%s7 + $0x74] sm:$0xf]
  %v618 = vld [vmem:[%s7 + $0x78] sm:$0xff]
  %v619 = vld [vmem:[%s7 + $0x80] sm:$0xf]
  %v620 = vld [vmem:[%s7 + $0x84] sm:$0xff]
  %v621 = vld [vmem:[%s7 + $0x8c] sm:$0xf]
  %v622 = vld [vmem:[%s7 + $0x90] sm:$0xff]
  %v623 = vld [vmem:[%s7 + $0x98] sm:$0xf]
  %v624 = vld [vmem:[%s7 + $0x9c] sm:$0xff]
  %v625 = vld [vmem:[%s7 + $0xa4] sm:$0xf]
  %v626 = vld [vmem:[%s7 + $0xa8] sm:$0xff]
  %v627 = vld [vmem:[%s7 + $0xb0] sm:$0xf]
  %v628 = vld [vmem:[%s7 + $0xb4] sm:$0xff]
  %v629 = vld [vmem:[%s7 + $0xbc] sm:$0xf]
  %v630 = vpack.c.bf16 %v476, %v475
  %v631 = vpack.c.bf16 %v594, %v593
  %v632 = vperm.slane %v595, 0
  %v633 = vperm.slane %v596, 0
  %v634 = vperm.slane %v597, 0
  %v667 = vunpack.c.l.b16 %v598
  %v668 = vunpack.c.h.b16 %v598
  %v669 = vunpack.c.l.b16 %v599
  %v670 = vunpack.c.l.b16 %v600
  %v671 = vunpack.c.h.b16 %v600
  %v672 = vunpack.c.l.b16 %v601
  %v673 = vunpack.c.l.b16 %v602
  %v674 = vunpack.c.h.b16 %v602
  %v675 = vunpack.c.l.b16 %v603
  %v676 = vunpack.c.l.b16 %v604
  %v677 = vunpack.c.h.b16 %v604
  %v678 = vunpack.c.l.b16 %v605
  %v679 = vunpack.c.l.b16 %v606
  %v680 = vunpack.c.h.b16 %v606
  %v681 = vunpack.c.l.b16 %v607
  %v682 = vunpack.c.l.b16 %v608
  %v683 = vunpack.c.h.b16 %v608
  %v684 = vunpack.c.l.b16 %v609
  %v685 = vunpack.c.l.b16 %v610
  %v686 = vunpack.c.h.b16 %v610
  %v687 = vunpack.c.l.b16 %v611
  %v688 = vunpack.c.l.b16 %v612
  %v689 = vunpack.c.h.b16 %v612
  %v690 = vunpack.c.l.b16 %v613
  %v691 = vunpack.c.l.b16 %v614
  %v692 = vunpack.c.h.b16 %v614
  %v693 = vunpack.c.l.b16 %v615
  %v694 = vunpack.c.l.b16 %v616
  %v695 = vunpack.c.h.b16 %v616
  %v696 = vunpack.c.l.b16 %v617
  %v697 = vunpack.c.l.b16 %v618
  %v698 = vunpack.c.h.b16 %v618
  %v699 = vunpack.c.l.b16 %v619
  %v700 = vunpack.c.l.b16 %v620
  %v701 = vunpack.c.h.b16 %v620
  %v702 = vunpack.c.l.b16 %v621
  %v703 = vunpack.c.l.b16 %v622
  %v704 = vunpack.c.h.b16 %v622
  %v705 = vunpack.c.l.b16 %v623
  %v706 = vunpack.c.l.b16 %v624
  %v707 = vunpack.c.h.b16 %v624
  %v708 = vunpack.c.l.b16 %v625
  %v709 = vunpack.c.l.b16 %v626
  %v710 = vunpack.c.h.b16 %v626
  %v711 = vunpack.c.l.b16 %v627
  %v712 = vunpack.c.l.b16 %v628
  %v713 = vunpack.c.h.b16 %v628
  %v714 = vunpack.c.l.b16 %v629
  %v715 = vpack.c.b16 %v670, %v667
  %v716 = vpack.c.b16 %v671, %v668
  %v717 = vpack.c.b16 %v672, %v669
  %v718 = vpack.c.b16 %v676, %v673
  %v719 = vpack.c.b16 %v677, %v674
  %v720 = vpack.c.b16 %v678, %v675
  %v721 = vpack.c.b16 %v682, %v679
  %v722 = vpack.c.b16 %v683, %v680
  %v723 = vpack.c.b16 %v684, %v681
  %v724 = vpack.c.b16 %v688, %v685
  %v725 = vpack.c.b16 %v689, %v686
  %v726 = vpack.c.b16 %v690, %v687
  %v727 = vpack.c.b16 %v694, %v691
  %v728 = vpack.c.b16 %v695, %v692
  %v729 = vpack.c.b16 %v696, %v693
  %v730 = vpack.c.b16 %v700, %v697
  %v731 = vpack.c.b16 %v701, %v698
  %v732 = vpack.c.b16 %v702, %v699
  %v733 = vpack.c.b16 %v706, %v703
  %v734 = vpack.c.b16 %v707, %v704
  %v735 = vpack.c.b16 %v708, %v705
  %v736 = vpack.c.b16 %v712, %v709
  %v737 = vpack.c.b16 %v713, %v710
  %v738 = vpack.c.b16 %v714, %v711
  %763 = vmatpush.bf16.msra.mxu0 %v736
  %764 = vmatpush.bf16.msra.mxu0 %v733
  %765 = vmatpush.bf16.msra.mxu0 %v730
  %766 = vmatpush.bf16.msra.mxu0 %v727
  %767 = vmatpush.bf16.msra.mxu0 %v724
  %768 = vmatpush.bf16.msra.mxu0 %v721
  %769 = vmatpush.bf16.msra.mxu0 %v718
  %770 = vmatpush.bf16.msra.mxu0 %v715
  %771 = vmatmul.bf16.gmra.mxu0 %v630
  %v772 = vpop.f32.mrf.mxu0
  %v773 = vadd.f32 %v632, %v772
  %v774 = vpop.f32.mrf.mxu0
  %v775 = vadd.f32 %v632, %v774
  %776 = vmatmul.bf16.gmra.mxu0 %v631
  %v777 = vpop.f32.mrf.mxu0
  %v778 = vadd.f32 %v632, %v777
  %v779 = vpop.f32.mrf.mxu0
  %v780 = vadd.f32 %v632, %v779
  %781 = vdwg.mxu0
  %782 = vmatpush.bf16.msra.mxu0 %v737
  %783 = vmatpush.bf16.msra.mxu0 %v734
  %784 = vmatpush.bf16.msra.mxu0 %v731
  %785 = vmatpush.bf16.msra.mxu0 %v728
  %786 = vmatpush.bf16.msra.mxu0 %v725
  %787 = vmatpush.bf16.msra.mxu0 %v722
  %788 = vmatpush.bf16.msra.mxu0 %v719
  %789 = vmatpush.bf16.msra.mxu0 %v716
  %790 = vmatmul.bf16.gmra.mxu0 %v630
  %v791 = vpop.f32.mrf.mxu0
  %v792 = vadd.f32 %v633, %v791
  %v793 = vpop.f32.mrf.mxu0
  %v794 = vadd.f32 %v633, %v793
  %795 = vmatmul.bf16.gmra.mxu0 %v631
  %v796 = vpop.f32.mrf.mxu0
  %v797 = vadd.f32 %v633, %v796
  %v798 = vpop.f32.mrf.mxu0
  %v799 = vadd.f32 %v633, %v798
  %800 = vdwg.mxu0
  %801 = vmatpush.bf16.msra.mxu0 %v738
  %802 = vmatpush.bf16.msra.mxu0 %v735
  %803 = vmatpush.bf16.msra.mxu0 %v732
  %804 = vmatpush.bf16.msra.mxu0 %v729
  %805 = vmatpush.bf16.msra.mxu0 %v726
  %806 = vmatpush.bf16.msra.mxu0 %v723
  %807 = vmatpush.bf16.msra.mxu0 %v720
  %808 = vmatpush.bf16.msra.mxu0 %v717
  %809 = vmatmul.bf16.gmra.mxu0 %v630
  %v810 = vpop.f32.mrf.mxu0
  %v811 = vadd.f32 %v634, %v810
  %v812 = vpop.f32.mrf.mxu0
  %v813 = vadd.f32 %v634, %v812
  %814 = vmatmul.bf16.gmra.mxu0 %v631
  %v815 = vpop.f32.mrf.mxu0
  %v816 = vadd.f32 %v634, %v815
  %v817 = vpop.f32.mrf.mxu0
  %v818 = vadd.f32 %v634, %v817
  %819 = vdwg.mxu0
  %v820 = vpack.c.bf16 %v792, %v773
  %v821 = vpack.c.bf16 %v811, %v811
  %v822 = vpack.c.bf16 %v794, %v775
  %v823 = vpack.c.bf16 %v813, %v813
  %v824 = vpack.c.bf16 %v797, %v778
  %v825 = vpack.c.bf16 %v816, %v816
  %v826 = vpack.c.bf16 %v799, %v780
  %v827 = vpack.c.bf16 %v818, %v818
  %v828 = vld [vmem:[%s8] sm:$0xf]
  %v829 = vld [vmem:[%s8 + $0x4] sm:$0xf]
  %v830 = vld [vmem:[%s8 + $0x8] sm:$0xf]
  %v831 = vld [vmem:[%s8 + $0xc] sm:$0xf]
  %v832 = vld [vmem:[%s8 + $0x10] sm:$0xf]
  %v833 = vld [vmem:[%s8 + $0x14] sm:$0xf]
  %v834 = vld [vmem:[%s8 + $0x18] sm:$0xf]
  %v835 = vld [vmem:[%s8 + $0x1c] sm:$0xf]
  %v836 = vld [vmem:[%s8 + $0x20] sm:$0xf]
  %v837 = vld [vmem:[%s8 + $0x24] sm:$0xf]
  %v838 = vld [vmem:[%s8 + $0x28] sm:$0xf]
  %v839 = vld [vmem:[%s8 + $0x2c] sm:$0xf]
  %v840 = vld [vmem:[%s8 + $0x30] sm:$0xf]
  %v841 = vld [vmem:[%s8 + $0x34] sm:$0xf]
  %v842 = vld [vmem:[%s8 + $0x38] sm:$0xf]
  %v843 = vld [vmem:[%s8 + $0x3c] sm:$0xf]
  %v846 = vunpack.c.l.b16 %v820
  %v847 = vunpack.c.l.b16 %v822
  %v848 = vpack.c.b16 %v847, %v846
  %v849 = vunpack.c.h.b16 %v820
  %v850 = vunpack.c.h.b16 %v822
  %v851 = vpack.c.b16 %v850, %v849
  %v853 = vsel %vm113, %v848, 0
  %v856 = vsel %vm113, %v851, 0
  %858 = vmatpush.bf16.xpose.msra.mxu0 0
  %859 = vmatpush.bf16.xpose.msra.mxu0 0
  %860 = vmatpush.bf16.xpose.msra.mxu0 0
  %861 = vmatpush.bf16.xpose.msra.mxu0 0
  %862 = vmatpush.bf16.xpose.msra.mxu0 0
  %863 = vmatpush.bf16.xpose.msra.mxu0 0
  %864 = vmatpush.bf16.xpose.msra.mxu0 0
  %865 = vmatpush.bf16.xpose.msra.mxu0 %v856
  %866 = vmatmul.bf16.gmra.mxu0 %v853
  %v867 = vpop.f32.mrf.mxu0
  %v868 = vadd.f32 0.0, %v867
  %v869 = vpop.f32.mrf.mxu0
  %v870 = vadd.f32 0.0, %v869
  %871 = vdwg.mxu0
  %vm872 = vcmask 130048
  %v873 = vsel %vm872, %v868, -inf
  %874 = vmax.xlane.f32.xlu0 %v873
  %v875 = vpop.xlane.xlu0 %874
  %v876 = vsel %vm872, %v870, -inf
  %877 = vmax.xlane.f32.xlu0 %v876
  %v878 = vpop.xlane.xlu0 %877
  %v879 = vsub.f32 %v868, %v875
  %v880 = vsub.f32 %v870, %v878
  %v881 = vmul.f32 %v879, 1.442695
  %v882 = vpow.pop %v881
  %v883 = vmul.f32 %v880, 1.442695
  %v884 = vpow.pop %v883
  %v885 = vsel %vm872, %v882, 0.0
  %886 = vadd.xlane.f32.xlu0 %v885
  %v887 = vpop.xlane.xlu0 %886
  %v888 = vsel %vm872, %v884, 0.0
  %889 = vadd.xlane.f32.xlu0 %v888
  %v890 = vpop.xlane.xlu0 %889
  %v891 = vrcp.pop %v887
  %v892 = vrcp.pop %v890
  %v893 = vmul.f32 %v882, %v891
  %v894 = vmul.f32 %v884, %v892
  %v895 = vpack.c.bf16 %v894, %v893
  %v898 = vunpack.c.l.b16 %v821
  %v899 = vunpack.c.l.b16 %v823
  %v900 = vpack.c.b16 %v899, %v898
  %v903 = vsel %vm872, %v895, 0
  %905 = vmatpush.bf16.msra.mxu0 0
  %906 = vmatpush.bf16.msra.mxu0 0
  %907 = vmatpush.bf16.msra.mxu0 0
  %908 = vmatpush.bf16.msra.mxu0 0
  %909 = vmatpush.bf16.msra.mxu0 0
  %910 = vmatpush.bf16.msra.mxu0 0
  %911 = vmatpush.bf16.msra.mxu0 0
  %912 = vmatpush.bf16.msra.mxu0 %v900
  %913 = vmatmul.bf16.gmra.mxu0 %v903
  %v914 = vpop.f32.mrf.mxu0
  %v915 = vadd.f32 0.0, %v914
  %v916 = vpop.f32.mrf.mxu0
  %v917 = vadd.f32 0.0, %v916
  %918 = vdwg.mxu0
  %v921 = vunpack.c.l.b16 %v824
  %v922 = vunpack.c.l.b16 %v826
  %v923 = vpack.c.b16 %v922, %v921
  %v924 = vunpack.c.h.b16 %v824
  %v925 = vunpack.c.h.b16 %v826
  %v926 = vpack.c.b16 %v925, %v924
  %v928 = vsel %vm113, %v923, 0
  %v931 = vsel %vm113, %v926, 0
  %933 = vmatpush.bf16.xpose.msra.mxu0 0
  %934 = vmatpush.bf16.xpose.msra.mxu0 0
  %935 = vmatpush.bf16.xpose.msra.mxu0 0
  %936 = vmatpush.bf16.xpose.msra.mxu0 0
  %937 = vmatpush.bf16.xpose.msra.mxu0 0
  %938 = vmatpush.bf16.xpose.msra.mxu0 0
  %939 = vmatpush.bf16.xpose.msra.mxu0 0
  %940 = vmatpush.bf16.xpose.msra.mxu0 %v931
  %941 = vmatmul.bf16.gmra.mxu0 %v928
  %v942 = vpop.f32.mrf.mxu0
  %v943 = vadd.f32 0.0, %v942
  %v944 = vpop.f32.mrf.mxu0
  %v945 = vadd.f32 0.0, %v944
  %946 = vdwg.mxu0
  %v947 = vsel %vm872, %v943, -inf
  %948 = vmax.xlane.f32.xlu0 %v947
  %v949 = vpop.xlane.xlu0 %948
  %v950 = vsel %vm872, %v945, -inf
  %951 = vmax.xlane.f32.xlu0 %v950
  %v952 = vpop.xlane.xlu0 %951
  %v953 = vsub.f32 %v943, %v949
  %v954 = vsub.f32 %v945, %v952
  %v955 = vmul.f32 %v953, 1.442695
  %v956 = vpow.pop %v955
  %v957 = vmul.f32 %v954, 1.442695
  %v958 = vpow.pop %v957
  %v959 = vsel %vm872, %v956, 0.0
  %960 = vadd.xlane.f32.xlu0 %v959
  %v961 = vpop.xlane.xlu0 %960
  %v962 = vsel %vm872, %v958, 0.0
  %963 = vadd.xlane.f32.xlu0 %v962
  %v964 = vpop.xlane.xlu0 %963
  %v965 = vrcp.pop %v961
  %v966 = vrcp.pop %v964
  %v967 = vmul.f32 %v956, %v965
  %v968 = vmul.f32 %v958, %v966
  %v969 = vpack.c.bf16 %v968, %v967
  %v972 = vunpack.c.l.b16 %v825
  %v973 = vunpack.c.l.b16 %v827
  %v974 = vpack.c.b16 %v973, %v972
  %v977 = vsel %vm872, %v969, 0
  %979 = vmatpush.bf16.msra.mxu0 0
  %980 = vmatpush.bf16.msra.mxu0 0
  %981 = vmatpush.bf16.msra.mxu0 0
  %982 = vmatpush.bf16.msra.mxu0 0
  %983 = vmatpush.bf16.msra.mxu0 0
  %984 = vmatpush.bf16.msra.mxu0 0
  %985 = vmatpush.bf16.msra.mxu0 0
  %986 = vmatpush.bf16.msra.mxu0 %v974
  %987 = vmatmul.bf16.gmra.mxu0 %v977
  %v988 = vpop.f32.mrf.mxu0
  %v989 = vadd.f32 0.0, %v988
  %v990 = vpop.f32.mrf.mxu0
  %v991 = vadd.f32 0.0, %v990
  %992 = vdwg.mxu0
  %v993 = vpack.c.bf16 %v917, %v915
  %v994 = vpack.c.bf16 %v991, %v989
  %995 = vrot.lane.b32.xlu0 %v848, 96
  %v996 = vpop.permute.xlu0 %995
  %997 = vrot.lane.b32.xlu0 %v851, 96
  %v998 = vpop.permute.xlu0 %997
  %v1000 = vsel %vm113, %v996, 0
  %v1003 = vsel %vm113, %v998, 0
  %1005 = vmatpush.bf16.xpose.msra.mxu0 0
  %1006 = vmatpush.bf16.xpose.msra.mxu0 0
  %1007 = vmatpush.bf16.xpose.msra.mxu0 0
  %1008 = vmatpush.bf16.xpose.msra.mxu0 0
  %1009 = vmatpush.bf16.xpose.msra.mxu0 0
  %1010 = vmatpush.bf16.xpose.msra.mxu0 0
  %1011 = vmatpush.bf16.xpose.msra.mxu0 0
  %1012 = vmatpush.bf16.xpose.msra.mxu0 %v1003
  %1013 = vmatmul.bf16.gmra.mxu0 %v1000
  %v1014 = vpop.f32.mrf.mxu0
  %v1015 = vadd.f32 0.0, %v1014
  %v1016 = vpop.f32.mrf.mxu0
  %v1017 = vadd.f32 0.0, %v1016
  %1018 = vdwg.mxu0
  %v1019 = vsel %vm872, %v1015, -inf
  %1020 = vmax.xlane.f32.xlu0 %v1019
  %v1021 = vpop.xlane.xlu0 %1020
  %v1022 = vsel %vm872, %v1017, -inf
  %1023 = vmax.xlane.f32.xlu0 %v1022
  %v1024 = vpop.xlane.xlu0 %1023
  %v1025 = vsub.f32 %v1015, %v1021
  %v1026 = vsub.f32 %v1017, %v1024
  %v1027 = vmul.f32 %v1025, 1.442695
  %v1028 = vpow.pop %v1027
  %v1029 = vmul.f32 %v1026, 1.442695
  %v1030 = vpow.pop %v1029
  %v1031 = vsel %vm872, %v1028, 0.0
  %1032 = vadd.xlane.f32.xlu0 %v1031
  %v1033 = vpop.xlane.xlu0 %1032
  %v1034 = vsel %vm872, %v1030, 0.0
  %1035 = vadd.xlane.f32.xlu0 %v1034
  %v1036 = vpop.xlane.xlu0 %1035
  %v1037 = vrcp.pop %v1033
  %v1038 = vrcp.pop %v1036
  %v1039 = vmul.f32 %v1028, %v1037
  %v1040 = vmul.f32 %v1030, %v1038
  %v1041 = vpack.c.bf16 %v1040, %v1039
  %1042 = vrot.lane.b32.xlu0 %v900, 96
  %v1043 = vpop.permute.xlu0 %1042
  %v1046 = vsel %vm872, %v1041, 0
  %1048 = vmatpush.bf16.msra.mxu0 0
  %1049 = vmatpush.bf16.msra.mxu0 0
  %1050 = vmatpush.bf16.msra.mxu0 0
  %1051 = vmatpush.bf16.msra.mxu0 0
  %1052 = vmatpush.bf16.msra.mxu0 0
  %1053 = vmatpush.bf16.msra.mxu0 0
  %1054 = vmatpush.bf16.msra.mxu0 0
  %1055 = vmatpush.bf16.msra.mxu0 %v1043
  %1056 = vmatmul.bf16.gmra.mxu0 %v1046
  %v1057 = vpop.f32.mrf.mxu0
  %v1058 = vadd.f32 0.0, %v1057
  %v1059 = vpop.f32.mrf.mxu0
  %v1060 = vadd.f32 0.0, %v1059
  %1061 = vdwg.mxu0
  %1062 = vrot.lane.b32.xlu0 %v923, 96
  %v1063 = vpop.permute.xlu0 %1062
  %1064 = vrot.lane.b32.xlu0 %v926, 96
  %v1065 = vpop.permute.xlu0 %1064
  %v1067 = vsel %vm113, %v1063, 0
  %v1070 = vsel %vm113, %v1065, 0
  %1072 = vmatpush.bf16.xpose.msra.mxu0 0
  %1073 = vmatpush.bf16.xpose.msra.mxu0 0
  %1074 = vmatpush.bf16.xpose.msra.mxu0 0
  %1075 = vmatpush.bf16.xpose.msra.mxu0 0
  %1076 = vmatpush.bf16.xpose.msra.mxu0 0
  %1077 = vmatpush.bf16.xpose.msra.mxu0 0
  %1078 = vmatpush.bf16.xpose.msra.mxu0 0
  %1079 = vmatpush.bf16.xpose.msra.mxu0 %v1070
  %1080 = vmatmul.bf16.gmra.mxu0 %v1067
  %v1081 = vpop.f32.mrf.mxu0
  %v1082 = vadd.f32 0.0, %v1081
  %v1083 = vpop.f32.mrf.mxu0
  %v1084 = vadd.f32 0.0, %v1083
  %1085 = vdwg.mxu0
  %v1086 = vsel %vm872, %v1082, -inf
  %1087 = vmax.xlane.f32.xlu0 %v1086
  %v1088 = vpop.xlane.xlu0 %1087
  %v1089 = vsel %vm872, %v1084, -inf
  %1090 = vmax.xlane.f32.xlu0 %v1089
  %v1091 = vpop.xlane.xlu0 %1090
  %v1092 = vsub.f32 %v1082, %v1088
  %v1093 = vsub.f32 %v1084, %v1091
  %v1094 = vmul.f32 %v1092, 1.442695
  %v1095 = vpow.pop %v1094
  %v1096 = vmul.f32 %v1093, 1.442695
  %v1097 = vpow.pop %v1096
  %v1098 = vsel %vm872, %v1095, 0.0
  %1099 = vadd.xlane.f32.xlu0 %v1098
  %v1100 = vpop.xlane.xlu0 %1099
  %v1101 = vsel %vm872, %v1097, 0.0
  %1102 = vadd.xlane.f32.xlu0 %v1101
  %v1103 = vpop.xlane.xlu0 %1102
  %v1104 = vrcp.pop %v1100
  %v1105 = vrcp.pop %v1103
  %v1106 = vmul.f32 %v1095, %v1104
  %v1107 = vmul.f32 %v1097, %v1105
  %v1108 = vpack.c.bf16 %v1107, %v1106
  %1109 = vrot.lane.b32.xlu0 %v974, 96
  %v1110 = vpop.permute.xlu0 %1109
  %v1113 = vsel %vm872, %v1108, 0
  %1115 = vmatpush.bf16.msra.mxu0 0
  %1116 = vmatpush.bf16.msra.mxu0 0
  %1117 = vmatpush.bf16.msra.mxu0 0
  %1118 = vmatpush.bf16.msra.mxu0 0
  %1119 = vmatpush.bf16.msra.mxu0 0
  %1120 = vmatpush.bf16.msra.mxu0 0
  %1121 = vmatpush.bf16.msra.mxu0 0
  %1122 = vmatpush.bf16.msra.mxu0 %v1110
  %1123 = vmatmul.bf16.gmra.mxu0 %v1113
  %v1124 = vpop.f32.mrf.mxu0
  %v1125 = vadd.f32 0.0, %v1124
  %v1126 = vpop.f32.mrf.mxu0
  %v1127 = vadd.f32 0.0, %v1126
  %1128 = vdwg.mxu0
  %v1129 = vpack.c.bf16 %v1060, %v1058
  %v1130 = vpack.c.bf16 %v1127, %v1125
  %v1135 = vunpack.c.l.b16 %v832
  %v1136 = vunpack.c.l.b16 %v833
  %v1137 = vunpack.c.l.b16 %v834
  %v1138 = vunpack.c.l.b16 %v835
  %v1139 = vpack.c.b16 %v1136, %v1135
  %v1140 = vpack.c.b16 %v1138, %v1137
  %v1144 = vsel %vm113, %v1129, 0
  %v1147 = vsel %vm113, %v1130, 0
  %1149 = vmatpush.bf16.msra.mxu0 0
  %1150 = vmatpush.bf16.msra.mxu0 0
  %1151 = vmatpush.bf16.msra.mxu0 0
  %1152 = vmatpush.bf16.msra.mxu0 0
  %1153 = vmatpush.bf16.msra.mxu0 0
  %1154 = vmatpush.bf16.msra.mxu0 0
  %1155 = vmatpush.bf16.msra.mxu0 %v1140
  %1156 = vmatpush.bf16.msra.mxu0 %v1139
  %1157 = vmatmul.bf16.gmra.mxu0 %v1144
  %v1158 = vpop.f32.mrf.mxu0
  %v1159 = vadd.f32 0.0, %v1158
  %v1160 = vpop.f32.mrf.mxu0
  %v1161 = vadd.f32 0.0, %v1160
  %1162 = vmatmul.bf16.gmra.mxu0 %v1147
  %v1163 = vpop.f32.mrf.mxu0
  %v1164 = vadd.f32 0.0, %v1163
  %v1165 = vpop.f32.mrf.mxu0
  %v1166 = vadd.f32 0.0, %v1165
  %1167 = vdwg.mxu0
  %1168 = vrot.lane.b32.xlu0 %v848, 64
  %v1169 = vpop.permute.xlu0 %1168
  %1170 = vrot.lane.b32.xlu0 %v851, 64
  %v1171 = vpop.permute.xlu0 %1170
  %v1173 = vsel %vm113, %v1169, 0
  %v1176 = vsel %vm113, %v1171, 0
  %1178 = vmatpush.bf16.xpose.msra.mxu0 0
  %1179 = vmatpush.bf16.xpose.msra.mxu0 0
  %1180 = vmatpush.bf16.xpose.msra.mxu0 0
  %1181 = vmatpush.bf16.xpose.msra.mxu0 0
  %1182 = vmatpush.bf16.xpose.msra.mxu0 0
  %1183 = vmatpush.bf16.xpose.msra.mxu0 0
  %1184 = vmatpush.bf16.xpose.msra.mxu0 0
  %1185 = vmatpush.bf16.xpose.msra.mxu0 %v1176
  %1186 = vmatmul.bf16.gmra.mxu0 %v1173
  %v1187 = vpop.f32.mrf.mxu0
  %v1188 = vadd.f32 0.0, %v1187
  %v1189 = vpop.f32.mrf.mxu0
  %v1190 = vadd.f32 0.0, %v1189
  %1191 = vdwg.mxu0
  %v1192 = vsel %vm872, %v1188, -inf
  %1193 = vmax.xlane.f32.xlu0 %v1192
  %v1194 = vpop.xlane.xlu0 %1193
  %v1195 = vsel %vm872, %v1190, -inf
  %1196 = vmax.xlane.f32.xlu0 %v1195
  %v1197 = vpop.xlane.xlu0 %1196
  %v1198 = vsub.f32 %v1188, %v1194
  %v1199 = vsub.f32 %v1190, %v1197
  %v1200 = vmul.f32 %v1198, 1.442695
  %v1201 = vpow.pop %v1200
  %v1202 = vmul.f32 %v1199, 1.442695
  %v1203 = vpow.pop %v1202
  %v1204 = vsel %vm872, %v1201, 0.0
  %1205 = vadd.xlane.f32.xlu0 %v1204
  %v1206 = vpop.xlane.xlu0 %1205
  %v1207 = vsel %vm872, %v1203, 0.0
  %1208 = vadd.xlane.f32.xlu0 %v1207
  %v1209 = vpop.xlane.xlu0 %1208
  %v1210 = vrcp.pop %v1206
  %v1211 = vrcp.pop %v1209
  %v1212 = vmul.f32 %v1201, %v1210
  %v1213 = vmul.f32 %v1203, %v1211
  %v1214 = vpack.c.bf16 %v1213, %v1212
  %1215 = vrot.lane.b32.xlu0 %v900, 64
  %v1216 = vpop.permute.xlu0 %1215
  %v1219 = vsel %vm872, %v1214, 0
  %1221 = vmatpush.bf16.msra.mxu0 0
  %1222 = vmatpush.bf16.msra.mxu0 0
  %1223 = vmatpush.bf16.msra.mxu0 0
  %1224 = vmatpush.bf16.msra.mxu0 0
  %1225 = vmatpush.bf16.msra.mxu0 0
  %1226 = vmatpush.bf16.msra.mxu0 0
  %1227 = vmatpush.bf16.msra.mxu0 0
  %1228 = vmatpush.bf16.msra.mxu0 %v1216
  %1229 = vmatmul.bf16.gmra.mxu0 %v1219
  %v1230 = vpop.f32.mrf.mxu0
  %v1231 = vadd.f32 0.0, %v1230
  %v1232 = vpop.f32.mrf.mxu0
  %v1233 = vadd.f32 0.0, %v1232
  %1234 = vdwg.mxu0
  %1235 = vrot.lane.b32.xlu0 %v923, 64
  %v1236 = vpop.permute.xlu0 %1235
  %1237 = vrot.lane.b32.xlu0 %v926, 64
  %v1238 = vpop.permute.xlu0 %1237
  %v1240 = vsel %vm113, %v1236, 0
  %v1243 = vsel %vm113, %v1238, 0
  %1245 = vmatpush.bf16.xpose.msra.mxu0 0
  %1246 = vmatpush.bf16.xpose.msra.mxu0 0
  %1247 = vmatpush.bf16.xpose.msra.mxu0 0
  %1248 = vmatpush.bf16.xpose.msra.mxu0 0
  %1249 = vmatpush.bf16.xpose.msra.mxu0 0
  %1250 = vmatpush.bf16.xpose.msra.mxu0 0
  %1251 = vmatpush.bf16.xpose.msra.mxu0 0
  %1252 = vmatpush.bf16.xpose.msra.mxu0 %v1243
  %1253 = vmatmul.bf16.gmra.mxu0 %v1240
  %v1254 = vpop.f32.mrf.mxu0
  %v1255 = vadd.f32 0.0, %v1254
  %v1256 = vpop.f32.mrf.mxu0
  %v1257 = vadd.f32 0.0, %v1256
  %1258 = vdwg.mxu0
  %v1259 = vsel %vm872, %v1255, -inf
  %1260 = vmax.xlane.f32.xlu0 %v1259
  %v1261 = vpop.xlane.xlu0 %1260
  %v1262 = vsel %vm872, %v1257, -inf
  %1263 = vmax.xlane.f32.xlu0 %v1262
  %v1264 = vpop.xlane.xlu0 %1263
  %v1265 = vsub.f32 %v1255, %v1261
  %v1266 = vsub.f32 %v1257, %v1264
  %v1267 = vmul.f32 %v1265, 1.442695
  %v1268 = vpow.pop %v1267
  %v1269 = vmul.f32 %v1266, 1.442695
  %v1270 = vpow.pop %v1269
  %v1271 = vsel %vm872, %v1268, 0.0
  %1272 = vadd.xlane.f32.xlu0 %v1271
  %v1273 = vpop.xlane.xlu0 %1272
  %v1274 = vsel %vm872, %v1270, 0.0
  %1275 = vadd.xlane.f32.xlu0 %v1274
  %v1276 = vpop.xlane.xlu0 %1275
  %v1277 = vrcp.pop %v1273
  %v1278 = vrcp.pop %v1276
  %v1279 = vmul.f32 %v1268, %v1277
  %v1280 = vmul.f32 %v1270, %v1278
  %v1281 = vpack.c.bf16 %v1280, %v1279
  %1282 = vrot.lane.b32.xlu0 %v974, 64
  %v1283 = vpop.permute.xlu0 %1282
  %v1286 = vsel %vm872, %v1281, 0
  %1288 = vmatpush.bf16.msra.mxu0 0
  %1289 = vmatpush.bf16.msra.mxu0 0
  %1290 = vmatpush.bf16.msra.mxu0 0
  %1291 = vmatpush.bf16.msra.mxu0 0
  %1292 = vmatpush.bf16.msra.mxu0 0
  %1293 = vmatpush.bf16.msra.mxu0 0
  %1294 = vmatpush.bf16.msra.mxu0 0
  %1295 = vmatpush.bf16.msra.mxu0 %v1283
  %1296 = vmatmul.bf16.gmra.mxu0 %v1286
  %v1297 = vpop.f32.mrf.mxu0
  %v1298 = vadd.f32 0.0, %v1297
  %v1299 = vpop.f32.mrf.mxu0
  %v1300 = vadd.f32 0.0, %v1299
  %1301 = vdwg.mxu0
  %v1302 = vpack.c.bf16 %v1233, %v1231
  %v1303 = vpack.c.bf16 %v1300, %v1298
  %1304 = vrot.lane.b32.xlu0 %v848, 32
  %v1305 = vpop.permute.xlu0 %1304
  %1306 = vrot.lane.b32.xlu0 %v851, 32
  %v1307 = vpop.permute.xlu0 %1306
  %v1309 = vsel %vm113, %v1305, 0
  %v1312 = vsel %vm113, %v1307, 0
  %1314 = vmatpush.bf16.xpose.msra.mxu0 0
  %1315 = vmatpush.bf16.xpose.msra.mxu0 0
  %1316 = vmatpush.bf16.xpose.msra.mxu0 0
  %1317 = vmatpush.bf16.xpose.msra.mxu0 0
  %1318 = vmatpush.bf16.xpose.msra.mxu0 0
  %1319 = vmatpush.bf16.xpose.msra.mxu0 0
  %1320 = vmatpush.bf16.xpose.msra.mxu0 0
  %1321 = vmatpush.bf16.xpose.msra.mxu0 %v1312
  %1322 = vmatmul.bf16.gmra.mxu0 %v1309
  %v1323 = vpop.f32.mrf.mxu0
  %v1324 = vadd.f32 0.0, %v1323
  %v1325 = vpop.f32.mrf.mxu0
  %v1326 = vadd.f32 0.0, %v1325
  %1327 = vdwg.mxu0
  %v1328 = vsel %vm872, %v1324, -inf
  %1329 = vmax.xlane.f32.xlu0 %v1328
  %v1330 = vpop.xlane.xlu0 %1329
  %v1331 = vsel %vm872, %v1326, -inf
  %1332 = vmax.xlane.f32.xlu0 %v1331
  %v1333 = vpop.xlane.xlu0 %1332
  %v1334 = vsub.f32 %v1324, %v1330
  %v1335 = vsub.f32 %v1326, %v1333
  %v1336 = vmul.f32 %v1334, 1.442695
  %v1337 = vpow.pop %v1336
  %v1338 = vmul.f32 %v1335, 1.442695
  %v1339 = vpow.pop %v1338
  %v1340 = vsel %vm872, %v1337, 0.0
  %1341 = vadd.xlane.f32.xlu0 %v1340
  %v1342 = vpop.xlane.xlu0 %1341
  %v1343 = vsel %vm872, %v1339, 0.0
  %1344 = vadd.xlane.f32.xlu0 %v1343
  %v1345 = vpop.xlane.xlu0 %1344
  %v1346 = vrcp.pop %v1342
  %v1347 = vrcp.pop %v1345
  %v1348 = vmul.f32 %v1337, %v1346
  %v1349 = vmul.f32 %v1339, %v1347
  %v1350 = vpack.c.bf16 %v1349, %v1348
  %1351 = vrot.lane.b32.xlu0 %v900, 32
  %v1352 = vpop.permute.xlu0 %1351
  %v1355 = vsel %vm872, %v1350, 0
  %1357 = vmatpush.bf16.msra.mxu0 0
  %1358 = vmatpush.bf16.msra.mxu0 0
  %1359 = vmatpush.bf16.msra.mxu0 0
  %1360 = vmatpush.bf16.msra.mxu0 0
  %1361 = vmatpush.bf16.msra.mxu0 0
  %1362 = vmatpush.bf16.msra.mxu0 0
  %1363 = vmatpush.bf16.msra.mxu0 0
  %1364 = vmatpush.bf16.msra.mxu0 %v1352
  %1365 = vmatmul.bf16.gmra.mxu0 %v1355
  %v1366 = vpop.f32.mrf.mxu0
  %v1367 = vadd.f32 0.0, %v1366
  %v1368 = vpop.f32.mrf.mxu0
  %v1369 = vadd.f32 0.0, %v1368
  %1370 = vdwg.mxu0
  %1371 = vrot.lane.b32.xlu0 %v923, 32
  %v1372 = vpop.permute.xlu0 %1371
  %1373 = vrot.lane.b32.xlu0 %v926, 32
  %v1374 = vpop.permute.xlu0 %1373
  %v1376 = vsel %vm113, %v1372, 0
  %v1379 = vsel %vm113, %v1374, 0
  %1381 = vmatpush.bf16.xpose.msra.mxu0 0
  %1382 = vmatpush.bf16.xpose.msra.mxu0 0
  %1383 = vmatpush.bf16.xpose.msra.mxu0 0
  %1384 = vmatpush.bf16.xpose.msra.mxu0 0
  %1385 = vmatpush.bf16.xpose.msra.mxu0 0
  %1386 = vmatpush.bf16.xpose.msra.mxu0 0
  %1387 = vmatpush.bf16.xpose.msra.mxu0 0
  %1388 = vmatpush.bf16.xpose.msra.mxu0 %v1379
  %1389 = vmatmul.bf16.gmra.mxu0 %v1376
  %v1390 = vpop.f32.mrf.mxu0
  %v1391 = vadd.f32 0.0, %v1390
  %v1392 = vpop.f32.mrf.mxu0
  %v1393 = vadd.f32 0.0, %v1392
  %1394 = vdwg.mxu0
  %v1395 = vsel %vm872, %v1391, -inf
  %1396 = vmax.xlane.f32.xlu0 %v1395
  %v1397 = vpop.xlane.xlu0 %1396
  %v1398 = vsel %vm872, %v1393, -inf
  %1399 = vmax.xlane.f32.xlu0 %v1398
  %v1400 = vpop.xlane.xlu0 %1399
  %v1401 = vsub.f32 %v1391, %v1397
  %v1402 = vsub.f32 %v1393, %v1400
  %v1403 = vmul.f32 %v1401, 1.442695
  %v1404 = vpow.pop %v1403
  %v1405 = vmul.f32 %v1402, 1.442695
  %v1406 = vpow.pop %v1405
  %v1407 = vsel %vm872, %v1404, 0.0
  %1408 = vadd.xlane.f32.xlu0 %v1407
  %v1409 = vpop.xlane.xlu0 %1408
  %v1410 = vsel %vm872, %v1406, 0.0
  %1411 = vadd.xlane.f32.xlu0 %v1410
  %v1412 = vpop.xlane.xlu0 %1411
  %v1413 = vrcp.pop %v1409
  %v1414 = vrcp.pop %v1412
  %v1415 = vmul.f32 %v1404, %v1413
  %v1416 = vmul.f32 %v1406, %v1414
  %v1417 = vpack.c.bf16 %v1416, %v1415
  %1418 = vrot.lane.b32.xlu0 %v974, 32
  %v1419 = vpop.permute.xlu0 %1418
  %v1422 = vsel %vm872, %v1417, 0
  %1424 = vmatpush.bf16.msra.mxu0 0
  %1425 = vmatpush.bf16.msra.mxu0 0
  %1426 = vmatpush.bf16.msra.mxu0 0
  %1427 = vmatpush.bf16.msra.mxu0 0
  %1428 = vmatpush.bf16.msra.mxu0 0
  %1429 = vmatpush.bf16.msra.mxu0 0
  %1430 = vmatpush.bf16.msra.mxu0 0
  %1431 = vmatpush.bf16.msra.mxu0 %v1419
  %1432 = vmatmul.bf16.gmra.mxu0 %v1422
  %v1433 = vpop.f32.mrf.mxu0
  %v1434 = vadd.f32 0.0, %v1433
  %v1435 = vpop.f32.mrf.mxu0
  %v1436 = vadd.f32 0.0, %v1435
  %1437 = vdwg.mxu0
  %v1438 = vpack.c.bf16 %v1369, %v1367
  %v1439 = vpack.c.bf16 %v1436, %v1434
  %v1444 = vunpack.c.l.b16 %v840
  %v1445 = vunpack.c.l.b16 %v841
  %v1446 = vunpack.c.l.b16 %v842
  %v1447 = vunpack.c.l.b16 %v843
  %v1448 = vpack.c.b16 %v1445, %v1444
  %v1449 = vpack.c.b16 %v1447, %v1446
  %v1453 = vsel %vm113, %v1438, 0
  %v1456 = vsel %vm113, %v1439, 0
  %1458 = vmatpush.bf16.msra.mxu0 0
  %1459 = vmatpush.bf16.msra.mxu0 0
  %1460 = vmatpush.bf16.msra.mxu0 0
  %1461 = vmatpush.bf16.msra.mxu0 0
  %1462 = vmatpush.bf16.msra.mxu0 0
  %1463 = vmatpush.bf16.msra.mxu0 0
  %1464 = vmatpush.bf16.msra.mxu0 %v1449
  %1465 = vmatpush.bf16.msra.mxu0 %v1448
  %1466 = vmatmul.bf16.gmra.mxu0 %v1453
  %v1467 = vpop.f32.mrf.mxu0
  %v1468 = vadd.f32 0.0, %v1467
  %v1469 = vpop.f32.mrf.mxu0
  %v1470 = vadd.f32 0.0, %v1469
  %1471 = vmatmul.bf16.gmra.mxu0 %v1456
  %v1472 = vpop.f32.mrf.mxu0
  %v1473 = vadd.f32 0.0, %v1472
  %v1474 = vpop.f32.mrf.mxu0
  %v1475 = vadd.f32 0.0, %v1474
  %1476 = vdwg.mxu0
  %v1481 = vunpack.c.l.b16 %v828
  %v1482 = vunpack.c.l.b16 %v829
  %v1483 = vunpack.c.l.b16 %v830
  %v1484 = vunpack.c.l.b16 %v831
  %v1485 = vpack.c.b16 %v1482, %v1481
  %v1486 = vpack.c.b16 %v1484, %v1483
  %v1490 = vsel %vm113, %v993, 0
  %v1493 = vsel %vm113, %v994, 0
  %1495 = vmatpush.bf16.msra.mxu0 0
  %1496 = vmatpush.bf16.msra.mxu0 0
  %1497 = vmatpush.bf16.msra.mxu0 0
  %1498 = vmatpush.bf16.msra.mxu0 0
  %1499 = vmatpush.bf16.msra.mxu0 0
  %1500 = vmatpush.bf16.msra.mxu0 0
  %1501 = vmatpush.bf16.msra.mxu0 %v1486
  %1502 = vmatpush.bf16.msra.mxu0 %v1485
  %1503 = vmatmul.bf16.gmra.mxu0 %v1490
  %v1504 = vpop.f32.mrf.mxu0
  %v1505 = vadd.f32 %v1159, %v1504
  %v1506 = vpop.f32.mrf.mxu0
  %v1507 = vadd.f32 %v1161, %v1506
  %1508 = vmatmul.bf16.gmra.mxu0 %v1493
  %v1509 = vpop.f32.mrf.mxu0
  %v1510 = vadd.f32 %v1164, %v1509
  %v1511 = vpop.f32.mrf.mxu0
  %v1512 = vadd.f32 %v1166, %v1511
  %1513 = vdwg.mxu0
  %v1518 = vunpack.c.l.b16 %v836
  %v1519 = vunpack.c.l.b16 %v837
  %v1520 = vunpack.c.l.b16 %v838
  %v1521 = vunpack.c.l.b16 %v839
  %v1522 = vpack.c.b16 %v1519, %v1518
  %v1523 = vpack.c.b16 %v1521, %v1520
  %v1527 = vsel %vm113, %v1302, 0
  %v1530 = vsel %vm113, %v1303, 0
  %1532 = vmatpush.bf16.msra.mxu0 0
  %1533 = vmatpush.bf16.msra.mxu0 0
  %1534 = vmatpush.bf16.msra.mxu0 0
  %1535 = vmatpush.bf16.msra.mxu0 0
  %1536 = vmatpush.bf16.msra.mxu0 0
  %1537 = vmatpush.bf16.msra.mxu0 0
  %1538 = vmatpush.bf16.msra.mxu0 %v1523
  %1539 = vmatpush.bf16.msra.mxu0 %v1522
  %1540 = vmatmul.bf16.gmra.mxu0 %v1527
  %v1541 = vpop.f32.mrf.mxu0
  %v1542 = vadd.f32 %v1468, %v1541
  %v1543 = vpop.f32.mrf.mxu0
  %v1544 = vadd.f32 %v1470, %v1543
  %1545 = vmatmul.bf16.gmra.mxu0 %v1530
  %v1546 = vpop.f32.mrf.mxu0
  %v1547 = vadd.f32 %v1473, %v1546
  %v1548 = vpop.f32.mrf.mxu0
  %v1549 = vadd.f32 %v1475, %v1548
  %1550 = vdwg.mxu0
  %v1551 = vadd.f32 %v1505, %v1542
  %v1552 = vadd.f32 %v1507, %v1544
  %v1553 = vadd.f32 %v1510, %v1547
  %v1554 = vadd.f32 %v1512, %v1549
  %v1555 = vadd.f32 %v475, %v1551
  %v1556 = vadd.f32 %v476, %v1552
  %v1557 = vadd.f32 %v593, %v1553
  %v1558 = vadd.f32 %v594, %v1554
  %v1559 = vperm.slane %v595, 2
  %v1560 = vadd.f32 %v1555, %v1559
  %v1561 = vadd.f32 %v1556, %v1559
  %v1562 = vadd.f32 %v1557, %v1559
  %v1563 = vadd.f32 %v1558, %v1559
  %1564 = vadd.xlane.f32.xlu0 %v1560
  %v1565 = vpop.xlane.xlu0 %1564
  %1566 = vadd.xlane.f32.xlu0 %v1561
  %v1567 = vpop.xlane.xlu0 %1566
  %1568 = vadd.xlane.f32.xlu0 %v1562
  %v1569 = vpop.xlane.xlu0 %1568
  %1570 = vadd.xlane.f32.xlu0 %v1563
  %v1571 = vpop.xlane.xlu0 %1570
  %v1572 = vrcp.pop 128.0
  %v1573 = vmul.f32 128.0, %v1572
  %v1574 = vsub.f32 1.0, %v1573
  %v1575 = vmul.f32 %v1572, %v1574
  %v1576 = vadd.f32 %v1572, %v1575
  %vm1577 = vweird.f32 %v1572
  %v1578 = vsel %vm1577, %v1572, %v1576
  %v1579 = vmul.f32 %v1565, %v1578
  %v1580 = vmul.f32 %v1567, %v1578
  %v1581 = vmul.f32 %v1569, %v1578
  %v1582 = vmul.f32 %v1571, %v1578
  %v1583 = vsub.f32 %v1560, %v1579
  %v1584 = vsub.f32 %v1561, %v1580
  %v1585 = vsub.f32 %v1562, %v1581
  %v1586 = vsub.f32 %v1563, %v1582
  %v1587 = vmul.f32 %v1583, %v1583
  %v1588 = vmul.f32 %v1584, %v1584
  %v1589 = vmul.f32 %v1585, %v1585
  %v1590 = vmul.f32 %v1586, %v1586
  %1591 = vadd.xlane.f32.xlu0 %v1587
  %v1592 = vpop.xlane.xlu0 %1591
  %1593 = vadd.xlane.f32.xlu0 %v1588
  %v1594 = vpop.xlane.xlu0 %1593
  %1595 = vadd.xlane.f32.xlu0 %v1589
  %v1596 = vpop.xlane.xlu0 %1595
  %1597 = vadd.xlane.f32.xlu0 %v1590
  %v1598 = vpop.xlane.xlu0 %1597
  %v1599 = vmul.f32 %v1592, %v1578
  %v1600 = vmul.f32 %v1594, %v1578
  %v1601 = vmul.f32 %v1596, %v1578
  %v1602 = vmul.f32 %v1598, %v1578
  %v1603 = vadd.f32 %v1599, 1e-05
  %v1604 = vadd.f32 %v1600, 1e-05
  %v1605 = vadd.f32 %v1601, 1e-05
  %v1606 = vadd.f32 %v1602, 1e-05
  %v1607 = vrsqrt.pop %v1603
  %v1608 = vmul.f32 %v1607, %v1603
  %v1609 = vmul.f32 %v1608, %v1607
  %v1610 = vmul.f32 0.5, %v1609
  %v1611 = vsub.f32 1.5, %v1610
  %v1612 = vmul.f32 %v1607, %v1611
  %vm1613 = vweird.f32 %v1603
  %vm1614 = vweird.f32 %v1607
  %vm1615 = vmor %vm1613, %vm1614
  %v1616 = vsel %vm1615, %v1607, %v1612
  %v1617 = vrsqrt.pop %v1604
  %v1618 = vmul.f32 %v1617, %v1604
  %v1619 = vmul.f32 %v1618, %v1617
  %v1620 = vmul.f32 0.5, %v1619
  %v1621 = vsub.f32 1.5, %v1620
  %v1622 = vmul.f32 %v1617, %v1621
  %vm1623 = vweird.f32 %v1604
  %vm1624 = vweird.f32 %v1617
  %vm1625 = vmor %vm1623, %vm1624
  %v1626 = vsel %vm1625, %v1617, %v1622
  %v1627 = vrsqrt.pop %v1605
  %v1628 = vmul.f32 %v1627, %v1605
  %v1629 = vmul.f32 %v1628, %v1627
  %v1630 = vmul.f32 0.5, %v1629
  %v1631 = vsub.f32 1.5, %v1630
  %v1632 = vmul.f32 %v1627, %v1631
  %vm1633 = vweird.f32 %v1605
  %vm1634 = vweird.f32 %v1627
  %vm1635 = vmor %vm1633, %vm1634
  %v1636 = vsel %vm1635, %v1627, %v1632
  %v1637 = vrsqrt.pop %v1606
  %v1638 = vmul.f32 %v1637, %v1606
  %v1639 = vmul.f32 %v1638, %v1637
  %v1640 = vmul.f32 0.5, %v1639
  %v1641 = vsub.f32 1.5, %v1640
  %v1642 = vmul.f32 %v1637, %v1641
  %vm1643 = vweird.f32 %v1606
  %vm1644 = vweird.f32 %v1637
  %vm1645 = vmor %vm1643, %vm1644
  %v1646 = vsel %vm1645, %v1637, %v1642
  %v1647 = vmul.f32 %v1583, %v1616
  %v1648 = vmul.f32 %v1584, %v1626
  %v1649 = vmul.f32 %v1585, %v1636
  %v1650 = vmul.f32 %v1586, %v1646
  %v1651 = vperm.slane %v595, 3
  %v1652 = vmul.f32 %v1647, %v1651
  %v1653 = vmul.f32 %v1648, %v1651
  %v1654 = vmul.f32 %v1649, %v1651
  %v1655 = vmul.f32 %v1650, %v1651
  %v1656 = vperm.slane %v595, 4
  %v1657 = vadd.f32 %v1652, %v1656
  %v1658 = vadd.f32 %v1653, %v1656
  %v1659 = vadd.f32 %v1654, %v1656
  %v1660 = vadd.f32 %v1655, %v1656
  %v1661 = vld [vmem:[%s9] sm:$0xff]
  %v1662 = vld [vmem:[%s9 + $0x8] sm:$0xf]
  %v1663 = vld [vmem:[%s9 + $0xc] sm:$0xff]
  %v1664 = vld [vmem:[%s9 + $0x14] sm:$0xf]
  %v1665 = vld [vmem:[%s9 + $0x18] sm:$0xff]
  %v1666 = vld [vmem:[%s9 + $0x20] sm:$0xf]
  %v1667 = vld [vmem:[%s9 + $0x24] sm:$0xff]
  %v1668 = vld [vmem:[%s9 + $0x2c] sm:$0xf]
  %v1669 = vld [vmem:[%s9 + $0x30] sm:$0xff]
  %v1670 = vld [vmem:[%s9 + $0x38] sm:$0xf]
  %v1671 = vld [vmem:[%s9 + $0x3c] sm:$0xff]
  %v1672 = vld [vmem:[%s9 + $0x44] sm:$0xf]
  %v1673 = vld [vmem:[%s9 + $0x48] sm:$0xff]
  %v1674 = vld [vmem:[%s9 + $0x50] sm:$0xf]
  %v1675 = vld [vmem:[%s9 + $0x54] sm:$0xff]
  %v1676 = vld [vmem:[%s9 + $0x5c] sm:$0xf]
  %v1677 = vld [vmem:[%s9 + $0x60] sm:$0xff]
  %v1678 = vld [vmem:[%s9 + $0x68] sm:$0xf]
  %v1679 = vld [vmem:[%s9 + $0x6c] sm:$0xff]
  %v1680 = vld [vmem:[%s9 + $0x74] sm:$0xf]
  %v1681 = vld [vmem:[%s9 + $0x78] sm:$0xff]
  %v1682 = vld [vmem:[%s9 + $0x80] sm:$0xf]
  %v1683 = vld [vmem:[%s9 + $0x84] sm:$0xff]
  %v1684 = vld [vmem:[%s9 + $0x8c] sm:$0xf]
  %v1685 = vld [vmem:[%s9 + $0x90] sm:$0xff]
  %v1686 = vld [vmem:[%s9 + $0x98] sm:$0xf]
  %v1687 = vld [vmem:[%s9 + $0x9c] sm:$0xff]
  %v1688 = vld [vmem:[%s9 + $0xa4] sm:$0xf]
  %v1689 = vld [vmem:[%s9 + $0xa8] sm:$0xff]
  %v1690 = vld [vmem:[%s9 + $0xb0] sm:$0xf]
  %v1691 = vld [vmem:[%s9 + $0xb4] sm:$0xff]
  %v1692 = vld [vmem:[%s9 + $0xbc] sm:$0xf]
  %v1693 = vpack.c.bf16 %v1658, %v1657
  %v1694 = vpack.c.bf16 %v1660, %v1659
  %v1695 = vperm.slane %v595, 1
  %v1696 = vperm.slane %v596, 1
  %v1697 = vperm.slane %v597, 1
  %v1730 = vunpack.c.l.b16 %v1661
  %v1731 = vunpack.c.h.b16 %v1661
  %v1732 = vunpack.c.l.b16 %v1662
  %v1733 = vunpack.c.l.b16 %v1663
  %v1734 = vunpack.c.h.b16 %v1663
  %v1735 = vunpack.c.l.b16 %v1664
  %v1736 = vunpack.c.l.b16 %v1665
  %v1737 = vunpack.c.h.b16 %v1665
  %v1738 = vunpack.c.l.b16 %v1666
  %v1739 = vunpack.c.l.b16 %v1667
  %v1740 = vunpack.c.h.b16 %v1667
  %v1741 = vunpack.c.l.b16 %v1668
  %v1742 = vunpack.c.l.b16 %v1669
  %v1743 = vunpack.c.h.b16 %v1669
  %v1744 = vunpack.c.l.b16 %v1670
  %v1745 = vunpack.c.l.b16 %v1671
  %v1746 = vunpack.c.h.b16 %v1671
  %v1747 = vunpack.c.l.b16 %v1672
  %v1748 = vunpack.c.l.b16 %v1673
  %v1749 = vunpack.c.h.b16 %v1673
  %v1750 = vunpack.c.l.b16 %v1674
  %v1751 = vunpack.c.l.b16 %v1675
  %v1752 = vunpack.c.h.b16 %v1675
  %v1753 = vunpack.c.l.b16 %v1676
  %v1754 = vunpack.c.l.b16 %v1677
  %v1755 = vunpack.c.h.b16 %v1677
  %v1756 = vunpack.c.l.b16 %v1678
  %v1757 = vunpack.c.l.b16 %v1679
  %v1758 = vunpack.c.h.b16 %v1679
  %v1759 = vunpack.c.l.b16 %v1680
  %v1760 = vunpack.c.l.b16 %v1681
  %v1761 = vunpack.c.h.b16 %v1681
  %v1762 = vunpack.c.l.b16 %v1682
  %v1763 = vunpack.c.l.b16 %v1683
  %v1764 = vunpack.c.h.b16 %v1683
  %v1765 = vunpack.c.l.b16 %v1684
  %v1766 = vunpack.c.l.b16 %v1685
  %v1767 = vunpack.c.h.b16 %v1685
  %v1768 = vunpack.c.l.b16 %v1686
  %v1769 = vunpack.c.l.b16 %v1687
  %v1770 = vunpack.c.h.b16 %v1687
  %v1771 = vunpack.c.l.b16 %v1688
  %v1772 = vunpack.c.l.b16 %v1689
  %v1773 = vunpack.c.h.b16 %v1689
  %v1774 = vunpack.c.l.b16 %v1690
  %v1775 = vunpack.c.l.b16 %v1691
  %v1776 = vunpack.c.h.b16 %v1691
  %v1777 = vunpack.c.l.b16 %v1692
  %v1778 = vpack.c.b16 %v1733, %v1730
  %v1779 = vpack.c.b16 %v1734, %v1731
  %v1780 = vpack.c.b16 %v1735, %v1732
  %v1781 = vpack.c.b16 %v1739, %v1736
  %v1782 = vpack.c.b16 %v1740, %v1737
  %v1783 = vpack.c.b16 %v1741, %v1738
  %v1784 = vpack.c.b16 %v1745, %v1742
  %v1785 = vpack.c.b16 %v1746, %v1743
  %v1786 = vpack.c.b16 %v1747, %v1744
  %v1787 = vpack.c.b16 %v1751, %v1748
  %v1788 = vpack.c.b16 %v1752, %v1749
  %v1789 = vpack.c.b16 %v1753, %v1750
  %v1790 = vpack.c.b16 %v1757, %v1754
  %v1791 = vpack.c.b16 %v1758, %v1755
  %v1792 = vpack.c.b16 %v1759, %v1756
  %v1793 = vpack.c.b16 %v1763, %v1760
  %v1794 = vpack.c.b16 %v1764, %v1761
  %v1795 = vpack.c.b16 %v1765, %v1762
  %v1796 = vpack.c.b16 %v1769, %v1766
  %v1797 = vpack.c.b16 %v1770, %v1767
  %v1798 = vpack.c.b16 %v1771, %v1768
  %v1799 = vpack.c.b16 %v1775, %v1772
  %v1800 = vpack.c.b16 %v1776, %v1773
  %v1801 = vpack.c.b16 %v1777, %v1774
  %1826 = vmatpush.bf16.msra.mxu0 %v1799
  %1827 = vmatpush.bf16.msra.mxu0 %v1796
  %1828 = vmatpush.bf16.msra.mxu0 %v1793
  %1829 = vmatpush.bf16.msra.mxu0 %v1790
  %1830 = vmatpush.bf16.msra.mxu0 %v1787
  %1831 = vmatpush.bf16.msra.mxu0 %v1784
  %1832 = vmatpush.bf16.msra.mxu0 %v1781
  %1833 = vmatpush.bf16.msra.mxu0 %v1778
  %1834 = vmatmul.bf16.gmra.mxu0 %v1693
  %v1835 = vpop.f32.mrf.mxu0
  %v1836 = vadd.f32 %v1695, %v1835
  %v1837 = vpop.f32.mrf.mxu0
  %v1838 = vadd.f32 %v1695, %v1837
  %1839 = vmatmul.bf16.gmra.mxu0 %v1694
  %v1840 = vpop.f32.mrf.mxu0
  %v1841 = vadd.f32 %v1695, %v1840
  %v1842 = vpop.f32.mrf.mxu0
  %v1843 = vadd.f32 %v1695, %v1842
  %1844 = vdwg.mxu0
  %1845 = vmatpush.bf16.msra.mxu0 %v1800
  %1846 = vmatpush.bf16.msra.mxu0 %v1797
  %1847 = vmatpush.bf16.msra.mxu0 %v1794
  %1848 = vmatpush.bf16.msra.mxu0 %v1791
  %1849 = vmatpush.bf16.msra.mxu0 %v1788
  %1850 = vmatpush.bf16.msra.mxu0 %v1785
  %1851 = vmatpush.bf16.msra.mxu0 %v1782
  %1852 = vmatpush.bf16.msra.mxu0 %v1779
  %1853 = vmatmul.bf16.gmra.mxu0 %v1693
  %v1854 = vpop.f32.mrf.mxu0
  %v1855 = vadd.f32 %v1696, %v1854
  %v1856 = vpop.f32.mrf.mxu0
  %v1857 = vadd.f32 %v1696, %v1856
  %1858 = vmatmul.bf16.gmra.mxu0 %v1694
  %v1859 = vpop.f32.mrf.mxu0
  %v1860 = vadd.f32 %v1696, %v1859
  %v1861 = vpop.f32.mrf.mxu0
  %v1862 = vadd.f32 %v1696, %v1861
  %1863 = vdwg.mxu0
  %1864 = vmatpush.bf16.msra.mxu0 %v1801
  %1865 = vmatpush.bf16.msra.mxu0 %v1798
  %1866 = vmatpush.bf16.msra.mxu0 %v1795
  %1867 = vmatpush.bf16.msra.mxu0 %v1792
  %1868 = vmatpush.bf16.msra.mxu0 %v1789
  %1869 = vmatpush.bf16.msra.mxu0 %v1786
  %1870 = vmatpush.bf16.msra.mxu0 %v1783
  %1871 = vmatpush.bf16.msra.mxu0 %v1780
  %1872 = vmatmul.bf16.gmra.mxu0 %v1693
  %v1873 = vpop.f32.mrf.mxu0
  %v1874 = vadd.f32 %v1697, %v1873
  %v1875 = vpop.f32.mrf.mxu0
  %v1876 = vadd.f32 %v1697, %v1875
  %1877 = vmatmul.bf16.gmra.mxu0 %v1694
  %v1878 = vpop.f32.mrf.mxu0
  %v1879 = vadd.f32 %v1697, %v1878
  %v1880 = vpop.f32.mrf.mxu0
  %v1881 = vadd.f32 %v1697, %v1880
  %1882 = vdwg.mxu0
  %v1883 = vmul.f32 %v1836, %v1836
  %v1884 = vmul.f32 %v1855, %v1855
  %v1885 = vmul.f32 %v1874, %v1874
  %v1886 = vmul.f32 %v1838, %v1838
  %v1887 = vmul.f32 %v1857, %v1857
  %v1888 = vmul.f32 %v1876, %v1876
  %v1889 = vmul.f32 %v1841, %v1841
  %v1890 = vmul.f32 %v1860, %v1860
  %v1891 = vmul.f32 %v1879, %v1879
  %v1892 = vmul.f32 %v1843, %v1843
  %v1893 = vmul.f32 %v1862, %v1862
  %v1894 = vmul.f32 %v1881, %v1881
  %v1895 = vmul.f32 %v1836, %v1883
  %v1896 = vmul.f32 %v1855, %v1884
  %v1897 = vmul.f32 %v1874, %v1885
  %v1898 = vmul.f32 %v1838, %v1886
  %v1899 = vmul.f32 %v1857, %v1887
  %v1900 = vmul.f32 %v1876, %v1888
  %v1901 = vmul.f32 %v1841, %v1889
  %v1902 = vmul.f32 %v1860, %v1890
  %v1903 = vmul.f32 %v1879, %v1891
  %v1904 = vmul.f32 %v1843, %v1892
  %v1905 = vmul.f32 %v1862, %v1893
  %v1906 = vmul.f32 %v1881, %v1894
  %v1907 = vmul.f32 %v1895, 0.044715
  %v1908 = vmul.f32 %v1896, 0.044715
  %v1909 = vmul.f32 %v1897, 0.044715
  %v1910 = vmul.f32 %v1898, 0.044715
  %v1911 = vmul.f32 %v1899, 0.044715
  %v1912 = vmul.f32 %v1900, 0.044715
  %v1913 = vmul.f32 %v1901, 0.044715
  %v1914 = vmul.f32 %v1902, 0.044715
  %v1915 = vmul.f32 %v1903, 0.044715
  %v1916 = vmul.f32 %v1904, 0.044715
  %v1917 = vmul.f32 %v1905, 0.044715
  %v1918 = vmul.f32 %v1906, 0.044715
  %v1919 = vadd.f32 %v1836, %v1907
  %v1920 = vadd.f32 %v1855, %v1908
  %v1921 = vadd.f32 %v1874, %v1909
  %v1922 = vadd.f32 %v1838, %v1910
  %v1923 = vadd.f32 %v1857, %v1911
  %v1924 = vadd.f32 %v1876, %v1912
  %v1925 = vadd.f32 %v1841, %v1913
  %v1926 = vadd.f32 %v1860, %v1914
  %v1927 = vadd.f32 %v1879, %v1915
  %v1928 = vadd.f32 %v1843, %v1916
  %v1929 = vadd.f32 %v1862, %v1917
  %v1930 = vadd.f32 %v1881, %v1918
  %v1931 = vmul.f32 %v1919, 0.7978846
  %v1932 = vmul.f32 %v1920, 0.7978846
  %v1933 = vmul.f32 %v1921, 0.7978846
  %v1934 = vmul.f32 %v1922, 0.7978846
  %v1935 = vmul.f32 %v1923, 0.7978846
  %v1936 = vmul.f32 %v1924, 0.7978846
  %v1937 = vmul.f32 %v1925, 0.7978846
  %v1938 = vmul.f32 %v1926, 0.7978846
  %v1939 = vmul.f32 %v1927, 0.7978846
  %v1940 = vmul.f32 %v1928, 0.7978846
  %v1941 = vmul.f32 %v1929, 0.7978846
  %v1942 = vmul.f32 %v1930, 0.7978846
  %v1943 = vtanh.pop %v1931
  %v1944 = vtanh.pop %v1932
  %v1945 = vtanh.pop %v1933
  %v1946 = vtanh.pop %v1934
  %v1947 = vtanh.pop %v1935
  %v1948 = vtanh.pop %v1936
  %v1949 = vtanh.pop %v1937
  %v1950 = vtanh.pop %v1938
  %v1951 = vtanh.pop %v1939
  %v1952 = vtanh.pop %v1940
  %v1953 = vtanh.pop %v1941
  %v1954 = vtanh.pop %v1942
  %v1955 = vadd.f32 %v1943, 1.0
  %v1956 = vadd.f32 %v1944, 1.0
  %v1957 = vadd.f32 %v1945, 1.0
  %v1958 = vadd.f32 %v1946, 1.0
  %v1959 = vadd.f32 %v1947, 1.0
  %v1960 = vadd.f32 %v1948, 1.0
  %v1961 = vadd.f32 %v1949, 1.0
  %v1962 = vadd.f32 %v1950, 1.0
  %v1963 = vadd.f32 %v1951, 1.0
  %v1964 = vadd.f32 %v1952, 1.0
  %v1965 = vadd.f32 %v1953, 1.0
  %v1966 = vadd.f32 %v1954, 1.0
  %v1967 = vmul.f32 %v1955, 0.5
  %v1968 = vmul.f32 %v1956, 0.5
  %v1969 = vmul.f32 %v1957, 0.5
  %v1970 = vmul.f32 %v1958, 0.5
  %v1971 = vmul.f32 %v1959, 0.5
  %v1972 = vmul.f32 %v1960, 0.5
  %v1973 = vmul.f32 %v1961, 0.5
  %v1974 = vmul.f32 %v1962, 0.5
  %v1975 = vmul.f32 %v1963, 0.5
  %v1976 = vmul.f32 %v1964, 0.5
  %v1977 = vmul.f32 %v1965, 0.5
  %v1978 = vmul.f32 %v1966, 0.5
  %v1979 = vmul.f32 %v1836, %v1967
  %v1980 = vmul.f32 %v1855, %v1968
  %v1981 = vmul.f32 %v1874, %v1969
  %v1982 = vmul.f32 %v1838, %v1970
  %v1983 = vmul.f32 %v1857, %v1971
  %v1984 = vmul.f32 %v1876, %v1972
  %v1985 = vmul.f32 %v1841, %v1973
  %v1986 = vmul.f32 %v1860, %v1974
  %v1987 = vmul.f32 %v1879, %v1975
  %v1988 = vmul.f32 %v1843, %v1976
  %v1989 = vmul.f32 %v1862, %v1977
  %v1990 = vmul.f32 %v1881, %v1978
  %v1991 = vld [vmem:[%s10] sm:$0xf]
  %v1992 = vld [vmem:[%s10 + $0x4] sm:$0xf]
  %v1993 = vld [vmem:[%s10 + $0x8] sm:$0xf]
  %v1994 = vld [vmem:[%s10 + $0xc] sm:$0xf]
  %v1995 = vld [vmem:[%s10 + $0x10] sm:$0xf]
  %v1996 = vld [vmem:[%s10 + $0x14] sm:$0xf]
  %v1997 = vld [vmem:[%s10 + $0x18] sm:$0xf]
  %v1998 = vld [vmem:[%s10 + $0x1c] sm:$0xf]
  %v1999 = vld [vmem:[%s10 + $0x20] sm:$0xf]
  %v2000 = vld [vmem:[%s10 + $0x24] sm:$0xf]
  %v2001 = vld [vmem:[%s10 + $0x28] sm:$0xf]
  %v2002 = vld [vmem:[%s10 + $0x2c] sm:$0xf]
  %v2003 = vld [vmem:[%s10 + $0x30] sm:$0xf]
  %v2004 = vld [vmem:[%s10 + $0x34] sm:$0xf]
  %v2005 = vld [vmem:[%s10 + $0x38] sm:$0xf]
  %v2006 = vld [vmem:[%s10 + $0x3c] sm:$0xf]
  %v2007 = vld [vmem:[%s10 + $0x40] sm:$0xf]
  %v2008 = vld [vmem:[%s10 + $0x44] sm:$0xf]
  %v2009 = vld [vmem:[%s10 + $0x48] sm:$0xf]
  %v2010 = vld [vmem:[%s10 + $0x4c] sm:$0xf]
  %v2011 = vld [vmem:[%s10 + $0x50] sm:$0xf]
  %v2012 = vld [vmem:[%s10 + $0x54] sm:$0xf]
  %v2013 = vld [vmem:[%s10 + $0x58] sm:$0xf]
  %v2014 = vld [vmem:[%s10 + $0x5c] sm:$0xf]
  %v2015 = vld [vmem:[%s10 + $0x60] sm:$0xf]
  %v2016 = vld [vmem:[%s10 + $0x64] sm:$0xf]
  %v2017 = vld [vmem:[%s10 + $0x68] sm:$0xf]
  %v2018 = vld [vmem:[%s10 + $0x6c] sm:$0xf]
  %v2019 = vld [vmem:[%s10 + $0x70] sm:$0xf]
  %v2020 = vld [vmem:[%s10 + $0x74] sm:$0xf]
  %v2021 = vld [vmem:[%s10 + $0x78] sm:$0xf]
  %v2022 = vld [vmem:[%s10 + $0x7c] sm:$0xf]
  %v2023 = vld [vmem:[%s10 + $0x80] sm:$0xf]
  %v2024 = vld [vmem:[%s10 + $0x84] sm:$0xf]
  %v2025 = vld [vmem:[%s10 + $0x88] sm:$0xf]
  %v2026 = vld [vmem:[%s10 + $0x8c] sm:$0xf]
  %v2027 = vld [vmem:[%s10 + $0x90] sm:$0xf]
  %v2028 = vld [vmem:[%s10 + $0x94] sm:$0xf]
  %v2029 = vld [vmem:[%s10 + $0x98] sm:$0xf]
  %v2030 = vld [vmem:[%s10 + $0x9c] sm:$0xf]
  %v2031 = vld [vmem:[%s10 + $0xa0] sm:$0xf]
  %v2032 = vld [vmem:[%s10 + $0xa4] sm:$0xf]
  %v2033 = vld [vmem:[%s10 + $0xa8] sm:$0xf]
  %v2034 = vld [vmem:[%s10 + $0xac] sm:$0xf]
  %v2035 = vld [vmem:[%s10 + $0xb0] sm:$0xf]
  %v2036 = vld [vmem:[%s10 + $0xb4] sm:$0xf]
  %v2037 = vld [vmem:[%s10 + $0xb8] sm:$0xf]
  %v2038 = vld [vmem:[%s10 + $0xbc] sm:$0xf]
  %v2039 = vpack.c.bf16 %v1982, %v1979
  %v2040 = vpack.c.bf16 %v1983, %v1980
  %v2041 = vpack.c.bf16 %v1984, %v1981
  %v2042 = vpack.c.bf16 %v1988, %v1985
  %v2043 = vpack.c.bf16 %v1989, %v1986
  %v2044 = vpack.c.bf16 %v1990, %v1987
  %v2045 = vperm.slane %v595, 5
  %v2094 = vunpack.c.l.b16 %v1991
  %v2095 = vunpack.c.l.b16 %v1992
  %v2096 = vunpack.c.l.b16 %v1993
  %v2097 = vunpack.c.l.b16 %v1994
  %v2098 = vunpack.c.l.b16 %v1995
  %v2099 = vunpack.c.l.b16 %v1996
  %v2100 = vunpack.c.l.b16 %v1997
  %v2101 = vunpack.c.l.b16 %v1998
  %v2102 = vunpack.c.l.b16 %v1999
  %v2103 = vunpack.c.l.b16 %v2000
  %v2104 = vunpack.c.l.b16 %v2001
  %v2105 = vunpack.c.l.b16 %v2002
  %v2106 = vunpack.c.l.b16 %v2003
  %v2107 = vunpack.c.l.b16 %v2004
  %v2108 = vunpack.c.l.b16 %v2005
  %v2109 = vunpack.c.l.b16 %v2006
  %v2110 = vunpack.c.l.b16 %v2007
  %v2111 = vunpack.c.l.b16 %v2008
  %v2112 = vunpack.c.l.b16 %v2009
  %v2113 = vunpack.c.l.b16 %v2010
  %v2114 = vunpack.c.l.b16 %v2011
  %v2115 = vunpack.c.l.b16 %v2012
  %v2116 = vunpack.c.l.b16 %v2013
  %v2117 = vunpack.c.l.b16 %v2014
  %v2118 = vunpack.c.l.b16 %v2015
  %v2119 = vunpack.c.l.b16 %v2016
  %v2120 = vunpack.c.l.b16 %v2017
  %v2121 = vunpack.c.l.b16 %v2018
  %v2122 = vunpack.c.l.b16 %v2019
  %v2123 = vunpack.c.l.b16 %v2020
  %v2124 = vunpack.c.l.b16 %v2021
  %v2125 = vunpack.c.l.b16 %v2022
  %v2126 = vunpack.c.l.b16 %v2023
  %v2127 = vunpack.c.l.b16 %v2024
  %v2128 = vunpack.c.l.b16 %v2025
  %v2129 = vunpack.c.l.b16 %v2026
  %v2130 = vunpack.c.l.b16 %v2027
  %v2131 = vunpack.c.l.b16 %v2028
  %v2132 = vunpack.c.l.b16 %v2029
  %v2133 = vunpack.c.l.b16 %v2030
  %v2134 = vunpack.c.l.b16 %v2031
  %v2135 = vunpack.c.l.b16 %v2032
  %v2136 = vunpack.c.l.b16 %v2033
  %v2137 = vunpack.c.l.b16 %v2034
  %v2138 = vunpack.c.l.b16 %v2035
  %v2139 = vunpack.c.l.b16 %v2036
  %v2140 = vunpack.c.l.b16 %v2037
  %v2141 = vunpack.c.l.b16 %v2038
  %v2142 = vpack.c.b16 %v2095, %v2094
  %v2143 = vpack.c.b16 %v2097, %v2096
  %v2144 = vpack.c.b16 %v2099, %v2098
  %v2145 = vpack.c.b16 %v2101, %v2100
  %v2146 = vpack.c.b16 %v2103, %v2102
  %v2147 = vpack.c.b16 %v2105, %v2104
  %v2148 = vpack.c.b16 %v2107, %v2106
  %v2149 = vpack.c.b16 %v2109, %v2108
  %v2150 = vpack.c.b16 %v2111, %v2110
  %v2151 = vpack.c.b16 %v2113, %v2112
  %v2152 = vpack.c.b16 %v2115, %v2114
  %v2153 = vpack.c.b16 %v2117, %v2116
  %v2154 = vpack.c.b16 %v2119, %v2118
  %v2155 = vpack.c.b16 %v2121, %v2120
  %v2156 = vpack.c.b16 %v2123, %v2122
  %v2157 = vpack.c.b16 %v2125, %v2124
  %v2158 = vpack.c.b16 %v2127, %v2126
  %v2159 = vpack.c.b16 %v2129, %v2128
  %v2160 = vpack.c.b16 %v2131, %v2130
  %v2161 = vpack.c.b16 %v2133, %v2132
  %v2162 = vpack.c.b16 %v2135, %v2134
  %v2163 = vpack.c.b16 %v2137, %v2136
  %v2164 = vpack.c.b16 %v2139, %v2138
  %v2165 = vpack.c.b16 %v2141, %v2140
  %2190 = vmatpush.bf16.msra.mxu0 %v2149
  %2191 = vmatpush.bf16.msra.mxu0 %v2148
  %2192 = vmatpush.bf16.msra.mxu0 %v2147
  %2193 = vmatpush.bf16.msra.mxu0 %v2146
  %2194 = vmatpush.bf16.msra.mxu0 %v2145
  %2195 = vmatpush.bf16.msra.mxu0 %v2144
  %2196 = vmatpush.bf16.msra.mxu0 %v2143
  %2197 = vmatpush.bf16.msra.mxu0 %v2142
  %2198 = vmatmul.bf16.gmra.mxu0 %v2039
  %v2199 = vpop.f32.mrf.mxu0
  %v2200 = vadd.f32 %v2045, %v2199
  %v2201 = vpop.f32.mrf.mxu0
  %v2202 = vadd.f32 %v2045, %v2201
  %2203 = vmatmul.bf16.gmra.mxu0 %v2042
  %v2204 = vpop.f32.mrf.mxu0
  %v2205 = vadd.f32 %v2045, %v2204
  %v2206 = vpop.f32.mrf.mxu0
  %v2207 = vadd.f32 %v2045, %v2206
  %2208 = vdwg.mxu0
  %2209 = vmatpush.bf16.msra.mxu0 %v2157
  %2210 = vmatpush.bf16.msra.mxu0 %v2156
  %2211 = vmatpush.bf16.msra.mxu0 %v2155
  %2212 = vmatpush.bf16.msra.mxu0 %v2154
  %2213 = vmatpush.bf16.msra.mxu0 %v2153
  %2214 = vmatpush.bf16.msra.mxu0 %v2152
  %2215 = vmatpush.bf16.msra.mxu0 %v2151
  %2216 = vmatpush.bf16.msra.mxu0 %v2150
  %2217 = vmatmul.bf16.gmra.mxu0 %v2040
  %v2218 = vpop.f32.mrf.mxu0
  %v2219 = vadd.f32 %v2200, %v2218
  %v2220 = vpop.f32.mrf.mxu0
  %v2221 = vadd.f32 %v2202, %v2220
  %2222 = vmatmul.bf16.gmra.mxu0 %v2043
  %v2223 = vpop.f32.mrf.mxu0
  %v2224 = vadd.f32 %v2205, %v2223
  %v2225 = vpop.f32.mrf.mxu0
  %v2226 = vadd.f32 %v2207, %v2225
  %2227 = vdwg.mxu0
  %2228 = vmatpush.bf16.msra.mxu0 %v2165
  %2229 = vmatpush.bf16.msra.mxu0 %v2164
  %2230 = vmatpush.bf16.msra.mxu0 %v2163
  %2231 = vmatpush.bf16.msra.mxu0 %v2162
  %2232 = vmatpush.bf16.msra.mxu0 %v2161
  %2233 = vmatpush.bf16.msra.mxu0 %v2160
  %2234 = vmatpush.bf16.msra.mxu0 %v2159
  %2235 = vmatpush.bf16.msra.mxu0 %v2158
  %2236 = vmatmul.bf16.gmra.mxu0 %v2041
  %v2237 = vpop.f32.mrf.mxu0
  %v2238 = vadd.f32 %v2219, %v2237
  %v2239 = vpop.f32.mrf.mxu0
  %v2240 = vadd.f32 %v2221, %v2239
  %2241 = vmatmul.bf16.gmra.mxu0 %v2044
  %v2242 = vpop.f32.mrf.mxu0
  %v2243 = vadd.f32 %v2224, %v2242
  %v2244 = vpop.f32.mrf.mxu0
  %v2245 = vadd.f32 %v2226, %v2244
  %2246 = vdwg.mxu0
  %v2247 = vadd.f32 %v1657, %v2238
  %v2248 = vadd.f32 %v1658, %v2240
  %v2249 = vadd.f32 %v1659, %v2243
  %v2250 = vadd.f32 %v1660, %v2245
  %2251 = vadd.xlane.f32.xlu0 %v2247
  %v2252 = vpop.xlane.xlu0 %2251
  %2253 = vadd.xlane.f32.xlu0 %v2248
  %v2254 = vpop.xlane.xlu0 %2253
  %2255 = vadd.xlane.f32.xlu0 %v2249
  %v2256 = vpop.xlane.xlu0 %2255
  %2257 = vadd.xlane.f32.xlu0 %v2250
  %v2258 = vpop.xlane.xlu0 %2257
  %v2259 = vmul.f32 %v2252, %v1578
  %v2260 = vmul.f32 %v2254, %v1578
  %v2261 = vmul.f32 %v2256, %v1578
  %v2262 = vmul.f32 %v2258, %v1578
  %v2263 = vsub.f32 %v2247, %v2259
  %v2264 = vsub.f32 %v2248, %v2260
  %v2265 = vsub.f32 %v2249, %v2261
  %v2266 = vsub.f32 %v2250, %v2262
  %v2267 = vmul.f32 %v2263, %v2263
  %v2268 = vmul.f32 %v2264, %v2264
  %v2269 = vmul.f32 %v2265, %v2265
  %v2270 = vmul.f32 %v2266, %v2266
  %2271 = vadd.xlane.f32.xlu0 %v2267
  %v2272 = vpop.xlane.xlu0 %2271
  %2273 = vadd.xlane.f32.xlu0 %v2268
  %v2274 = vpop.xlane.xlu0 %2273
  %2275 = vadd.xlane.f32.xlu0 %v2269
  %v2276 = vpop.xlane.xlu0 %2275
  %2277 = vadd.xlane.f32.xlu0 %v2270
  %v2278 = vpop.xlane.xlu0 %2277
  %v2279 = vmul.f32 %v2272, %v1578
  %v2280 = vmul.f32 %v2274, %v1578
  %v2281 = vmul.f32 %v2276, %v1578
  %v2282 = vmul.f32 %v2278, %v1578
  %v2283 = vadd.f32 %v2279, 1e-05
  %v2284 = vadd.f32 %v2280, 1e-05
  %v2285 = vadd.f32 %v2281, 1e-05
  %v2286 = vadd.f32 %v2282, 1e-05
  %v2287 = vrsqrt.pop %v2283
  %v2288 = vmul.f32 %v2287, %v2283
  %v2289 = vmul.f32 %v2288, %v2287
  %v2290 = vmul.f32 0.5, %v2289
  %v2291 = vsub.f32 1.5, %v2290
  %v2292 = vmul.f32 %v2287, %v2291
  %vm2293 = vweird.f32 %v2283
  %vm2294 = vweird.f32 %v2287
  %vm2295 = vmor %vm2293, %vm2294
  %v2296 = vsel %vm2295, %v2287, %v2292
  %v2297 = vrsqrt.pop %v2284
  %v2298 = vmul.f32 %v2297, %v2284
  %v2299 = vmul.f32 %v2298, %v2297
  %v2300 = vmul.f32 0.5, %v2299
  %v2301 = vsub.f32 1.5, %v2300
  %v2302 = vmul.f32 %v2297, %v2301
  %vm2303 = vweird.f32 %v2284
  %vm2304 = vweird.f32 %v2297
  %vm2305 = vmor %vm2303, %vm2304
  %v2306 = vsel %vm2305, %v2297, %v2302
  %v2307 = vrsqrt.pop %v2285
  %v2308 = vmul.f32 %v2307, %v2285
  %v2309 = vmul.f32 %v2308, %v2307
  %v2310 = vmul.f32 0.5, %v2309
  %v2311 = vsub.f32 1.5, %v2310
  %v2312 = vmul.f32 %v2307, %v2311
  %vm2313 = vweird.f32 %v2285
  %vm2314 = vweird.f32 %v2307
  %vm2315 = vmor %vm2313, %vm2314
  %v2316 = vsel %vm2315, %v2307, %v2312
  %v2317 = vrsqrt.pop %v2286
  %v2318 = vmul.f32 %v2317, %v2286
  %v2319 = vmul.f32 %v2318, %v2317
  %v2320 = vmul.f32 0.5, %v2319
  %v2321 = vsub.f32 1.5, %v2320
  %v2322 = vmul.f32 %v2317, %v2321
  %vm2323 = vweird.f32 %v2286
  %vm2324 = vweird.f32 %v2317
  %vm2325 = vmor %vm2323, %vm2324
  %v2326 = vsel %vm2325, %v2317, %v2322
  %v2327 = vmul.f32 %v2263, %v2296
  %v2328 = vmul.f32 %v2264, %v2306
  %v2329 = vmul.f32 %v2265, %v2316
  %v2330 = vmul.f32 %v2266, %v2326
  %v2331 = vperm.slane %v595, 6
  %v2332 = vmul.f32 %v2327, %v2331
  %v2333 = vmul.f32 %v2328, %v2331
  %v2334 = vmul.f32 %v2329, %v2331
  %v2335 = vmul.f32 %v2330, %v2331
  %v2336 = vperm.slane %v595, 7
  %v2337 = vadd.f32 %v2332, %v2336
  %v2338 = vadd.f32 %v2333, %v2336
  %v2339 = vadd.f32 %v2334, %v2336
  %v2340 = vadd.f32 %v2335, %v2336
  %v2341 = vld [vmem:[%s16] sm:$0xff]
  %v2342 = vld [vmem:[%s16 + $0x8] sm:$0xff]
  %v2343 = vld [vmem:[%s16 + $0x10] sm:$0xff]
  %v2344 = vld [vmem:[%s12] sm:$0xff]
  %v2345 = vld [vmem:[%s12 + $0x8] sm:$0xf]
  %v2346 = vld [vmem:[%s12 + $0xc] sm:$0xff]
  %v2347 = vld [vmem:[%s12 + $0x14] sm:$0xf]
  %v2348 = vld [vmem:[%s12 + $0x18] sm:$0xff]
  %v2349 = vld [vmem:[%s12 + $0x20] sm:$0xf]
  %v2350 = vld [vmem:[%s12 + $0x24] sm:$0xff]
  %v2351 = vld [vmem:[%s12 + $0x2c] sm:$0xf]
  %v2352 = vld [vmem:[%s12 + $0x30] sm:$0xff]
  %v2353 = vld [vmem:[%s12 + $0x38] sm:$0xf]
  %v2354 = vld [vmem:[%s12 + $0x3c] sm:$0xff]
  %v2355 = vld [vmem:[%s12 + $0x44] sm:$0xf]
  %v2356 = vld [vmem:[%s12 + $0x48] sm:$0xff]
  %v2357 = vld [vmem:[%s12 + $0x50] sm:$0xf]
  %v2358 = vld [vmem:[%s12 + $0x54] sm:$0xff]
  %v2359 = vld [vmem:[%s12 + $0x5c] sm:$0xf]
  %v2360 = vld [vmem:[%s12 + $0x60] sm:$0xff]
  %v2361 = vld [vmem:[%s12 + $0x68] sm:$0xf]
  %v2362 = vld [vmem:[%s12 + $0x6c] sm:$0xff]
  %v2363 = vld [vmem:[%s12 + $0x74] sm:$0xf]
  %v2364 = vld [vmem:[%s12 + $0x78] sm:$0xff]
  %v2365 = vld [vmem:[%s12 + $0x80] sm:$0xf]
  %v2366 = vld [vmem:[%s12 + $0x84] sm:$0xff]
  %v2367 = vld [vmem:[%s12 + $0x8c] sm:$0xf]
  %v2368 = vld [vmem:[%s12 + $0x90] sm:$0xff]
  %v2369 = vld [vmem:[%s12 + $0x98] sm:$0xf]
  %v2370 = vld [vmem:[%s12 + $0x9c] sm:$0xff]
  %v2371 = vld [vmem:[%s12 + $0xa4] sm:$0xf]
  %v2372 = vld [vmem:[%s12 + $0xa8] sm:$0xff]
  %v2373 = vld [vmem:[%s12 + $0xb0] sm:$0xf]
  %v2374 = vld [vmem:[%s12 + $0xb4] sm:$0xff]
  %v2375 = vld [vmem:[%s12 + $0xbc] sm:$0xf]
  %v2376 = vpack.c.bf16 %v2338, %v2337
  %v2377 = vpack.c.bf16 %v2340, %v2339
  %v2378 = vperm.slane %v2341, 0
  %v2379 = vperm.slane %v2342, 0
  %v2380 = vperm.slane %v2343, 0
  %v2413 = vunpack.c.l.b16 %v2344
  %v2414 = vunpack.c.h.b16 %v2344
  %v2415 = vunpack.c.l.b16 %v2345
  %v2416 = vunpack.c.l.b16 %v2346
  %v2417 = vunpack.c.h.b16 %v2346
  %v2418 = vunpack.c.l.b16 %v2347
  %v2419 = vunpack.c.l.b16 %v2348
  %v2420 = vunpack.c.h.b16 %v2348
  %v2421 = vunpack.c.l.b16 %v2349
  %v2422 = vunpack.c.l.b16 %v2350
  %v2423 = vunpack.c.h.b16 %v2350
  %v2424 = vunpack.c.l.b16 %v2351
  %v2425 = vunpack.c.l.b16 %v2352
  %v2426 = vunpack.c.h.b16 %v2352
  %v2427 = vunpack.c.l.b16 %v2353
  %v2428 = vunpack.c.l.b16 %v2354
  %v2429 = vunpack.c.h.b16 %v2354
  %v2430 = vunpack.c.l.b16 %v2355
  %v2431 = vunpack.c.l.b16 %v2356
  %v2432 = vunpack.c.h.b16 %v2356
  %v2433 = vunpack.c.l.b16 %v2357
  %v2434 = vunpack.c.l.b16 %v2358
  %v2435 = vunpack.c.h.b16 %v2358
  %v2436 = vunpack.c.l.b16 %v2359
  %v2437 = vunpack.c.l.b16 %v2360
  %v2438 = vunpack.c.h.b16 %v2360
  %v2439 = vunpack.c.l.b16 %v2361
  %v2440 = vunpack.c.l.b16 %v2362
  %v2441 = vunpack.c.h.b16 %v2362
  %v2442 = vunpack.c.l.b16 %v2363
  %v2443 = vunpack.c.l.b16 %v2364
  %v2444 = vunpack.c.h.b16 %v2364
  %v2445 = vunpack.c.l.b16 %v2365
  %v2446 = vunpack.c.l.b16 %v2366
  %v2447 = vunpack.c.h.b16 %v2366
  %v2448 = vunpack.c.l.b16 %v2367
  %v2449 = vunpack.c.l.b16 %v2368
  %v2450 = vunpack.c.h.b16 %v2368
  %v2451 = vunpack.c.l.b16 %v2369
  %v2452 = vunpack.c.l.b16 %v2370
  %v2453 = vunpack.c.h.b16 %v2370
  %v2454 = vunpack.c.l.b16 %v2371
  %v2455 = vunpack.c.l.b16 %v2372
  %v2456 = vunpack.c.h.b16 %v2372
  %v2457 = vunpack.c.l.b16 %v2373
  %v2458 = vunpack.c.l.b16 %v2374
  %v2459 = vunpack.c.h.b16 %v2374
  %v2460 = vunpack.c.l.b16 %v2375
  %v2461 = vpack.c.b16 %v2416, %v2413
  %v2462 = vpack.c.b16 %v2417, %v2414
  %v2463 = vpack.c.b16 %v2418, %v2415
  %v2464 = vpack.c.b16 %v2422, %v2419
  %v2465 = vpack.c.b16 %v2423, %v2420
  %v2466 = vpack.c.b16 %v2424, %v2421
  %v2467 = vpack.c.b16 %v2428, %v2425
  %v2468 = vpack.c.b16 %v2429, %v2426
  %v2469 = vpack.c.b16 %v2430, %v2427
  %v2470 = vpack.c.b16 %v2434, %v2431
  %v2471 = vpack.c.b16 %v2435, %v2432
  %v2472 = vpack.c.b16 %v2436, %v2433
  %v2473 = vpack.c.b16 %v2440, %v2437
  %v2474 = vpack.c.b16 %v2441, %v2438
  %v2475 = vpack.c.b16 %v2442, %v2439
  %v2476 = vpack.c.b16 %v2446, %v2443
  %v2477 = vpack.c.b16 %v2447, %v2444
  %v2478 = vpack.c.b16 %v2448, %v2445
  %v2479 = vpack.c.b16 %v2452, %v2449
  %v2480 = vpack.c.b16 %v2453, %v2450
  %v2481 = vpack.c.b16 %v2454, %v2451
  %v2482 = vpack.c.b16 %v2458, %v2455
  %v2483 = vpack.c.b16 %v2459, %v2456
  %v2484 = vpack.c.b16 %v2460, %v2457
  %2509 = vmatpush.bf16.msra.mxu0 %v2482
  %2510 = vmatpush.bf16.msra.mxu0 %v2479
  %2511 = vmatpush.bf16.msra.mxu0 %v2476
  %2512 = vmatpush.bf16.msra.mxu0 %v2473
  %2513 = vmatpush.bf16.msra.mxu0 %v2470
  %2514 = vmatpush.bf16.msra.mxu0 %v2467
  %2515 = vmatpush.bf16.msra.mxu0 %v2464
  %2516 = vmatpush.bf16.msra.mxu0 %v2461
  %2517 = vmatmul.bf16.gmra.mxu0 %v2376
  %v2518 = vpop.f32.mrf.mxu0
  %v2519 = vadd.f32 %v2378, %v2518
  %v2520 = vpop.f32.mrf.mxu0
  %v2521 = vadd.f32 %v2378, %v2520
  %2522 = vmatmul.bf16.gmra.mxu0 %v2377
  %v2523 = vpop.f32.mrf.mxu0
  %v2524 = vadd.f32 %v2378, %v2523
  %v2525 = vpop.f32.mrf.mxu0
  %v2526 = vadd.f32 %v2378, %v2525
  %2527 = vdwg.mxu0
  %2528 = vmatpush.bf16.msra.mxu0 %v2483
  %2529 = vmatpush.bf16.msra.mxu0 %v2480
  %2530 = vmatpush.bf16.msra.mxu0 %v2477
  %2531 = vmatpush.bf16.msra.mxu0 %v2474
  %2532 = vmatpush.bf16.msra.mxu0 %v2471
  %2533 = vmatpush.bf16.msra.mxu0 %v2468
  %2534 = vmatpush.bf16.msra.mxu0 %v2465
  %2535 = vmatpush.bf16.msra.mxu0 %v2462
  %2536 = vmatmul.bf16.gmra.mxu0 %v2376
  %v2537 = vpop.f32.mrf.mxu0
  %v2538 = vadd.f32 %v2379, %v2537
  %v2539 = vpop.f32.mrf.mxu0
  %v2540 = vadd.f32 %v2379, %v2539
  %2541 = vmatmul.bf16.gmra.mxu0 %v2377
  %v2542 = vpop.f32.mrf.mxu0
  %v2543 = vadd.f32 %v2379, %v2542
  %v2544 = vpop.f32.mrf.mxu0
  %v2545 = vadd.f32 %v2379, %v2544
  %2546 = vdwg.mxu0
  %2547 = vmatpush.bf16.msra.mxu0 %v2484
  %2548 = vmatpush.bf16.msra.mxu0 %v2481
  %2549 = vmatpush.bf16.msra.mxu0 %v2478
  %2550 = vmatpush.bf16.msra.mxu0 %v2475
  %2551 = vmatpush.bf16.msra.mxu0 %v2472
  %2552 = vmatpush.bf16.msra.mxu0 %v2469
  %2553 = vmatpush.bf16.msra.mxu0 %v2466
  %2554 = vmatpush.bf16.msra.mxu0 %v2463
  %2555 = vmatmul.bf16.gmra.mxu0 %v2376
  %v2556 = vpop.f32.mrf.mxu0
  %v2557 = vadd.f32 %v2380, %v2556
  %v2558 = vpop.f32.mrf.mxu0
  %v2559 = vadd.f32 %v2380, %v2558
  %2560 = vmatmul.bf16.gmra.mxu0 %v2377
  %v2561 = vpop.f32.mrf.mxu0
  %v2562 = vadd.f32 %v2380, %v2561
  %v2563 = vpop.f32.mrf.mxu0
  %v2564 = vadd.f32 %v2380, %v2563
  %2565 = vdwg.mxu0
  %v2566 = vpack.c.bf16 %v2538, %v2519
  %v2567 = vpack.c.bf16 %v2557, %v2557
  %v2568 = vpack.c.bf16 %v2540, %v2521
  %v2569 = vpack.c.bf16 %v2559, %v2559
  %v2570 = vpack.c.bf16 %v2543, %v2524
  %v2571 = vpack.c.bf16 %v2562, %v2562
  %v2572 = vpack.c.bf16 %v2545, %v2526
  %v2573 = vpack.c.bf16 %v2564, %v2564
  %v2574 = vld [vmem:[%s13] sm:$0xf]
  %v2575 = vld [vmem:[%s13 + $0x4] sm:$0xf]
  %v2576 = vld [vmem:[%s13 + $0x8] sm:$0xf]
  %v2577 = vld [vmem:[%s13 + $0xc] sm:$0xf]
  %v2578 = vld [vmem:[%s13 + $0x10] sm:$0xf]
  %v2579 = vld [vmem:[%s13 + $0x14] sm:$0xf]
  %v2580 = vld [vmem:[%s13 + $0x18] sm:$0xf]
  %v2581 = vld [vmem:[%s13 + $0x1c] sm:$0xf]
  %v2582 = vld [vmem:[%s13 + $0x20] sm:$0xf]
  %v2583 = vld [vmem:[%s13 + $0x24] sm:$0xf]
  %v2584 = vld [vmem:[%s13 + $0x28] sm:$0xf]
  %v2585 = vld [vmem:[%s13 + $0x2c] sm:$0xf]
  %v2586 = vld [vmem:[%s13 + $0x30] sm:$0xf]
  %v2587 = vld [vmem:[%s13 + $0x34] sm:$0xf]
  %v2588 = vld [vmem:[%s13 + $0x38] sm:$0xf]
  %v2589 = vld [vmem:[%s13 + $0x3c] sm:$0xf]
  %v2592 = vunpack.c.l.b16 %v2566
  %v2593 = vunpack.c.l.b16 %v2568
  %v2594 = vpack.c.b16 %v2593, %v2592
  %v2595 = vunpack.c.h.b16 %v2566
  %v2596 = vunpack.c.h.b16 %v2568
  %v2597 = vpack.c.b16 %v2596, %v2595
  %v2599 = vsel %vm113, %v2594, 0
  %v2602 = vsel %vm113, %v2597, 0
  %2604 = vmatpush.bf16.xpose.msra.mxu0 0
  %2605 = vmatpush.bf16.xpose.msra.mxu0 0
  %2606 = vmatpush.bf16.xpose.msra.mxu0 0
  %2607 = vmatpush.bf16.xpose.msra.mxu0 0
  %2608 = vmatpush.bf16.xpose.msra.mxu0 0
  %2609 = vmatpush.bf16.xpose.msra.mxu0 0
  %2610 = vmatpush.bf16.xpose.msra.mxu0 0
  %2611 = vmatpush.bf16.xpose.msra.mxu0 %v2602
  %2612 = vmatmul.bf16.gmra.mxu0 %v2599
  %v2613 = vpop.f32.mrf.mxu0
  %v2614 = vadd.f32 0.0, %v2613
  %v2615 = vpop.f32.mrf.mxu0
  %v2616 = vadd.f32 0.0, %v2615
  %2617 = vdwg.mxu0
  %v2618 = vsel %vm872, %v2614, -inf
  %2619 = vmax.xlane.f32.xlu0 %v2618
  %v2620 = vpop.xlane.xlu0 %2619
  %v2621 = vsel %vm872, %v2616, -inf
  %2622 = vmax.xlane.f32.xlu0 %v2621
  %v2623 = vpop.xlane.xlu0 %2622
  %v2624 = vsub.f32 %v2614, %v2620
  %v2625 = vsub.f32 %v2616, %v2623
  %v2626 = vmul.f32 %v2624, 1.442695
  %v2627 = vpow.pop %v2626
  %v2628 = vmul.f32 %v2625, 1.442695
  %v2629 = vpow.pop %v2628
  %v2630 = vsel %vm872, %v2627, 0.0
  %2631 = vadd.xlane.f32.xlu0 %v2630
  %v2632 = vpop.xlane.xlu0 %2631
  %v2633 = vsel %vm872, %v2629, 0.0
  %2634 = vadd.xlane.f32.xlu0 %v2633
  %v2635 = vpop.xlane.xlu0 %2634
  %v2636 = vrcp.pop %v2632
  %v2637 = vrcp.pop %v2635
  %v2638 = vmul.f32 %v2627, %v2636
  %v2639 = vmul.f32 %v2629, %v2637
  %v2640 = vpack.c.bf16 %v2639, %v2638
  %v2643 = vunpack.c.l.b16 %v2567
  %v2644 = vunpack.c.l.b16 %v2569
  %v2645 = vpack.c.b16 %v2644, %v2643
  %v2648 = vsel %vm872, %v2640, 0
  %2650 = vmatpush.bf16.msra.mxu0 0
  %2651 = vmatpush.bf16.msra.mxu0 0
  %2652 = vmatpush.bf16.msra.mxu0 0
  %2653 = vmatpush.bf16.msra.mxu0 0
  %2654 = vmatpush.bf16.msra.mxu0 0
  %2655 = vmatpush.bf16.msra.mxu0 0
  %2656 = vmatpush.bf16.msra.mxu0 0
  %2657 = vmatpush.bf16.msra.mxu0 %v2645
  %2658 = vmatmul.bf16.gmra.mxu0 %v2648
  %v2659 = vpop.f32.mrf.mxu0
  %v2660 = vadd.f32 0.0, %v2659
  %v2661 = vpop.f32.mrf.mxu0
  %v2662 = vadd.f32 0.0, %v2661
  %2663 = vdwg.mxu0
  %v2666 = vunpack.c.l.b16 %v2570
  %v2667 = vunpack.c.l.b16 %v2572
  %v2668 = vpack.c.b16 %v2667, %v2666
  %v2669 = vunpack.c.h.b16 %v2570
  %v2670 = vunpack.c.h.b16 %v2572
  %v2671 = vpack.c.b16 %v2670, %v2669
  %v2673 = vsel %vm113, %v2668, 0
  %v2676 = vsel %vm113, %v2671, 0
  %2678 = vmatpush.bf16.xpose.msra.mxu0 0
  %2679 = vmatpush.bf16.xpose.msra.mxu0 0
  %2680 = vmatpush.bf16.xpose.msra.mxu0 0
  %2681 = vmatpush.bf16.xpose.msra.mxu0 0
  %2682 = vmatpush.bf16.xpose.msra.mxu0 0
  %2683 = vmatpush.bf16.xpose.msra.mxu0 0
  %2684 = vmatpush.bf16.xpose.msra.mxu0 0
  %2685 = vmatpush.bf16.xpose.msra.mxu0 %v2676
  %2686 = vmatmul.bf16.gmra.mxu0 %v2673
  %v2687 = vpop.f32.mrf.mxu0
  %v2688 = vadd.f32 0.0, %v2687
  %v2689 = vpop.f32.mrf.mxu0
  %v2690 = vadd.f32 0.0, %v2689
  %2691 = vdwg.mxu0
  %v2692 = vsel %vm872, %v2688, -inf
  %2693 = vmax.xlane.f32.xlu0 %v2692
  %v2694 = vpop.xlane.xlu0 %2693
  %v2695 = vsel %vm872, %v2690, -inf
  %2696 = vmax.xlane.f32.xlu0 %v2695
  %v2697 = vpop.xlane.xlu0 %2696
  %v2698 = vsub.f32 %v2688, %v2694
  %v2699 = vsub.f32 %v2690, %v2697
  %v2700 = vmul.f32 %v2698, 1.442695
  %v2701 = vpow.pop %v2700
  %v2702 = vmul.f32 %v2699, 1.442695
  %v2703 = vpow.pop %v2702
  %v2704 = vsel %vm872, %v2701, 0.0
  %2705 = vadd.xlane.f32.xlu0 %v2704
  %v2706 = vpop.xlane.xlu0 %2705
  %v2707 = vsel %vm872, %v2703, 0.0
  %2708 = vadd.xlane.f32.xlu0 %v2707
  %v2709 = vpop.xlane.xlu0 %2708
  %v2710 = vrcp.pop %v2706
  %v2711 = vrcp.pop %v2709
  %v2712 = vmul.f32 %v2701, %v2710
  %v2713 = vmul.f32 %v2703, %v2711
  %v2714 = vpack.c.bf16 %v2713, %v2712
  %v2717 = vunpack.c.l.b16 %v2571
  %v2718 = vunpack.c.l.b16 %v2573
  %v2719 = vpack.c.b16 %v2718, %v2717
  %v2722 = vsel %vm872, %v2714, 0
  %2724 = vmatpush.bf16.msra.mxu0 0
  %2725 = vmatpush.bf16.msra.mxu0 0
  %2726 = vmatpush.bf16.msra.mxu0 0
  %2727 = vmatpush.bf16.msra.mxu0 0
  %2728 = vmatpush.bf16.msra.mxu0 0
  %2729 = vmatpush.bf16.msra.mxu0 0
  %2730 = vmatpush.bf16.msra.mxu0 0
  %2731 = vmatpush.bf16.msra.mxu0 %v2719
  %2732 = vmatmul.bf16.gmra.mxu0 %v2722
  %v2733 = vpop.f32.mrf.mxu0
  %v2734 = vadd.f32 0.0, %v2733
  %v2735 = vpop.f32.mrf.mxu0
  %v2736 = vadd.f32 0.0, %v2735
  %2737 = vdwg.mxu0
  %v2738 = vpack.c.bf16 %v2662, %v2660
  %v2739 = vpack.c.bf16 %v2736, %v2734
  %2740 = vrot.lane.b32.xlu0 %v2594, 96
  %v2741 = vpop.permute.xlu0 %2740
  %2742 = vrot.lane.b32.xlu0 %v2597, 96
  %v2743 = vpop.permute.xlu0 %2742
  %v2745 = vsel %vm113, %v2741, 0
  %v2748 = vsel %vm113, %v2743, 0
  %2750 = vmatpush.bf16.xpose.msra.mxu0 0
  %2751 = vmatpush.bf16.xpose.msra.mxu0 0
  %2752 = vmatpush.bf16.xpose.msra.mxu0 0
  %2753 = vmatpush.bf16.xpose.msra.mxu0 0
  %2754 = vmatpush.bf16.xpose.msra.mxu0 0
  %2755 = vmatpush.bf16.xpose.msra.mxu0 0
  %2756 = vmatpush.bf16.xpose.msra.mxu0 0
  %2757 = vmatpush.bf16.xpose.msra.mxu0 %v2748
  %2758 = vmatmul.bf16.gmra.mxu0 %v2745
  %v2759 = vpop.f32.mrf.mxu0
  %v2760 = vadd.f32 0.0, %v2759
  %v2761 = vpop.f32.mrf.mxu0
  %v2762 = vadd.f32 0.0, %v2761
  %2763 = vdwg.mxu0
  %v2764 = vsel %vm872, %v2760, -inf
  %2765 = vmax.xlane.f32.xlu0 %v2764
  %v2766 = vpop.xlane.xlu0 %2765
  %v2767 = vsel %vm872, %v2762, -inf
  %2768 = vmax.xlane.f32.xlu0 %v2767
  %v2769 = vpop.xlane.xlu0 %2768
  %v2770 = vsub.f32 %v2760, %v2766
  %v2771 = vsub.f32 %v2762, %v2769
  %v2772 = vmul.f32 %v2770, 1.442695
  %v2773 = vpow.pop %v2772
  %v2774 = vmul.f32 %v2771, 1.442695
  %v2775 = vpow.pop %v2774
  %v2776 = vsel %vm872, %v2773, 0.0
  %2777 = vadd.xlane.f32.xlu0 %v2776
  %v2778 = vpop.xlane.xlu0 %2777
  %v2779 = vsel %vm872, %v2775, 0.0
  %2780 = vadd.xlane.f32.xlu0 %v2779
  %v2781 = vpop.xlane.xlu0 %2780
  %v2782 = vrcp.pop %v2778
  %v2783 = vrcp.pop %v2781
  %v2784 = vmul.f32 %v2773, %v2782
  %v2785 = vmul.f32 %v2775, %v2783
  %v2786 = vpack.c.bf16 %v2785, %v2784
  %2787 = vrot.lane.b32.xlu0 %v2645, 96
  %v2788 = vpop.permute.xlu0 %2787
  %v2791 = vsel %vm872, %v2786, 0
  %2793 = vmatpush.bf16.msra.mxu0 0
  %2794 = vmatpush.bf16.msra.mxu0 0
  %2795 = vmatpush.bf16.msra.mxu0 0
  %2796 = vmatpush.bf16.msra.mxu0 0
  %2797 = vmatpush.bf16.msra.mxu0 0
  %2798 = vmatpush.bf16.msra.mxu0 0
  %2799 = vmatpush.bf16.msra.mxu0 0
  %2800 = vmatpush.bf16.msra.mxu0 %v2788
  %2801 = vmatmul.bf16.gmra.mxu0 %v2791
  %v2802 = vpop.f32.mrf.mxu0
  %v2803 = vadd.f32 0.0, %v2802
  %v2804 = vpop.f32.mrf.mxu0
  %v2805 = vadd.f32 0.0, %v2804
  %2806 = vdwg.mxu0
  %2807 = vrot.lane.b32.xlu0 %v2668, 96
  %v2808 = vpop.permute.xlu0 %2807
  %2809 = vrot.lane.b32.xlu0 %v2671, 96
  %v2810 = vpop.permute.xlu0 %2809
  %v2812 = vsel %vm113, %v2808, 0
  %v2815 = vsel %vm113, %v2810, 0
  %2817 = vmatpush.bf16.xpose.msra.mxu0 0
  %2818 = vmatpush.bf16.xpose.msra.mxu0 0
  %2819 = vmatpush.bf16.xpose.msra.mxu0 0
  %2820 = vmatpush.bf16.xpose.msra.mxu0 0
  %2821 = vmatpush.bf16.xpose.msra.mxu0 0
  %2822 = vmatpush.bf16.xpose.msra.mxu0 0
  %2823 = vmatpush.bf16.xpose.msra.mxu0 0
  %2824 = vmatpush.bf16.xpose.msra.mxu0 %v2815
  %2825 = vmatmul.bf16.gmra.mxu0 %v2812
  %v2826 = vpop.f32.mrf.mxu0
  %v2827 = vadd.f32 0.0, %v2826
  %v2828 = vpop.f32.mrf.mxu0
  %v2829 = vadd.f32 0.0, %v2828
  %2830 = vdwg.mxu0
  %v2831 = vsel %vm872, %v2827, -inf
  %2832 = vmax.xlane.f32.xlu0 %v2831
  %v2833 = vpop.xlane.xlu0 %2832
  %v2834 = vsel %vm872, %v2829, -inf
  %2835 = vmax.xlane.f32.xlu0 %v2834
  %v2836 = vpop.xlane.xlu0 %2835
  %v2837 = vsub.f32 %v2827, %v2833
  %v2838 = vsub.f32 %v2829, %v2836
  %v2839 = vmul.f32 %v2837, 1.442695
  %v2840 = vpow.pop %v2839
  %v2841 = vmul.f32 %v2838, 1.442695
  %v2842 = vpow.pop %v2841
  %v2843 = vsel %vm872, %v2840, 0.0
  %2844 = vadd.xlane.f32.xlu0 %v2843
  %v2845 = vpop.xlane.xlu0 %2844
  %v2846 = vsel %vm872, %v2842, 0.0
  %2847 = vadd.xlane.f32.xlu0 %v2846
  %v2848 = vpop.xlane.xlu0 %2847
  %v2849 = vrcp.pop %v2845
  %v2850 = vrcp.pop %v2848
  %v2851 = vmul.f32 %v2840, %v2849
  %v2852 = vmul.f32 %v2842, %v2850
  %v2853 = vpack.c.bf16 %v2852, %v2851
  %2854 = vrot.lane.b32.xlu0 %v2719, 96
  %v2855 = vpop.permute.xlu0 %2854
  %v2858 = vsel %vm872, %v2853, 0
  %2860 = vmatpush.bf16.msra.mxu0 0
  %2861 = vmatpush.bf16.msra.mxu0 0
  %2862 = vmatpush.bf16.msra.mxu0 0
  %2863 = vmatpush.bf16.msra.mxu0 0
  %2864 = vmatpush.bf16.msra.mxu0 0
  %2865 = vmatpush.bf16.msra.mxu0 0
  %2866 = vmatpush.bf16.msra.mxu0 0
  %2867 = vmatpush.bf16.msra.mxu0 %v2855
  %2868 = vmatmul.bf16.gmra.mxu0 %v2858
  %v2869 = vpop.f32.mrf.mxu0
  %v2870 = vadd.f32 0.0, %v2869
  %v2871 = vpop.f32.mrf.mxu0
  %v2872 = vadd.f32 0.0, %v2871
  %2873 = vdwg.mxu0
  %v2874 = vpack.c.bf16 %v2805, %v2803
  %v2875 = vpack.c.bf16 %v2872, %v2870
  %v2880 = vunpack.c.l.b16 %v2578
  %v2881 = vunpack.c.l.b16 %v2579
  %v2882 = vunpack.c.l.b16 %v2580
  %v2883 = vunpack.c.l.b16 %v2581
  %v2884 = vpack.c.b16 %v2881, %v2880
  %v2885 = vpack.c.b16 %v2883, %v2882
  %v2889 = vsel %vm113, %v2874, 0
  %v2892 = vsel %vm113, %v2875, 0
  %2894 = vmatpush.bf16.msra.mxu0 0
  %2895 = vmatpush.bf16.msra.mxu0 0
  %2896 = vmatpush.bf16.msra.mxu0 0
  %2897 = vmatpush.bf16.msra.mxu0 0
  %2898 = vmatpush.bf16.msra.mxu0 0
  %2899 = vmatpush.bf16.msra.mxu0 0
  %2900 = vmatpush.bf16.msra.mxu0 %v2885
  %2901 = vmatpush.bf16.msra.mxu0 %v2884
  %2902 = vmatmul.bf16.gmra.mxu0 %v2889
  %v2903 = vpop.f32.mrf.mxu0
  %v2904 = vadd.f32 0.0, %v2903
  %v2905 = vpop.f32.mrf.mxu0
  %v2906 = vadd.f32 0.0, %v2905
  %2907 = vmatmul.bf16.gmra.mxu0 %v2892
  %v2908 = vpop.f32.mrf.mxu0
  %v2909 = vadd.f32 0.0, %v2908
  %v2910 = vpop.f32.mrf.mxu0
  %v2911 = vadd.f32 0.0, %v2910
  %2912 = vdwg.mxu0
  %2913 = vrot.lane.b32.xlu0 %v2594, 64
  %v2914 = vpop.permute.xlu0 %2913
  %2915 = vrot.lane.b32.xlu0 %v2597, 64
  %v2916 = vpop.permute.xlu0 %2915
  %v2918 = vsel %vm113, %v2914, 0
  %v2921 = vsel %vm113, %v2916, 0
  %2923 = vmatpush.bf16.xpose.msra.mxu0 0
  %2924 = vmatpush.bf16.xpose.msra.mxu0 0
  %2925 = vmatpush.bf16.xpose.msra.mxu0 0
  %2926 = vmatpush.bf16.xpose.msra.mxu0 0
  %2927 = vmatpush.bf16.xpose.msra.mxu0 0
  %2928 = vmatpush.bf16.xpose.msra.mxu0 0
  %2929 = vmatpush.bf16.xpose.msra.mxu0 0
  %2930 = vmatpush.bf16.xpose.msra.mxu0 %v2921
  %2931 = vmatmul.bf16.gmra.mxu0 %v2918
  %v2932 = vpop.f32.mrf.mxu0
  %v2933 = vadd.f32 0.0, %v2932
  %v2934 = vpop.f32.mrf.mxu0
  %v2935 = vadd.f32 0.0, %v2934
  %2936 = vdwg.mxu0
  %v2937 = vsel %vm872, %v2933, -inf
  %2938 = vmax.xlane.f32.xlu0 %v2937
  %v2939 = vpop.xlane.xlu0 %2938
  %v2940 = vsel %vm872, %v2935, -inf
  %2941 = vmax.xlane.f32.xlu0 %v2940
  %v2942 = vpop.xlane.xlu0 %2941
  %v2943 = vsub.f32 %v2933, %v2939
  %v2944 = vsub.f32 %v2935, %v2942
  %v2945 = vmul.f32 %v2943, 1.442695
  %v2946 = vpow.pop %v2945
  %v2947 = vmul.f32 %v2944, 1.442695
  %v2948 = vpow.pop %v2947
  %v2949 = vsel %vm872, %v2946, 0.0
  %2950 = vadd.xlane.f32.xlu0 %v2949
  %v2951 = vpop.xlane.xlu0 %2950
  %v2952 = vsel %vm872, %v2948, 0.0
  %2953 = vadd.xlane.f32.xlu0 %v2952
  %v2954 = vpop.xlane.xlu0 %2953
  %v2955 = vrcp.pop %v2951
  %v2956 = vrcp.pop %v2954
  %v2957 = vmul.f32 %v2946, %v2955
  %v2958 = vmul.f32 %v2948, %v2956
  %v2959 = vpack.c.bf16 %v2958, %v2957
  %2960 = vrot.lane.b32.xlu0 %v2645, 64
  %v2961 = vpop.permute.xlu0 %2960
  %v2964 = vsel %vm872, %v2959, 0
  %2966 = vmatpush.bf16.msra.mxu0 0
  %2967 = vmatpush.bf16.msra.mxu0 0
  %2968 = vmatpush.bf16.msra.mxu0 0
  %2969 = vmatpush.bf16.msra.mxu0 0
  %2970 = vmatpush.bf16.msra.mxu0 0
  %2971 = vmatpush.bf16.msra.mxu0 0
  %2972 = vmatpush.bf16.msra.mxu0 0
  %2973 = vmatpush.bf16.msra.mxu0 %v2961
  %2974 = vmatmul.bf16.gmra.mxu0 %v2964
  %v2975 = vpop.f32.mrf.mxu0
  %v2976 = vadd.f32 0.0, %v2975
  %v2977 = vpop.f32.mrf.mxu0
  %v2978 = vadd.f32 0.0, %v2977
  %2979 = vdwg.mxu0
  %2980 = vrot.lane.b32.xlu0 %v2668, 64
  %v2981 = vpop.permute.xlu0 %2980
  %2982 = vrot.lane.b32.xlu0 %v2671, 64
  %v2983 = vpop.permute.xlu0 %2982
  %v2985 = vsel %vm113, %v2981, 0
  %v2988 = vsel %vm113, %v2983, 0
  %2990 = vmatpush.bf16.xpose.msra.mxu0 0
  %2991 = vmatpush.bf16.xpose.msra.mxu0 0
  %2992 = vmatpush.bf16.xpose.msra.mxu0 0
  %2993 = vmatpush.bf16.xpose.msra.mxu0 0
  %2994 = vmatpush.bf16.xpose.msra.mxu0 0
  %2995 = vmatpush.bf16.xpose.msra.mxu0 0
  %2996 = vmatpush.bf16.xpose.msra.mxu0 0
  %2997 = vmatpush.bf16.xpose.msra.mxu0 %v2988
  %2998 = vmatmul.bf16.gmra.mxu0 %v2985
  %v2999 = vpop.f32.mrf.mxu0
  %v3000 = vadd.f32 0.0, %v2999
  %v3001 = vpop.f32.mrf.mxu0
  %v3002 = vadd.f32 0.0, %v3001
  %3003 = vdwg.mxu0
  %v3004 = vsel %vm872, %v3000, -inf
  %3005 = vmax.xlane.f32.xlu0 %v3004
  %v3006 = vpop.xlane.xlu0 %3005
  %v3007 = vsel %vm872, %v3002, -inf
  %3008 = vmax.xlane.f32.xlu0 %v3007
  %v3009 = vpop.xlane.xlu0 %3008
  %v3010 = vsub.f32 %v3000, %v3006
  %v3011 = vsub.f32 %v3002, %v3009
  %v3012 = vmul.f32 %v3010, 1.442695
  %v3013 = vpow.pop %v3012
  %v3014 = vmul.f32 %v3011, 1.442695
  %v3015 = vpow.pop %v3014
  %v3016 = vsel %vm872, %v3013, 0.0
  %3017 = vadd.xlane.f32.xlu0 %v3016
  %v3018 = vpop.xlane.xlu0 %3017
  %v3019 = vsel %vm872, %v3015, 0.0
  %3020 = vadd.xlane.f32.xlu0 %v3019
  %v3021 = vpop.xlane.xlu0 %3020
  %v3022 = vrcp.pop %v3018
  %v3023 = vrcp.pop %v3021
  %v3024 = vmul.f32 %v3013, %v3022
  %v3025 = vmul.f32 %v3015, %v3023
  %v3026 = vpack.c.bf16 %v3025, %v3024
  %3027 = vrot.lane.b32.xlu0 %v2719, 64
  %v3028 = vpop.permute.xlu0 %3027
  %v3031 = vsel %vm872, %v3026, 0
  %3033 = vmatpush.bf16.msra.mxu0 0
  %3034 = vmatpush.bf16.msra.mxu0 0
  %3035 = vmatpush.bf16.msra.mxu0 0
  %3036 = vmatpush.bf16.msra.mxu0 0
  %3037 = vmatpush.bf16.msra.mxu0 0
  %3038 = vmatpush.bf16.msra.mxu0 0
  %3039 = vmatpush.bf16.msra.mxu0 0
  %3040 = vmatpush.bf16.msra.mxu0 %v3028
  %3041 = vmatmul.bf16.gmra.mxu0 %v3031
  %v3042 = vpop.f32.mrf.mxu0
  %v3043 = vadd.f32 0.0, %v3042
  %v3044 = vpop.f32.mrf.mxu0
  %v3045 = vadd.f32 0.0, %v3044
  %3046 = vdwg.mxu0
  %v3047 = vpack.c.bf16 %v2978, %v2976
  %v3048 = vpack.c.bf16 %v3045, %v3043
  %3049 = vrot.lane.b32.xlu0 %v2594, 32
  %v3050 = vpop.permute.xlu0 %3049
  %3051 = vrot.lane.b32.xlu0 %v2597, 32
  %v3052 = vpop.permute.xlu0 %3051
  %v3054 = vsel %vm113, %v3050, 0
  %v3057 = vsel %vm113, %v3052, 0
  %3059 = vmatpush.bf16.xpose.msra.mxu0 0
  %3060 = vmatpush.bf16.xpose.msra.mxu0 0
  %3061 = vmatpush.bf16.xpose.msra.mxu0 0
  %3062 = vmatpush.bf16.xpose.msra.mxu0 0
  %3063 = vmatpush.bf16.xpose.msra.mxu0 0
  %3064 = vmatpush.bf16.xpose.msra.mxu0 0
  %3065 = vmatpush.bf16.xpose.msra.mxu0 0
  %3066 = vmatpush.bf16.xpose.msra.mxu0 %v3057
  %3067 = vmatmul.bf16.gmra.mxu0 %v3054
  %v3068 = vpop.f32.mrf.mxu0
  %v3069 = vadd.f32 0.0, %v3068
  %v3070 = vpop.f32.mrf.mxu0
  %v3071 = vadd.f32 0.0, %v3070
  %3072 = vdwg.mxu0
  %v3073 = vsel %vm872, %v3069, -inf
  %3074 = vmax.xlane.f32.xlu0 %v3073
  %v3075 = vpop.xlane.xlu0 %3074
  %v3076 = vsel %vm872, %v3071, -inf
  %3077 = vmax.xlane.f32.xlu0 %v3076
  %v3078 = vpop.xlane.xlu0 %3077
  %v3079 = vsub.f32 %v3069, %v3075
  %v3080 = vsub.f32 %v3071, %v3078
  %v3081 = vmul.f32 %v3079, 1.442695
  %v3082 = vpow.pop %v3081
  %v3083 = vmul.f32 %v3080, 1.442695
  %v3084 = vpow.pop %v3083
  %v3085 = vsel %vm872, %v3082, 0.0
  %3086 = vadd.xlane.f32.xlu0 %v3085
  %v3087 = vpop.xlane.xlu0 %3086
  %v3088 = vsel %vm872, %v3084, 0.0
  %3089 = vadd.xlane.f32.xlu0 %v3088
  %v3090 = vpop.xlane.xlu0 %3089
  %v3091 = vrcp.pop %v3087
  %v3092 = vrcp.pop %v3090
  %v3093 = vmul.f32 %v3082, %v3091
  %v3094 = vmul.f32 %v3084, %v3092
  %v3095 = vpack.c.bf16 %v3094, %v3093
  %3096 = vrot.lane.b32.xlu0 %v2645, 32
  %v3097 = vpop.permute.xlu0 %3096
  %v3100 = vsel %vm872, %v3095, 0
  %3102 = vmatpush.bf16.msra.mxu0 0
  %3103 = vmatpush.bf16.msra.mxu0 0
  %3104 = vmatpush.bf16.msra.mxu0 0
  %3105 = vmatpush.bf16.msra.mxu0 0
  %3106 = vmatpush.bf16.msra.mxu0 0
  %3107 = vmatpush.bf16.msra.mxu0 0
  %3108 = vmatpush.bf16.msra.mxu0 0
  %3109 = vmatpush.bf16.msra.mxu0 %v3097
  %3110 = vmatmul.bf16.gmra.mxu0 %v3100
  %v3111 = vpop.f32.mrf.mxu0
  %v3112 = vadd.f32 0.0, %v3111
  %v3113 = vpop.f32.mrf.mxu0
  %v3114 = vadd.f32 0.0, %v3113
  %3115 = vdwg.mxu0
  %3116 = vrot.lane.b32.xlu0 %v2668, 32
  %v3117 = vpop.permute.xlu0 %3116
  %3118 = vrot.lane.b32.xlu0 %v2671, 32
  %v3119 = vpop.permute.xlu0 %3118
  %v3121 = vsel %vm113, %v3117, 0
  %v3124 = vsel %vm113, %v3119, 0
  %3126 = vmatpush.bf16.xpose.msra.mxu0 0
  %3127 = vmatpush.bf16.xpose.msra.mxu0 0
  %3128 = vmatpush.bf16.xpose.msra.mxu0 0
  %3129 = vmatpush.bf16.xpose.msra.mxu0 0
  %3130 = vmatpush.bf16.xpose.msra.mxu0 0
  %3131 = vmatpush.bf16.xpose.msra.mxu0 0
  %3132 = vmatpush.bf16.xpose.msra.mxu0 0
  %3133 = vmatpush.bf16.xpose.msra.mxu0 %v3124
  %3134 = vmatmul.bf16.gmra.mxu0 %v3121
  %v3135 = vpop.f32.mrf.mxu0
  %v3136 = vadd.f32 0.0, %v3135
  %v3137 = vpop.f32.mrf.mxu0
  %v3138 = vadd.f32 0.0, %v3137
  %3139 = vdwg.mxu0
  %v3140 = vsel %vm872, %v3136, -inf
  %3141 = vmax.xlane.f32.xlu0 %v3140
  %v3142 = vpop.xlane.xlu0 %3141
  %v3143 = vsel %vm872, %v3138, -inf
  %3144 = vmax.xlane.f32.xlu0 %v3143
  %v3145 = vpop.xlane.xlu0 %3144
  %v3146 = vsub.f32 %v3136, %v3142
  %v3147 = vsub.f32 %v3138, %v3145
  %v3148 = vmul.f32 %v3146, 1.442695
  %v3149 = vpow.pop %v3148
  %v3150 = vmul.f32 %v3147, 1.442695
  %v3151 = vpow.pop %v3150
  %v3152 = vsel %vm872, %v3149, 0.0
  %3153 = vadd.xlane.f32.xlu0 %v3152
  %v3154 = vpop.xlane.xlu0 %3153
  %v3155 = vsel %vm872, %v3151, 0.0
  %3156 = vadd.xlane.f32.xlu0 %v3155
  %v3157 = vpop.xlane.xlu0 %3156
  %v3158 = vrcp.pop %v3154
  %v3159 = vrcp.pop %v3157
  %v3160 = vmul.f32 %v3149, %v3158
  %v3161 = vmul.f32 %v3151, %v3159
  %v3162 = vpack.c.bf16 %v3161, %v3160
  %3163 = vrot.lane.b32.xlu0 %v2719, 32
  %v3164 = vpop.permute.xlu0 %3163
  %v3167 = vsel %vm872, %v3162, 0
  %3169 = vmatpush.bf16.msra.mxu0 0
  %3170 = vmatpush.bf16.msra.mxu0 0
  %3171 = vmatpush.bf16.msra.mxu0 0
  %3172 = vmatpush.bf16.msra.mxu0 0
  %3173 = vmatpush.bf16.msra.mxu0 0
  %3174 = vmatpush.bf16.msra.mxu0 0
  %3175 = vmatpush.bf16.msra.mxu0 0
  %3176 = vmatpush.bf16.msra.mxu0 %v3164
  %3177 = vmatmul.bf16.gmra.mxu0 %v3167
  %v3178 = vpop.f32.mrf.mxu0
  %v3179 = vadd.f32 0.0, %v3178
  %v3180 = vpop.f32.mrf.mxu0
  %v3181 = vadd.f32 0.0, %v3180
  %3182 = vdwg.mxu0
  %v3183 = vpack.c.bf16 %v3114, %v3112
  %v3184 = vpack.c.bf16 %v3181, %v3179
  %v3189 = vunpack.c.l.b16 %v2586
  %v3190 = vunpack.c.l.b16 %v2587
  %v3191 = vunpack.c.l.b16 %v2588
  %v3192 = vunpack.c.l.b16 %v2589
  %v3193 = vpack.c.b16 %v3190, %v3189
  %v3194 = vpack.c.b16 %v3192, %v3191
  %v3198 = vsel %vm113, %v3183, 0
  %v3201 = vsel %vm113, %v3184, 0
  %3203 = vmatpush.bf16.msra.mxu0 0
  %3204 = vmatpush.bf16.msra.mxu0 0
  %3205 = vmatpush.bf16.msra.mxu0 0
  %3206 = vmatpush.bf16.msra.mxu0 0
  %3207 = vmatpush.bf16.msra.mxu0 0
  %3208 = vmatpush.bf16.msra.mxu0 0
  %3209 = vmatpush.bf16.msra.mxu0 %v3194
  %3210 = vmatpush.bf16.msra.mxu0 %v3193
  %3211 = vmatmul.bf16.gmra.mxu0 %v3198
  %v3212 = vpop.f32.mrf.mxu0
  %v3213 = vadd.f32 0.0, %v3212
  %v3214 = vpop.f32.mrf.mxu0
  %v3215 = vadd.f32 0.0, %v3214
  %3216 = vmatmul.bf16.gmra.mxu0 %v3201
  %v3217 = vpop.f32.mrf.mxu0
  %v3218 = vadd.f32 0.0, %v3217
  %v3219 = vpop.f32.mrf.mxu0
  %v3220 = vadd.f32 0.0, %v3219
  %3221 = vdwg.mxu0
  %v3226 = vunpack.c.l.b16 %v2574
  %v3227 = vunpack.c.l.b16 %v2575
  %v3228 = vunpack.c.l.b16 %v2576
  %v3229 = vunpack.c.l.b16 %v2577
  %v3230 = vpack.c.b16 %v3227, %v3226
  %v3231 = vpack.c.b16 %v3229, %v3228
  %v3235 = vsel %vm113, %v2738, 0
  %v3238 = vsel %vm113, %v2739, 0
  %3240 = vmatpush.bf16.msra.mxu0 0
  %3241 = vmatpush.bf16.msra.mxu0 0
  %3242 = vmatpush.bf16.msra.mxu0 0
  %3243 = vmatpush.bf16.msra.mxu0 0
  %3244 = vmatpush.bf16.msra.mxu0 0
  %3245 = vmatpush.bf16.msra.mxu0 0
  %3246 = vmatpush.bf16.msra.mxu0 %v3231
  %3247 = vmatpush.bf16.msra.mxu0 %v3230
  %3248 = vmatmul.bf16.gmra.mxu0 %v3235
  %v3249 = vpop.f32.mrf.mxu0
  %v3250 = vadd.f32 %v2904, %v3249
  %v3251 = vpop.f32.mrf.mxu0
  %v3252 = vadd.f32 %v2906, %v3251
  %3253 = vmatmul.bf16.gmra.mxu0 %v3238
  %v3254 = vpop.f32.mrf.mxu0
  %v3255 = vadd.f32 %v2909, %v3254
  %v3256 = vpop.f32.mrf.mxu0
  %v3257 = vadd.f32 %v2911, %v3256
  %3258 = vdwg.mxu0
  %v3263 = vunpack.c.l.b16 %v2582
  %v3264 = vunpack.c.l.b16 %v2583
  %v3265 = vunpack.c.l.b16 %v2584
  %v3266 = vunpack.c.l.b16 %v2585
  %v3267 = vpack.c.b16 %v3264, %v3263
  %v3268 = vpack.c.b16 %v3266, %v3265
  %v3272 = vsel %vm113, %v3047, 0
  %v3275 = vsel %vm113, %v3048, 0
  %3277 = vmatpush.bf16.msra.mxu0 0
  %3278 = vmatpush.bf16.msra.mxu0 0
  %3279 = vmatpush.bf16.msra.mxu0 0
  %3280 = vmatpush.bf16.msra.mxu0 0
  %3281 = vmatpush.bf16.msra.mxu0 0
  %3282 = vmatpush.bf16.msra.mxu0 0
  %3283 = vmatpush.bf16.msra.mxu0 %v3268
  %3284 = vmatpush.bf16.msra.mxu0 %v3267
  %3285 = vmatmul.bf16.gmra.mxu0 %v3272
  %v3286 = vpop.f32.mrf.mxu0
  %v3287 = vadd.f32 %v3213, %v3286
  %v3288 = vpop.f32.mrf.mxu0
  %v3289 = vadd.f32 %v3215, %v3288
  %3290 = vmatmul.bf16.gmra.mxu0 %v3275
  %v3291 = vpop.f32.mrf.mxu0
  %v3292 = vadd.f32 %v3218, %v3291
  %v3293 = vpop.f32.mrf.mxu0
  %v3294 = vadd.f32 %v3220, %v3293
  %3295 = vdwg.mxu0
  %v3296 = vadd.f32 %v3250, %v3287
  %v3297 = vadd.f32 %v3252, %v3289
  %v3298 = vadd.f32 %v3255, %v3292
  %v3299 = vadd.f32 %v3257, %v3294
  %v3300 = vadd.f32 %v2337, %v3296
  %v3301 = vadd.f32 %v2338, %v3297
  %v3302 = vadd.f32 %v2339, %v3298
  %v3303 = vadd.f32 %v2340, %v3299
  %v3304 = vperm.slane %v2341, 2
  %v3305 = vadd.f32 %v3300, %v3304
  %v3306 = vadd.f32 %v3301, %v3304
  %v3307 = vadd.f32 %v3302, %v3304
  %v3308 = vadd.f32 %v3303, %v3304
  %3309 = vadd.xlane.f32.xlu0 %v3305
  %v3310 = vpop.xlane.xlu0 %3309
  %3311 = vadd.xlane.f32.xlu0 %v3306
  %v3312 = vpop.xlane.xlu0 %3311
  %3313 = vadd.xlane.f32.xlu0 %v3307
  %v3314 = vpop.xlane.xlu0 %3313
  %3315 = vadd.xlane.f32.xlu0 %v3308
  %v3316 = vpop.xlane.xlu0 %3315
  %v3317 = vmul.f32 %v3310, %v1578
  %v3318 = vmul.f32 %v3312, %v1578
  %v3319 = vmul.f32 %v3314, %v1578
  %v3320 = vmul.f32 %v3316, %v1578
  %v3321 = vsub.f32 %v3305, %v3317
  %v3322 = vsub.f32 %v3306, %v3318
  %v3323 = vsub.f32 %v3307, %v3319
  %v3324 = vsub.f32 %v3308, %v3320
  %v3325 = vmul.f32 %v3321, %v3321
  %v3326 = vmul.f32 %v3322, %v3322
  %v3327 = vmul.f32 %v3323, %v3323
  %v3328 = vmul.f32 %v3324, %v3324
  %3329 = vadd.xlane.f32.xlu0 %v3325
  %v3330 = vpop.xlane.xlu0 %3329
  %3331 = vadd.xlane.f32.xlu0 %v3326
  %v3332 = vpop.xlane.xlu0 %3331
  %3333 = vadd.xlane.f32.xlu0 %v3327
  %v3334 = vpop.xlane.xlu0 %3333
  %3335 = vadd.xlane.f32.xlu0 %v3328
  %v3336 = vpop.xlane.xlu0 %3335
  %v3337 = vmul.f32 %v3330, %v1578
  %v3338 = vmul.f32 %v3332, %v1578
  %v3339 = vmul.f32 %v3334, %v1578
  %v3340 = vmul.f32 %v3336, %v1578
  %v3341 = vadd.f32 %v3337, 1e-05
  %v3342 = vadd.f32 %v3338, 1e-05
  %v3343 = vadd.f32 %v3339, 1e-05
  %v3344 = vadd.f32 %v3340, 1e-05
  %v3345 = vrsqrt.pop %v3341
  %v3346 = vmul.f32 %v3345, %v3341
  %v3347 = vmul.f32 %v3346, %v3345
  %v3348 = vmul.f32 0.5, %v3347
  %v3349 = vsub.f32 1.5, %v3348
  %v3350 = vmul.f32 %v3345, %v3349
  %vm3351 = vweird.f32 %v3341
  %vm3352 = vweird.f32 %v3345
  %vm3353 = vmor %vm3351, %vm3352
  %v3354 = vsel %vm3353, %v3345, %v3350
  %v3355 = vrsqrt.pop %v3342
  %v3356 = vmul.f32 %v3355, %v3342
  %v3357 = vmul.f32 %v3356, %v3355
  %v3358 = vmul.f32 0.5, %v3357
  %v3359 = vsub.f32 1.5, %v3358
  %v3360 = vmul.f32 %v3355, %v3359
  %vm3361 = vweird.f32 %v3342
  %vm3362 = vweird.f32 %v3355
  %vm3363 = vmor %vm3361, %vm3362
  %v3364 = vsel %vm3363, %v3355, %v3360
  %v3365 = vrsqrt.pop %v3343
  %v3366 = vmul.f32 %v3365, %v3343
  %v3367 = vmul.f32 %v3366, %v3365
  %v3368 = vmul.f32 0.5, %v3367
  %v3369 = vsub.f32 1.5, %v3368
  %v3370 = vmul.f32 %v3365, %v3369
  %vm3371 = vweird.f32 %v3343
  %vm3372 = vweird.f32 %v3365
  %vm3373 = vmor %vm3371, %vm3372
  %v3374 = vsel %vm3373, %v3365, %v3370
  %v3375 = vrsqrt.pop %v3344
  %v3376 = vmul.f32 %v3375, %v3344
  %v3377 = vmul.f32 %v3376, %v3375
  %v3378 = vmul.f32 0.5, %v3377
  %v3379 = vsub.f32 1.5, %v3378
  %v3380 = vmul.f32 %v3375, %v3379
  %vm3381 = vweird.f32 %v3344
  %vm3382 = vweird.f32 %v3375
  %vm3383 = vmor %vm3381, %vm3382
  %v3384 = vsel %vm3383, %v3375, %v3380
  %v3385 = vmul.f32 %v3321, %v3354
  %v3386 = vmul.f32 %v3322, %v3364
  %v3387 = vmul.f32 %v3323, %v3374
  %v3388 = vmul.f32 %v3324, %v3384
  %v3389 = vperm.slane %v2341, 3
  %v3390 = vmul.f32 %v3385, %v3389
  %v3391 = vmul.f32 %v3386, %v3389
  %v3392 = vmul.f32 %v3387, %v3389
  %v3393 = vmul.f32 %v3388, %v3389
  %v3394 = vperm.slane %v2341, 4
  %v3395 = vadd.f32 %v3390, %v3394
  %v3396 = vadd.f32 %v3391, %v3394
  %v3397 = vadd.f32 %v3392, %v3394
  %v3398 = vadd.f32 %v3393, %v3394
  %v3399 = vld [vmem:[%s14] sm:$0xff]
  %v3400 = vld [vmem:[%s14 + $0x8] sm:$0xf]
  %v3401 = vld [vmem:[%s14 + $0xc] sm:$0xff]
  %v3402 = vld [vmem:[%s14 + $0x14] sm:$0xf]
  %v3403 = vld [vmem:[%s14 + $0x18] sm:$0xff]
  %v3404 = vld [vmem:[%s14 + $0x20] sm:$0xf]
  %v3405 = vld [vmem:[%s14 + $0x24] sm:$0xff]
  %v3406 = vld [vmem:[%s14 + $0x2c] sm:$0xf]
  %v3407 = vld [vmem:[%s14 + $0x30] sm:$0xff]
  %v3408 = vld [vmem:[%s14 + $0x38] sm:$0xf]
  %v3409 = vld [vmem:[%s14 + $0x3c] sm:$0xff]
  %v3410 = vld [vmem:[%s14 + $0x44] sm:$0xf]
  %v3411 = vld [vmem:[%s14 + $0x48] sm:$0xff]
  %v3412 = vld [vmem:[%s14 + $0x50] sm:$0xf]
  %v3413 = vld [vmem:[%s14 + $0x54] sm:$0xff]
  %v3414 = vld [vmem:[%s14 + $0x5c] sm:$0xf]
  %v3415 = vld [vmem:[%s14 + $0x60] sm:$0xff]
  %v3416 = vld [vmem:[%s14 + $0x68] sm:$0xf]
  %v3417 = vld [vmem:[%s14 + $0x6c] sm:$0xff]
  %v3418 = vld [vmem:[%s14 + $0x74] sm:$0xf]
  %v3419 = vld [vmem:[%s14 + $0x78] sm:$0xff]
  %v3420 = vld [vmem:[%s14 + $0x80] sm:$0xf]
  %v3421 = vld [vmem:[%s14 + $0x84] sm:$0xff]
  %v3422 = vld [vmem:[%s14 + $0x8c] sm:$0xf]
  %v3423 = vld [vmem:[%s14 + $0x90] sm:$0xff]
  %v3424 = vld [vmem:[%s14 + $0x98] sm:$0xf]
  %v3425 = vld [vmem:[%s14 + $0x9c] sm:$0xff]
  %v3426 = vld [vmem:[%s14 + $0xa4] sm:$0xf]
  %v3427 = vld [vmem:[%s14 + $0xa8] sm:$0xff]
  %v3428 = vld [vmem:[%s14 + $0xb0] sm:$0xf]
  %v3429 = vld [vmem:[%s14 + $0xb4] sm:$0xff]
  %v3430 = vld [vmem:[%s14 + $0xbc] sm:$0xf]
  %v3431 = vpack.c.bf16 %v3396, %v3395
  %v3432 = vpack.c.bf16 %v3398, %v3397
  %v3433 = vperm.slane %v2341, 1
  %v3434 = vperm.slane %v2342, 1
  %v3435 = vperm.slane %v2343, 1
  %v3468 = vunpack.c.l.b16 %v3399
  %v3469 = vunpack.c.h.b16 %v3399
  %v3470 = vunpack.c.l.b16 %v3400
  %v3471 = vunpack.c.l.b16 %v3401
  %v3472 = vunpack.c.h.b16 %v3401
  %v3473 = vunpack.c.l.b16 %v3402
  %v3474 = vunpack.c.l.b16 %v3403
  %v3475 = vunpack.c.h.b16 %v3403
  %v3476 = vunpack.c.l.b16 %v3404
  %v3477 = vunpack.c.l.b16 %v3405
  %v3478 = vunpack.c.h.b16 %v3405
  %v3479 = vunpack.c.l.b16 %v3406
  %v3480 = vunpack.c.l.b16 %v3407
  %v3481 = vunpack.c.h.b16 %v3407
  %v3482 = vunpack.c.l.b16 %v3408
  %v3483 = vunpack.c.l.b16 %v3409
  %v3484 = vunpack.c.h.b16 %v3409
  %v3485 = vunpack.c.l.b16 %v3410
  %v3486 = vunpack.c.l.b16 %v3411
  %v3487 = vunpack.c.h.b16 %v3411
  %v3488 = vunpack.c.l.b16 %v3412
  %v3489 = vunpack.c.l.b16 %v3413
  %v3490 = vunpack.c.h.b16 %v3413
  %v3491 = vunpack.c.l.b16 %v3414
  %v3492 = vunpack.c.l.b16 %v3415
  %v3493 = vunpack.c.h.b16 %v3415
  %v3494 = vunpack.c.l.b16 %v3416
  %v3495 = vunpack.c.l.b16 %v3417
  %v3496 = vunpack.c.h.b16 %v3417
  %v3497 = vunpack.c.l.b16 %v3418
  %v3498 = vunpack.c.l.b16 %v3419
  %v3499 = vunpack.c.h.b16 %v3419
  %v3500 = vunpack.c.l.b16 %v3420
  %v3501 = vunpack.c.l.b16 %v3421
  %v3502 = vunpack.c.h.b16 %v3421
  %v3503 = vunpack.c.l.b16 %v3422
  %v3504 = vunpack.c.l.b16 %v3423
  %v3505 = vunpack.c.h.b16 %v3423
  %v3506 = vunpack.c.l.b16 %v3424
  %v3507 = vunpack.c.l.b16 %v3425
  %v3508 = vunpack.c.h.b16 %v3425
  %v3509 = vunpack.c.l.b16 %v3426
  %v3510 = vunpack.c.l.b16 %v3427
  %v3511 = vunpack.c.h.b16 %v3427
  %v3512 = vunpack.c.l.b16 %v3428
  %v3513 = vunpack.c.l.b16 %v3429
  %v3514 = vunpack.c.h.b16 %v3429
  %v3515 = vunpack.c.l.b16 %v3430
  %v3516 = vpack.c.b16 %v3471, %v3468
  %v3517 = vpack.c.b16 %v3472, %v3469
  %v3518 = vpack.c.b16 %v3473, %v3470
  %v3519 = vpack.c.b16 %v3477, %v3474
  %v3520 = vpack.c.b16 %v3478, %v3475
  %v3521 = vpack.c.b16 %v3479, %v3476
  %v3522 = vpack.c.b16 %v3483, %v3480
  %v3523 = vpack.c.b16 %v3484, %v3481
  %v3524 = vpack.c.b16 %v3485, %v3482
  %v3525 = vpack.c.b16 %v3489, %v3486
  %v3526 = vpack.c.b16 %v3490, %v3487
  %v3527 = vpack.c.b16 %v3491, %v3488
  %v3528 = vpack.c.b16 %v3495, %v3492
  %v3529 = vpack.c.b16 %v3496, %v3493
  %v3530 = vpack.c.b16 %v3497, %v3494
  %v3531 = vpack.c.b16 %v3501, %v3498
  %v3532 = vpack.c.b16 %v3502, %v3499
  %v3533 = vpack.c.b16 %v3503, %v3500
  %v3534 = vpack.c.b16 %v3507, %v3504
  %v3535 = vpack.c.b16 %v3508, %v3505
  %v3536 = vpack.c.b16 %v3509, %v3506
  %v3537 = vpack.c.b16 %v3513, %v3510
  %v3538 = vpack.c.b16 %v3514, %v3511
  %v3539 = vpack.c.b16 %v3515, %v3512
  %3564 = vmatpush.bf16.msra.mxu0 %v3537
  %3565 = vmatpush.bf16.msra.mxu0 %v3534
  %3566 = vmatpush.bf16.msra.mxu0 %v3531
  %3567 = vmatpush.bf16.msra.mxu0 %v3528
  %3568 = vmatpush.bf16.msra.mxu0 %v3525
  %3569 = vmatpush.bf16.msra.mxu0 %v3522
  %3570 = vmatpush.bf16.msra.mxu0 %v3519
  %3571 = vmatpush.bf16.msra.mxu0 %v3516
  %3572 = vmatmul.bf16.gmra.mxu0 %v3431
  %v3573 = vpop.f32.mrf.mxu0
  %v3574 = vadd.f32 %v3433, %v3573
  %v3575 = vpop.f32.mrf.mxu0
  %v3576 = vadd.f32 %v3433, %v3575
  %3577 = vmatmul.bf16.gmra.mxu0 %v3432
  %v3578 = vpop.f32.mrf.mxu0
  %v3579 = vadd.f32 %v3433, %v3578
  %v3580 = vpop.f32.mrf.mxu0
  %v3581 = vadd.f32 %v3433, %v3580
  %3582 = vdwg.mxu0
  %3583 = vmatpush.bf16.msra.mxu0 %v3538
  %3584 = vmatpush.bf16.msra.mxu0 %v3535
  %3585 = vmatpush.bf16.msra.mxu0 %v3532
  %3586 = vmatpush.bf16.msra.mxu0 %v3529
  %3587 = vmatpush.bf16.msra.mxu0 %v3526
  %3588 = vmatpush.bf16.msra.mxu0 %v3523
  %3589 = vmatpush.bf16.msra.mxu0 %v3520
  %3590 = vmatpush.bf16.msra.mxu0 %v3517
  %3591 = vmatmul.bf16.gmra.mxu0 %v3431
  %v3592 = vpop.f32.mrf.mxu0
  %v3593 = vadd.f32 %v3434, %v3592
  %v3594 = vpop.f32.mrf.mxu0
  %v3595 = vadd.f32 %v3434, %v3594
  %3596 = vmatmul.bf16.gmra.mxu0 %v3432
  %v3597 = vpop.f32.mrf.mxu0
  %v3598 = vadd.f32 %v3434, %v3597
  %v3599 = vpop.f32.mrf.mxu0
  %v3600 = vadd.f32 %v3434, %v3599
  %3601 = vdwg.mxu0
  %3602 = vmatpush.bf16.msra.mxu0 %v3539
  %3603 = vmatpush.bf16.msra.mxu0 %v3536
  %3604 = vmatpush.bf16.msra.mxu0 %v3533
  %3605 = vmatpush.bf16.msra.mxu0 %v3530
  %3606 = vmatpush.bf16.msra.mxu0 %v3527
  %3607 = vmatpush.bf16.msra.mxu0 %v3524
  %3608 = vmatpush.bf16.msra.mxu0 %v3521
  %3609 = vmatpush.bf16.msra.mxu0 %v3518
  %3610 = vmatmul.bf16.gmra.mxu0 %v3431
  %v3611 = vpop.f32.mrf.mxu0
  %v3612 = vadd.f32 %v3435, %v3611
  %v3613 = vpop.f32.mrf.mxu0
  %v3614 = vadd.f32 %v3435, %v3613
  %3615 = vmatmul.bf16.gmra.mxu0 %v3432
  %v3616 = vpop.f32.mrf.mxu0
  %v3617 = vadd.f32 %v3435, %v3616
  %v3618 = vpop.f32.mrf.mxu0
  %v3619 = vadd.f32 %v3435, %v3618
  %3620 = vdwg.mxu0
  %v3621 = vmul.f32 %v3574, %v3574
  %v3622 = vmul.f32 %v3593, %v3593
  %v3623 = vmul.f32 %v3612, %v3612
  %v3624 = vmul.f32 %v3576, %v3576
  %v3625 = vmul.f32 %v3595, %v3595
  %v3626 = vmul.f32 %v3614, %v3614
  %v3627 = vmul.f32 %v3579, %v3579
  %v3628 = vmul.f32 %v3598, %v3598
  %v3629 = vmul.f32 %v3617, %v3617
  %v3630 = vmul.f32 %v3581, %v3581
  %v3631 = vmul.f32 %v3600, %v3600
  %v3632 = vmul.f32 %v3619, %v3619
  %v3633 = vmul.f32 %v3574, %v3621
  %v3634 = vmul.f32 %v3593, %v3622
  %v3635 = vmul.f32 %v3612, %v3623
  %v3636 = vmul.f32 %v3576, %v3624
  %v3637 = vmul.f32 %v3595, %v3625
  %v3638 = vmul.f32 %v3614, %v3626
  %v3639 = vmul.f32 %v3579, %v3627
  %v3640 = vmul.f32 %v3598, %v3628
  %v3641 = vmul.f32 %v3617, %v3629
  %v3642 = vmul.f32 %v3581, %v3630
  %v3643 = vmul.f32 %v3600, %v3631
  %v3644 = vmul.f32 %v3619, %v3632
  %v3645 = vmul.f32 %v3633, 0.044715
  %v3646 = vmul.f32 %v3634, 0.044715
  %v3647 = vmul.f32 %v3635, 0.044715
  %v3648 = vmul.f32 %v3636, 0.044715
  %v3649 = vmul.f32 %v3637, 0.044715
  %v3650 = vmul.f32 %v3638, 0.044715
  %v3651 = vmul.f32 %v3639, 0.044715
  %v3652 = vmul.f32 %v3640, 0.044715
  %v3653 = vmul.f32 %v3641, 0.044715
  %v3654 = vmul.f32 %v3642, 0.044715
  %v3655 = vmul.f32 %v3643, 0.044715
  %v3656 = vmul.f32 %v3644, 0.044715
  %v3657 = vadd.f32 %v3574, %v3645
  %v3658 = vadd.f32 %v3593, %v3646
  %v3659 = vadd.f32 %v3612, %v3647
  %v3660 = vadd.f32 %v3576, %v3648
  %v3661 = vadd.f32 %v3595, %v3649
  %v3662 = vadd.f32 %v3614, %v3650
  %v3663 = vadd.f32 %v3579, %v3651
  %v3664 = vadd.f32 %v3598, %v3652
  %v3665 = vadd.f32 %v3617, %v3653
  %v3666 = vadd.f32 %v3581, %v3654
  %v3667 = vadd.f32 %v3600, %v3655
  %v3668 = vadd.f32 %v3619, %v3656
  %v3669 = vmul.f32 %v3657, 0.7978846
  %v3670 = vmul.f32 %v3658, 0.7978846
  %v3671 = vmul.f32 %v3659, 0.7978846
  %v3672 = vmul.f32 %v3660, 0.7978846
  %v3673 = vmul.f32 %v3661, 0.7978846
  %v3674 = vmul.f32 %v3662, 0.7978846
  %v3675 = vmul.f32 %v3663, 0.7978846
  %v3676 = vmul.f32 %v3664, 0.7978846
  %v3677 = vmul.f32 %v3665, 0.7978846
  %v3678 = vmul.f32 %v3666, 0.7978846
  %v3679 = vmul.f32 %v3667, 0.7978846
  %v3680 = vmul.f32 %v3668, 0.7978846
  %v3681 = vtanh.pop %v3669
  %v3682 = vtanh.pop %v3670
  %v3683 = vtanh.pop %v3671
  %v3684 = vtanh.pop %v3672
  %v3685 = vtanh.pop %v3673
  %v3686 = vtanh.pop %v3674
  %v3687 = vtanh.pop %v3675
  %v3688 = vtanh.pop %v3676
  %v3689 = vtanh.pop %v3677
  %v3690 = vtanh.pop %v3678
  %v3691 = vtanh.pop %v3679
  %v3692 = vtanh.pop %v3680
  %v3693 = vadd.f32 %v3681, 1.0
  %v3694 = vadd.f32 %v3682, 1.0
  %v3695 = vadd.f32 %v3683, 1.0
  %v3696 = vadd.f32 %v3684, 1.0
  %v3697 = vadd.f32 %v3685, 1.0
  %v3698 = vadd.f32 %v3686, 1.0
  %v3699 = vadd.f32 %v3687, 1.0
  %v3700 = vadd.f32 %v3688, 1.0
  %v3701 = vadd.f32 %v3689, 1.0
  %v3702 = vadd.f32 %v3690, 1.0
  %v3703 = vadd.f32 %v3691, 1.0
  %v3704 = vadd.f32 %v3692, 1.0
  %v3705 = vmul.f32 %v3693, 0.5
  %v3706 = vmul.f32 %v3694, 0.5
  %v3707 = vmul.f32 %v3695, 0.5
  %v3708 = vmul.f32 %v3696, 0.5
  %v3709 = vmul.f32 %v3697, 0.5
  %v3710 = vmul.f32 %v3698, 0.5
  %v3711 = vmul.f32 %v3699, 0.5
  %v3712 = vmul.f32 %v3700, 0.5
  %v3713 = vmul.f32 %v3701, 0.5
  %v3714 = vmul.f32 %v3702, 0.5
  %v3715 = vmul.f32 %v3703, 0.5
  %v3716 = vmul.f32 %v3704, 0.5
  %v3717 = vmul.f32 %v3574, %v3705
  %v3718 = vmul.f32 %v3593, %v3706
  %v3719 = vmul.f32 %v3612, %v3707
  %v3720 = vmul.f32 %v3576, %v3708
  %v3721 = vmul.f32 %v3595, %v3709
  %v3722 = vmul.f32 %v3614, %v3710
  %v3723 = vmul.f32 %v3579, %v3711
  %v3724 = vmul.f32 %v3598, %v3712
  %v3725 = vmul.f32 %v3617, %v3713
  %v3726 = vmul.f32 %v3581, %v3714
  %v3727 = vmul.f32 %v3600, %v3715
  %v3728 = vmul.f32 %v3619, %v3716
  %v3729 = vld [vmem:[%s15] sm:$0xf]
  %v3730 = vld [vmem:[%s15 + $0x4] sm:$0xf]
  %v3731 = vld [vmem:[%s15 + $0x8] sm:$0xf]
  %v3732 = vld [vmem:[%s15 + $0xc] sm:$0xf]
  %v3733 = vld [vmem:[%s15 + $0x10] sm:$0xf]
  %v3734 = vld [vmem:[%s15 + $0x14] sm:$0xf]
  %v3735 = vld [vmem:[%s15 + $0x18] sm:$0xf]
  %v3736 = vld [vmem:[%s15 + $0x1c] sm:$0xf]
  %v3737 = vld [vmem:[%s15 + $0x20] sm:$0xf]
  %v3738 = vld [vmem:[%s15 + $0x24] sm:$0xf]
  %v3739 = vld [vmem:[%s15 + $0x28] sm:$0xf]
  %v3740 = vld [vmem:[%s15 + $0x2c] sm:$0xf]
  %v3741 = vld [vmem:[%s15 + $0x30] sm:$0xf]
  %v3742 = vld [vmem:[%s15 + $0x34] sm:$0xf]
  %v3743 = vld [vmem:[%s15 + $0x38] sm:$0xf]
  %v3744 = vld [vmem:[%s15 + $0x3c] sm:$0xf]
  %v3745 = vld [vmem:[%s15 + $0x40] sm:$0xf]
  %v3746 = vld [vmem:[%s15 + $0x44] sm:$0xf]
  %v3747 = vld [vmem:[%s15 + $0x48] sm:$0xf]
  %v3748 = vld [vmem:[%s15 + $0x4c] sm:$0xf]
  %v3749 = vld [vmem:[%s15 + $0x50] sm:$0xf]
  %v3750 = vld [vmem:[%s15 + $0x54] sm:$0xf]
  %v3751 = vld [vmem:[%s15 + $0x58] sm:$0xf]
  %v3752 = vld [vmem:[%s15 + $0x5c] sm:$0xf]
  %v3753 = vld [vmem:[%s15 + $0x60] sm:$0xf]
  %v3754 = vld [vmem:[%s15 + $0x64] sm:$0xf]
  %v3755 = vld [vmem:[%s15 + $0x68] sm:$0xf]
  %v3756 = vld [vmem:[%s15 + $0x6c] sm:$0xf]
  %v3757 = vld [vmem:[%s15 + $0x70] sm:$0xf]
  %v3758 = vld [vmem:[%s15 + $0x74] sm:$0xf]
  %v3759 = vld [vmem:[%s15 + $0x78] sm:$0xf]
  %v3760 = vld [vmem:[%s15 + $0x7c] sm:$0xf]
  %v3761 = vld [vmem:[%s15 + $0x80] sm:$0xf]
  %v3762 = vld [vmem:[%s15 + $0x84] sm:$0xf]
  %v3763 = vld [vmem:[%s15 + $0x88] sm:$0xf]
  %v3764 = vld [vmem:[%s15 + $0x8c] sm:$0xf]
  %v3765 = vld [vmem:[%s15 + $0x90] sm:$0xf]
  %v3766 = vld [vmem:[%s15 + $0x94] sm:$0xf]
  %v3767 = vld [vmem:[%s15 + $0x98] sm:$0xf]
  %v3768 = vld [vmem:[%s15 + $0x9c] sm:$0xf]
  %v3769 = vld [vmem:[%s15 + $0xa0] sm:$0xf]
  %v3770 = vld [vmem:[%s15 + $0xa4] sm:$0xf]
  %v3771 = vld [vmem:[%s15 + $0xa8] sm:$0xf]
  %v3772 = vld [vmem:[%s15 + $0xac] sm:$0xf]
  %v3773 = vld [vmem:[%s15 + $0xb0] sm:$0xf]
  %v3774 = vld [vmem:[%s15 + $0xb4] sm:$0xf]
  %v3775 = vld [vmem:[%s15 + $0xb8] sm:$0xf]
  %v3776 = vld [vmem:[%s15 + $0xbc] sm:$0xf]
  %v3777 = vpack.c.bf16 %v3720, %v3717
  %v3778 = vpack.c.bf16 %v3721, %v3718
  %v3779 = vpack.c.bf16 %v3722, %v3719
  %v3780 = vpack.c.bf16 %v3726, %v3723
  %v3781 = vpack.c.bf16 %v3727, %v3724
  %v3782 = vpack.c.bf16 %v3728, %v3725
  %v3783 = vperm.slane %v2341, 5
  %v3832 = vunpack.c.l.b16 %v3729
  %v3833 = vunpack.c.l.b16 %v3730
  %v3834 = vunpack.c.l.b16 %v3731
  %v3835 = vunpack.c.l.b16 %v3732
  %v3836 = vunpack.c.l.b16 %v3733
  %v3837 = vunpack.c.l.b16 %v3734
  %v3838 = vunpack.c.l.b16 %v3735
  %v3839 = vunpack.c.l.b16 %v3736
  %v3840 = vunpack.c.l.b16 %v3737
  %v3841 = vunpack.c.l.b16 %v3738
  %v3842 = vunpack.c.l.b16 %v3739
  %v3843 = vunpack.c.l.b16 %v3740
  %v3844 = vunpack.c.l.b16 %v3741
  %v3845 = vunpack.c.l.b16 %v3742
  %v3846 = vunpack.c.l.b16 %v3743
  %v3847 = vunpack.c.l.b16 %v3744
  %v3848 = vunpack.c.l.b16 %v3745
  %v3849 = vunpack.c.l.b16 %v3746
  %v3850 = vunpack.c.l.b16 %v3747
  %v3851 = vunpack.c.l.b16 %v3748
  %v3852 = vunpack.c.l.b16 %v3749
  %v3853 = vunpack.c.l.b16 %v3750
  %v3854 = vunpack.c.l.b16 %v3751
  %v3855 = vunpack.c.l.b16 %v3752
  %v3856 = vunpack.c.l.b16 %v3753
  %v3857 = vunpack.c.l.b16 %v3754
  %v3858 = vunpack.c.l.b16 %v3755
  %v3859 = vunpack.c.l.b16 %v3756
  %v3860 = vunpack.c.l.b16 %v3757
  %v3861 = vunpack.c.l.b16 %v3758
  %v3862 = vunpack.c.l.b16 %v3759
  %v3863 = vunpack.c.l.b16 %v3760
  %v3864 = vunpack.c.l.b16 %v3761
  %v3865 = vunpack.c.l.b16 %v3762
  %v3866 = vunpack.c.l.b16 %v3763
  %v3867 = vunpack.c.l.b16 %v3764
  %v3868 = vunpack.c.l.b16 %v3765
  %v3869 = vunpack.c.l.b16 %v3766
  %v3870 = vunpack.c.l.b16 %v3767
  %v3871 = vunpack.c.l.b16 %v3768
  %v3872 = vunpack.c.l.b16 %v3769
  %v3873 = vunpack.c.l.b16 %v3770
  %v3874 = vunpack.c.l.b16 %v3771
  %v3875 = vunpack.c.l.b16 %v3772
  %v3876 = vunpack.c.l.b16 %v3773
  %v3877 = vunpack.c.l.b16 %v3774
  %v3878 = vunpack.c.l.b16 %v3775
  %v3879 = vunpack.c.l.b16 %v3776
  %v3880 = vpack.c.b16 %v3833, %v3832
  %v3881 = vpack.c.b16 %v3835, %v3834
  %v3882 = vpack.c.b16 %v3837, %v3836
  %v3883 = vpack.c.b16 %v3839, %v3838
  %v3884 = vpack.c.b16 %v3841, %v3840
  %v3885 = vpack.c.b16 %v3843, %v3842
  %v3886 = vpack.c.b16 %v3845, %v3844
  %v3887 = vpack.c.b16 %v3847, %v3846
  %v3888 = vpack.c.b16 %v3849, %v3848
  %v3889 = vpack.c.b16 %v3851, %v3850
  %v3890 = vpack.c.b16 %v3853, %v3852
  %v3891 = vpack.c.b16 %v3855, %v3854
  %v3892 = vpack.c.b16 %v3857, %v3856
  %v3893 = vpack.c.b16 %v3859, %v3858
  %v3894 = vpack.c.b16 %v3861, %v3860
  %v3895 = vpack.c.b16 %v3863, %v3862
  %v3896 = vpack.c.b16 %v3865, %v3864
  %v3897 = vpack.c.b16 %v3867, %v3866
  %v3898 = vpack.c.b16 %v3869, %v3868
  %v3899 = vpack.c.b16 %v3871, %v3870
  %v3900 = vpack.c.b16 %v3873, %v3872
  %v3901 = vpack.c.b16 %v3875, %v3874
  %v3902 = vpack.c.b16 %v3877, %v3876
  %v3903 = vpack.c.b16 %v3879, %v3878
  %3928 = vmatpush.bf16.msra.mxu0 %v3887
  %3929 = vmatpush.bf16.msra.mxu0 %v3886
  %3930 = vmatpush.bf16.msra.mxu0 %v3885
  %3931 = vmatpush.bf16.msra.mxu0 %v3884
  %3932 = vmatpush.bf16.msra.mxu0 %v3883
  %3933 = vmatpush.bf16.msra.mxu0 %v3882
  %3934 = vmatpush.bf16.msra.mxu0 %v3881
  %3935 = vmatpush.bf16.msra.mxu0 %v3880
  %3936 = vmatmul.bf16.gmra.mxu0 %v3777
  %v3937 = vpop.f32.mrf.mxu0
  %v3938 = vadd.f32 %v3783, %v3937
  %v3939 = vpop.f32.mrf.mxu0
  %v3940 = vadd.f32 %v3783, %v3939
  %3941 = vmatmul.bf16.gmra.mxu0 %v3780
  %v3942 = vpop.f32.mrf.mxu0
  %v3943 = vadd.f32 %v3783, %v3942
  %v3944 = vpop.f32.mrf.mxu0
  %v3945 = vadd.f32 %v3783, %v3944
  %3946 = vdwg.mxu0
  %3947 = vmatpush.bf16.msra.mxu0 %v3895
  %3948 = vmatpush.bf16.msra.mxu0 %v3894
  %3949 = vmatpush.bf16.msra.mxu0 %v3893
  %3950 = vmatpush.bf16.msra.mxu0 %v3892
  %3951 = vmatpush.bf16.msra.mxu0 %v3891
  %3952 = vmatpush.bf16.msra.mxu0 %v3890
  %3953 = vmatpush.bf16.msra.mxu0 %v3889
  %3954 = vmatpush.bf16.msra.mxu0 %v3888
  %3955 = vmatmul.bf16.gmra.mxu0 %v3778
  %v3956 = vpop.f32.mrf.mxu0
  %v3957 = vadd.f32 %v3938, %v3956
  %v3958 = vpop.f32.mrf.mxu0
  %v3959 = vadd.f32 %v3940, %v3958
  %3960 = vmatmul.bf16.gmra.mxu0 %v3781
  %v3961 = vpop.f32.mrf.mxu0
  %v3962 = vadd.f32 %v3943, %v3961
  %v3963 = vpop.f32.mrf.mxu0
  %v3964 = vadd.f32 %v3945, %v3963
  %3965 = vdwg.mxu0
  %3966 = vmatpush.bf16.msra.mxu0 %v3903
  %3967 = vmatpush.bf16.msra.mxu0 %v3902
  %3968 = vmatpush.bf16.msra.mxu0 %v3901
  %3969 = vmatpush.bf16.msra.mxu0 %v3900
  %3970 = vmatpush.bf16.msra.mxu0 %v3899
  %3971 = vmatpush.bf16.msra.mxu0 %v3898
  %3972 = vmatpush.bf16.msra.mxu0 %v3897
  %3973 = vmatpush.bf16.msra.mxu0 %v3896
  %3974 = vmatmul.bf16.gmra.mxu0 %v3779
  %v3975 = vpop.f32.mrf.mxu0
  %v3976 = vadd.f32 %v3957, %v3975
  %v3977 = vpop.f32.mrf.mxu0
  %v3978 = vadd.f32 %v3959, %v3977
  %3979 = vmatmul.bf16.gmra.mxu0 %v3782
  %v3980 = vpop.f32.mrf.mxu0
  %v3981 = vadd.f32 %v3962, %v3980
  %v3982 = vpop.f32.mrf.mxu0
  %v3983 = vadd.f32 %v3964, %v3982
  %3984 = vdwg.mxu0
  %v3985 = vadd.f32 %v3395, %v3976
  %v3986 = vadd.f32 %v3396, %v3978
  %v3987 = vadd.f32 %v3397, %v3981
  %v3988 = vadd.f32 %v3398, %v3983
  %3989 = vadd.xlane.f32.xlu0 %v3985
  %v3990 = vpop.xlane.xlu0 %3989
  %3991 = vadd.xlane.f32.xlu0 %v3986
  %v3992 = vpop.xlane.xlu0 %3991
  %3993 = vadd.xlane.f32.xlu0 %v3987
  %v3994 = vpop.xlane.xlu0 %3993
  %3995 = vadd.xlane.f32.xlu0 %v3988
  %v3996 = vpop.xlane.xlu0 %3995
  %v3997 = vmul.f32 %v3990, %v1578
  %v3998 = vmul.f32 %v3992, %v1578
  %v3999 = vmul.f32 %v3994, %v1578
  %v4000 = vmul.f32 %v3996, %v1578
  %v4001 = vsub.f32 %v3985, %v3997
  %v4002 = vsub.f32 %v3986, %v3998
  %v4003 = vsub.f32 %v3987, %v3999
  %v4004 = vsub.f32 %v3988, %v4000
  %v4005 = vmul.f32 %v4001, %v4001
  %v4006 = vmul.f32 %v4002, %v4002
  %v4007 = vmul.f32 %v4003, %v4003
  %v4008 = vmul.f32 %v4004, %v4004
  %4009 = vadd.xlane.f32.xlu0 %v4005
  %v4010 = vpop.xlane.xlu0 %4009
  %4011 = vadd.xlane.f32.xlu0 %v4006
  %v4012 = vpop.xlane.xlu0 %4011
  %4013 = vadd.xlane.f32.xlu0 %v4007
  %v4014 = vpop.xlane.xlu0 %4013
  %4015 = vadd.xlane.f32.xlu0 %v4008
  %v4016 = vpop.xlane.xlu0 %4015
  %v4017 = vmul.f32 %v4010, %v1578
  %v4018 = vmul.f32 %v4012, %v1578
  %v4019 = vmul.f32 %v4014, %v1578
  %v4020 = vmul.f32 %v4016, %v1578
  %v4021 = vadd.f32 %v4017, 1e-05
  %v4022 = vadd.f32 %v4018, 1e-05
  %v4023 = vadd.f32 %v4019, 1e-05
  %v4024 = vadd.f32 %v4020, 1e-05
  %v4025 = vrsqrt.pop %v4021
  %v4026 = vmul.f32 %v4025, %v4021
  %v4027 = vmul.f32 %v4026, %v4025
  %v4028 = vmul.f32 0.5, %v4027
  %v4029 = vsub.f32 1.5, %v4028
  %v4030 = vmul.f32 %v4025, %v4029
  %vm4031 = vweird.f32 %v4021
  %vm4032 = vweird.f32 %v4025
  %vm4033 = vmor %vm4031, %vm4032
  %v4034 = vsel %vm4033, %v4025, %v4030
  %v4035 = vrsqrt.pop %v4022
  %v4036 = vmul.f32 %v4035, %v4022
  %v4037 = vmul.f32 %v4036, %v4035
  %v4038 = vmul.f32 0.5, %v4037
  %v4039 = vsub.f32 1.5, %v4038
  %v4040 = vmul.f32 %v4035, %v4039
  %vm4041 = vweird.f32 %v4022
  %vm4042 = vweird.f32 %v4035
  %vm4043 = vmor %vm4041, %vm4042
  %v4044 = vsel %vm4043, %v4035, %v4040
  %v4045 = vrsqrt.pop %v4023
  %v4046 = vmul.f32 %v4045, %v4023
  %v4047 = vmul.f32 %v4046, %v4045
  %v4048 = vmul.f32 0.5, %v4047
  %v4049 = vsub.f32 1.5, %v4048
  %v4050 = vmul.f32 %v4045, %v4049
  %vm4051 = vweird.f32 %v4023
  %vm4052 = vweird.f32 %v4045
  %vm4053 = vmor %vm4051, %vm4052
  %v4054 = vsel %vm4053, %v4045, %v4050
  %v4055 = vrsqrt.pop %v4024
  %v4056 = vmul.f32 %v4055, %v4024
  %v4057 = vmul.f32 %v4056, %v4055
  %v4058 = vmul.f32 0.5, %v4057
  %v4059 = vsub.f32 1.5, %v4058
  %v4060 = vmul.f32 %v4055, %v4059
  %vm4061 = vweird.f32 %v4024
  %vm4062 = vweird.f32 %v4055
  %vm4063 = vmor %vm4061, %vm4062
  %v4064 = vsel %vm4063, %v4055, %v4060
  %v4065 = vmul.f32 %v4001, %v4034
  %v4066 = vmul.f32 %v4002, %v4044
  %v4067 = vmul.f32 %v4003, %v4054
  %v4068 = vmul.f32 %v4004, %v4064
  %v4069 = vperm.slane %v2341, 6
  %v4070 = vmul.f32 %v4065, %v4069
  %v4071 = vmul.f32 %v4066, %v4069
  %v4072 = vmul.f32 %v4067, %v4069
  %v4073 = vmul.f32 %v4068, %v4069
  %v4074 = vperm.slane %v2341, 7
  %v4075 = vadd.f32 %v4070, %v4074
  %v4076 = vadd.f32 %v4071, %v4074
  %v4077 = vadd.f32 %v4072, %v4074
  %v4078 = vadd.f32 %v4073, %v4074
  %v4080 = vrot.slane %v4077, 7
  %vm4082 = vcmask 1040384
  %v4083 = vsel %vm4082, %v4075, %v4080
  %v4084 = vld [vmem:[%s17] sm:$0xf]
  %v4085 = vld [vmem:[%s17 + $0x4] sm:$0xf]
  %v4086 = vld [vmem:[%s17 + $0x8] sm:$0xf]
  %v4087 = vld [vmem:[%s17 + $0xc] sm:$0xf]
  %v4088 = vld [vmem:[%s17 + $0x10] sm:$0xf]
  %v4089 = vld [vmem:[%s17 + $0x14] sm:$0xf]
  %v4090 = vld [vmem:[%s17 + $0x18] sm:$0xf]
  %v4091 = vld [vmem:[%s17 + $0x1c] sm:$0xf]
  %v4092 = vld [vmem:[%s17 + $0x20] sm:$0xf]
  %v4093 = vld [vmem:[%s17 + $0x24] sm:$0xf]
  %v4094 = vld [vmem:[%s17 + $0x28] sm:$0xf]
  %v4095 = vld [vmem:[%s17 + $0x2c] sm:$0xf]
  %v4096 = vld [vmem:[%s17 + $0x30] sm:$0xf]
  %v4097 = vld [vmem:[%s17 + $0x34] sm:$0xf]
  %v4098 = vld [vmem:[%s17 + $0x38] sm:$0xf]
  %v4099 = vld [vmem:[%s17 + $0x3c] sm:$0xf]
  %v4100 = vpack.c.bf16 %v4083, %v4083
  %v4102 = vrot.slane %v4075, 1
  %v4104 = vsel %vm4082, %v4102, %v4077
  %s4105 = scalar_lea.vmem %s17, 64
  %v4106 = vld [vmem:[%s4105] sm:$0xf]
  %v4107 = vld [vmem:[%s4105 + $0x4] sm:$0xf]
  %v4108 = vld [vmem:[%s4105 + $0x8] sm:$0xf]
  %v4109 = vld [vmem:[%s4105 + $0xc] sm:$0xf]
  %v4110 = vld [vmem:[%s4105 + $0x10] sm:$0xf]
  %v4111 = vld [vmem:[%s4105 + $0x14] sm:$0xf]
  %v4112 = vld [vmem:[%s4105 + $0x18] sm:$0xf]
  %v4113 = vld [vmem:[%s4105 + $0x1c] sm:$0xf]
  %v4114 = vld [vmem:[%s4105 + $0x20] sm:$0xf]
  %v4115 = vld [vmem:[%s4105 + $0x24] sm:$0xf]
  %v4116 = vld [vmem:[%s4105 + $0x28] sm:$0xf]
  %v4117 = vld [vmem:[%s4105 + $0x2c] sm:$0xf]
  %v4118 = vld [vmem:[%s4105 + $0x30] sm:$0xf]
  %v4119 = vld [vmem:[%s4105 + $0x34] sm:$0xf]
  %v4120 = vld [vmem:[%s4105 + $0x38] sm:$0xf]
  %v4121 = vld [vmem:[%s4105 + $0x3c] sm:$0xf]
  %v4122 = vpack.c.bf16 %v4104, %v4104
  %v4139 = vunpack.c.l.b16 %v4106
  %v4140 = vunpack.c.l.b16 %v4107
  %v4141 = vunpack.c.l.b16 %v4108
  %v4142 = vunpack.c.l.b16 %v4109
  %v4143 = vunpack.c.l.b16 %v4110
  %v4144 = vunpack.c.l.b16 %v4111
  %v4145 = vunpack.c.l.b16 %v4112
  %v4146 = vunpack.c.l.b16 %v4113
  %v4147 = vunpack.c.l.b16 %v4114
  %v4148 = vunpack.c.l.b16 %v4115
  %v4149 = vunpack.c.l.b16 %v4116
  %v4150 = vunpack.c.l.b16 %v4117
  %v4151 = vunpack.c.l.b16 %v4118
  %v4152 = vunpack.c.l.b16 %v4119
  %v4153 = vunpack.c.l.b16 %v4120
  %v4154 = vunpack.c.l.b16 %v4121
  %v4155 = vpack.c.b16 %v4140, %v4139
  %v4156 = vpack.c.b16 %v4142, %v4141
  %v4157 = vpack.c.b16 %v4144, %v4143
  %v4158 = vpack.c.b16 %v4146, %v4145
  %v4159 = vpack.c.b16 %v4148, %v4147
  %v4160 = vpack.c.b16 %v4150, %v4149
  %v4161 = vpack.c.b16 %v4152, %v4151
  %v4162 = vpack.c.b16 %v4154, %v4153
  %4171 = vmatpush.bf16.msra.mxu0 %v4162
  %4172 = vmatpush.bf16.msra.mxu0 %v4161
  %4173 = vmatpush.bf16.msra.mxu0 %v4160
  %4174 = vmatpush.bf16.msra.mxu0 %v4159
  %4175 = vmatpush.bf16.msra.mxu0 %v4158
  %4176 = vmatpush.bf16.msra.mxu0 %v4157
  %4177 = vmatpush.bf16.msra.mxu0 %v4156
  %4178 = vmatpush.bf16.msra.mxu0 %v4155
  %4179 = vmatmul.bf16.gmra.mxu0 %v4122
  %v4180 = vpop.f32.mrf.mxu0
  %v4181 = vadd.f32 0.0, %v4180
  %v4182 = vpop.f32.mrf.mxu0
  %4183 = vdwg.mxu0
  %v4184 = vrot.slane %v4075, 2
  %v4186 = vrot.slane %v4077, 1
  %v4188 = vsel %vm4082, %v4184, %v4186
  %s4189 = scalar_lea.vmem %s17, 128
  %v4190 = vld [vmem:[%s4189] sm:$0xf]
  %v4191 = vld [vmem:[%s4189 + $0x4] sm:$0xf]
  %v4192 = vld [vmem:[%s4189 + $0x8] sm:$0xf]
  %v4193 = vld [vmem:[%s4189 + $0xc] sm:$0xf]
  %v4194 = vld [vmem:[%s4189 + $0x10] sm:$0xf]
  %v4195 = vld [vmem:[%s4189 + $0x14] sm:$0xf]
  %v4196 = vld [vmem:[%s4189 + $0x18] sm:$0xf]
  %v4197 = vld [vmem:[%s4189 + $0x1c] sm:$0xf]
  %v4198 = vld [vmem:[%s4189 + $0x20] sm:$0xf]
  %v4199 = vld [vmem:[%s4189 + $0x24] sm:$0xf]
  %v4200 = vld [vmem:[%s4189 + $0x28] sm:$0xf]
  %v4201 = vld [vmem:[%s4189 + $0x2c] sm:$0xf]
  %v4202 = vld [vmem:[%s4189 + $0x30] sm:$0xf]
  %v4203 = vld [vmem:[%s4189 + $0x34] sm:$0xf]
  %v4204 = vld [vmem:[%s4189 + $0x38] sm:$0xf]
  %v4205 = vld [vmem:[%s4189 + $0x3c] sm:$0xf]
  %v4206 = vpack.c.bf16 %v4188, %v4188
  %v4207 = vrot.slane %v4075, 3
  %v4209 = vrot.slane %v4077, 2
  %v4211 = vsel %vm4082, %v4207, %v4209
  %s4212 = scalar_lea.vmem %s17, 192
  %v4213 = vld [vmem:[%s4212] sm:$0xf]
  %v4214 = vld [vmem:[%s4212 + $0x4] sm:$0xf]
  %v4215 = vld [vmem:[%s4212 + $0x8] sm:$0xf]
  %v4216 = vld [vmem:[%s4212 + $0xc] sm:$0xf]
  %v4217 = vld [vmem:[%s4212 + $0x10] sm:$0xf]
  %v4218 = vld [vmem:[%s4212 + $0x14] sm:$0xf]
  %v4219 = vld [vmem:[%s4212 + $0x18] sm:$0xf]
  %v4220 = vld [vmem:[%s4212 + $0x1c] sm:$0xf]
  %v4221 = vld [vmem:[%s4212 + $0x20] sm:$0xf]
  %v4222 = vld [vmem:[%s4212 + $0x24] sm:$0xf]
  %v4223 = vld [vmem:[%s4212 + $0x28] sm:$0xf]
  %v4224 = vld [vmem:[%s4212 + $0x2c] sm:$0xf]
  %v4225 = vld [vmem:[%s4212 + $0x30] sm:$0xf]
  %v4226 = vld [vmem:[%s4212 + $0x34] sm:$0xf]
  %v4227 = vld [vmem:[%s4212 + $0x38] sm:$0xf]
  %v4228 = vld [vmem:[%s4212 + $0x3c] sm:$0xf]
  %v4229 = vpack.c.bf16 %v4211, %v4211
  %v4246 = vunpack.c.l.b16 %v4213
  %v4247 = vunpack.c.l.b16 %v4214
  %v4248 = vunpack.c.l.b16 %v4215
  %v4249 = vunpack.c.l.b16 %v4216
  %v4250 = vunpack.c.l.b16 %v4217
  %v4251 = vunpack.c.l.b16 %v4218
  %v4252 = vunpack.c.l.b16 %v4219
  %v4253 = vunpack.c.l.b16 %v4220
  %v4254 = vunpack.c.l.b16 %v4221
  %v4255 = vunpack.c.l.b16 %v4222
  %v4256 = vunpack.c.l.b16 %v4223
  %v4257 = vunpack.c.l.b16 %v4224
  %v4258 = vunpack.c.l.b16 %v4225
  %v4259 = vunpack.c.l.b16 %v4226
  %v4260 = vunpack.c.l.b16 %v4227
  %v4261 = vunpack.c.l.b16 %v4228
  %v4262 = vpack.c.b16 %v4247, %v4246
  %v4263 = vpack.c.b16 %v4249, %v4248
  %v4264 = vpack.c.b16 %v4251, %v4250
  %v4265 = vpack.c.b16 %v4253, %v4252
  %v4266 = vpack.c.b16 %v4255, %v4254
  %v4267 = vpack.c.b16 %v4257, %v4256
  %v4268 = vpack.c.b16 %v4259, %v4258
  %v4269 = vpack.c.b16 %v4261, %v4260
  %4278 = vmatpush.bf16.msra.mxu0 %v4269
  %4279 = vmatpush.bf16.msra.mxu0 %v4268
  %4280 = vmatpush.bf16.msra.mxu0 %v4267
  %4281 = vmatpush.bf16.msra.mxu0 %v4266
  %4282 = vmatpush.bf16.msra.mxu0 %v4265
  %4283 = vmatpush.bf16.msra.mxu0 %v4264
  %4284 = vmatpush.bf16.msra.mxu0 %v4263
  %4285 = vmatpush.bf16.msra.mxu0 %v4262
  %4286 = vmatmul.bf16.gmra.mxu0 %v4229
  %v4287 = vpop.f32.mrf.mxu0
  %v4288 = vadd.f32 0.0, %v4287
  %v4289 = vpop.f32.mrf.mxu0
  %4290 = vdwg.mxu0
  %v4291 = vrot.slane %v4075, 4
  %v4293 = vrot.slane %v4077, 3
  %v4295 = vsel %vm4082, %v4291, %v4293
  %s4296 = scalar_lea.vmem %s17, 256
  %v4297 = vld [vmem:[%s4296] sm:$0xf]
  %v4298 = vld [vmem:[%s4296 + $0x4] sm:$0xf]
  %v4299 = vld [vmem:[%s4296 + $0x8] sm:$0xf]
  %v4300 = vld [vmem:[%s4296 + $0xc] sm:$0xf]
  %v4301 = vld [vmem:[%s4296 + $0x10] sm:$0xf]
  %v4302 = vld [vmem:[%s4296 + $0x14] sm:$0xf]
  %v4303 = vld [vmem:[%s4296 + $0x18] sm:$0xf]
  %v4304 = vld [vmem:[%s4296 + $0x1c] sm:$0xf]
  %v4305 = vld [vmem:[%s4296 + $0x20] sm:$0xf]
  %v4306 = vld [vmem:[%s4296 + $0x24] sm:$0xf]
  %v4307 = vld [vmem:[%s4296 + $0x28] sm:$0xf]
  %v4308 = vld [vmem:[%s4296 + $0x2c] sm:$0xf]
  %v4309 = vld [vmem:[%s4296 + $0x30] sm:$0xf]
  %v4310 = vld [vmem:[%s4296 + $0x34] sm:$0xf]
  %v4311 = vld [vmem:[%s4296 + $0x38] sm:$0xf]
  %v4312 = vld [vmem:[%s4296 + $0x3c] sm:$0xf]
  %v4313 = vpack.c.bf16 %v4295, %v4295
  %v4314 = vrot.slane %v4075, 5
  %v4316 = vrot.slane %v4077, 4
  %v4318 = vsel %vm4082, %v4314, %v4316
  %s4319 = scalar_lea.vmem %s17, 320
  %v4320 = vld [vmem:[%s4319] sm:$0xf]
  %v4321 = vld [vmem:[%s4319 + $0x4] sm:$0xf]
  %v4322 = vld [vmem:[%s4319 + $0x8] sm:$0xf]
  %v4323 = vld [vmem:[%s4319 + $0xc] sm:$0xf]
  %v4324 = vld [vmem:[%s4319 + $0x10] sm:$0xf]
  %v4325 = vld [vmem:[%s4319 + $0x14] sm:$0xf]
  %v4326 = vld [vmem:[%s4319 + $0x18] sm:$0xf]
  %v4327 = vld [vmem:[%s4319 + $0x1c] sm:$0xf]
  %v4328 = vld [vmem:[%s4319 + $0x20] sm:$0xf]
  %v4329 = vld [vmem:[%s4319 + $0x24] sm:$0xf]
  %v4330 = vld [vmem:[%s4319 + $0x28] sm:$0xf]
  %v4331 = vld [vmem:[%s4319 + $0x2c] sm:$0xf]
  %v4332 = vld [vmem:[%s4319 + $0x30] sm:$0xf]
  %v4333 = vld [vmem:[%s4319 + $0x34] sm:$0xf]
  %v4334 = vld [vmem:[%s4319 + $0x38] sm:$0xf]
  %v4335 = vld [vmem:[%s4319 + $0x3c] sm:$0xf]
  %v4336 = vpack.c.bf16 %v4318, %v4318
  %v4353 = vunpack.c.l.b16 %v4320
  %v4354 = vunpack.c.l.b16 %v4321
  %v4355 = vunpack.c.l.b16 %v4322
  %v4356 = vunpack.c.l.b16 %v4323
  %v4357 = vunpack.c.l.b16 %v4324
  %v4358 = vunpack.c.l.b16 %v4325
  %v4359 = vunpack.c.l.b16 %v4326
  %v4360 = vunpack.c.l.b16 %v4327
  %v4361 = vunpack.c.l.b16 %v4328
  %v4362 = vunpack.c.l.b16 %v4329
  %v4363 = vunpack.c.l.b16 %v4330
  %v4364 = vunpack.c.l.b16 %v4331
  %v4365 = vunpack.c.l.b16 %v4332
  %v4366 = vunpack.c.l.b16 %v4333
  %v4367 = vunpack.c.l.b16 %v4334
  %v4368 = vunpack.c.l.b16 %v4335
  %v4369 = vpack.c.b16 %v4354, %v4353
  %v4370 = vpack.c.b16 %v4356, %v4355
  %v4371 = vpack.c.b16 %v4358, %v4357
  %v4372 = vpack.c.b16 %v4360, %v4359
  %v4373 = vpack.c.b16 %v4362, %v4361
  %v4374 = vpack.c.b16 %v4364, %v4363
  %v4375 = vpack.c.b16 %v4366, %v4365
  %v4376 = vpack.c.b16 %v4368, %v4367
  %4385 = vmatpush.bf16.msra.mxu0 %v4376
  %4386 = vmatpush.bf16.msra.mxu0 %v4375
  %4387 = vmatpush.bf16.msra.mxu0 %v4374
  %4388 = vmatpush.bf16.msra.mxu0 %v4373
  %4389 = vmatpush.bf16.msra.mxu0 %v4372
  %4390 = vmatpush.bf16.msra.mxu0 %v4371
  %4391 = vmatpush.bf16.msra.mxu0 %v4370
  %4392 = vmatpush.bf16.msra.mxu0 %v4369
  %4393 = vmatmul.bf16.gmra.mxu0 %v4336
  %v4394 = vpop.f32.mrf.mxu0
  %v4395 = vadd.f32 0.0, %v4394
  %v4396 = vpop.f32.mrf.mxu0
  %4397 = vdwg.mxu0
  %v4398 = vrot.slane %v4075, 6
  %v4400 = vrot.slane %v4077, 5
  %v4402 = vsel %vm4082, %v4398, %v4400
  %s4403 = scalar_lea.vmem %s17, 384
  %v4404 = vld [vmem:[%s4403] sm:$0xf]
  %v4405 = vld [vmem:[%s4403 + $0x4] sm:$0xf]
  %v4406 = vld [vmem:[%s4403 + $0x8] sm:$0xf]
  %v4407 = vld [vmem:[%s4403 + $0xc] sm:$0xf]
  %v4408 = vld [vmem:[%s4403 + $0x10] sm:$0xf]
  %v4409 = vld [vmem:[%s4403 + $0x14] sm:$0xf]
  %v4410 = vld [vmem:[%s4403 + $0x18] sm:$0xf]
  %v4411 = vld [vmem:[%s4403 + $0x1c] sm:$0xf]
  %v4412 = vld [vmem:[%s4403 + $0x20] sm:$0xf]
  %v4413 = vld [vmem:[%s4403 + $0x24] sm:$0xf]
  %v4414 = vld [vmem:[%s4403 + $0x28] sm:$0xf]
  %v4415 = vld [vmem:[%s4403 + $0x2c] sm:$0xf]
  %v4416 = vld [vmem:[%s4403 + $0x30] sm:$0xf]
  %v4417 = vld [vmem:[%s4403 + $0x34] sm:$0xf]
  %v4418 = vld [vmem:[%s4403 + $0x38] sm:$0xf]
  %v4419 = vld [vmem:[%s4403 + $0x3c] sm:$0xf]
  %v4420 = vpack.c.bf16 %v4402, %v4402
  %v4421 = vrot.slane %v4075, 7
  %v4423 = vrot.slane %v4077, 6
  %v4425 = vsel %vm4082, %v4421, %v4423
  %s4426 = scalar_lea.vmem %s17, 448
  %v4427 = vld [vmem:[%s4426] sm:$0xf]
  %v4428 = vld [vmem:[%s4426 + $0x4] sm:$0xf]
  %v4429 = vld [vmem:[%s4426 + $0x8] sm:$0xf]
  %v4430 = vld [vmem:[%s4426 + $0xc] sm:$0xf]
  %v4431 = vld [vmem:[%s4426 + $0x10] sm:$0xf]
  %v4432 = vld [vmem:[%s4426 + $0x14] sm:$0xf]
  %v4433 = vld [vmem:[%s4426 + $0x18] sm:$0xf]
  %v4434 = vld [vmem:[%s4426 + $0x1c] sm:$0xf]
  %v4435 = vld [vmem:[%s4426 + $0x20] sm:$0xf]
  %v4436 = vld [vmem:[%s4426 + $0x24] sm:$0xf]
  %v4437 = vld [vmem:[%s4426 + $0x28] sm:$0xf]
  %v4438 = vld [vmem:[%s4426 + $0x2c] sm:$0xf]
  %v4439 = vld [vmem:[%s4426 + $0x30] sm:$0xf]
  %v4440 = vld [vmem:[%s4426 + $0x34] sm:$0xf]
  %v4441 = vld [vmem:[%s4426 + $0x38] sm:$0xf]
  %v4442 = vld [vmem:[%s4426 + $0x3c] sm:$0xf]
  %v4443 = vpack.c.bf16 %v4425, %v4425
  %v4460 = vunpack.c.l.b16 %v4427
  %v4461 = vunpack.c.l.b16 %v4428
  %v4462 = vunpack.c.l.b16 %v4429
  %v4463 = vunpack.c.l.b16 %v4430
  %v4464 = vunpack.c.l.b16 %v4431
  %v4465 = vunpack.c.l.b16 %v4432
  %v4466 = vunpack.c.l.b16 %v4433
  %v4467 = vunpack.c.l.b16 %v4434
  %v4468 = vunpack.c.l.b16 %v4435
  %v4469 = vunpack.c.l.b16 %v4436
  %v4470 = vunpack.c.l.b16 %v4437
  %v4471 = vunpack.c.l.b16 %v4438
  %v4472 = vunpack.c.l.b16 %v4439
  %v4473 = vunpack.c.l.b16 %v4440
  %v4474 = vunpack.c.l.b16 %v4441
  %v4475 = vunpack.c.l.b16 %v4442
  %v4476 = vpack.c.b16 %v4461, %v4460
  %v4477 = vpack.c.b16 %v4463, %v4462
  %v4478 = vpack.c.b16 %v4465, %v4464
  %v4479 = vpack.c.b16 %v4467, %v4466
  %v4480 = vpack.c.b16 %v4469, %v4468
  %v4481 = vpack.c.b16 %v4471, %v4470
  %v4482 = vpack.c.b16 %v4473, %v4472
  %v4483 = vpack.c.b16 %v4475, %v4474
  %4492 = vmatpush.bf16.msra.mxu0 %v4483
  %4493 = vmatpush.bf16.msra.mxu0 %v4482
  %4494 = vmatpush.bf16.msra.mxu0 %v4481
  %4495 = vmatpush.bf16.msra.mxu0 %v4480
  %4496 = vmatpush.bf16.msra.mxu0 %v4479
  %4497 = vmatpush.bf16.msra.mxu0 %v4478
  %4498 = vmatpush.bf16.msra.mxu0 %v4477
  %4499 = vmatpush.bf16.msra.mxu0 %v4476
  %4500 = vmatmul.bf16.gmra.mxu0 %v4443
  %v4501 = vpop.f32.mrf.mxu0
  %v4502 = vadd.f32 0.0, %v4501
  %v4503 = vpop.f32.mrf.mxu0
  %4504 = vdwg.mxu0
  %v4506 = vrot.slane %v4078, 7
  %v4508 = vsel %vm4082, %v4076, %v4506
  %s4509 = scalar_lea.vmem %s17, 512
  %v4510 = vld [vmem:[%s4509] sm:$0xf]
  %v4511 = vld [vmem:[%s4509 + $0x4] sm:$0xf]
  %v4512 = vld [vmem:[%s4509 + $0x8] sm:$0xf]
  %v4513 = vld [vmem:[%s4509 + $0xc] sm:$0xf]
  %v4514 = vld [vmem:[%s4509 + $0x10] sm:$0xf]
  %v4515 = vld [vmem:[%s4509 + $0x14] sm:$0xf]
  %v4516 = vld [vmem:[%s4509 + $0x18] sm:$0xf]
  %v4517 = vld [vmem:[%s4509 + $0x1c] sm:$0xf]
  %v4518 = vld [vmem:[%s4509 + $0x20] sm:$0xf]
  %v4519 = vld [vmem:[%s4509 + $0x24] sm:$0xf]
  %v4520 = vld [vmem:[%s4509 + $0x28] sm:$0xf]
  %v4521 = vld [vmem:[%s4509 + $0x2c] sm:$0xf]
  %v4522 = vld [vmem:[%s4509 + $0x30] sm:$0xf]
  %v4523 = vld [vmem:[%s4509 + $0x34] sm:$0xf]
  %v4524 = vld [vmem:[%s4509 + $0x38] sm:$0xf]
  %v4525 = vld [vmem:[%s4509 + $0x3c] sm:$0xf]
  %v4526 = vpack.c.bf16 %v4508, %v4508
  %v4528 = vrot.slane %v4076, 1
  %v4530 = vsel %vm4082, %v4528, %v4078
  %s4531 = scalar_lea.vmem %s17, 576
  %v4532 = vld [vmem:[%s4531] sm:$0xf]
  %v4533 = vld [vmem:[%s4531 + $0x4] sm:$0xf]
  %v4534 = vld [vmem:[%s4531 + $0x8] sm:$0xf]
  %v4535 = vld [vmem:[%s4531 + $0xc] sm:$0xf]
  %v4536 = vld [vmem:[%s4531 + $0x10] sm:$0xf]
  %v4537 = vld [vmem:[%s4531 + $0x14] sm:$0xf]
  %v4538 = vld [vmem:[%s4531 + $0x18] sm:$0xf]
  %v4539 = vld [vmem:[%s4531 + $0x1c] sm:$0xf]
  %v4540 = vld [vmem:[%s4531 + $0x20] sm:$0xf]
  %v4541 = vld [vmem:[%s4531 + $0x24] sm:$0xf]
  %v4542 = vld [vmem:[%s4531 + $0x28] sm:$0xf]
  %v4543 = vld [vmem:[%s4531 + $0x2c] sm:$0xf]
  %v4544 = vld [vmem:[%s4531 + $0x30] sm:$0xf]
  %v4545 = vld [vmem:[%s4531 + $0x34] sm:$0xf]
  %v4546 = vld [vmem:[%s4531 + $0x38] sm:$0xf]
  %v4547 = vld [vmem:[%s4531 + $0x3c] sm:$0xf]
  %v4548 = vpack.c.bf16 %v4530, %v4530
  %v4565 = vunpack.c.l.b16 %v4532
  %v4566 = vunpack.c.l.b16 %v4533
  %v4567 = vunpack.c.l.b16 %v4534
  %v4568 = vunpack.c.l.b16 %v4535
  %v4569 = vunpack.c.l.b16 %v4536
  %v4570 = vunpack.c.l.b16 %v4537
  %v4571 = vunpack.c.l.b16 %v4538
  %v4572 = vunpack.c.l.b16 %v4539
  %v4573 = vunpack.c.l.b16 %v4540
  %v4574 = vunpack.c.l.b16 %v4541
  %v4575 = vunpack.c.l.b16 %v4542
  %v4576 = vunpack.c.l.b16 %v4543
  %v4577 = vunpack.c.l.b16 %v4544
  %v4578 = vunpack.c.l.b16 %v4545
  %v4579 = vunpack.c.l.b16 %v4546
  %v4580 = vunpack.c.l.b16 %v4547
  %v4581 = vpack.c.b16 %v4566, %v4565
  %v4582 = vpack.c.b16 %v4568, %v4567
  %v4583 = vpack.c.b16 %v4570, %v4569
  %v4584 = vpack.c.b16 %v4572, %v4571
  %v4585 = vpack.c.b16 %v4574, %v4573
  %v4586 = vpack.c.b16 %v4576, %v4575
  %v4587 = vpack.c.b16 %v4578, %v4577
  %v4588 = vpack.c.b16 %v4580, %v4579
  %4597 = vmatpush.bf16.msra.mxu0 %v4588
  %4598 = vmatpush.bf16.msra.mxu0 %v4587
  %4599 = vmatpush.bf16.msra.mxu0 %v4586
  %4600 = vmatpush.bf16.msra.mxu0 %v4585
  %4601 = vmatpush.bf16.msra.mxu0 %v4584
  %4602 = vmatpush.bf16.msra.mxu0 %v4583
  %4603 = vmatpush.bf16.msra.mxu0 %v4582
  %4604 = vmatpush.bf16.msra.mxu0 %v4581
  %4605 = vmatmul.bf16.gmra.mxu0 %v4548
  %v4606 = vpop.f32.mrf.mxu0
  %v4607 = vadd.f32 0.0, %v4606
  %v4608 = vpop.f32.mrf.mxu0
  %4609 = vdwg.mxu0
  %v4610 = vrot.slane %v4076, 2
  %v4612 = vrot.slane %v4078, 1
  %v4614 = vsel %vm4082, %v4610, %v4612
  %s4615 = scalar_lea.vmem %s17, 640
  %v4616 = vld [vmem:[%s4615] sm:$0xf]
  %v4617 = vld [vmem:[%s4615 + $0x4] sm:$0xf]
  %v4618 = vld [vmem:[%s4615 + $0x8] sm:$0xf]
  %v4619 = vld [vmem:[%s4615 + $0xc] sm:$0xf]
  %v4620 = vld [vmem:[%s4615 + $0x10] sm:$0xf]
  %v4621 = vld [vmem:[%s4615 + $0x14] sm:$0xf]
  %v4622 = vld [vmem:[%s4615 + $0x18] sm:$0xf]
  %v4623 = vld [vmem:[%s4615 + $0x1c] sm:$0xf]
  %v4624 = vld [vmem:[%s4615 + $0x20] sm:$0xf]
  %v4625 = vld [vmem:[%s4615 + $0x24] sm:$0xf]
  %v4626 = vld [vmem:[%s4615 + $0x28] sm:$0xf]
  %v4627 = vld [vmem:[%s4615 + $0x2c] sm:$0xf]
  %v4628 = vld [vmem:[%s4615 + $0x30] sm:$0xf]
  %v4629 = vld [vmem:[%s4615 + $0x34] sm:$0xf]
  %v4630 = vld [vmem:[%s4615 + $0x38] sm:$0xf]
  %v4631 = vld [vmem:[%s4615 + $0x3c] sm:$0xf]
  %v4632 = vpack.c.bf16 %v4614, %v4614
  %v4633 = vrot.slane %v4076, 3
  %v4635 = vrot.slane %v4078, 2
  %v4637 = vsel %vm4082, %v4633, %v4635
  %s4638 = scalar_lea.vmem %s17, 704
  %v4639 = vld [vmem:[%s4638] sm:$0xf]
  %v4640 = vld [vmem:[%s4638 + $0x4] sm:$0xf]
  %v4641 = vld [vmem:[%s4638 + $0x8] sm:$0xf]
  %v4642 = vld [vmem:[%s4638 + $0xc] sm:$0xf]
  %v4643 = vld [vmem:[%s4638 + $0x10] sm:$0xf]
  %v4644 = vld [vmem:[%s4638 + $0x14] sm:$0xf]
  %v4645 = vld [vmem:[%s4638 + $0x18] sm:$0xf]
  %v4646 = vld [vmem:[%s4638 + $0x1c] sm:$0xf]
  %v4647 = vld [vmem:[%s4638 + $0x20] sm:$0xf]
  %v4648 = vld [vmem:[%s4638 + $0x24] sm:$0xf]
  %v4649 = vld [vmem:[%s4638 + $0x28] sm:$0xf]
  %v4650 = vld [vmem:[%s4638 + $0x2c] sm:$0xf]
  %v4651 = vld [vmem:[%s4638 + $0x30] sm:$0xf]
  %v4652 = vld [vmem:[%s4638 + $0x34] sm:$0xf]
  %v4653 = vld [vmem:[%s4638 + $0x38] sm:$0xf]
  %v4654 = vld [vmem:[%s4638 + $0x3c] sm:$0xf]
  %v4655 = vpack.c.bf16 %v4637, %v4637
  %v4672 = vunpack.c.l.b16 %v4639
  %v4673 = vunpack.c.l.b16 %v4640
  %v4674 = vunpack.c.l.b16 %v4641
  %v4675 = vunpack.c.l.b16 %v4642
  %v4676 = vunpack.c.l.b16 %v4643
  %v4677 = vunpack.c.l.b16 %v4644
  %v4678 = vunpack.c.l.b16 %v4645
  %v4679 = vunpack.c.l.b16 %v4646
  %v4680 = vunpack.c.l.b16 %v4647
  %v4681 = vunpack.c.l.b16 %v4648
  %v4682 = vunpack.c.l.b16 %v4649
  %v4683 = vunpack.c.l.b16 %v4650
  %v4684 = vunpack.c.l.b16 %v4651
  %v4685 = vunpack.c.l.b16 %v4652
  %v4686 = vunpack.c.l.b16 %v4653
  %v4687 = vunpack.c.l.b16 %v4654
  %v4688 = vpack.c.b16 %v4673, %v4672
  %v4689 = vpack.c.b16 %v4675, %v4674
  %v4690 = vpack.c.b16 %v4677, %v4676
  %v4691 = vpack.c.b16 %v4679, %v4678
  %v4692 = vpack.c.b16 %v4681, %v4680
  %v4693 = vpack.c.b16 %v4683, %v4682
  %v4694 = vpack.c.b16 %v4685, %v4684
  %v4695 = vpack.c.b16 %v4687, %v4686
  %4704 = vmatpush.bf16.msra.mxu0 %v4695
  %4705 = vmatpush.bf16.msra.mxu0 %v4694
  %4706 = vmatpush.bf16.msra.mxu0 %v4693
  %4707 = vmatpush.bf16.msra.mxu0 %v4692
  %4708 = vmatpush.bf16.msra.mxu0 %v4691
  %4709 = vmatpush.bf16.msra.mxu0 %v4690
  %4710 = vmatpush.bf16.msra.mxu0 %v4689
  %4711 = vmatpush.bf16.msra.mxu0 %v4688
  %4712 = vmatmul.bf16.gmra.mxu0 %v4655
  %v4713 = vpop.f32.mrf.mxu0
  %v4714 = vadd.f32 0.0, %v4713
  %v4715 = vpop.f32.mrf.mxu0
  %4716 = vdwg.mxu0
  %v4717 = vrot.slane %v4076, 4
  %v4719 = vrot.slane %v4078, 3
  %v4721 = vsel %vm4082, %v4717, %v4719
  %s4722 = scalar_lea.vmem %s17, 768
  %v4723 = vld [vmem:[%s4722] sm:$0xf]
  %v4724 = vld [vmem:[%s4722 + $0x4] sm:$0xf]
  %v4725 = vld [vmem:[%s4722 + $0x8] sm:$0xf]
  %v4726 = vld [vmem:[%s4722 + $0xc] sm:$0xf]
  %v4727 = vld [vmem:[%s4722 + $0x10] sm:$0xf]
  %v4728 = vld [vmem:[%s4722 + $0x14] sm:$0xf]
  %v4729 = vld [vmem:[%s4722 + $0x18] sm:$0xf]
  %v4730 = vld [vmem:[%s4722 + $0x1c] sm:$0xf]
  %v4731 = vld [vmem:[%s4722 + $0x20] sm:$0xf]
  %v4732 = vld [vmem:[%s4722 + $0x24] sm:$0xf]
  %v4733 = vld [vmem:[%s4722 + $0x28] sm:$0xf]
  %v4734 = vld [vmem:[%s4722 + $0x2c] sm:$0xf]
  %v4735 = vld [vmem:[%s4722 + $0x30] sm:$0xf]
  %v4736 = vld [vmem:[%s4722 + $0x34] sm:$0xf]
  %v4737 = vld [vmem:[%s4722 + $0x38] sm:$0xf]
  %v4738 = vld [vmem:[%s4722 + $0x3c] sm:$0xf]
  %v4739 = vpack.c.bf16 %v4721, %v4721
  %v4740 = vrot.slane %v4076, 5
  %v4742 = vrot.slane %v4078, 4
  %v4744 = vsel %vm4082, %v4740, %v4742
  %s4745 = scalar_lea.vmem %s17, 832
  %v4746 = vld [vmem:[%s4745] sm:$0xf]
  %v4747 = vld [vmem:[%s4745 + $0x4] sm:$0xf]
  %v4748 = vld [vmem:[%s4745 + $0x8] sm:$0xf]
  %v4749 = vld [vmem:[%s4745 + $0xc] sm:$0xf]
  %v4750 = vld [vmem:[%s4745 + $0x10] sm:$0xf]
  %v4751 = vld [vmem:[%s4745 + $0x14] sm:$0xf]
  %v4752 = vld [vmem:[%s4745 + $0x18] sm:$0xf]
  %v4753 = vld [vmem:[%s4745 + $0x1c] sm:$0xf]
  %v4754 = vld [vmem:[%s4745 + $0x20] sm:$0xf]
  %v4755 = vld [vmem:[%s4745 + $0x24] sm:$0xf]
  %v4756 = vld [vmem:[%s4745 + $0x28] sm:$0xf]
  %v4757 = vld [vmem:[%s4745 + $0x2c] sm:$0xf]
  %v4758 = vld [vmem:[%s4745 + $0x30] sm:$0xf]
  %v4759 = vld [vmem:[%s4745 + $0x34] sm:$0xf]
  %v4760 = vld [vmem:[%s4745 + $0x38] sm:$0xf]
  %v4761 = vld [vmem:[%s4745 + $0x3c] sm:$0xf]
  %v4762 = vpack.c.bf16 %v4744, %v4744
  %v4779 = vunpack.c.l.b16 %v4746
  %v4780 = vunpack.c.l.b16 %v4747
  %v4781 = vunpack.c.l.b16 %v4748
  %v4782 = vunpack.c.l.b16 %v4749
  %v4783 = vunpack.c.l.b16 %v4750
  %v4784 = vunpack.c.l.b16 %v4751
  %v4785 = vunpack.c.l.b16 %v4752
  %v4786 = vunpack.c.l.b16 %v4753
  %v4787 = vunpack.c.l.b16 %v4754
  %v4788 = vunpack.c.l.b16 %v4755
  %v4789 = vunpack.c.l.b16 %v4756
  %v4790 = vunpack.c.l.b16 %v4757
  %v4791 = vunpack.c.l.b16 %v4758
  %v4792 = vunpack.c.l.b16 %v4759
  %v4793 = vunpack.c.l.b16 %v4760
  %v4794 = vunpack.c.l.b16 %v4761
  %v4795 = vpack.c.b16 %v4780, %v4779
  %v4796 = vpack.c.b16 %v4782, %v4781
  %v4797 = vpack.c.b16 %v4784, %v4783
  %v4798 = vpack.c.b16 %v4786, %v4785
  %v4799 = vpack.c.b16 %v4788, %v4787
  %v4800 = vpack.c.b16 %v4790, %v4789
  %v4801 = vpack.c.b16 %v4792, %v4791
  %v4802 = vpack.c.b16 %v4794, %v4793
  %4811 = vmatpush.bf16.msra.mxu0 %v4802
  %4812 = vmatpush.bf16.msra.mxu0 %v4801
  %4813 = vmatpush.bf16.msra.mxu0 %v4800
  %4814 = vmatpush.bf16.msra.mxu0 %v4799
  %4815 = vmatpush.bf16.msra.mxu0 %v4798
  %4816 = vmatpush.bf16.msra.mxu0 %v4797
  %4817 = vmatpush.bf16.msra.mxu0 %v4796
  %4818 = vmatpush.bf16.msra.mxu0 %v4795
  %4819 = vmatmul.bf16.gmra.mxu0 %v4762
  %v4820 = vpop.f32.mrf.mxu0
  %v4821 = vadd.f32 0.0, %v4820
  %v4822 = vpop.f32.mrf.mxu0
  %4823 = vdwg.mxu0
  %v4824 = vrot.slane %v4076, 6
  %v4826 = vrot.slane %v4078, 5
  %v4828 = vsel %vm4082, %v4824, %v4826
  %s4829 = scalar_lea.vmem %s17, 896
  %v4830 = vld [vmem:[%s4829] sm:$0xf]
  %v4831 = vld [vmem:[%s4829 + $0x4] sm:$0xf]
  %v4832 = vld [vmem:[%s4829 + $0x8] sm:$0xf]
  %v4833 = vld [vmem:[%s4829 + $0xc] sm:$0xf]
  %v4834 = vld [vmem:[%s4829 + $0x10] sm:$0xf]
  %v4835 = vld [vmem:[%s4829 + $0x14] sm:$0xf]
  %v4836 = vld [vmem:[%s4829 + $0x18] sm:$0xf]
  %v4837 = vld [vmem:[%s4829 + $0x1c] sm:$0xf]
  %v4838 = vld [vmem:[%s4829 + $0x20] sm:$0xf]
  %v4839 = vld [vmem:[%s4829 + $0x24] sm:$0xf]
  %v4840 = vld [vmem:[%s4829 + $0x28] sm:$0xf]
  %v4841 = vld [vmem:[%s4829 + $0x2c] sm:$0xf]
  %v4842 = vld [vmem:[%s4829 + $0x30] sm:$0xf]
  %v4843 = vld [vmem:[%s4829 + $0x34] sm:$0xf]
  %v4844 = vld [vmem:[%s4829 + $0x38] sm:$0xf]
  %v4845 = vld [vmem:[%s4829 + $0x3c] sm:$0xf]
  %v4846 = vpack.c.bf16 %v4828, %v4828
  %v4847 = vrot.slane %v4076, 7
  %v4849 = vrot.slane %v4078, 6
  %v4851 = vsel %vm4082, %v4847, %v4849
  %s4852 = scalar_lea.vmem %s17, 960
  %v4853 = vld [vmem:[%s4852] sm:$0xf]
  %v4854 = vld [vmem:[%s4852 + $0x4] sm:$0xf]
  %v4855 = vld [vmem:[%s4852 + $0x8] sm:$0xf]
  %v4856 = vld [vmem:[%s4852 + $0xc] sm:$0xf]
  %v4857 = vld [vmem:[%s4852 + $0x10] sm:$0xf]
  %v4858 = vld [vmem:[%s4852 + $0x14] sm:$0xf]
  %v4859 = vld [vmem:[%s4852 + $0x18] sm:$0xf]
  %v4860 = vld [vmem:[%s4852 + $0x1c] sm:$0xf]
  %v4861 = vld [vmem:[%s4852 + $0x20] sm:$0xf]
  %v4862 = vld [vmem:[%s4852 + $0x24] sm:$0xf]
  %v4863 = vld [vmem:[%s4852 + $0x28] sm:$0xf]
  %v4864 = vld [vmem:[%s4852 + $0x2c] sm:$0xf]
  %v4865 = vld [vmem:[%s4852 + $0x30] sm:$0xf]
  %v4866 = vld [vmem:[%s4852 + $0x34] sm:$0xf]
  %v4867 = vld [vmem:[%s4852 + $0x38] sm:$0xf]
  %v4868 = vld [vmem:[%s4852 + $0x3c] sm:$0xf]
  %v4869 = vpack.c.bf16 %v4851, %v4851
  %v4886 = vunpack.c.l.b16 %v4853
  %v4887 = vunpack.c.l.b16 %v4854
  %v4888 = vunpack.c.l.b16 %v4855
  %v4889 = vunpack.c.l.b16 %v4856
  %v4890 = vunpack.c.l.b16 %v4857
  %v4891 = vunpack.c.l.b16 %v4858
  %v4892 = vunpack.c.l.b16 %v4859
  %v4893 = vunpack.c.l.b16 %v4860
  %v4894 = vunpack.c.l.b16 %v4861
  %v4895 = vunpack.c.l.b16 %v4862
  %v4896 = vunpack.c.l.b16 %v4863
  %v4897 = vunpack.c.l.b16 %v4864
  %v4898 = vunpack.c.l.b16 %v4865
  %v4899 = vunpack.c.l.b16 %v4866
  %v4900 = vunpack.c.l.b16 %v4867
  %v4901 = vunpack.c.l.b16 %v4868
  %v4902 = vpack.c.b16 %v4887, %v4886
  %v4903 = vpack.c.b16 %v4889, %v4888
  %v4904 = vpack.c.b16 %v4891, %v4890
  %v4905 = vpack.c.b16 %v4893, %v4892
  %v4906 = vpack.c.b16 %v4895, %v4894
  %v4907 = vpack.c.b16 %v4897, %v4896
  %v4908 = vpack.c.b16 %v4899, %v4898
  %v4909 = vpack.c.b16 %v4901, %v4900
  %4918 = vmatpush.bf16.msra.mxu0 %v4909
  %4919 = vmatpush.bf16.msra.mxu0 %v4908
  %4920 = vmatpush.bf16.msra.mxu0 %v4907
  %4921 = vmatpush.bf16.msra.mxu0 %v4906
  %4922 = vmatpush.bf16.msra.mxu0 %v4905
  %4923 = vmatpush.bf16.msra.mxu0 %v4904
  %4924 = vmatpush.bf16.msra.mxu0 %v4903
  %4925 = vmatpush.bf16.msra.mxu0 %v4902
  %4926 = vmatmul.bf16.gmra.mxu0 %v4869
  %v4927 = vpop.f32.mrf.mxu0
  %v4928 = vadd.f32 0.0, %v4927
  %v4929 = vpop.f32.mrf.mxu0
  %4930 = vdwg.mxu0
  %v4947 = vunpack.c.l.b16 %v4084
  %v4948 = vunpack.c.l.b16 %v4085
  %v4949 = vunpack.c.l.b16 %v4086
  %v4950 = vunpack.c.l.b16 %v4087
  %v4951 = vunpack.c.l.b16 %v4088
  %v4952 = vunpack.c.l.b16 %v4089
  %v4953 = vunpack.c.l.b16 %v4090
  %v4954 = vunpack.c.l.b16 %v4091
  %v4955 = vunpack.c.l.b16 %v4092
  %v4956 = vunpack.c.l.b16 %v4093
  %v4957 = vunpack.c.l.b16 %v4094
  %v4958 = vunpack.c.l.b16 %v4095
  %v4959 = vunpack.c.l.b16 %v4096
  %v4960 = vunpack.c.l.b16 %v4097
  %v4961 = vunpack.c.l.b16 %v4098
  %v4962 = vunpack.c.l.b16 %v4099
  %v4963 = vpack.c.b16 %v4948, %v4947
  %v4964 = vpack.c.b16 %v4950, %v4949
  %v4965 = vpack.c.b16 %v4952, %v4951
  %v4966 = vpack.c.b16 %v4954, %v4953
  %v4967 = vpack.c.b16 %v4956, %v4955
  %v4968 = vpack.c.b16 %v4958, %v4957
  %v4969 = vpack.c.b16 %v4960, %v4959
  %v4970 = vpack.c.b16 %v4962, %v4961
  %4979 = vmatpush.bf16.msra.mxu0 %v4970
  %4980 = vmatpush.bf16.msra.mxu0 %v4969
  %4981 = vmatpush.bf16.msra.mxu0 %v4968
  %4982 = vmatpush.bf16.msra.mxu0 %v4967
  %4983 = vmatpush.bf16.msra.mxu0 %v4966
  %4984 = vmatpush.bf16.msra.mxu0 %v4965
  %4985 = vmatpush.bf16.msra.mxu0 %v4964
  %4986 = vmatpush.bf16.msra.mxu0 %v4963
  %4987 = vmatmul.bf16.gmra.mxu0 %v4100
  %v4988 = vpop.f32.mrf.mxu0
  %v4989 = vadd.f32 %v4181, %v4988
  %v4990 = vpop.f32.mrf.mxu0
  %4991 = vdwg.mxu0
  %v5008 = vunpack.c.l.b16 %v4190
  %v5009 = vunpack.c.l.b16 %v4191
  %v5010 = vunpack.c.l.b16 %v4192
  %v5011 = vunpack.c.l.b16 %v4193
  %v5012 = vunpack.c.l.b16 %v4194
  %v5013 = vunpack.c.l.b16 %v4195
  %v5014 = vunpack.c.l.b16 %v4196
  %v5015 = vunpack.c.l.b16 %v4197
  %v5016 = vunpack.c.l.b16 %v4198
  %v5017 = vunpack.c.l.b16 %v4199
  %v5018 = vunpack.c.l.b16 %v4200
  %v5019 = vunpack.c.l.b16 %v4201
  %v5020 = vunpack.c.l.b16 %v4202
  %v5021 = vunpack.c.l.b16 %v4203
  %v5022 = vunpack.c.l.b16 %v4204
  %v5023 = vunpack.c.l.b16 %v4205
  %v5024 = vpack.c.b16 %v5009, %v5008
  %v5025 = vpack.c.b16 %v5011, %v5010
  %v5026 = vpack.c.b16 %v5013, %v5012
  %v5027 = vpack.c.b16 %v5015, %v5014
  %v5028 = vpack.c.b16 %v5017, %v5016
  %v5029 = vpack.c.b16 %v5019, %v5018
  %v5030 = vpack.c.b16 %v5021, %v5020
  %v5031 = vpack.c.b16 %v5023, %v5022
  %5040 = vmatpush.bf16.msra.mxu0 %v5031
  %5041 = vmatpush.bf16.msra.mxu0 %v5030
  %5042 = vmatpush.bf16.msra.mxu0 %v5029
  %5043 = vmatpush.bf16.msra.mxu0 %v5028
  %5044 = vmatpush.bf16.msra.mxu0 %v5027
  %5045 = vmatpush.bf16.msra.mxu0 %v5026
  %5046 = vmatpush.bf16.msra.mxu0 %v5025
  %5047 = vmatpush.bf16.msra.mxu0 %v5024
  %5048 = vmatmul.bf16.gmra.mxu0 %v4206
  %v5049 = vpop.f32.mrf.mxu0
  %v5050 = vadd.f32 %v4288, %v5049
  %v5051 = vpop.f32.mrf.mxu0
  %5052 = vdwg.mxu0
  %v5069 = vunpack.c.l.b16 %v4297
  %v5070 = vunpack.c.l.b16 %v4298
  %v5071 = vunpack.c.l.b16 %v4299
  %v5072 = vunpack.c.l.b16 %v4300
  %v5073 = vunpack.c.l.b16 %v4301
  %v5074 = vunpack.c.l.b16 %v4302
  %v5075 = vunpack.c.l.b16 %v4303
  %v5076 = vunpack.c.l.b16 %v4304
  %v5077 = vunpack.c.l.b16 %v4305
  %v5078 = vunpack.c.l.b16 %v4306
  %v5079 = vunpack.c.l.b16 %v4307
  %v5080 = vunpack.c.l.b16 %v4308
  %v5081 = vunpack.c.l.b16 %v4309
  %v5082 = vunpack.c.l.b16 %v4310
  %v5083 = vunpack.c.l.b16 %v4311
  %v5084 = vunpack.c.l.b16 %v4312
  %v5085 = vpack.c.b16 %v5070, %v5069
  %v5086 = vpack.c.b16 %v5072, %v5071
  %v5087 = vpack.c.b16 %v5074, %v5073
  %v5088 = vpack.c.b16 %v5076, %v5075
  %v5089 = vpack.c.b16 %v5078, %v5077
  %v5090 = vpack.c.b16 %v5080, %v5079
  %v5091 = vpack.c.b16 %v5082, %v5081
  %v5092 = vpack.c.b16 %v5084, %v5083
  %5101 = vmatpush.bf16.msra.mxu0 %v5092
  %5102 = vmatpush.bf16.msra.mxu0 %v5091
  %5103 = vmatpush.bf16.msra.mxu0 %v5090
  %5104 = vmatpush.bf16.msra.mxu0 %v5089
  %5105 = vmatpush.bf16.msra.mxu0 %v5088
  %5106 = vmatpush.bf16.msra.mxu0 %v5087
  %5107 = vmatpush.bf16.msra.mxu0 %v5086
  %5108 = vmatpush.bf16.msra.mxu0 %v5085
  %5109 = vmatmul.bf16.gmra.mxu0 %v4313
  %v5110 = vpop.f32.mrf.mxu0
  %v5111 = vadd.f32 %v4395, %v5110
  %v5112 = vpop.f32.mrf.mxu0
  %5113 = vdwg.mxu0
  %v5130 = vunpack.c.l.b16 %v4404
  %v5131 = vunpack.c.l.b16 %v4405
  %v5132 = vunpack.c.l.b16 %v4406
  %v5133 = vunpack.c.l.b16 %v4407
  %v5134 = vunpack.c.l.b16 %v4408
  %v5135 = vunpack.c.l.b16 %v4409
  %v5136 = vunpack.c.l.b16 %v4410
  %v5137 = vunpack.c.l.b16 %v4411
  %v5138 = vunpack.c.l.b16 %v4412
  %v5139 = vunpack.c.l.b16 %v4413
  %v5140 = vunpack.c.l.b16 %v4414
  %v5141 = vunpack.c.l.b16 %v4415
  %v5142 = vunpack.c.l.b16 %v4416
  %v5143 = vunpack.c.l.b16 %v4417
  %v5144 = vunpack.c.l.b16 %v4418
  %v5145 = vunpack.c.l.b16 %v4419
  %v5146 = vpack.c.b16 %v5131, %v5130
  %v5147 = vpack.c.b16 %v5133, %v5132
  %v5148 = vpack.c.b16 %v5135, %v5134
  %v5149 = vpack.c.b16 %v5137, %v5136
  %v5150 = vpack.c.b16 %v5139, %v5138
  %v5151 = vpack.c.b16 %v5141, %v5140
  %v5152 = vpack.c.b16 %v5143, %v5142
  %v5153 = vpack.c.b16 %v5145, %v5144
  %5162 = vmatpush.bf16.msra.mxu0 %v5153
  %5163 = vmatpush.bf16.msra.mxu0 %v5152
  %5164 = vmatpush.bf16.msra.mxu0 %v5151
  %5165 = vmatpush.bf16.msra.mxu0 %v5150
  %5166 = vmatpush.bf16.msra.mxu0 %v5149
  %5167 = vmatpush.bf16.msra.mxu0 %v5148
  %5168 = vmatpush.bf16.msra.mxu0 %v5147
  %5169 = vmatpush.bf16.msra.mxu0 %v5146
  %5170 = vmatmul.bf16.gmra.mxu0 %v4420
  %v5171 = vpop.f32.mrf.mxu0
  %v5172 = vadd.f32 %v4502, %v5171
  %v5173 = vpop.f32.mrf.mxu0
  %5174 = vdwg.mxu0
  %v5191 = vunpack.c.l.b16 %v4510
  %v5192 = vunpack.c.l.b16 %v4511
  %v5193 = vunpack.c.l.b16 %v4512
  %v5194 = vunpack.c.l.b16 %v4513
  %v5195 = vunpack.c.l.b16 %v4514
  %v5196 = vunpack.c.l.b16 %v4515
  %v5197 = vunpack.c.l.b16 %v4516
  %v5198 = vunpack.c.l.b16 %v4517
  %v5199 = vunpack.c.l.b16 %v4518
  %v5200 = vunpack.c.l.b16 %v4519
  %v5201 = vunpack.c.l.b16 %v4520
  %v5202 = vunpack.c.l.b16 %v4521
  %v5203 = vunpack.c.l.b16 %v4522
  %v5204 = vunpack.c.l.b16 %v4523
  %v5205 = vunpack.c.l.b16 %v4524
  %v5206 = vunpack.c.l.b16 %v4525
  %v5207 = vpack.c.b16 %v5192, %v5191
  %v5208 = vpack.c.b16 %v5194, %v5193
  %v5209 = vpack.c.b16 %v5196, %v5195
  %v5210 = vpack.c.b16 %v5198, %v5197
  %v5211 = vpack.c.b16 %v5200, %v5199
  %v5212 = vpack.c.b16 %v5202, %v5201
  %v5213 = vpack.c.b16 %v5204, %v5203
  %v5214 = vpack.c.b16 %v5206, %v5205
  %5223 = vmatpush.bf16.msra.mxu0 %v5214
  %5224 = vmatpush.bf16.msra.mxu0 %v5213
  %5225 = vmatpush.bf16.msra.mxu0 %v5212
  %5226 = vmatpush.bf16.msra.mxu0 %v5211
  %5227 = vmatpush.bf16.msra.mxu0 %v5210
  %5228 = vmatpush.bf16.msra.mxu0 %v5209
  %5229 = vmatpush.bf16.msra.mxu0 %v5208
  %5230 = vmatpush.bf16.msra.mxu0 %v5207
  %5231 = vmatmul.bf16.gmra.mxu0 %v4526
  %v5232 = vpop.f32.mrf.mxu0
  %v5233 = vadd.f32 %v4607, %v5232
  %v5234 = vpop.f32.mrf.mxu0
  %5235 = vdwg.mxu0
  %v5252 = vunpack.c.l.b16 %v4616
  %v5253 = vunpack.c.l.b16 %v4617
  %v5254 = vunpack.c.l.b16 %v4618
  %v5255 = vunpack.c.l.b16 %v4619
  %v5256 = vunpack.c.l.b16 %v4620
  %v5257 = vunpack.c.l.b16 %v4621
  %v5258 = vunpack.c.l.b16 %v4622
  %v5259 = vunpack.c.l.b16 %v4623
  %v5260 = vunpack.c.l.b16 %v4624
  %v5261 = vunpack.c.l.b16 %v4625
  %v5262 = vunpack.c.l.b16 %v4626
  %v5263 = vunpack.c.l.b16 %v4627
  %v5264 = vunpack.c.l.b16 %v4628
  %v5265 = vunpack.c.l.b16 %v4629
  %v5266 = vunpack.c.l.b16 %v4630
  %v5267 = vunpack.c.l.b16 %v4631
  %v5268 = vpack.c.b16 %v5253, %v5252
  %v5269 = vpack.c.b16 %v5255, %v5254
  %v5270 = vpack.c.b16 %v5257, %v5256
  %v5271 = vpack.c.b16 %v5259, %v5258
  %v5272 = vpack.c.b16 %v5261, %v5260
  %v5273 = vpack.c.b16 %v5263, %v5262
  %v5274 = vpack.c.b16 %v5265, %v5264
  %v5275 = vpack.c.b16 %v5267, %v5266
  %5284 = vmatpush.bf16.msra.mxu0 %v5275
  %5285 = vmatpush.bf16.msra.mxu0 %v5274
  %5286 = vmatpush.bf16.msra.mxu0 %v5273
  %5287 = vmatpush.bf16.msra.mxu0 %v5272
  %5288 = vmatpush.bf16.msra.mxu0 %v5271
  %5289 = vmatpush.bf16.msra.mxu0 %v5270
  %5290 = vmatpush.bf16.msra.mxu0 %v5269
  %5291 = vmatpush.bf16.msra.mxu0 %v5268
  %5292 = vmatmul.bf16.gmra.mxu0 %v4632
  %v5293 = vpop.f32.mrf.mxu0
  %v5294 = vadd.f32 %v4714, %v5293
  %v5295 = vpop.f32.mrf.mxu0
  %5296 = vdwg.mxu0
  %v5313 = vunpack.c.l.b16 %v4723
  %v5314 = vunpack.c.l.b16 %v4724
  %v5315 = vunpack.c.l.b16 %v4725
  %v5316 = vunpack.c.l.b16 %v4726
  %v5317 = vunpack.c.l.b16 %v4727
  %v5318 = vunpack.c.l.b16 %v4728
  %v5319 = vunpack.c.l.b16 %v4729
  %v5320 = vunpack.c.l.b16 %v4730
  %v5321 = vunpack.c.l.b16 %v4731
  %v5322 = vunpack.c.l.b16 %v4732
  %v5323 = vunpack.c.l.b16 %v4733
  %v5324 = vunpack.c.l.b16 %v4734
  %v5325 = vunpack.c.l.b16 %v4735
  %v5326 = vunpack.c.l.b16 %v4736
  %v5327 = vunpack.c.l.b16 %v4737
  %v5328 = vunpack.c.l.b16 %v4738
  %v5329 = vpack.c.b16 %v5314, %v5313
  %v5330 = vpack.c.b16 %v5316, %v5315
  %v5331 = vpack.c.b16 %v5318, %v5317
  %v5332 = vpack.c.b16 %v5320, %v5319
  %v5333 = vpack.c.b16 %v5322, %v5321
  %v5334 = vpack.c.b16 %v5324, %v5323
  %v5335 = vpack.c.b16 %v5326, %v5325
  %v5336 = vpack.c.b16 %v5328, %v5327
  %5345 = vmatpush.bf16.msra.mxu0 %v5336
  %5346 = vmatpush.bf16.msra.mxu0 %v5335
  %5347 = vmatpush.bf16.msra.mxu0 %v5334
  %5348 = vmatpush.bf16.msra.mxu0 %v5333
  %5349 = vmatpush.bf16.msra.mxu0 %v5332
  %5350 = vmatpush.bf16.msra.mxu0 %v5331
  %5351 = vmatpush.bf16.msra.mxu0 %v5330
  %5352 = vmatpush.bf16.msra.mxu0 %v5329
  %5353 = vmatmul.bf16.gmra.mxu0 %v4739
  %v5354 = vpop.f32.mrf.mxu0
  %v5355 = vadd.f32 %v4821, %v5354
  %v5356 = vpop.f32.mrf.mxu0
  %5357 = vdwg.mxu0
  %v5374 = vunpack.c.l.b16 %v4830
  %v5375 = vunpack.c.l.b16 %v4831
  %v5376 = vunpack.c.l.b16 %v4832
  %v5377 = vunpack.c.l.b16 %v4833
  %v5378 = vunpack.c.l.b16 %v4834
  %v5379 = vunpack.c.l.b16 %v4835
  %v5380 = vunpack.c.l.b16 %v4836
  %v5381 = vunpack.c.l.b16 %v4837
  %v5382 = vunpack.c.l.b16 %v4838
  %v5383 = vunpack.c.l.b16 %v4839
  %v5384 = vunpack.c.l.b16 %v4840
  %v5385 = vunpack.c.l.b16 %v4841
  %v5386 = vunpack.c.l.b16 %v4842
  %v5387 = vunpack.c.l.b16 %v4843
  %v5388 = vunpack.c.l.b16 %v4844
  %v5389 = vunpack.c.l.b16 %v4845
  %v5390 = vpack.c.b16 %v5375, %v5374
  %v5391 = vpack.c.b16 %v5377, %v5376
  %v5392 = vpack.c.b16 %v5379, %v5378
  %v5393 = vpack.c.b16 %v5381, %v5380
  %v5394 = vpack.c.b16 %v5383, %v5382
  %v5395 = vpack.c.b16 %v5385, %v5384
  %v5396 = vpack.c.b16 %v5387, %v5386
  %v5397 = vpack.c.b16 %v5389, %v5388
  %5406 = vmatpush.bf16.msra.mxu0 %v5397
  %5407 = vmatpush.bf16.msra.mxu0 %v5396
  %5408 = vmatpush.bf16.msra.mxu0 %v5395
  %5409 = vmatpush.bf16.msra.mxu0 %v5394
  %5410 = vmatpush.bf16.msra.mxu0 %v5393
  %5411 = vmatpush.bf16.msra.mxu0 %v5392
  %5412 = vmatpush.bf16.msra.mxu0 %v5391
  %5413 = vmatpush.bf16.msra.mxu0 %v5390
  %5414 = vmatmul.bf16.gmra.mxu0 %v4846
  %v5415 = vpop.f32.mrf.mxu0
  %v5416 = vadd.f32 %v4928, %v5415
  %v5417 = vpop.f32.mrf.mxu0
  %5418 = vdwg.mxu0
  %v5419 = vadd.f32 %v4989, %v5050
  %v5420 = vadd.f32 %v5111, %v5172
  %v5421 = vadd.f32 %v5233, %v5294
  %v5422 = vadd.f32 %v5355, %v5416
  %v5423 = vadd.f32 %v5419, %v5420
  %v5424 = vadd.f32 %v5421, %v5422
  %v5425 = vadd.f32 %v5423, %v5424
  %v5426 = vperm.slane %v60, 3
  %v5427 = vadd.f32 %v5425, %v5426
  %vm5428 = vcmask 516096
  %5429 = vst.msk [vmem:[%s18] sm:$0x1] %vm5428, %v5427
  %s5430 = scalar_lea.vmem %s18, 1
  %vm5431 = vcmask 517121
  %5432 = vst.msk [vmem:[%s5430 - $0x1] sm:$0x2] %vm5431, %v5427
  // Predicated region
  $region74: #{data_trajectory_forward.1} parent=0 // pred_check
    _
  $region75: #{data_trajectory_forward.1} parent=0 // pred_check_branch
    %5434 = sbr.rel (0) target = $region77
  $region76: #{data_trajectory_forward.1} parent=0 // pred_region
    _
  $region77: #{data_trajectory_forward.1} parent=0 // pred_fallthru
    _
  // Predicated region
  $region78: #{data_trajectory_forward.1} parent=0 // pred_check
    _
  $region79: #{data_trajectory_forward.1} parent=0 // pred_check_branch
    %5436 = sbr.rel (0) target = $region81
  $region80: #{data_trajectory_forward.1} parent=0 // pred_region
    _
  $region81: #{data_trajectory_forward.1} parent=0 // pred_fallthru
    _

</llo_original>
